<compile_context>
chip_gen: v5e
topology: v5e:2x2
jax: 0.10.0
libtpu: 0.0.40
codegen_flags: <defaults>
</compile_context>

<pallas_src>
import functools

import jax
import jax.numpy as jnp
from jax import lax
from jax.experimental import pallas as pl
from jax.experimental.pallas import tpu as pltpu

EPS = 1e-5


# ----------------------------------------------------------------------------
# Kernel 1: 3x3 conv (stride 1, pad 1, no bias), channels-last, gridded over
# batch.  Single merged (H*W, 9*Cin) @ (9*Cin, Cout) MXU matmul per image.
# Emits pre-BN conv output (bf16) plus per-image (sum, sum_sq) f32 partials so
# BatchNorm batch statistics need only one pass.
# ----------------------------------------------------------------------------
def _conv_kernel(xp_ref, w_ref, y_ref, stats_ref, *, H, W, Cin, Cout):
    # xp_ref:    (1, H+2, W+2, Cin) bf16   padded activation (one batch image)
    # w_ref:     (9*Cin, Cout)      bf16   conv weights, (dh, dw, cin) row order
    # y_ref:     (1, H*W, Cout)     bf16   pre-BN conv output
    # stats_ref: (1, 2, Cout)       f32    per-image [sum, sum_sq]
    slabs = []
    for dh in range(3):                     # static 3x3 tap loop (unrolled)
        for dw in range(3):
            slabs.append(
                xp_ref[0, dh:dh + H, dw:dw + W, :].reshape(H * W, Cin))
    patches = jnp.concatenate(slabs, axis=-1)            # (H*W, 9*Cin) bf16
    acc = jnp.dot(patches, w_ref[...],
                  preferred_element_type=jnp.float32)    # (H*W, Cout) f32
    y_ref[0] = acc.astype(y_ref.dtype)
    stats_ref[0] = jnp.concatenate(
        [jnp.sum(acc, axis=0, keepdims=True),
         jnp.sum(acc * acc, axis=0, keepdims=True)], axis=0)


def conv3x3(xpad_bhwc, w_flat):
    """3x3 conv on padded NHWC input -> (y (B, H*W, Cout) bf16, stats (B, 2, Cout) f32)."""
    B, Hp, Wp, Cin = xpad_bhwc.shape
    H, W = Hp - 2, Wp - 2
    Cout = w_flat.shape[-1]
    assert w_flat.shape[0] == 9 * Cin
    kernel = functools.partial(_conv_kernel, H=H, W=W, Cin=Cin, Cout=Cout)
    return pl.pallas_call(
        kernel,
        out_shape=(jax.ShapeDtypeStruct((B, H * W, Cout), jnp.bfloat16),
                   jax.ShapeDtypeStruct((B, 2, Cout), jnp.float32)),
        grid=(B,),
        in_specs=[
            pl.BlockSpec((1, Hp, Wp, Cin), lambda b: (b, 0, 0, 0)),
            pl.BlockSpec((9 * Cin, Cout), lambda b: (0, 0)),
        ],
        out_specs=(
            pl.BlockSpec((1, H * W, Cout), lambda b: (b, 0, 0)),
            pl.BlockSpec((1, 2, Cout), lambda b: (b, 0, 0)),
        ),
        compiler_params=pltpu.CompilerParams(dimension_semantics=("parallel",)),
    )(xpad_bhwc, w_flat)


def bn_scale_shift(stats, gamma, beta, count):
    """Fold training-mode BatchNorm (batch stats, biased var) into y*scale+shift."""
    s = jnp.sum(stats[:, 0, :], axis=0)
    sq = jnp.sum(stats[:, 1, :], axis=0)
    mean = s / count
    var = jnp.maximum(sq / count - mean * mean, 0.0)   # one-pass E[y^2]-E[y]^2
    scale = gamma * lax.rsqrt(var + EPS)
    shift = beta - mean * scale
    return jnp.stack([scale, shift], axis=0)           # (2, C) f32


# ----------------------------------------------------------------------------
# Kernel 2: DANet position-attention block, grid = (batch,).  One query tile
# per image (tq = N); conva BatchNorm affine applied once to the input on load;
# wq @ wk^T folded host-side; gamma folded into wv.
# ----------------------------------------------------------------------------
def _da_kernel(f_ref, ss_ref, wqk_ref, wv_ref, out_ref, attn_ref):
    # f_ref:    (1, N, C) bf16  pre-BN conva output (full image for this batch)
    # ss_ref:   (2, C)    f32   conva BN [scale; shift]
    # wqk_ref:  (C, C)    bf16  wq @ wk^T   (rank cq)
    # wv_ref:   (C, C)    bf16  gamma * wv
    # out_ref:  (1, N, C) bf16  attention output + residual
    # attn_ref: (1, N, N) f32   attention mask
    scale = ss_ref[0:1, :]
    shift = ss_ref[1:2, :]
    f_bn = f_ref[0].astype(jnp.float32) * scale + shift          # (N, C) f32
    f_b16 = f_bn.astype(jnp.bfloat16)

    fq = jnp.dot(f_b16, wqk_ref[...],
                 preferred_element_type=jnp.float32)             # (N, C)
    energy = lax.dot_general(fq.astype(jnp.bfloat16), f_b16,
                             (((1,), (1,)), ((), ())),
                             preferred_element_type=jnp.float32)  # (N, N)
    e = jnp.exp(energy - jnp.max(energy, axis=-1, keepdims=True))
    attn = e * pl.reciprocal(jnp.sum(e, axis=-1, keepdims=True), approx=True)

    v = jnp.dot(f_b16, wv_ref[...],
                preferred_element_type=jnp.float32)              # (N, C)
    ctx = jnp.dot(attn.astype(jnp.bfloat16), v.astype(jnp.bfloat16),
                  preferred_element_type=jnp.float32)            # (N, C)
    out_ref[0] = (ctx + f_bn).astype(out_ref.dtype)   # gamma folded into wv
    attn_ref[0] = attn


def da_block(f_raw, ss, wqk, wv_g):
    B, N, C = f_raw.shape
    return pl.pallas_call(
        _da_kernel,
        out_shape=(jax.ShapeDtypeStruct((B, N, C), jnp.bfloat16),
                   jax.ShapeDtypeStruct((B, N, N), jnp.float32)),
        grid=(B,),
        in_specs=[
            pl.BlockSpec((1, N, C), lambda b: (b, 0, 0)),
            pl.BlockSpec((2, C), lambda b: (0, 0)),
            pl.BlockSpec((C, C), lambda b: (0, 0)),
            pl.BlockSpec((C, C), lambda b: (0, 0)),
        ],
        out_specs=(
            pl.BlockSpec((1, N, C), lambda b: (b, 0, 0)),
            pl.BlockSpec((1, N, N), lambda b: (b, 0, 0)),
        ),
        compiler_params=pltpu.CompilerParams(dimension_semantics=("parallel",)),
    )(f_raw, ss, wqk, wv_g)


# ----------------------------------------------------------------------------
# DAModule forward: conva(+BN) -> DA block -> convb(+BN)
# ----------------------------------------------------------------------------
def da_module_forward(params, x_nchw):
    B, Cin, H, W = x_nchw.shape
    Cout = params["conva_w"].shape[0]
    Cpad = ((Cout + 127) // 128) * 128          # lane-dense channel dim
    n_pos = B * H * W

    # --- conva ---------------------------------------------------------------
    # Module boundary: NCHW -> channels-last once.
    x = jnp.transpose(x_nchw, (0, 2, 3, 1))
    xp = jnp.pad(x, ((0, 0), (1, 1), (1, 1), (0, 0))).astype(jnp.bfloat16)
    wa = jnp.transpose(params["conva_w"], (2, 3, 1, 0))           # (3,3,Cin,Cout)
    wa = jnp.pad(wa, ((0, 0), (0, 0), (0, 0), (0, Cpad - Cout)))
    wa = wa.reshape(9 * Cin, Cpad).astype(jnp.bfloat16)

    ya, stats_a = conv3x3(xp, wa)                                 # (B, H*W, Cpad) bf16
    g_a = jnp.pad(params["conva_bn_g"], (0, Cpad - Cout))
    b_a = jnp.pad(params["conva_bn_b"], (0, Cpad - Cout))
    ss_a = bn_scale_shift(stats_a, g_a, b_a, n_pos)               # (2, Cpad)

    # --- DA block weights -----------------------------------------------------
    # Fold wq @ wk^T (rank cq << C) and gamma*wv; zero-pad channels to Cpad.
    wq_p = jnp.pad(params["da_wq"], ((0, Cpad - Cout), (0, 0)))
    wk_p = jnp.pad(params["da_wk"], ((0, Cpad - Cout), (0, 0)))
    wqk = (wq_p @ wk_p.T).astype(jnp.bfloat16)                    # (Cpad, Cpad)
    wv_p = jnp.pad(params["da_wv"], ((0, Cpad - Cout), (0, Cpad - Cout)))
    wv_g = (params["da_gamma"] * wv_p).astype(jnp.bfloat16)

    h, att_mask = da_block(ya, ss_a, wqk, wv_g)                   # (B, H*W, Cpad) bf16

    # --- convb ---------------------------------------------------------------
    hp = jnp.pad(h.reshape(B, H, W, Cpad), ((0, 0), (1, 1), (1, 1), (0, 0)))
    wb = jnp.transpose(params["convb_w"], (2, 3, 1, 0))           # (3,3,Cout,Cout)
    wb = jnp.pad(wb, ((0, 0), (0, 0), (0, Cpad - Cout), (0, Cpad - Cout)))
    wb = wb.reshape(9 * Cpad, Cpad).astype(jnp.bfloat16)

    yb, stats_b = conv3x3(hp, wb)
    g_b = jnp.pad(params["convb_bn_g"], (0, Cpad - Cout))
    b_b = jnp.pad(params["convb_bn_b"], (0, Cpad - Cout))
    ss_b = bn_scale_shift(stats_b, g_b, b_b, n_pos)

    # convb BN affine + channel un-pad fused (by XLA) with the boundary transpose.
    out = yb.astype(jnp.float32) * ss_b[0] + ss_b[1]
    out = out[..., :Cout].reshape(B, H, W, Cout)
    out_nchw = jnp.transpose(out, (0, 3, 1, 2))
    return out_nchw, att_mask


def init_params(key, in_channels, out_channels):
    ks = jax.random.split(key, 5)
    cq = max(out_channels // 8, 1)

    def _w(k, shape, fan_in):
        return jax.random.normal(k, shape, jnp.float32) * (2.0 / fan_in) ** 0.5

    return {
        "conva_w": _w(ks[0], (out_channels, in_channels, 3, 3), in_channels * 9),
        "conva_bn_g": jnp.ones((out_channels,), jnp.float32),
        "conva_bn_b": jnp.zeros((out_channels,), jnp.float32),
        "da_wq": _w(ks[1], (out_channels, cq), out_channels),
        "da_wk": _w(ks[2], (out_channels, cq), out_channels),
        "da_wv": _w(ks[3], (out_channels, out_channels), out_channels),
        # DANet initialises the residual-attention weight gamma to 0.
        "da_gamma": jnp.zeros((), jnp.float32),
        "convb_w": _w(ks[4], (out_channels, out_channels, 3, 3), out_channels * 9),
        "convb_bn_g": jnp.ones((out_channels,), jnp.float32),
        "convb_bn_b": jnp.zeros((out_channels,), jnp.float32),
    }


if __name__ == "__main__":
    B, in_channels, fmap_size, out_channels = 2, 4, 16, 32

    key = jax.random.PRNGKey(0)
    k_x, k_p = jax.random.split(key)
    x = jax.random.normal(k_x, (B, in_channels, fmap_size, fmap_size), jnp.float32)
    params = init_params(k_p, in_channels, out_channels)

    fwd = jax.jit(da_module_forward)
    out, att_mask = fwd(params, x)
    jax.block_until_ready((out, att_mask))

    assert out.shape == (B, out_channels, fmap_size, fmap_size)
    assert att_mask.shape == (B, fmap_size * fmap_size, fmap_size * fmap_size)
    assert bool(jnp.all(jnp.isfinite(out))) and bool(jnp.all(jnp.isfinite(att_mask)))
    print("KERNEL_OK")
</pallas_src>

<mosaic_0001>
module attributes {stable_mosaic.version = 11 : i64} {
  func.func @_conv_kernel(%arg0: i32, %arg1: memref<1x18x18x4xbf16, #tpu.memory_space<vmem>>, %arg2: memref<36x128xbf16, #tpu.memory_space<vmem>>, %arg3: memref<1x256x128xbf16, #tpu.memory_space<vmem>>, %arg4: memref<1x2x128xf32, #tpu.memory_space<vmem>>) attributes {dimension_semantics = [#tpu.dimension_semantics<parallel>], iteration_bounds = array<i64: 2>, scalar_prefetch = 0 : i64, scratch_operands = 0 : i64, tpu.core_type = #tpu.core_type<tc>, window_params = [{transform_indices = @transform_0, window_bounds = array<i64: 1, 18, 18, 4>}, {pipeline_mode = #tpu.pipeline_mode<synchronous>, transform_indices = @transform_1, window_bounds = array<i64: 36, 128>}, {transform_indices = @transform_2, window_bounds = array<i64: 1, 256, 128>}, {transform_indices = @transform_3, window_bounds = array<i64: 1, 2, 128>}]} {
    %c0 = arith.constant 0 : index
    %c0_0 = arith.constant 0 : index
    %c0_1 = arith.constant 0 : index
    %c0_2 = arith.constant 0 : index
    %0 = vector.load %arg1[%c0, %c0_0, %c0_1, %c0_2] : memref<1x18x18x4xbf16, #tpu.memory_space<vmem>>, vector<1x16x16x4xbf16>
    %1 = vector.shape_cast %0 : vector<1x16x16x4xbf16> to vector<16x16x4xbf16>
    %2 = vector.shape_cast %1 : vector<16x16x4xbf16> to vector<256x4xbf16>
    %c0_3 = arith.constant 0 : index
    %c0_4 = arith.constant 0 : index
    %c1 = arith.constant 1 : index
    %c0_5 = arith.constant 0 : index
    %3 = vector.load %arg1[%c0_3, %c0_4, %c1, %c0_5] : memref<1x18x18x4xbf16, #tpu.memory_space<vmem>>, vector<1x16x16x4xbf16>
    %4 = vector.shape_cast %3 : vector<1x16x16x4xbf16> to vector<16x16x4xbf16>
    %5 = vector.shape_cast %4 : vector<16x16x4xbf16> to vector<256x4xbf16>
    %c0_6 = arith.constant 0 : index
    %c0_7 = arith.constant 0 : index
    %c2 = arith.constant 2 : index
    %c0_8 = arith.constant 0 : index
    %6 = vector.load %arg1[%c0_6, %c0_7, %c2, %c0_8] : memref<1x18x18x4xbf16, #tpu.memory_space<vmem>>, vector<1x16x16x4xbf16>
    %7 = vector.shape_cast %6 : vector<1x16x16x4xbf16> to vector<16x16x4xbf16>
    %8 = vector.shape_cast %7 : vector<16x16x4xbf16> to vector<256x4xbf16>
    %c0_9 = arith.constant 0 : index
    %c1_10 = arith.constant 1 : index
    %c0_11 = arith.constant 0 : index
    %c0_12 = arith.constant 0 : index
    %9 = vector.load %arg1[%c0_9, %c1_10, %c0_11, %c0_12] : memref<1x18x18x4xbf16, #tpu.memory_space<vmem>>, vector<1x16x16x4xbf16>
    %10 = vector.shape_cast %9 : vector<1x16x16x4xbf16> to vector<16x16x4xbf16>
    %11 = vector.shape_cast %10 : vector<16x16x4xbf16> to vector<256x4xbf16>
    %c0_13 = arith.constant 0 : index
    %c1_14 = arith.constant 1 : index
    %c1_15 = arith.constant 1 : index
    %c0_16 = arith.constant 0 : index
    %12 = vector.load %arg1[%c0_13, %c1_14, %c1_15, %c0_16] : memref<1x18x18x4xbf16, #tpu.memory_space<vmem>>, vector<1x16x16x4xbf16>
    %13 = vector.shape_cast %12 : vector<1x16x16x4xbf16> to vector<16x16x4xbf16>
    %14 = vector.shape_cast %13 : vector<16x16x4xbf16> to vector<256x4xbf16>
    %c0_17 = arith.constant 0 : index
    %c1_18 = arith.constant 1 : index
    %c2_19 = arith.constant 2 : index
    %c0_20 = arith.constant 0 : index
    %15 = vector.load %arg1[%c0_17, %c1_18, %c2_19, %c0_20] : memref<1x18x18x4xbf16, #tpu.memory_space<vmem>>, vector<1x16x16x4xbf16>
    %16 = vector.shape_cast %15 : vector<1x16x16x4xbf16> to vector<16x16x4xbf16>
    %17 = vector.shape_cast %16 : vector<16x16x4xbf16> to vector<256x4xbf16>
    %c0_21 = arith.constant 0 : index
    %c2_22 = arith.constant 2 : index
    %c0_23 = arith.constant 0 : index
    %c0_24 = arith.constant 0 : index
    %18 = vector.load %arg1[%c0_21, %c2_22, %c0_23, %c0_24] : memref<1x18x18x4xbf16, #tpu.memory_space<vmem>>, vector<1x16x16x4xbf16>
    %19 = vector.shape_cast %18 : vector<1x16x16x4xbf16> to vector<16x16x4xbf16>
    %20 = vector.shape_cast %19 : vector<16x16x4xbf16> to vector<256x4xbf16>
    %c0_25 = arith.constant 0 : index
    %c2_26 = arith.constant 2 : index
    %c1_27 = arith.constant 1 : index
    %c0_28 = arith.constant 0 : index
    %21 = vector.load %arg1[%c0_25, %c2_26, %c1_27, %c0_28] : memref<1x18x18x4xbf16, #tpu.memory_space<vmem>>, vector<1x16x16x4xbf16>
    %22 = vector.shape_cast %21 : vector<1x16x16x4xbf16> to vector<16x16x4xbf16>
    %23 = vector.shape_cast %22 : vector<16x16x4xbf16> to vector<256x4xbf16>
    %c0_29 = arith.constant 0 : index
    %c2_30 = arith.constant 2 : index
    %c2_31 = arith.constant 2 : index
    %c0_32 = arith.constant 0 : index
    %24 = vector.load %arg1[%c0_29, %c2_30, %c2_31, %c0_32] : memref<1x18x18x4xbf16, #tpu.memory_space<vmem>>, vector<1x16x16x4xbf16>
    %25 = vector.shape_cast %24 : vector<1x16x16x4xbf16> to vector<16x16x4xbf16>
    %26 = vector.shape_cast %25 : vector<16x16x4xbf16> to vector<256x4xbf16>
    %27 = tpu.concatenate %2, %5, %8, %11, %14, %17, %20, %23, %26 in 1 : vector<256x4xbf16>, vector<256x4xbf16>, vector<256x4xbf16>, vector<256x4xbf16>, vector<256x4xbf16>, vector<256x4xbf16>, vector<256x4xbf16>, vector<256x4xbf16>, vector<256x4xbf16> -> vector<256x36xbf16>
    %c0_33 = arith.constant 0 : index
    %c0_34 = arith.constant 0 : index
    %28 = vector.load %arg2[%c0_33, %c0_34] : memref<36x128xbf16, #tpu.memory_space<vmem>>, vector<36x128xbf16>
    %cst = arith.constant dense<0.000000e+00> : vector<256x128xf32>
    %29 = tpu.matmul %27, %28, %cst {dimension_numbers = #tpu.dot_dimension_numbers<[1], [0], [0], [1], [0, 0, 1, 1], [], []>} : vector<256x36xbf16>, vector<36x128xbf16>, vector<256x128xf32> -> vector<256x128xf32>
    %30 = arith.truncf %29 : vector<256x128xf32> to vector<256x128xbf16>
    %c0_35 = arith.constant 0 : index
    %c0_36 = arith.constant 0 : index
    %c0_37 = arith.constant 0 : index
    %31 = vector.load %arg3[%c0_35, %c0_36, %c0_37] : memref<1x256x128xbf16, #tpu.memory_space<vmem>>, vector<1x256x128xbf16>
    %32 = vector.shape_cast %31 : vector<1x256x128xbf16> to vector<256x128xbf16>
    %33 = vector.shape_cast %30 : vector<256x128xbf16> to vector<1x256x128xbf16>
    tpu.vector_store %arg3[%c0_35, %c0_36, %c0_37], %33 {strides = array<i32>} : memref<1x256x128xbf16, #tpu.memory_space<vmem>>, vector<1x256x128xbf16>,
    %cst_38 = arith.constant dense<0.000000e+00> : vector<128xf32>
    %34 = vector.multi_reduction <add>, %29, %cst_38 [0] : vector<256x128xf32> to vector<128xf32>
    %35 = vector.shape_cast %34 : vector<128xf32> to vector<1x128xf32>
    %36 = arith.mulf %29, %29 : vector<256x128xf32>
    %cst_39 = arith.constant dense<0.000000e+00> : vector<128xf32>
    %37 = vector.multi_reduction <add>, %36, %cst_39 [0] : vector<256x128xf32> to vector<128xf32>
    %38 = vector.shape_cast %37 : vector<128xf32> to vector<1x128xf32>
    %39 = tpu.concatenate %35, %38 in 0 : vector<1x128xf32>, vector<1x128xf32> -> vector<2x128xf32>
    %c0_40 = arith.constant 0 : index
    %c0_41 = arith.constant 0 : index
    %c0_42 = arith.constant 0 : index
    %40 = vector.load %arg4[%c0_40, %c0_41, %c0_42] : memref<1x2x128xf32, #tpu.memory_space<vmem>>, vector<1x2x128xf32>
    %41 = vector.shape_cast %40 : vector<1x2x128xf32> to vector<2x128xf32>
    %42 = vector.shape_cast %39 : vector<2x128xf32> to vector<1x2x128xf32>
    tpu.vector_store %arg4[%c0_40, %c0_41, %c0_42], %42 {strides = array<i32>} : memref<1x2x128xf32, #tpu.memory_space<vmem>>, vector<1x2x128xf32>,
    return
  }
  func.func @transform_0(%arg0: i32) -> (i32, i32, i32, i32) {
    %c0_i32 = arith.constant 0 : i32
    %c0_i32_0 = arith.constant 0 : i32
    %c0_i32_1 = arith.constant 0 : i32
    %c0_i32_2 = arith.constant 0 : i32
    return %arg0, %c0_i32, %c0_i32_0, %c0_i32_1 : i32, i32, i32, i32
  }
  func.func @transform_1(%arg0: i32) -> (i32, i32) {
    %c0_i32 = arith.constant 0 : i32
    %c0_i32_0 = arith.constant 0 : i32
    %c0_i32_1 = arith.constant 0 : i32
    return %c0_i32, %c0_i32_0 : i32, i32
  }
  func.func @transform_2(%arg0: i32) -> (i32, i32, i32) {
    %c0_i32 = arith.constant 0 : i32
    %c0_i32_0 = arith.constant 0 : i32
    %c0_i32_1 = arith.constant 0 : i32
    return %arg0, %c0_i32, %c0_i32_0 : i32, i32, i32
  }
  func.func @transform_3(%arg0: i32) -> (i32, i32, i32) {
    %c0_i32 = arith.constant 0 : i32
    %c0_i32_0 = arith.constant 0 : i32
    %c0_i32_1 = arith.constant 0 : i32
    return %arg0, %c0_i32, %c0_i32_0 : i32, i32, i32
  }
}

module attributes {stable_mosaic.version = 11 : i64} {
  func.func @_da_kernel(%arg0: i32, %arg1: memref<1x256x128xbf16, #tpu.memory_space<vmem>>, %arg2: memref<2x128xf32, #tpu.memory_space<vmem>>, %arg3: memref<128x128xbf16, #tpu.memory_space<vmem>>, %arg4: memref<128x128xbf16, #tpu.memory_space<vmem>>, %arg5: memref<1x256x128xbf16, #tpu.memory_space<vmem>>, %arg6: memref<1x256x256xf32, #tpu.memory_space<vmem>>) attributes {dimension_semantics = [#tpu.dimension_semantics<parallel>], iteration_bounds = array<i64: 2>, scalar_prefetch = 0 : i64, scratch_operands = 0 : i64, tpu.core_type = #tpu.core_type<tc>, window_params = [{transform_indices = @transform_0, window_bounds = array<i64: 1, 256, 128>}, {pipeline_mode = #tpu.pipeline_mode<synchronous>, transform_indices = @transform_1, window_bounds = array<i64: 2, 128>}, {pipeline_mode = #tpu.pipeline_mode<synchronous>, transform_indices = @transform_2, window_bounds = array<i64: 128, 128>}, {pipeline_mode = #tpu.pipeline_mode<synchronous>, transform_indices = @transform_3, window_bounds = array<i64: 128, 128>}, {transform_indices = @transform_4, window_bounds = array<i64: 1, 256, 128>}, {transform_indices = @transform_5, window_bounds = array<i64: 1, 256, 256>}]} {
    %c0 = arith.constant 0 : index
    %c0_0 = arith.constant 0 : index
    %0 = vector.load %arg2[%c0, %c0_0] : memref<2x128xf32, #tpu.memory_space<vmem>>, vector<1x128xf32>
    %c1 = arith.constant 1 : index
    %c0_1 = arith.constant 0 : index
    %1 = vector.load %arg2[%c1, %c0_1] : memref<2x128xf32, #tpu.memory_space<vmem>>, vector<1x128xf32>
    %c0_2 = arith.constant 0 : index
    %c0_3 = arith.constant 0 : index
    %c0_4 = arith.constant 0 : index
    %2 = vector.load %arg1[%c0_2, %c0_3, %c0_4] : memref<1x256x128xbf16, #tpu.memory_space<vmem>>, vector<1x256x128xbf16>
    %3 = vector.shape_cast %2 : vector<1x256x128xbf16> to vector<256x128xbf16>
    %4 = arith.extf %3 : vector<256x128xbf16> to vector<256x128xf32>
    %5 = vector.broadcast %0 : vector<1x128xf32> to vector<256x128xf32>
    %6 = arith.mulf %4, %5 : vector<256x128xf32>
    %7 = vector.broadcast %1 : vector<1x128xf32> to vector<256x128xf32>
    %8 = arith.addf %6, %7 : vector<256x128xf32>
    %9 = arith.truncf %8 : vector<256x128xf32> to vector<256x128xbf16>
    %c0_5 = arith.constant 0 : index
    %c0_6 = arith.constant 0 : index
    %10 = vector.load %arg3[%c0_5, %c0_6] : memref<128x128xbf16, #tpu.memory_space<vmem>>, vector<128x128xbf16>
    %cst = arith.constant dense<0.000000e+00> : vector<256x128xf32>
    %11 = tpu.matmul %9, %10, %cst {dimension_numbers = #tpu.dot_dimension_numbers<[1], [0], [0], [1], [0, 0, 1, 1], [], []>} : vector<256x128xbf16>, vector<128x128xbf16>, vector<256x128xf32> -> vector<256x128xf32>
    %12 = arith.truncf %11 : vector<256x128xf32> to vector<256x128xbf16>
    %cst_7 = arith.constant dense<0.000000e+00> : vector<256x256xf32>
    %13 = tpu.matmul %12, %9, %cst_7 {dimension_numbers = #tpu.dot_dimension_numbers<[1], [1], [0], [0], [0, 0, 1, 0], [], []>} : vector<256x128xbf16>, vector<256x128xbf16>, vector<256x256xf32> -> vector<256x256xf32>
    %cst_8 = arith.constant dense<0xFF800000> : vector<256xf32>
    %14 = vector.multi_reduction <maximumf>, %13, %cst_8 [1] : vector<256x256xf32> to vector<256xf32>
    %15 = vector.shape_cast %14 : vector<256xf32> to vector<256x1xf32>
    %16 = vector.broadcast %15 : vector<256x1xf32> to vector<256x256xf32>
    %17 = arith.subf %13, %16 : vector<256x256xf32>
    %18 = math.exp %17 : vector<256x256xf32>
    %cst_9 = arith.constant dense<0.000000e+00> : vector<256xf32>
    %19 = vector.multi_reduction <add>, %18, %cst_9 [1] : vector<256x256xf32> to vector<256xf32>
    %20 = vector.shape_cast %19 : vector<256xf32> to vector<256x1xf32>
    %21 = tpu.reciprocal %20 {approx = true} : vector<256x1xf32> -> vector<256x1xf32>
    %22 = vector.broadcast %21 : vector<256x1xf32> to vector<256x256xf32>
    %23 = arith.mulf %18, %22 : vector<256x256xf32>
    %c0_10 = arith.constant 0 : index
    %c0_11 = arith.constant 0 : index
    %24 = vector.load %arg4[%c0_10, %c0_11] : memref<128x128xbf16, #tpu.memory_space<vmem>>, vector<128x128xbf16>
    %cst_12 = arith.constant dense<0.000000e+00> : vector<256x128xf32>
    %25 = tpu.matmul %9, %24, %cst_12 {dimension_numbers = #tpu.dot_dimension_numbers<[1], [0], [0], [1], [0, 0, 1, 1], [], []>} : vector<256x128xbf16>, vector<128x128xbf16>, vector<256x128xf32> -> vector<256x128xf32>
    %26 = arith.truncf %23 : vector<256x256xf32> to vector<256x256xbf16>
    %27 = arith.truncf %25 : vector<256x128xf32> to vector<256x128xbf16>
    %cst_13 = arith.constant dense<0.000000e+00> : vector<256x128xf32>
    %28 = tpu.matmul %26, %27, %cst_13 {dimension_numbers = #tpu.dot_dimension_numbers<[1], [0], [0], [1], [0, 0, 1, 1], [], []>} : vector<256x256xbf16>, vector<256x128xbf16>, vector<256x128xf32> -> vector<256x128xf32>
    %29 = arith.addf %28, %8 : vector<256x128xf32>
    %30 = arith.truncf %29 : vector<256x128xf32> to vector<256x128xbf16>
    %c0_14 = arith.constant 0 : index
    %c0_15 = arith.constant 0 : index
    %c0_16 = arith.constant 0 : index
    %31 = vector.load %arg5[%c0_14, %c0_15, %c0_16] : memref<1x256x128xbf16, #tpu.memory_space<vmem>>, vector<1x256x128xbf16>
    %32 = vector.shape_cast %31 : vector<1x256x128xbf16> to vector<256x128xbf16>
    %33 = vector.shape_cast %30 : vector<256x128xbf16> to vector<1x256x128xbf16>
    tpu.vector_store %arg5[%c0_14, %c0_15, %c0_16], %33 {strides = array<i32>} : memref<1x256x128xbf16, #tpu.memory_space<vmem>>, vector<1x256x128xbf16>,
    %c0_17 = arith.constant 0 : index
    %c0_18 = arith.constant 0 : index
    %c0_19 = arith.constant 0 : index
    %34 = vector.load %arg6[%c0_17, %c0_18, %c0_19] : memref<1x256x256xf32, #tpu.memory_space<vmem>>, vector<1x256x256xf32>
    %35 = vector.shape_cast %34 : vector<1x256x256xf32> to vector<256x256xf32>
    %36 = vector.shape_cast %23 : vector<256x256xf32> to vector<1x256x256xf32>
    tpu.vector_store %arg6[%c0_17, %c0_18, %c0_19], %36 {strides = array<i32>} : memref<1x256x256xf32, #tpu.memory_space<vmem>>, vector<1x256x256xf32>,
    return
  }
  func.func @transform_0(%arg0: i32) -> (i32, i32, i32) {
    %c0_i32 = arith.constant 0 : i32
    %c0_i32_0 = arith.constant 0 : i32
    %c0_i32_1 = arith.constant 0 : i32
    return %arg0, %c0_i32, %c0_i32_0 : i32, i32, i32
  }
  func.func @transform_1(%arg0: i32) -> (i32, i32) {
    %c0_i32 = arith.constant 0 : i32
    %c0_i32_0 = arith.constant 0 : i32
    %c0_i32_1 = arith.constant 0 : i32
    return %c0_i32, %c0_i32_0 : i32, i32
  }
  func.func @transform_2(%arg0: i32) -> (i32, i32) {
    %c0_i32 = arith.constant 0 : i32
    %c0_i32_0 = arith.constant 0 : i32
    %c0_i32_1 = arith.constant 0 : i32
    return %c0_i32, %c0_i32_0 : i32, i32
  }
  func.func @transform_3(%arg0: i32) -> (i32, i32) {
    %c0_i32 = arith.constant 0 : i32
    %c0_i32_0 = arith.constant 0 : i32
    %c0_i32_1 = arith.constant 0 : i32
    return %c0_i32, %c0_i32_0 : i32, i32
  }
  func.func @transform_4(%arg0: i32) -> (i32, i32, i32) {
    %c0_i32 = arith.constant 0 : i32
    %c0_i32_0 = arith.constant 0 : i32
    %c0_i32_1 = arith.constant 0 : i32
    return %arg0, %c0_i32, %c0_i32_0 : i32, i32, i32
  }
  func.func @transform_5(%arg0: i32) -> (i32, i32, i32) {
    %c0_i32 = arith.constant 0 : i32
    %c0_i32_0 = arith.constant 0 : i32
    %c0_i32_1 = arith.constant 0 : i32
    return %arg0, %c0_i32, %c0_i32_0 : i32, i32, i32
  }
}

module attributes {stable_mosaic.version = 11 : i64} {
  func.func @_conv_kernel(%arg0: i32, %arg1: memref<1x18x18x128xbf16, #tpu.memory_space<vmem>>, %arg2: memref<1152x128xbf16, #tpu.memory_space<vmem>>, %arg3: memref<1x256x128xbf16, #tpu.memory_space<vmem>>, %arg4: memref<1x2x128xf32, #tpu.memory_space<vmem>>) attributes {dimension_semantics = [#tpu.dimension_semantics<parallel>], iteration_bounds = array<i64: 2>, scalar_prefetch = 0 : i64, scratch_operands = 0 : i64, tpu.core_type = #tpu.core_type<tc>, window_params = [{transform_indices = @transform_0, window_bounds = array<i64: 1, 18, 18, 128>}, {pipeline_mode = #tpu.pipeline_mode<synchronous>, transform_indices = @transform_1, window_bounds = array<i64: 1152, 128>}, {transform_indices = @transform_2, window_bounds = array<i64: 1, 256, 128>}, {transform_indices = @transform_3, window_bounds = array<i64: 1, 2, 128>}]} {
    %c0 = arith.constant 0 : index
    %c0_0 = arith.constant 0 : index
    %c0_1 = arith.constant 0 : index
    %c0_2 = arith.constant 0 : index
    %0 = vector.load %arg1[%c0, %c0_0, %c0_1, %c0_2] : memref<1x18x18x128xbf16, #tpu.memory_space<vmem>>, vector<1x16x16x128xbf16>
    %1 = vector.shape_cast %0 : vector<1x16x16x128xbf16> to vector<16x16x128xbf16>
    %2 = vector.shape_cast %1 : vector<16x16x128xbf16> to vector<256x128xbf16>
    %c0_3 = arith.constant 0 : index
    %c0_4 = arith.constant 0 : index
    %c1 = arith.constant 1 : index
    %c0_5 = arith.constant 0 : index
    %3 = vector.load %arg1[%c0_3, %c0_4, %c1, %c0_5] : memref<1x18x18x128xbf16, #tpu.memory_space<vmem>>, vector<1x16x16x128xbf16>
    %4 = vector.shape_cast %3 : vector<1x16x16x128xbf16> to vector<16x16x128xbf16>
    %5 = vector.shape_cast %4 : vector<16x16x128xbf16> to vector<256x128xbf16>
    %c0_6 = arith.constant 0 : index
    %c0_7 = arith.constant 0 : index
    %c2 = arith.constant 2 : index
    %c0_8 = arith.constant 0 : index
    %6 = vector.load %arg1[%c0_6, %c0_7, %c2, %c0_8] : memref<1x18x18x128xbf16, #tpu.memory_space<vmem>>, vector<1x16x16x128xbf16>
    %7 = vector.shape_cast %6 : vector<1x16x16x128xbf16> to vector<16x16x128xbf16>
    %8 = vector.shape_cast %7 : vector<16x16x128xbf16> to vector<256x128xbf16>
    %c0_9 = arith.constant 0 : index
    %c1_10 = arith.constant 1 : index
    %c0_11 = arith.constant 0 : index
    %c0_12 = arith.constant 0 : index
    %9 = vector.load %arg1[%c0_9, %c1_10, %c0_11, %c0_12] : memref<1x18x18x128xbf16, #tpu.memory_space<vmem>>, vector<1x16x16x128xbf16>
    %10 = vector.shape_cast %9 : vector<1x16x16x128xbf16> to vector<16x16x128xbf16>
    %11 = vector.shape_cast %10 : vector<16x16x128xbf16> to vector<256x128xbf16>
    %c0_13 = arith.constant 0 : index
    %c1_14 = arith.constant 1 : index
    %c1_15 = arith.constant 1 : index
    %c0_16 = arith.constant 0 : index
    %12 = vector.load %arg1[%c0_13, %c1_14, %c1_15, %c0_16] : memref<1x18x18x128xbf16, #tpu.memory_space<vmem>>, vector<1x16x16x128xbf16>
    %13 = vector.shape_cast %12 : vector<1x16x16x128xbf16> to vector<16x16x128xbf16>
    %14 = vector.shape_cast %13 : vector<16x16x128xbf16> to vector<256x128xbf16>
    %c0_17 = arith.constant 0 : index
    %c1_18 = arith.constant 1 : index
    %c2_19 = arith.constant 2 : index
    %c0_20 = arith.constant 0 : index
    %15 = vector.load %arg1[%c0_17, %c1_18, %c2_19, %c0_20] : memref<1x18x18x128xbf16, #tpu.memory_space<vmem>>, vector<1x16x16x128xbf16>
    %16 = vector.shape_cast %15 : vector<1x16x16x128xbf16> to vector<16x16x128xbf16>
    %17 = vector.shape_cast %16 : vector<16x16x128xbf16> to vector<256x128xbf16>
    %c0_21 = arith.constant 0 : index
    %c2_22 = arith.constant 2 : index
    %c0_23 = arith.constant 0 : index
    %c0_24 = arith.constant 0 : index
    %18 = vector.load %arg1[%c0_21, %c2_22, %c0_23, %c0_24] : memref<1x18x18x128xbf16, #tpu.memory_space<vmem>>, vector<1x16x16x128xbf16>
    %19 = vector.shape_cast %18 : vector<1x16x16x128xbf16> to vector<16x16x128xbf16>
    %20 = vector.shape_cast %19 : vector<16x16x128xbf16> to vector<256x128xbf16>
    %c0_25 = arith.constant 0 : index
    %c2_26 = arith.constant 2 : index
    %c1_27 = arith.constant 1 : index
    %c0_28 = arith.constant 0 : index
    %21 = vector.load %arg1[%c0_25, %c2_26, %c1_27, %c0_28] : memref<1x18x18x128xbf16, #tpu.memory_space<vmem>>, vector<1x16x16x128xbf16>
    %22 = vector.shape_cast %21 : vector<1x16x16x128xbf16> to vector<16x16x128xbf16>
    %23 = vector.shape_cast %22 : vector<16x16x128xbf16> to vector<256x128xbf16>
    %c0_29 = arith.constant 0 : index
    %c2_30 = arith.constant 2 : index
    %c2_31 = arith.constant 2 : index
    %c0_32 = arith.constant 0 : index
    %24 = vector.load %arg1[%c0_29, %c2_30, %c2_31, %c0_32] : memref<1x18x18x128xbf16, #tpu.memory_space<vmem>>, vector<1x16x16x128xbf16>
    %25 = vector.shape_cast %24 : vector<1x16x16x128xbf16> to vector<16x16x128xbf16>
    %26 = vector.shape_cast %25 : vector<16x16x128xbf16> to vector<256x128xbf16>
    %27 = tpu.concatenate %2, %5, %8, %11, %14, %17, %20, %23, %26 in 1 : vector<256x128xbf16>, vector<256x128xbf16>, vector<256x128xbf16>, vector<256x128xbf16>, vector<256x128xbf16>, vector<256x128xbf16>, vector<256x128xbf16>, vector<256x128xbf16>, vector<256x128xbf16> -> vector<256x1152xbf16>
    %c0_33 = arith.constant 0 : index
    %c0_34 = arith.constant 0 : index
    %28 = vector.load %arg2[%c0_33, %c0_34] : memref<1152x128xbf16, #tpu.memory_space<vmem>>, vector<1152x128xbf16>
    %cst = arith.constant dense<0.000000e+00> : vector<256x128xf32>
    %29 = tpu.matmul %27, %28, %cst {dimension_numbers = #tpu.dot_dimension_numbers<[1], [0], [0], [1], [0, 0, 1, 1], [], []>} : vector<256x1152xbf16>, vector<1152x128xbf16>, vector<256x128xf32> -> vector<256x128xf32>
    %30 = arith.truncf %29 : vector<256x128xf32> to vector<256x128xbf16>
    %c0_35 = arith.constant 0 : index
    %c0_36 = arith.constant 0 : index
    %c0_37 = arith.constant 0 : index
    %31 = vector.load %arg3[%c0_35, %c0_36, %c0_37] : memref<1x256x128xbf16, #tpu.memory_space<vmem>>, vector<1x256x128xbf16>
    %32 = vector.shape_cast %31 : vector<1x256x128xbf16> to vector<256x128xbf16>
    %33 = vector.shape_cast %30 : vector<256x128xbf16> to vector<1x256x128xbf16>
    tpu.vector_store %arg3[%c0_35, %c0_36, %c0_37], %33 {strides = array<i32>} : memref<1x256x128xbf16, #tpu.memory_space<vmem>>, vector<1x256x128xbf16>,
    %cst_38 = arith.constant dense<0.000000e+00> : vector<128xf32>
    %34 = vector.multi_reduction <add>, %29, %cst_38 [0] : vector<256x128xf32> to vector<128xf32>
    %35 = vector.shape_cast %34 : vector<128xf32> to vector<1x128xf32>
    %36 = arith.mulf %29, %29 : vector<256x128xf32>
    %cst_39 = arith.constant dense<0.000000e+00> : vector<128xf32>
    %37 = vector.multi_reduction <add>, %36, %cst_39 [0] : vector<256x128xf32> to vector<128xf32>
    %38 = vector.shape_cast %37 : vector<128xf32> to vector<1x128xf32>
    %39 = tpu.concatenate %35, %38 in 0 : vector<1x128xf32>, vector<1x128xf32> -> vector<2x128xf32>
    %c0_40 = arith.constant 0 : index
    %c0_41 = arith.constant 0 : index
    %c0_42 = arith.constant 0 : index
    %40 = vector.load %arg4[%c0_40, %c0_41, %c0_42] : memref<1x2x128xf32, #tpu.memory_space<vmem>>, vector<1x2x128xf32>
    %41 = vector.shape_cast %40 : vector<1x2x128xf32> to vector<2x128xf32>
    %42 = vector.shape_cast %39 : vector<2x128xf32> to vector<1x2x128xf32>
    tpu.vector_store %arg4[%c0_40, %c0_41, %c0_42], %42 {strides = array<i32>} : memref<1x2x128xf32, #tpu.memory_space<vmem>>, vector<1x2x128xf32>,
    return
  }
  func.func @transform_0(%arg0: i32) -> (i32, i32, i32, i32) {
    %c0_i32 = arith.constant 0 : i32
    %c0_i32_0 = arith.constant 0 : i32
    %c0_i32_1 = arith.constant 0 : i32
    %c0_i32_2 = arith.constant 0 : i32
    return %arg0, %c0_i32, %c0_i32_0, %c0_i32_1 : i32, i32, i32, i32
  }
  func.func @transform_1(%arg0: i32) -> (i32, i32) {
    %c0_i32 = arith.constant 0 : i32
    %c0_i32_0 = arith.constant 0 : i32
    %c0_i32_1 = arith.constant 0 : i32
    return %c0_i32, %c0_i32_0 : i32, i32
  }
  func.func @transform_2(%arg0: i32) -> (i32, i32, i32) {
    %c0_i32 = arith.constant 0 : i32
    %c0_i32_0 = arith.constant 0 : i32
    %c0_i32_1 = arith.constant 0 : i32
    return %arg0, %c0_i32, %c0_i32_0 : i32, i32, i32
  }
  func.func @transform_3(%arg0: i32) -> (i32, i32, i32) {
    %c0_i32 = arith.constant 0 : i32
    %c0_i32_0 = arith.constant 0 : i32
    %c0_i32_1 = arith.constant 0 : i32
    return %arg0, %c0_i32, %c0_i32_0 : i32, i32, i32
  }
}

</mosaic_0001>

<llo_original>
// kernel: da_module_forward.4
$region0: #{da_module_forward.4}
  #allocation0 [shape = 'u32[]', space=smem, size = 0x4, offset = 0x4, fixed_abs, tag = 'smem constant byte address 0x4 - core index']
  #allocation1 [shape = 'u32[72,128]{1,0:T(1,128)}', space=vmem, size = 0x9000, scoped, tag = 'internal scratch']
  %s0 = inlined_call_operand.vmem [shape: bf16[2,256,128], index: 0, kind: input, shape index: {}]
  %s1 = inlined_call_operand.vmem [shape: f32[2,128], index: 1, kind: input, shape index: {}]
  %s2 = inlined_call_operand.vmem [shape: bf16[128,128], index: 2, kind: input, shape index: {}]
  %s3 = inlined_call_operand.vmem [shape: bf16[128,128], index: 3, kind: input, shape index: {}]
  %s4 = inlined_call_operand.vmem [shape: bf16[2,256,128], index: 4, kind: output, shape index: {0}]
  %s5 = inlined_call_operand.hbm [shape: f32[2,256,256], index: 5, kind: output, shape index: {1}]
  %6 = xla_tuple %s4, %s5
  %s7 = sld [smem:[#allocation0]]
  $region57: #{da_module_forward.4} parent=0
    _
  %s9 = ssub.s32 1, %s7
  %s10 = scalar_select 0, %s9, %s7
  $region1: #{da_module_forward.4} parent=0
    #allocation2 [shape = 'u8[524288]{0}', space=vmem, size = 0x80000, scoped, tag = 'output window, operand 1']
    #allocation3 [shape = 's32[2]{0}', space=sflag, size = 0x8, scoped, tag = 'scoped memory for da_module_forward.4']
    %11 = vsyncpa [#allocation3], 0
    %s12 = scalar_lea.sflag [#allocation3], 1
    %13 = vsyncpa %s12, 0
    loop: start=0, step=1, limit=4
    $region2: #{da_module_forward.4} parent=1 // loop_pre_header
      _
    $region3: #{da_module_forward.4} parent=1 // loop_header
      %s15 = sphi 0, %s19
      %p16 = scmp.ge.s32.totalorder %s15, 4
      %s25 = sphi 0, %s27
      %s28 = sphi 0, %s25
      %s29 = sphi 0, %s28
      %s45 = sphi 0, %s29
      %s49 = sphi 0, %s49
      %s51 = sphi 0, %s49
      %s52 = sphi 0, %s51
      %s66 = sphi 0, %s52
      %s70 = sphi 0, %s70
      %s72 = sphi 0, %s70
      %s73 = sphi 0, %s72
      %s87 = sphi 0, %s73
      %s91 = sphi 0, %s91
      %s93 = sphi 0, %s91
      %s94 = sphi 0, %s93
      %s108 = sphi 0, %s94
      %s114 = sphi 0, %s116
      %s117 = sphi 0, %s114
      %s118 = sphi 0, %s117
      %s134 = sphi 0, %s118
      %s140 = sphi 0, %s142
      %s143 = sphi 0, %s140
      %s144 = sphi 0, %s143
      %s160 = sphi 0, %s144
    $region4: #{da_module_forward.4} parent=1 // loop_header_branch
      %18 = sbr.rel (%p16) target = $region8
    $region5: #{da_module_forward.4} parent=1 // loop_body
      %s20 = ssub.s32 %s15, 1
      %s21 = ssub.s32 %s15, 2
      %s22 = sadd.s32 %s15, 1
      %s23 = ssub.s32 %s15, %s22
      %p24 = scmp.eq.s32.totalorder %s23, 0
      %s26 = sadd.s32 %s25, 1
      %s27 = scalar_select %p24, %s25, %s26
      %p30 = pneg %p24
      %p31 = scmp.eq.s32.totalorder %s15, 1
      %p32 = por %p30, %p31
      %p33 = scmp.ne.s32.totalorder %s25, %s28
      %p34 = scmp.eq.s32.totalorder %s15, 0
      %p35 = por %p33, %p34
      %p36 = scmp.ne.s32.totalorder %s25, %s28
      %p37 = scmp.eq.s32.totalorder %s20, 1
      %p38 = por %p36, %p37
      %p39 = scmp.ne.s32.totalorder %s28, %s29
      %p40 = scmp.eq.s32.totalorder %s20, 0
      %p41 = por %p39, %p40
      %p42 = scmp.ne.s32.totalorder %s28, %s29
      %p43 = scmp.eq.s32.totalorder %s21, 1
      %p44 = por %p42, %p43
      %p46 = scmp.ne.s32.totalorder %s29, %s45
      %p47 = scmp.eq.s32.totalorder %s21, 0
      %p48 = por %p46, %p47
      %s50 = sadd.s32 %s49, 1
      %p53 = scmp.eq.s32.totalorder %s15, 1
      %p54 = scmp.ne.s32.totalorder %s49, %s51
      %p55 = scmp.eq.s32.totalorder %s15, 0
      %p56 = por %p54, %p55
      %p57 = scmp.ne.s32.totalorder %s49, %s51
      %p58 = scmp.eq.s32.totalorder %s20, 1
      %p59 = por %p57, %p58
      %p60 = scmp.ne.s32.totalorder %s51, %s52
      %p61 = scmp.eq.s32.totalorder %s20, 0
      %p62 = por %p60, %p61
      %p63 = scmp.ne.s32.totalorder %s51, %s52
      %p64 = scmp.eq.s32.totalorder %s21, 1
      %p65 = por %p63, %p64
      %p67 = scmp.ne.s32.totalorder %s52, %s66
      %p68 = scmp.eq.s32.totalorder %s21, 0
      %p69 = por %p67, %p68
      %s71 = sadd.s32 %s70, 1
      %p74 = scmp.eq.s32.totalorder %s15, 1
      %p75 = scmp.ne.s32.totalorder %s70, %s72
      %p76 = scmp.eq.s32.totalorder %s15, 0
      %p77 = por %p75, %p76
      %p78 = scmp.ne.s32.totalorder %s70, %s72
      %p79 = scmp.eq.s32.totalorder %s20, 1
      %p80 = por %p78, %p79
      %p81 = scmp.ne.s32.totalorder %s72, %s73
      %p82 = scmp.eq.s32.totalorder %s20, 0
      %p83 = por %p81, %p82
      %p84 = scmp.ne.s32.totalorder %s72, %s73
      %p85 = scmp.eq.s32.totalorder %s21, 1
      %p86 = por %p84, %p85
      %p88 = scmp.ne.s32.totalorder %s73, %s87
      %p89 = scmp.eq.s32.totalorder %s21, 0
      %p90 = por %p88, %p89
      %s92 = sadd.s32 %s91, 1
      %p95 = scmp.eq.s32.totalorder %s15, 1
      %p96 = scmp.ne.s32.totalorder %s91, %s93
      %p97 = scmp.eq.s32.totalorder %s15, 0
      %p98 = por %p96, %p97
      %p99 = scmp.ne.s32.totalorder %s91, %s93
      %p100 = scmp.eq.s32.totalorder %s20, 1
      %p101 = por %p99, %p100
      %p102 = scmp.ne.s32.totalorder %s93, %s94
      %p103 = scmp.eq.s32.totalorder %s20, 0
      %p104 = por %p102, %p103
      %p105 = scmp.ne.s32.totalorder %s93, %s94
      %p106 = scmp.eq.s32.totalorder %s21, 1
      %p107 = por %p105, %p106
      %p109 = scmp.ne.s32.totalorder %s94, %s108
      %p110 = scmp.eq.s32.totalorder %s21, 0
      %p111 = por %p109, %p110
      %s112 = ssub.s32 %s15, %s22
      %p113 = scmp.eq.s32.totalorder %s112, 0
      %s115 = sadd.s32 %s114, 1
      %s116 = scalar_select %p113, %s114, %s115
      %p119 = pneg %p113
      %p120 = scmp.eq.s32.totalorder %s15, 1
      %p121 = por %p119, %p120
      %p122 = scmp.ne.s32.totalorder %s114, %s117
      %p123 = scmp.eq.s32.totalorder %s15, 0
      %p124 = por %p122, %p123
      %p125 = scmp.ne.s32.totalorder %s114, %s117
      %p126 = scmp.eq.s32.totalorder %s20, 1
      %p127 = por %p125, %p126
      %p128 = scmp.ne.s32.totalorder %s117, %s118
      %p129 = scmp.eq.s32.totalorder %s20, 0
      %p130 = por %p128, %p129
      %p131 = scmp.ne.s32.totalorder %s117, %s118
      %p132 = scmp.eq.s32.totalorder %s21, 1
      %p133 = por %p131, %p132
      %p135 = scmp.ne.s32.totalorder %s118, %s134
      %p136 = scmp.eq.s32.totalorder %s21, 0
      %p137 = por %p135, %p136
      %s138 = ssub.s32 %s15, %s22
      %p139 = scmp.eq.s32.totalorder %s138, 0
      %s141 = sadd.s32 %s140, 1
      %s142 = scalar_select %p139, %s140, %s141
      %p145 = pneg %p139
      %p146 = scmp.eq.s32.totalorder %s15, 1
      %p147 = por %p145, %p146
      %p148 = scmp.ne.s32.totalorder %s140, %s143
      %p149 = scmp.eq.s32.totalorder %s15, 0
      %p150 = por %p148, %p149
      %p151 = scmp.ne.s32.totalorder %s140, %s143
      %p152 = scmp.eq.s32.totalorder %s20, 1
      %p153 = por %p151, %p152
      %p154 = scmp.ne.s32.totalorder %s143, %s144
      %p155 = scmp.eq.s32.totalorder %s20, 0
      %p156 = por %p154, %p155
      %p157 = scmp.ne.s32.totalorder %s143, %s144
      %p158 = scmp.eq.s32.totalorder %s21, 1
      %p159 = por %p157, %p158
      %p161 = scmp.ne.s32.totalorder %s144, %s160
      %p162 = scmp.eq.s32.totalorder %s21, 0
      %p163 = por %p161, %p162
      %p164 = scmp.le.s32.totalorder 1, %s15
      %p165 = scmp.lt.s32.totalorder %s15, 3
      %p166 = pnand %p164, %p165
      %p167 = pneg %p166
      // Predicated region
      $region9: #{da_module_forward.4} parent=5 // pred_check
        _
      $region10: #{da_module_forward.4} parent=5 // pred_check_branch
        %169 = sbr.rel (%p166) target = $region12
      $region11: #{da_module_forward.4} parent=5 // pred_region
        %s170 = ssub.s32 %s15, 1
        // Predicated region
        $region13: #{da_module_forward.4} parent=11 // pred_check
          %p171 = pneg %p62
        $region14: #{da_module_forward.4} parent=11 // pred_check_branch
          %173 = sbr.rel (%p171) target = $region16
        $region15: #{da_module_forward.4} parent=11 // pred_region
          _
        $region16: #{da_module_forward.4} parent=11 // pred_fallthru
          _
        // Predicated region
        $region17: #{da_module_forward.4} parent=11 // pred_check
          %p174 = pneg %p83
        $region18: #{da_module_forward.4} parent=11 // pred_check_branch
          %176 = sbr.rel (%p174) target = $region20
        $region19: #{da_module_forward.4} parent=11 // pred_region
          _
        $region20: #{da_module_forward.4} parent=11 // pred_fallthru
          _
        // Predicated region
        $region21: #{da_module_forward.4} parent=11 // pred_check
          %p177 = pneg %p104
        $region22: #{da_module_forward.4} parent=11 // pred_check_branch
          %179 = sbr.rel (%p177) target = $region24
        $region23: #{da_module_forward.4} parent=11 // pred_region
          _
        $region24: #{da_module_forward.4} parent=11 // pred_fallthru
          _
      $region12: #{da_module_forward.4} parent=5 // pred_fallthru
        _
      %p180 = scmp.lt.s32.totalorder %s15, 2
      // Predicated region
      $region25: #{da_module_forward.4} parent=5 // pred_check
        %p181 = pneg %p180
      $region26: #{da_module_forward.4} parent=5 // pred_check_branch
        %183 = sbr.rel (%p181) target = $region28
      $region27: #{da_module_forward.4} parent=5 // pred_region
        // Predicated region
        $region29: #{da_module_forward.4} parent=27 // pred_check
          %p184 = pneg %p35
        $region30: #{da_module_forward.4} parent=27 // pred_check_branch
          %186 = sbr.rel (%p184) target = $region32
        $region31: #{da_module_forward.4} parent=27 // pred_region
          %p187 = scmp.lt.s32.totalorder %s15, 1
          %s188 = scalar_select %p187, %s15, 1
          %s189 = smul.addr %s188, 32
          %s190 = smul.addr %s189, 4
          %s191 = scalar_lea.vmem %s0, %s190
        $region32: #{da_module_forward.4} parent=27 // pred_fallthru
          _
      $region28: #{da_module_forward.4} parent=5 // pred_fallthru
        _
      %p192 = scmp.le.s32.totalorder 1, %s15
      %p193 = scmp.lt.s32.totalorder %s15, 3
      %p194 = pnand %p192, %p193
      %p195 = pneg %p194
      // Predicated region
      $region33: #{da_module_forward.4} parent=5 // pred_check
        _
      $region34: #{da_module_forward.4} parent=5 // pred_check_branch
        %197 = sbr.rel (%p194) target = $region36
      $region35: #{da_module_forward.4} parent=5 // pred_region
        %s198 = ssub.s32 %s15, 1
        %p199 = scmp.lt.s32.totalorder %s20, 1
        %s200 = scalar_select %p199, %s20, 1
        %s201 = smul.addr %s200, 32
        %s202 = smul.addr %s201, 4
        %s203 = scalar_lea.vmem %s0, %s202
        %p204 = pneg %p41
        %p205 = pneg %p38
        %p206 = pneg %p62
        %p207 = pneg %p59
        %p208 = pneg %p83
        %p209 = pneg %p80
        %p210 = pneg %p104
        %p211 = pneg %p101
        %p212 = pneg %p130
        %p213 = pneg %p127
        %p214 = scmp.lt.s32.totalorder %s20, 1
        %s215 = scalar_select %p214, %s20, 1
        %s216 = smul.addr %s215, 32
        %s217 = smul.addr %s216, 4
        %s218 = scalar_lea.vmem %s4, %s217
        %p219 = pneg %p156
        %p220 = pneg %p153
        %s221 = sand.u32 %s143, 1
        %s222 = scalar_lea.sflag [#allocation3], %s221
        %s223 = sand.u32 %s143, 1
        %s224 = smul.addr %s223, 512
        %s225 = scalar_lea.vmem [#allocation2], %s224
        %p226 = scmp.lt.s32.totalorder %s20, 1
        %s227 = scalar_select %p226, %s20, 1
        %s228 = smul.addr %s227, 32
        %s229 = smul.addr %s228, 4
        %s230 = scalar_lea.vmem %s0, %s229
        %p231 = scmp.lt.s32.totalorder %s20, 1
        %s232 = scalar_select %p231, %s20, 1
        %s233 = smul.addr %s232, 32
        %s234 = smul.addr %s233, 4
        %s235 = scalar_lea.vmem %s4, %s234
        %v236 = vld [vmem:[%s1] sm:$0x1]
        %v237 = vld [vmem:[%s1 + $0x1] sm:$0x1]
        %v238 = vld [vmem:[%s230] sm:$0xf]
        %v239 = vld [vmem:[%s230 + $0x4] sm:$0xf]
        %v240 = vld [vmem:[%s230 + $0x8] sm:$0xf]
        %v241 = vld [vmem:[%s230 + $0xc] sm:$0xf]
        %v242 = vld [vmem:[%s230 + $0x10] sm:$0xf]
        %v243 = vld [vmem:[%s230 + $0x14] sm:$0xf]
        %v244 = vld [vmem:[%s230 + $0x18] sm:$0xf]
        %v245 = vld [vmem:[%s230 + $0x1c] sm:$0xf]
        %v246 = vld [vmem:[%s230 + $0x20] sm:$0xf]
        %v247 = vld [vmem:[%s230 + $0x24] sm:$0xf]
        %v248 = vld [vmem:[%s230 + $0x28] sm:$0xf]
        %v249 = vld [vmem:[%s230 + $0x2c] sm:$0xf]
        %v250 = vld [vmem:[%s230 + $0x30] sm:$0xf]
        %v251 = vld [vmem:[%s230 + $0x34] sm:$0xf]
        %v252 = vld [vmem:[%s230 + $0x38] sm:$0xf]
        %v253 = vld [vmem:[%s230 + $0x3c] sm:$0xf]
        %v254 = vld [vmem:[%s230 + $0x40] sm:$0xf]
        %v255 = vld [vmem:[%s230 + $0x44] sm:$0xf]
        %v256 = vld [vmem:[%s230 + $0x48] sm:$0xf]
        %v257 = vld [vmem:[%s230 + $0x4c] sm:$0xf]
        %v258 = vld [vmem:[%s230 + $0x50] sm:$0xf]
        %v259 = vld [vmem:[%s230 + $0x54] sm:$0xf]
        %v260 = vld [vmem:[%s230 + $0x58] sm:$0xf]
        %v261 = vld [vmem:[%s230 + $0x5c] sm:$0xf]
        %v262 = vld [vmem:[%s230 + $0x60] sm:$0xf]
        %v263 = vld [vmem:[%s230 + $0x64] sm:$0xf]
        %v264 = vld [vmem:[%s230 + $0x68] sm:$0xf]
        %v265 = vld [vmem:[%s230 + $0x6c] sm:$0xf]
        %v266 = vld [vmem:[%s230 + $0x70] sm:$0xf]
        %v267 = vld [vmem:[%s230 + $0x74] sm:$0xf]
        %v268 = vld [vmem:[%s230 + $0x78] sm:$0xf]
        %v269 = vld [vmem:[%s230 + $0x7c] sm:$0xf]
        %v270 = vunpack.c.l.bf16 %v238
        %v271 = vunpack.c.l.bf16 %v239
        %v272 = vunpack.c.l.bf16 %v240
        %v273 = vunpack.c.l.bf16 %v241
        %v274 = vunpack.c.l.bf16 %v242
        %v275 = vunpack.c.l.bf16 %v243
        %v276 = vunpack.c.l.bf16 %v244
        %v277 = vunpack.c.l.bf16 %v245
        %v278 = vunpack.c.l.bf16 %v246
        %v279 = vunpack.c.l.bf16 %v247
        %v280 = vunpack.c.l.bf16 %v248
        %v281 = vunpack.c.l.bf16 %v249
        %v282 = vunpack.c.l.bf16 %v250
        %v283 = vunpack.c.l.bf16 %v251
        %v284 = vunpack.c.l.bf16 %v252
        %v285 = vunpack.c.l.bf16 %v253
        %v286 = vunpack.c.l.bf16 %v254
        %v287 = vunpack.c.l.bf16 %v255
        %v288 = vunpack.c.l.bf16 %v256
        %v289 = vunpack.c.l.bf16 %v257
        %v290 = vunpack.c.l.bf16 %v258
        %v291 = vunpack.c.l.bf16 %v259
        %v292 = vunpack.c.l.bf16 %v260
        %v293 = vunpack.c.l.bf16 %v261
        %v294 = vunpack.c.l.bf16 %v262
        %v295 = vunpack.c.l.bf16 %v263
        %v296 = vunpack.c.l.bf16 %v264
        %v297 = vunpack.c.l.bf16 %v265
        %v298 = vunpack.c.l.bf16 %v266
        %v299 = vunpack.c.l.bf16 %v267
        %v300 = vunpack.c.l.bf16 %v268
        %v301 = vunpack.c.l.bf16 %v269
        %v302 = vperm.slane %v236, 0
        %v303 = vmul.f32 %v270, %v302
        %v304 = vmul.f32 %v271, %v302
        %v305 = vmul.f32 %v272, %v302
        %v306 = vmul.f32 %v273, %v302
        %v307 = vmul.f32 %v274, %v302
        %v308 = vmul.f32 %v275, %v302
        %v309 = vmul.f32 %v276, %v302
        %v310 = vmul.f32 %v277, %v302
        %v311 = vmul.f32 %v278, %v302
        %v312 = vmul.f32 %v279, %v302
        %v313 = vmul.f32 %v280, %v302
        %v314 = vmul.f32 %v281, %v302
        %v315 = vmul.f32 %v282, %v302
        %v316 = vmul.f32 %v283, %v302
        %v317 = vmul.f32 %v284, %v302
        %v318 = vmul.f32 %v285, %v302
        %v319 = vmul.f32 %v286, %v302
        %v320 = vmul.f32 %v287, %v302
        %v321 = vmul.f32 %v288, %v302
        %v322 = vmul.f32 %v289, %v302
        %v323 = vmul.f32 %v290, %v302
        %v324 = vmul.f32 %v291, %v302
        %v325 = vmul.f32 %v292, %v302
        %v326 = vmul.f32 %v293, %v302
        %v327 = vmul.f32 %v294, %v302
        %v328 = vmul.f32 %v295, %v302
        %v329 = vmul.f32 %v296, %v302
        %v330 = vmul.f32 %v297, %v302
        %v331 = vmul.f32 %v298, %v302
        %v332 = vmul.f32 %v299, %v302
        %v333 = vmul.f32 %v300, %v302
        %v334 = vmul.f32 %v301, %v302
        %v335 = vperm.slane %v237, 0
        %v336 = vadd.f32 %v303, %v335
        %v337 = vadd.f32 %v304, %v335
        %v338 = vadd.f32 %v305, %v335
        %v339 = vadd.f32 %v306, %v335
        %v340 = vadd.f32 %v307, %v335
        %v341 = vadd.f32 %v308, %v335
        %v342 = vadd.f32 %v309, %v335
        %v343 = vadd.f32 %v310, %v335
        %v344 = vadd.f32 %v311, %v335
        %v345 = vadd.f32 %v312, %v335
        %v346 = vadd.f32 %v313, %v335
        %v347 = vadd.f32 %v314, %v335
        %v348 = vadd.f32 %v315, %v335
        %v349 = vadd.f32 %v316, %v335
        %v350 = vadd.f32 %v317, %v335
        %v351 = vadd.f32 %v318, %v335
        %v352 = vadd.f32 %v319, %v335
        %v353 = vadd.f32 %v320, %v335
        %v354 = vadd.f32 %v321, %v335
        %v355 = vadd.f32 %v322, %v335
        %v356 = vadd.f32 %v323, %v335
        %v357 = vadd.f32 %v324, %v335
        %v358 = vadd.f32 %v325, %v335
        %v359 = vadd.f32 %v326, %v335
        %v360 = vadd.f32 %v327, %v335
        %v361 = vadd.f32 %v328, %v335
        %v362 = vadd.f32 %v329, %v335
        %v363 = vadd.f32 %v330, %v335
        %v364 = vadd.f32 %v331, %v335
        %v365 = vadd.f32 %v332, %v335
        %v366 = vadd.f32 %v333, %v335
        %v367 = vadd.f32 %v334, %v335
        %v368 = vpack.c.bf16 %v337, %v336
        %v369 = vpack.c.bf16 %v339, %v338
        %v370 = vpack.c.bf16 %v341, %v340
        %v371 = vpack.c.bf16 %v343, %v342
        %v372 = vpack.c.bf16 %v345, %v344
        %v373 = vpack.c.bf16 %v347, %v346
        %v374 = vpack.c.bf16 %v349, %v348
        %v375 = vpack.c.bf16 %v351, %v350
        %v376 = vpack.c.bf16 %v353, %v352
        %v377 = vpack.c.bf16 %v355, %v354
        %v378 = vpack.c.bf16 %v357, %v356
        %v379 = vpack.c.bf16 %v359, %v358
        %v380 = vpack.c.bf16 %v361, %v360
        %v381 = vpack.c.bf16 %v363, %v362
        %v382 = vpack.c.bf16 %v365, %v364
        %v383 = vpack.c.bf16 %v367, %v366
        %v384 = vld [vmem:[%s2] sm:$0xf]
        %v385 = vld [vmem:[%s2 + $0x4] sm:$0xf]
        %v386 = vld [vmem:[%s2 + $0x8] sm:$0xf]
        %v387 = vld [vmem:[%s2 + $0xc] sm:$0xf]
        %v388 = vld [vmem:[%s2 + $0x10] sm:$0xf]
        %v389 = vld [vmem:[%s2 + $0x14] sm:$0xf]
        %v390 = vld [vmem:[%s2 + $0x18] sm:$0xf]
        %v391 = vld [vmem:[%s2 + $0x1c] sm:$0xf]
        %v392 = vld [vmem:[%s2 + $0x20] sm:$0xf]
        %v393 = vld [vmem:[%s2 + $0x24] sm:$0xf]
        %v394 = vld [vmem:[%s2 + $0x28] sm:$0xf]
        %v395 = vld [vmem:[%s2 + $0x2c] sm:$0xf]
        %v396 = vld [vmem:[%s2 + $0x30] sm:$0xf]
        %v397 = vld [vmem:[%s2 + $0x34] sm:$0xf]
        %v398 = vld [vmem:[%s2 + $0x38] sm:$0xf]
        %v399 = vld [vmem:[%s2 + $0x3c] sm:$0xf]
        %v416 = vunpack.c.l.b16 %v384
        %v417 = vunpack.c.l.b16 %v385
        %v418 = vunpack.c.l.b16 %v386
        %v419 = vunpack.c.l.b16 %v387
        %v420 = vunpack.c.l.b16 %v388
        %v421 = vunpack.c.l.b16 %v389
        %v422 = vunpack.c.l.b16 %v390
        %v423 = vunpack.c.l.b16 %v391
        %v424 = vunpack.c.l.b16 %v392
        %v425 = vunpack.c.l.b16 %v393
        %v426 = vunpack.c.l.b16 %v394
        %v427 = vunpack.c.l.b16 %v395
        %v428 = vunpack.c.l.b16 %v396
        %v429 = vunpack.c.l.b16 %v397
        %v430 = vunpack.c.l.b16 %v398
        %v431 = vunpack.c.l.b16 %v399
        %v432 = vpack.c.b16 %v417, %v416
        %v433 = vpack.c.b16 %v419, %v418
        %v434 = vpack.c.b16 %v421, %v420
        %v435 = vpack.c.b16 %v423, %v422
        %v436 = vpack.c.b16 %v425, %v424
        %v437 = vpack.c.b16 %v427, %v426
        %v438 = vpack.c.b16 %v429, %v428
        %v439 = vpack.c.b16 %v431, %v430
        %448 = vmatpush.bf16.msra.mxu0 %v439
        %449 = vmatpush.bf16.msra.mxu0 %v438
        %450 = vmatpush.bf16.msra.mxu0 %v437
        %451 = vmatpush.bf16.msra.mxu0 %v436
        %452 = vmatpush.bf16.msra.mxu0 %v435
        %453 = vmatpush.bf16.msra.mxu0 %v434
        %454 = vmatpush.bf16.msra.mxu0 %v433
        %455 = vmatpush.bf16.msra.mxu0 %v432
        %456 = vmatmul.bf16.gmra.mxu0 %v368
        %v457 = vpop.f32.mrf.mxu0
        %v458 = vadd.f32 0.0, %v457
        %v459 = vpop.f32.mrf.mxu0
        %v460 = vadd.f32 0.0, %v459
        %461 = vmatmul.bf16.gmra.mxu0 %v369
        %v462 = vpop.f32.mrf.mxu0
        %v463 = vadd.f32 0.0, %v462
        %v464 = vpop.f32.mrf.mxu0
        %v465 = vadd.f32 0.0, %v464
        %466 = vmatmul.bf16.gmra.mxu0 %v370
        %v467 = vpop.f32.mrf.mxu0
        %v468 = vadd.f32 0.0, %v467
        %v469 = vpop.f32.mrf.mxu0
        %v470 = vadd.f32 0.0, %v469
        %471 = vmatmul.bf16.gmra.mxu0 %v371
        %v472 = vpop.f32.mrf.mxu0
        %v473 = vadd.f32 0.0, %v472
        %v474 = vpop.f32.mrf.mxu0
        %v475 = vadd.f32 0.0, %v474
        %476 = vmatmul.bf16.gmra.mxu0 %v372
        %v477 = vpop.f32.mrf.mxu0
        %v478 = vadd.f32 0.0, %v477
        %v479 = vpop.f32.mrf.mxu0
        %v480 = vadd.f32 0.0, %v479
        %481 = vmatmul.bf16.gmra.mxu0 %v373
        %v482 = vpop.f32.mrf.mxu0
        %v483 = vadd.f32 0.0, %v482
        %v484 = vpop.f32.mrf.mxu0
        %v485 = vadd.f32 0.0, %v484
        %486 = vmatmul.bf16.gmra.mxu0 %v374
        %v487 = vpop.f32.mrf.mxu0
        %v488 = vadd.f32 0.0, %v487
        %v489 = vpop.f32.mrf.mxu0
        %v490 = vadd.f32 0.0, %v489
        %491 = vmatmul.bf16.gmra.mxu0 %v375
        %v492 = vpop.f32.mrf.mxu0
        %v493 = vadd.f32 0.0, %v492
        %v494 = vpop.f32.mrf.mxu0
        %v495 = vadd.f32 0.0, %v494
        %496 = vmatmul.bf16.gmra.mxu0 %v376
        %v497 = vpop.f32.mrf.mxu0
        %v498 = vadd.f32 0.0, %v497
        %v499 = vpop.f32.mrf.mxu0
        %v500 = vadd.f32 0.0, %v499
        %501 = vmatmul.bf16.gmra.mxu0 %v377
        %v502 = vpop.f32.mrf.mxu0
        %v503 = vadd.f32 0.0, %v502
        %v504 = vpop.f32.mrf.mxu0
        %v505 = vadd.f32 0.0, %v504
        %506 = vmatmul.bf16.gmra.mxu0 %v378
        %v507 = vpop.f32.mrf.mxu0
        %v508 = vadd.f32 0.0, %v507
        %v509 = vpop.f32.mrf.mxu0
        %v510 = vadd.f32 0.0, %v509
        %511 = vmatmul.bf16.gmra.mxu0 %v379
        %v512 = vpop.f32.mrf.mxu0
        %v513 = vadd.f32 0.0, %v512
        %v514 = vpop.f32.mrf.mxu0
        %v515 = vadd.f32 0.0, %v514
        %516 = vmatmul.bf16.gmra.mxu0 %v380
        %v517 = vpop.f32.mrf.mxu0
        %v518 = vadd.f32 0.0, %v517
        %v519 = vpop.f32.mrf.mxu0
        %v520 = vadd.f32 0.0, %v519
        %521 = vmatmul.bf16.gmra.mxu0 %v381
        %v522 = vpop.f32.mrf.mxu0
        %v523 = vadd.f32 0.0, %v522
        %v524 = vpop.f32.mrf.mxu0
        %v525 = vadd.f32 0.0, %v524
        %526 = vmatmul.bf16.gmra.mxu0 %v382
        %v527 = vpop.f32.mrf.mxu0
        %v528 = vadd.f32 0.0, %v527
        %v529 = vpop.f32.mrf.mxu0
        %v530 = vadd.f32 0.0, %v529
        %531 = vmatmul.bf16.gmra.mxu0 %v383
        %v532 = vpop.f32.mrf.mxu0
        %v533 = vadd.f32 0.0, %v532
        %v534 = vpop.f32.mrf.mxu0
        %v535 = vadd.f32 0.0, %v534
        %536 = vdwg.mxu0
        %v537 = vpack.c.bf16 %v460, %v458
        %v538 = vpack.c.bf16 %v465, %v463
        %v539 = vpack.c.bf16 %v470, %v468
        %v540 = vpack.c.bf16 %v475, %v473
        %v541 = vpack.c.bf16 %v480, %v478
        %v542 = vpack.c.bf16 %v485, %v483
        %v543 = vpack.c.bf16 %v490, %v488
        %v544 = vpack.c.bf16 %v495, %v493
        %v545 = vpack.c.bf16 %v500, %v498
        %v546 = vpack.c.bf16 %v505, %v503
        %v547 = vpack.c.bf16 %v510, %v508
        %v548 = vpack.c.bf16 %v515, %v513
        %v549 = vpack.c.bf16 %v520, %v518
        %v550 = vpack.c.bf16 %v525, %v523
        %v551 = vpack.c.bf16 %v530, %v528
        %v552 = vpack.c.bf16 %v535, %v533
        %553 = vmatpush.bf16.xpose.msra.mxu0 %v375
        %554 = vmatpush.bf16.xpose.msra.mxu0 %v374
        %555 = vmatpush.bf16.xpose.msra.mxu0 %v373
        %556 = vmatpush.bf16.xpose.msra.mxu0 %v372
        %557 = vmatpush.bf16.xpose.msra.mxu0 %v371
        %558 = vmatpush.bf16.xpose.msra.mxu0 %v370
        %559 = vmatpush.bf16.xpose.msra.mxu0 %v369
        %560 = vmatpush.bf16.xpose.msra.mxu0 %v368
        %561 = vmatmul.bf16.gmra.mxu0 %v537
        %v562 = vpop.f32.mrf.mxu0
        %v563 = vadd.f32 0.0, %v562
        %v564 = vpop.f32.mrf.mxu0
        %v565 = vadd.f32 0.0, %v564
        %566 = vmatmul.bf16.gmra.mxu0 %v538
        %v567 = vpop.f32.mrf.mxu0
        %v568 = vadd.f32 0.0, %v567
        %v569 = vpop.f32.mrf.mxu0
        %v570 = vadd.f32 0.0, %v569
        %571 = vmatmul.bf16.gmra.mxu0 %v539
        %v572 = vpop.f32.mrf.mxu0
        %v573 = vadd.f32 0.0, %v572
        %v574 = vpop.f32.mrf.mxu0
        %v575 = vadd.f32 0.0, %v574
        %576 = vmatmul.bf16.gmra.mxu0 %v540
        %v577 = vpop.f32.mrf.mxu0
        %v578 = vadd.f32 0.0, %v577
        %v579 = vpop.f32.mrf.mxu0
        %v580 = vadd.f32 0.0, %v579
        %581 = vmatmul.bf16.gmra.mxu0 %v541
        %v582 = vpop.f32.mrf.mxu0
        %v583 = vadd.f32 0.0, %v582
        %v584 = vpop.f32.mrf.mxu0
        %v585 = vadd.f32 0.0, %v584
        %586 = vmatmul.bf16.gmra.mxu0 %v542
        %v587 = vpop.f32.mrf.mxu0
        %v588 = vadd.f32 0.0, %v587
        %v589 = vpop.f32.mrf.mxu0
        %v590 = vadd.f32 0.0, %v589
        %591 = vmatmul.bf16.gmra.mxu0 %v543
        %v592 = vpop.f32.mrf.mxu0
        %v593 = vadd.f32 0.0, %v592
        %v594 = vpop.f32.mrf.mxu0
        %v595 = vadd.f32 0.0, %v594
        %596 = vmatmul.bf16.gmra.mxu0 %v544
        %v597 = vpop.f32.mrf.mxu0
        %v598 = vadd.f32 0.0, %v597
        %v599 = vpop.f32.mrf.mxu0
        %v600 = vadd.f32 0.0, %v599
        %601 = vmatmul.bf16.gmra.mxu0 %v545
        %v602 = vpop.f32.mrf.mxu0
        %v603 = vadd.f32 0.0, %v602
        %v604 = vpop.f32.mrf.mxu0
        %v605 = vadd.f32 0.0, %v604
        %606 = vmatmul.bf16.gmra.mxu0 %v546
        %v607 = vpop.f32.mrf.mxu0
        %v608 = vadd.f32 0.0, %v607
        %v609 = vpop.f32.mrf.mxu0
        %v610 = vadd.f32 0.0, %v609
        %611 = vmatmul.bf16.gmra.mxu0 %v547
        %v612 = vpop.f32.mrf.mxu0
        %v613 = vadd.f32 0.0, %v612
        %v614 = vpop.f32.mrf.mxu0
        %v615 = vadd.f32 0.0, %v614
        %616 = vmatmul.bf16.gmra.mxu0 %v548
        %v617 = vpop.f32.mrf.mxu0
        %v618 = vadd.f32 0.0, %v617
        %v619 = vpop.f32.mrf.mxu0
        %v620 = vadd.f32 0.0, %v619
        %621 = vmatmul.bf16.gmra.mxu0 %v549
        %v622 = vpop.f32.mrf.mxu0
        %v623 = vadd.f32 0.0, %v622
        %v624 = vpop.f32.mrf.mxu0
        %v625 = vadd.f32 0.0, %v624
        %626 = vmatmul.bf16.gmra.mxu0 %v550
        %v627 = vpop.f32.mrf.mxu0
        %v628 = vadd.f32 0.0, %v627
        %v629 = vpop.f32.mrf.mxu0
        %v630 = vadd.f32 0.0, %v629
        %631 = vmatmul.bf16.gmra.mxu0 %v551
        %v632 = vpop.f32.mrf.mxu0
        %v633 = vadd.f32 0.0, %v632
        %v634 = vpop.f32.mrf.mxu0
        %v635 = vadd.f32 0.0, %v634
        %636 = vmatmul.bf16.gmra.mxu0 %v552
        %v637 = vpop.f32.mrf.mxu0
        %v638 = vadd.f32 0.0, %v637
        %v639 = vpop.f32.mrf.mxu0
        %v640 = vadd.f32 0.0, %v639
        %641 = vdwg.mxu0
        %642 = vmatpush.bf16.xpose.msra.mxu0 %v383
        %643 = vmatpush.bf16.xpose.msra.mxu0 %v382
        %644 = vmatpush.bf16.xpose.msra.mxu0 %v381
        %645 = vmatpush.bf16.xpose.msra.mxu0 %v380
        %646 = vmatpush.bf16.xpose.msra.mxu0 %v379
        %647 = vmatpush.bf16.xpose.msra.mxu0 %v378
        %648 = vmatpush.bf16.xpose.msra.mxu0 %v377
        %649 = vmatpush.bf16.xpose.msra.mxu0 %v376
        %650 = vmatmul.bf16.gmra.mxu0 %v537
        %v651 = vpop.f32.mrf.mxu0
        %v652 = vadd.f32 0.0, %v651
        %v653 = vpop.f32.mrf.mxu0
        %v654 = vadd.f32 0.0, %v653
        %655 = vmatmul.bf16.gmra.mxu0 %v538
        %v656 = vpop.f32.mrf.mxu0
        %v657 = vadd.f32 0.0, %v656
        %v658 = vpop.f32.mrf.mxu0
        %v659 = vadd.f32 0.0, %v658
        %660 = vmatmul.bf16.gmra.mxu0 %v539
        %v661 = vpop.f32.mrf.mxu0
        %v662 = vadd.f32 0.0, %v661
        %v663 = vpop.f32.mrf.mxu0
        %v664 = vadd.f32 0.0, %v663
        %665 = vmatmul.bf16.gmra.mxu0 %v540
        %v666 = vpop.f32.mrf.mxu0
        %v667 = vadd.f32 0.0, %v666
        %v668 = vpop.f32.mrf.mxu0
        %v669 = vadd.f32 0.0, %v668
        %670 = vmatmul.bf16.gmra.mxu0 %v541
        %v671 = vpop.f32.mrf.mxu0
        %v672 = vadd.f32 0.0, %v671
        %v673 = vpop.f32.mrf.mxu0
        %v674 = vadd.f32 0.0, %v673
        %675 = vmatmul.bf16.gmra.mxu0 %v542
        %v676 = vpop.f32.mrf.mxu0
        %v677 = vadd.f32 0.0, %v676
        %v678 = vpop.f32.mrf.mxu0
        %v679 = vadd.f32 0.0, %v678
        %680 = vmatmul.bf16.gmra.mxu0 %v543
        %v681 = vpop.f32.mrf.mxu0
        %v682 = vadd.f32 0.0, %v681
        %v683 = vpop.f32.mrf.mxu0
        %v684 = vadd.f32 0.0, %v683
        %685 = vmatmul.bf16.gmra.mxu0 %v544
        %v686 = vpop.f32.mrf.mxu0
        %v687 = vadd.f32 0.0, %v686
        %v688 = vpop.f32.mrf.mxu0
        %v689 = vadd.f32 0.0, %v688
        %690 = vmatmul.bf16.gmra.mxu0 %v545
        %v691 = vpop.f32.mrf.mxu0
        %v692 = vadd.f32 0.0, %v691
        %v693 = vpop.f32.mrf.mxu0
        %v694 = vadd.f32 0.0, %v693
        %695 = vmatmul.bf16.gmra.mxu0 %v546
        %v696 = vpop.f32.mrf.mxu0
        %v697 = vadd.f32 0.0, %v696
        %v698 = vpop.f32.mrf.mxu0
        %v699 = vadd.f32 0.0, %v698
        %700 = vmatmul.bf16.gmra.mxu0 %v547
        %v701 = vpop.f32.mrf.mxu0
        %v702 = vadd.f32 0.0, %v701
        %v703 = vpop.f32.mrf.mxu0
        %v704 = vadd.f32 0.0, %v703
        %705 = vmatmul.bf16.gmra.mxu0 %v548
        %v706 = vpop.f32.mrf.mxu0
        %v707 = vadd.f32 0.0, %v706
        %v708 = vpop.f32.mrf.mxu0
        %v709 = vadd.f32 0.0, %v708
        %710 = vmatmul.bf16.gmra.mxu0 %v549
        %v711 = vpop.f32.mrf.mxu0
        %v712 = vadd.f32 0.0, %v711
        %v713 = vpop.f32.mrf.mxu0
        %v714 = vadd.f32 0.0, %v713
        %715 = vmatmul.bf16.gmra.mxu0 %v550
        %v716 = vpop.f32.mrf.mxu0
        %v717 = vadd.f32 0.0, %v716
        %v718 = vpop.f32.mrf.mxu0
        %v719 = vadd.f32 0.0, %v718
        %720 = vmatmul.bf16.gmra.mxu0 %v551
        %v721 = vpop.f32.mrf.mxu0
        %v722 = vadd.f32 0.0, %v721
        %v723 = vpop.f32.mrf.mxu0
        %v724 = vadd.f32 0.0, %v723
        %725 = vmatmul.bf16.gmra.mxu0 %v552
        %v726 = vpop.f32.mrf.mxu0
        %v727 = vadd.f32 0.0, %v726
        %v728 = vpop.f32.mrf.mxu0
        %v729 = vadd.f32 0.0, %v728
        %730 = vdwg.mxu0
        %v731 = vmax.f32 %v563, %v652
        %732 = vmax.xlane.f32.xlu0 %v731
        %v733 = vpop.xlane.xlu0 %732
        %v734 = vmax.f32 %v565, %v654
        %735 = vmax.xlane.f32.xlu0 %v734
        %v736 = vpop.xlane.xlu0 %735
        %v737 = vmax.f32 %v568, %v657
        %738 = vmax.xlane.f32.xlu0 %v737
        %v739 = vpop.xlane.xlu0 %738
        %v740 = vmax.f32 %v570, %v659
        %741 = vmax.xlane.f32.xlu0 %v740
        %v742 = vpop.xlane.xlu0 %741
        %v743 = vmax.f32 %v573, %v662
        %744 = vmax.xlane.f32.xlu0 %v743
        %v745 = vpop.xlane.xlu0 %744
        %v746 = vmax.f32 %v575, %v664
        %747 = vmax.xlane.f32.xlu0 %v746
        %v748 = vpop.xlane.xlu0 %747
        %v749 = vmax.f32 %v578, %v667
        %750 = vmax.xlane.f32.xlu0 %v749
        %v751 = vpop.xlane.xlu0 %750
        %v752 = vmax.f32 %v580, %v669
        %753 = vmax.xlane.f32.xlu0 %v752
        %v754 = vpop.xlane.xlu0 %753
        %v755 = vmax.f32 %v583, %v672
        %756 = vmax.xlane.f32.xlu0 %v755
        %v757 = vpop.xlane.xlu0 %756
        %v758 = vmax.f32 %v585, %v674
        %759 = vmax.xlane.f32.xlu0 %v758
        %v760 = vpop.xlane.xlu0 %759
        %v761 = vmax.f32 %v588, %v677
        %762 = vmax.xlane.f32.xlu0 %v761
        %v763 = vpop.xlane.xlu0 %762
        %v764 = vmax.f32 %v590, %v679
        %765 = vmax.xlane.f32.xlu0 %v764
        %v766 = vpop.xlane.xlu0 %765
        %v767 = vmax.f32 %v593, %v682
        %768 = vmax.xlane.f32.xlu0 %v767
        %v769 = vpop.xlane.xlu0 %768
        %v770 = vmax.f32 %v595, %v684
        %771 = vmax.xlane.f32.xlu0 %v770
        %v772 = vpop.xlane.xlu0 %771
        %v773 = vmax.f32 %v598, %v687
        %774 = vmax.xlane.f32.xlu0 %v773
        %v775 = vpop.xlane.xlu0 %774
        %v776 = vmax.f32 %v600, %v689
        %777 = vmax.xlane.f32.xlu0 %v776
        %v778 = vpop.xlane.xlu0 %777
        %v779 = vmax.f32 %v603, %v692
        %780 = vmax.xlane.f32.xlu0 %v779
        %v781 = vpop.xlane.xlu0 %780
        %v782 = vmax.f32 %v605, %v694
        %783 = vmax.xlane.f32.xlu0 %v782
        %v784 = vpop.xlane.xlu0 %783
        %v785 = vmax.f32 %v608, %v697
        %786 = vmax.xlane.f32.xlu0 %v785
        %v787 = vpop.xlane.xlu0 %786
        %v788 = vmax.f32 %v610, %v699
        %789 = vmax.xlane.f32.xlu0 %v788
        %v790 = vpop.xlane.xlu0 %789
        %v791 = vmax.f32 %v613, %v702
        %792 = vmax.xlane.f32.xlu0 %v791
        %v793 = vpop.xlane.xlu0 %792
        %v794 = vmax.f32 %v615, %v704
        %795 = vmax.xlane.f32.xlu0 %v794
        %v796 = vpop.xlane.xlu0 %795
        %v797 = vmax.f32 %v618, %v707
        %798 = vmax.xlane.f32.xlu0 %v797
        %v799 = vpop.xlane.xlu0 %798
        %v800 = vmax.f32 %v620, %v709
        %801 = vmax.xlane.f32.xlu0 %v800
        %v802 = vpop.xlane.xlu0 %801
        %v803 = vmax.f32 %v623, %v712
        %804 = vmax.xlane.f32.xlu0 %v803
        %v805 = vpop.xlane.xlu0 %804
        %v806 = vmax.f32 %v625, %v714
        %807 = vmax.xlane.f32.xlu0 %v806
        %v808 = vpop.xlane.xlu0 %807
        %v809 = vmax.f32 %v628, %v717
        %810 = vmax.xlane.f32.xlu0 %v809
        %v811 = vpop.xlane.xlu0 %810
        %v812 = vmax.f32 %v630, %v719
        %813 = vmax.xlane.f32.xlu0 %v812
        %v814 = vpop.xlane.xlu0 %813
        %v815 = vmax.f32 %v633, %v722
        %816 = vmax.xlane.f32.xlu0 %v815
        %v817 = vpop.xlane.xlu0 %816
        %v818 = vmax.f32 %v635, %v724
        %819 = vmax.xlane.f32.xlu0 %v818
        %v820 = vpop.xlane.xlu0 %819
        %v821 = vmax.f32 %v638, %v727
        %822 = vmax.xlane.f32.xlu0 %v821
        %v823 = vpop.xlane.xlu0 %822
        %v824 = vmax.f32 %v640, %v729
        %825 = vmax.xlane.f32.xlu0 %v824
        %v826 = vpop.xlane.xlu0 %825
        %v827 = vsub.f32 %v563, %v733
        %v828 = vsub.f32 %v652, %v733
        %v829 = vsub.f32 %v565, %v736
        %v830 = vsub.f32 %v654, %v736
        %v831 = vsub.f32 %v568, %v739
        %v832 = vsub.f32 %v657, %v739
        %v833 = vsub.f32 %v570, %v742
        %v834 = vsub.f32 %v659, %v742
        %v835 = vsub.f32 %v573, %v745
        %v836 = vsub.f32 %v662, %v745
        %v837 = vsub.f32 %v575, %v748
        %v838 = vsub.f32 %v664, %v748
        %v839 = vsub.f32 %v578, %v751
        %v840 = vsub.f32 %v667, %v751
        %v841 = vsub.f32 %v580, %v754
        %v842 = vsub.f32 %v669, %v754
        %v843 = vsub.f32 %v583, %v757
        %v844 = vsub.f32 %v672, %v757
        %v845 = vsub.f32 %v585, %v760
        %v846 = vsub.f32 %v674, %v760
        %v847 = vsub.f32 %v588, %v763
        %v848 = vsub.f32 %v677, %v763
        %v849 = vsub.f32 %v590, %v766
        %v850 = vsub.f32 %v679, %v766
        %v851 = vsub.f32 %v593, %v769
        %v852 = vsub.f32 %v682, %v769
        %v853 = vsub.f32 %v595, %v772
        %v854 = vsub.f32 %v684, %v772
        %v855 = vsub.f32 %v598, %v775
        %v856 = vsub.f32 %v687, %v775
        %v857 = vsub.f32 %v600, %v778
        %v858 = vsub.f32 %v689, %v778
        %v859 = vsub.f32 %v603, %v781
        %v860 = vsub.f32 %v692, %v781
        %v861 = vsub.f32 %v605, %v784
        %v862 = vsub.f32 %v694, %v784
        %v863 = vsub.f32 %v608, %v787
        %v864 = vsub.f32 %v697, %v787
        %v865 = vsub.f32 %v610, %v790
        %v866 = vsub.f32 %v699, %v790
        %v867 = vsub.f32 %v613, %v793
        %v868 = vsub.f32 %v702, %v793
        %v869 = vsub.f32 %v615, %v796
        %v870 = vsub.f32 %v704, %v796
        %v871 = vsub.f32 %v618, %v799
        %v872 = vsub.f32 %v707, %v799
        %v873 = vsub.f32 %v620, %v802
        %v874 = vsub.f32 %v709, %v802
        %v875 = vsub.f32 %v623, %v805
        %v876 = vsub.f32 %v712, %v805
        %v877 = vsub.f32 %v625, %v808
        %v878 = vsub.f32 %v714, %v808
        %v879 = vsub.f32 %v628, %v811
        %v880 = vsub.f32 %v717, %v811
        %v881 = vsub.f32 %v630, %v814
        %v882 = vsub.f32 %v719, %v814
        %v883 = vsub.f32 %v633, %v817
        %v884 = vsub.f32 %v722, %v817
        %v885 = vsub.f32 %v635, %v820
        %v886 = vsub.f32 %v724, %v820
        %v887 = vsub.f32 %v638, %v823
        %v888 = vsub.f32 %v727, %v823
        %v889 = vsub.f32 %v640, %v826
        %v890 = vsub.f32 %v729, %v826
        %v891 = vmul.f32 %v827, 1.442695
        %v892 = vpow.pop %v891
        %v893 = vmul.f32 %v828, 1.442695
        %v894 = vpow.pop %v893
        %v895 = vmul.f32 %v829, 1.442695
        %v896 = vpow.pop %v895
        %v897 = vmul.f32 %v830, 1.442695
        %v898 = vpow.pop %v897
        %v899 = vmul.f32 %v831, 1.442695
        %v900 = vpow.pop %v899
        %v901 = vmul.f32 %v832, 1.442695
        %v902 = vpow.pop %v901
        %v903 = vmul.f32 %v833, 1.442695
        %v904 = vpow.pop %v903
        %v905 = vmul.f32 %v834, 1.442695
        %v906 = vpow.pop %v905
        %v907 = vmul.f32 %v835, 1.442695
        %v908 = vpow.pop %v907
        %v909 = vmul.f32 %v836, 1.442695
        %v910 = vpow.pop %v909
        %v911 = vmul.f32 %v837, 1.442695
        %v912 = vpow.pop %v911
        %v913 = vmul.f32 %v838, 1.442695
        %v914 = vpow.pop %v913
        %v915 = vmul.f32 %v839, 1.442695
        %v916 = vpow.pop %v915
        %v917 = vmul.f32 %v840, 1.442695
        %v918 = vpow.pop %v917
        %v919 = vmul.f32 %v841, 1.442695
        %v920 = vpow.pop %v919
        %v921 = vmul.f32 %v842, 1.442695
        %v922 = vpow.pop %v921
        %v923 = vmul.f32 %v843, 1.442695
        %v924 = vpow.pop %v923
        %v925 = vmul.f32 %v844, 1.442695
        %v926 = vpow.pop %v925
        %v927 = vmul.f32 %v845, 1.442695
        %v928 = vpow.pop %v927
        %v929 = vmul.f32 %v846, 1.442695
        %v930 = vpow.pop %v929
        %v931 = vmul.f32 %v847, 1.442695
        %v932 = vpow.pop %v931
        %v933 = vmul.f32 %v848, 1.442695
        %v934 = vpow.pop %v933
        %v935 = vmul.f32 %v849, 1.442695
        %v936 = vpow.pop %v935
        %v937 = vmul.f32 %v850, 1.442695
        %v938 = vpow.pop %v937
        %v939 = vmul.f32 %v851, 1.442695
        %v940 = vpow.pop %v939
        %v941 = vmul.f32 %v852, 1.442695
        %v942 = vpow.pop %v941
        %v943 = vmul.f32 %v853, 1.442695
        %v944 = vpow.pop %v943
        %v945 = vmul.f32 %v854, 1.442695
        %v946 = vpow.pop %v945
        %v947 = vmul.f32 %v855, 1.442695
        %v948 = vpow.pop %v947
        %v949 = vmul.f32 %v856, 1.442695
        %v950 = vpow.pop %v949
        %v951 = vmul.f32 %v857, 1.442695
        %v952 = vpow.pop %v951
        %v953 = vmul.f32 %v858, 1.442695
        %v954 = vpow.pop %v953
        %v955 = vmul.f32 %v859, 1.442695
        %v956 = vpow.pop %v955
        %v957 = vmul.f32 %v860, 1.442695
        %v958 = vpow.pop %v957
        %v959 = vmul.f32 %v861, 1.442695
        %v960 = vpow.pop %v959
        %v961 = vmul.f32 %v862, 1.442695
        %v962 = vpow.pop %v961
        %v963 = vmul.f32 %v863, 1.442695
        %v964 = vpow.pop %v963
        %v965 = vmul.f32 %v864, 1.442695
        %v966 = vpow.pop %v965
        %v967 = vmul.f32 %v865, 1.442695
        %v968 = vpow.pop %v967
        %v969 = vmul.f32 %v866, 1.442695
        %v970 = vpow.pop %v969
        %v971 = vmul.f32 %v867, 1.442695
        %v972 = vpow.pop %v971
        %v973 = vmul.f32 %v868, 1.442695
        %v974 = vpow.pop %v973
        %v975 = vmul.f32 %v869, 1.442695
        %v976 = vpow.pop %v975
        %v977 = vmul.f32 %v870, 1.442695
        %v978 = vpow.pop %v977
        %v979 = vmul.f32 %v871, 1.442695
        %v980 = vpow.pop %v979
        %v981 = vmul.f32 %v872, 1.442695
        %v982 = vpow.pop %v981
        %v983 = vmul.f32 %v873, 1.442695
        %v984 = vpow.pop %v983
        %v985 = vmul.f32 %v874, 1.442695
        %v986 = vpow.pop %v985
        %v987 = vmul.f32 %v875, 1.442695
        %v988 = vpow.pop %v987
        %v989 = vmul.f32 %v876, 1.442695
        %v990 = vpow.pop %v989
        %v991 = vmul.f32 %v877, 1.442695
        %v992 = vpow.pop %v991
        %v993 = vmul.f32 %v878, 1.442695
        %v994 = vpow.pop %v993
        %v995 = vmul.f32 %v879, 1.442695
        %v996 = vpow.pop %v995
        %v997 = vmul.f32 %v880, 1.442695
        %v998 = vpow.pop %v997
        %v999 = vmul.f32 %v881, 1.442695
        %v1000 = vpow.pop %v999
        %v1001 = vmul.f32 %v882, 1.442695
        %v1002 = vpow.pop %v1001
        %v1003 = vmul.f32 %v883, 1.442695
        %v1004 = vpow.pop %v1003
        %v1005 = vmul.f32 %v884, 1.442695
        %v1006 = vpow.pop %v1005
        %v1007 = vmul.f32 %v885, 1.442695
        %v1008 = vpow.pop %v1007
        %v1009 = vmul.f32 %v886, 1.442695
        %v1010 = vpow.pop %v1009
        %v1011 = vmul.f32 %v887, 1.442695
        %v1012 = vpow.pop %v1011
        %v1013 = vmul.f32 %v888, 1.442695
        %v1014 = vpow.pop %v1013
        %v1015 = vmul.f32 %v889, 1.442695
        %v1016 = vpow.pop %v1015
        %v1017 = vmul.f32 %v890, 1.442695
        %v1018 = vpow.pop %v1017
        %v1019 = vadd.f32 %v892, %v894
        %1020 = vadd.xlane.f32.xlu0 %v1019
        %v1021 = vpop.xlane.xlu0 %1020
        %v1022 = vadd.f32 %v896, %v898
        %1023 = vadd.xlane.f32.xlu0 %v1022
        %v1024 = vpop.xlane.xlu0 %1023
        %v1025 = vadd.f32 %v900, %v902
        %1026 = vadd.xlane.f32.xlu0 %v1025
        %v1027 = vpop.xlane.xlu0 %1026
        %v1028 = vadd.f32 %v904, %v906
        %1029 = vadd.xlane.f32.xlu0 %v1028
        %v1030 = vpop.xlane.xlu0 %1029
        %v1031 = vadd.f32 %v908, %v910
        %1032 = vadd.xlane.f32.xlu0 %v1031
        %v1033 = vpop.xlane.xlu0 %1032
        %v1034 = vadd.f32 %v912, %v914
        %1035 = vadd.xlane.f32.xlu0 %v1034
        %v1036 = vpop.xlane.xlu0 %1035
        %v1037 = vadd.f32 %v916, %v918
        %1038 = vadd.xlane.f32.xlu0 %v1037
        %v1039 = vpop.xlane.xlu0 %1038
        %v1040 = vadd.f32 %v920, %v922
        %1041 = vadd.xlane.f32.xlu0 %v1040
        %v1042 = vpop.xlane.xlu0 %1041
        %v1043 = vadd.f32 %v924, %v926
        %1044 = vadd.xlane.f32.xlu0 %v1043
        %v1045 = vpop.xlane.xlu0 %1044
        %v1046 = vadd.f32 %v928, %v930
        %1047 = vadd.xlane.f32.xlu0 %v1046
        %v1048 = vpop.xlane.xlu0 %1047
        %v1049 = vadd.f32 %v932, %v934
        %1050 = vadd.xlane.f32.xlu0 %v1049
        %v1051 = vpop.xlane.xlu0 %1050
        %v1052 = vadd.f32 %v936, %v938
        %1053 = vadd.xlane.f32.xlu0 %v1052
        %v1054 = vpop.xlane.xlu0 %1053
        %v1055 = vadd.f32 %v940, %v942
        %1056 = vadd.xlane.f32.xlu0 %v1055
        %v1057 = vpop.xlane.xlu0 %1056
        %v1058 = vadd.f32 %v944, %v946
        %1059 = vadd.xlane.f32.xlu0 %v1058
        %v1060 = vpop.xlane.xlu0 %1059
        %v1061 = vadd.f32 %v948, %v950
        %1062 = vadd.xlane.f32.xlu0 %v1061
        %v1063 = vpop.xlane.xlu0 %1062
        %v1064 = vadd.f32 %v952, %v954
        %1065 = vadd.xlane.f32.xlu0 %v1064
        %v1066 = vpop.xlane.xlu0 %1065
        %v1067 = vadd.f32 %v956, %v958
        %1068 = vadd.xlane.f32.xlu0 %v1067
        %v1069 = vpop.xlane.xlu0 %1068
        %v1070 = vadd.f32 %v960, %v962
        %1071 = vadd.xlane.f32.xlu0 %v1070
        %v1072 = vpop.xlane.xlu0 %1071
        %v1073 = vadd.f32 %v964, %v966
        %1074 = vadd.xlane.f32.xlu0 %v1073
        %v1075 = vpop.xlane.xlu0 %1074
        %v1076 = vadd.f32 %v968, %v970
        %1077 = vadd.xlane.f32.xlu0 %v1076
        %v1078 = vpop.xlane.xlu0 %1077
        %v1079 = vadd.f32 %v972, %v974
        %1080 = vadd.xlane.f32.xlu0 %v1079
        %v1081 = vpop.xlane.xlu0 %1080
        %v1082 = vadd.f32 %v976, %v978
        %1083 = vadd.xlane.f32.xlu0 %v1082
        %v1084 = vpop.xlane.xlu0 %1083
        %v1085 = vadd.f32 %v980, %v982
        %1086 = vadd.xlane.f32.xlu0 %v1085
        %v1087 = vpop.xlane.xlu0 %1086
        %v1088 = vadd.f32 %v984, %v986
        %1089 = vadd.xlane.f32.xlu0 %v1088
        %v1090 = vpop.xlane.xlu0 %1089
        %v1091 = vadd.f32 %v988, %v990
        %1092 = vadd.xlane.f32.xlu0 %v1091
        %v1093 = vpop.xlane.xlu0 %1092
        %v1094 = vadd.f32 %v992, %v994
        %1095 = vadd.xlane.f32.xlu0 %v1094
        %v1096 = vpop.xlane.xlu0 %1095
        %v1097 = vadd.f32 %v996, %v998
        %1098 = vadd.xlane.f32.xlu0 %v1097
        %v1099 = vpop.xlane.xlu0 %1098
        %v1100 = vadd.f32 %v1000, %v1002
        %1101 = vadd.xlane.f32.xlu0 %v1100
        %v1102 = vpop.xlane.xlu0 %1101
        %v1103 = vadd.f32 %v1004, %v1006
        %1104 = vadd.xlane.f32.xlu0 %v1103
        %v1105 = vpop.xlane.xlu0 %1104
        %v1106 = vadd.f32 %v1008, %v1010
        %1107 = vadd.xlane.f32.xlu0 %v1106
        %v1108 = vpop.xlane.xlu0 %1107
        %v1109 = vadd.f32 %v1012, %v1014
        %1110 = vadd.xlane.f32.xlu0 %v1109
        %v1111 = vpop.xlane.xlu0 %1110
        %v1112 = vadd.f32 %v1016, %v1018
        %1113 = vadd.xlane.f32.xlu0 %v1112
        %v1114 = vpop.xlane.xlu0 %1113
        %v1115 = vrcp.pop %v1021
        %v1116 = vrcp.pop %v1024
        %v1117 = vrcp.pop %v1027
        %v1118 = vrcp.pop %v1030
        %v1119 = vrcp.pop %v1033
        %v1120 = vrcp.pop %v1036
        %v1121 = vrcp.pop %v1039
        %v1122 = vrcp.pop %v1042
        %v1123 = vrcp.pop %v1045
        %v1124 = vrcp.pop %v1048
        %v1125 = vrcp.pop %v1051
        %v1126 = vrcp.pop %v1054
        %v1127 = vrcp.pop %v1057
        %v1128 = vrcp.pop %v1060
        %v1129 = vrcp.pop %v1063
        %v1130 = vrcp.pop %v1066
        %v1131 = vrcp.pop %v1069
        %v1132 = vrcp.pop %v1072
        %v1133 = vrcp.pop %v1075
        %v1134 = vrcp.pop %v1078
        %v1135 = vrcp.pop %v1081
        %v1136 = vrcp.pop %v1084
        %v1137 = vrcp.pop %v1087
        %v1138 = vrcp.pop %v1090
        %v1139 = vrcp.pop %v1093
        %v1140 = vrcp.pop %v1096
        %v1141 = vrcp.pop %v1099
        %v1142 = vrcp.pop %v1102
        %v1143 = vrcp.pop %v1105
        %v1144 = vrcp.pop %v1108
        %v1145 = vrcp.pop %v1111
        %v1146 = vrcp.pop %v1114
        %v1147 = vmul.f32 %v892, %v1115
        %v1148 = vmul.f32 %v894, %v1115
        %v1149 = vmul.f32 %v896, %v1116
        %v1150 = vmul.f32 %v898, %v1116
        %v1151 = vmul.f32 %v900, %v1117
        %v1152 = vmul.f32 %v902, %v1117
        %v1153 = vmul.f32 %v904, %v1118
        %v1154 = vmul.f32 %v906, %v1118
        %v1155 = vmul.f32 %v908, %v1119
        %v1156 = vmul.f32 %v910, %v1119
        %v1157 = vmul.f32 %v912, %v1120
        %v1158 = vmul.f32 %v914, %v1120
        %v1159 = vmul.f32 %v916, %v1121
        %v1160 = vmul.f32 %v918, %v1121
        %v1161 = vmul.f32 %v920, %v1122
        %v1162 = vmul.f32 %v922, %v1122
        %v1163 = vmul.f32 %v924, %v1123
        %v1164 = vmul.f32 %v926, %v1123
        %v1165 = vmul.f32 %v928, %v1124
        %v1166 = vmul.f32 %v930, %v1124
        %v1167 = vmul.f32 %v932, %v1125
        %v1168 = vmul.f32 %v934, %v1125
        %v1169 = vmul.f32 %v936, %v1126
        %v1170 = vmul.f32 %v938, %v1126
        %v1171 = vmul.f32 %v940, %v1127
        %v1172 = vmul.f32 %v942, %v1127
        %v1173 = vmul.f32 %v944, %v1128
        %v1174 = vmul.f32 %v946, %v1128
        %v1175 = vmul.f32 %v948, %v1129
        %v1176 = vmul.f32 %v950, %v1129
        %v1177 = vmul.f32 %v952, %v1130
        %v1178 = vmul.f32 %v954, %v1130
        %v1179 = vmul.f32 %v956, %v1131
        %v1180 = vmul.f32 %v958, %v1131
        %v1181 = vmul.f32 %v960, %v1132
        %v1182 = vmul.f32 %v962, %v1132
        %v1183 = vmul.f32 %v964, %v1133
        %v1184 = vmul.f32 %v966, %v1133
        %v1185 = vmul.f32 %v968, %v1134
        %v1186 = vmul.f32 %v970, %v1134
        %v1187 = vmul.f32 %v972, %v1135
        %v1188 = vmul.f32 %v974, %v1135
        %v1189 = vmul.f32 %v976, %v1136
        %v1190 = vmul.f32 %v978, %v1136
        %v1191 = vmul.f32 %v980, %v1137
        %v1192 = vmul.f32 %v982, %v1137
        %v1193 = vmul.f32 %v984, %v1138
        %v1194 = vmul.f32 %v986, %v1138
        %v1195 = vmul.f32 %v988, %v1139
        %v1196 = vmul.f32 %v990, %v1139
        %v1197 = vmul.f32 %v992, %v1140
        %v1198 = vmul.f32 %v994, %v1140
        %v1199 = vmul.f32 %v996, %v1141
        %v1200 = vmul.f32 %v998, %v1141
        %v1201 = vmul.f32 %v1000, %v1142
        %v1202 = vmul.f32 %v1002, %v1142
        %v1203 = vmul.f32 %v1004, %v1143
        %v1204 = vmul.f32 %v1006, %v1143
        %v1205 = vmul.f32 %v1008, %v1144
        %v1206 = vmul.f32 %v1010, %v1144
        %v1207 = vmul.f32 %v1012, %v1145
        %v1208 = vmul.f32 %v1014, %v1145
        %v1209 = vmul.f32 %v1016, %v1146
        %v1210 = vmul.f32 %v1018, %v1146
        %v1211 = vld [vmem:[%s3] sm:$0xf]
        %v1212 = vld [vmem:[%s3 + $0x4] sm:$0xf]
        %v1213 = vld [vmem:[%s3 + $0x8] sm:$0xf]
        %v1214 = vld [vmem:[%s3 + $0xc] sm:$0xf]
        %v1215 = vld [vmem:[%s3 + $0x10] sm:$0xf]
        %v1216 = vld [vmem:[%s3 + $0x14] sm:$0xf]
        %v1217 = vld [vmem:[%s3 + $0x18] sm:$0xf]
        %v1218 = vld [vmem:[%s3 + $0x1c] sm:$0xf]
        %v1219 = vld [vmem:[%s3 + $0x20] sm:$0xf]
        %v1220 = vld [vmem:[%s3 + $0x24] sm:$0xf]
        %v1221 = vld [vmem:[%s3 + $0x28] sm:$0xf]
        %v1222 = vld [vmem:[%s3 + $0x2c] sm:$0xf]
        %v1223 = vld [vmem:[%s3 + $0x30] sm:$0xf]
        %v1224 = vld [vmem:[%s3 + $0x34] sm:$0xf]
        %v1225 = vld [vmem:[%s3 + $0x38] sm:$0xf]
        %v1226 = vld [vmem:[%s3 + $0x3c] sm:$0xf]
        %v1243 = vunpack.c.l.b16 %v1211
        %v1244 = vunpack.c.l.b16 %v1212
        %v1245 = vunpack.c.l.b16 %v1213
        %v1246 = vunpack.c.l.b16 %v1214
        %v1247 = vunpack.c.l.b16 %v1215
        %v1248 = vunpack.c.l.b16 %v1216
        %v1249 = vunpack.c.l.b16 %v1217
        %v1250 = vunpack.c.l.b16 %v1218
        %v1251 = vunpack.c.l.b16 %v1219
        %v1252 = vunpack.c.l.b16 %v1220
        %v1253 = vunpack.c.l.b16 %v1221
        %v1254 = vunpack.c.l.b16 %v1222
        %v1255 = vunpack.c.l.b16 %v1223
        %v1256 = vunpack.c.l.b16 %v1224
        %v1257 = vunpack.c.l.b16 %v1225
        %v1258 = vunpack.c.l.b16 %v1226
        %v1259 = vpack.c.b16 %v1244, %v1243
        %v1260 = vpack.c.b16 %v1246, %v1245
        %v1261 = vpack.c.b16 %v1248, %v1247
        %v1262 = vpack.c.b16 %v1250, %v1249
        %v1263 = vpack.c.b16 %v1252, %v1251
        %v1264 = vpack.c.b16 %v1254, %v1253
        %v1265 = vpack.c.b16 %v1256, %v1255
        %v1266 = vpack.c.b16 %v1258, %v1257
        %1275 = vmatpush.bf16.msra.mxu0 %v1266
        %1276 = vmatpush.bf16.msra.mxu0 %v1265
        %1277 = vmatpush.bf16.msra.mxu0 %v1264
        %1278 = vmatpush.bf16.msra.mxu0 %v1263
        %1279 = vmatpush.bf16.msra.mxu0 %v1262
        %1280 = vmatpush.bf16.msra.mxu0 %v1261
        %1281 = vmatpush.bf16.msra.mxu0 %v1260
        %1282 = vmatpush.bf16.msra.mxu0 %v1259
        %1283 = vmatmul.bf16.gmra.mxu0 %v368
        %v1284 = vpop.f32.mrf.mxu0
        %v1285 = vadd.f32 0.0, %v1284
        %v1286 = vpop.f32.mrf.mxu0
        %v1287 = vadd.f32 0.0, %v1286
        %1288 = vmatmul.bf16.gmra.mxu0 %v369
        %v1289 = vpop.f32.mrf.mxu0
        %v1290 = vadd.f32 0.0, %v1289
        %v1291 = vpop.f32.mrf.mxu0
        %v1292 = vadd.f32 0.0, %v1291
        %1293 = vmatmul.bf16.gmra.mxu0 %v370
        %v1294 = vpop.f32.mrf.mxu0
        %v1295 = vadd.f32 0.0, %v1294
        %v1296 = vpop.f32.mrf.mxu0
        %v1297 = vadd.f32 0.0, %v1296
        %1298 = vmatmul.bf16.gmra.mxu0 %v371
        %v1299 = vpop.f32.mrf.mxu0
        %v1300 = vadd.f32 0.0, %v1299
        %v1301 = vpop.f32.mrf.mxu0
        %v1302 = vadd.f32 0.0, %v1301
        %1303 = vmatmul.bf16.gmra.mxu0 %v372
        %v1304 = vpop.f32.mrf.mxu0
        %v1305 = vadd.f32 0.0, %v1304
        %v1306 = vpop.f32.mrf.mxu0
        %v1307 = vadd.f32 0.0, %v1306
        %1308 = vmatmul.bf16.gmra.mxu0 %v373
        %v1309 = vpop.f32.mrf.mxu0
        %v1310 = vadd.f32 0.0, %v1309
        %v1311 = vpop.f32.mrf.mxu0
        %v1312 = vadd.f32 0.0, %v1311
        %1313 = vmatmul.bf16.gmra.mxu0 %v374
        %v1314 = vpop.f32.mrf.mxu0
        %v1315 = vadd.f32 0.0, %v1314
        %v1316 = vpop.f32.mrf.mxu0
        %v1317 = vadd.f32 0.0, %v1316
        %1318 = vmatmul.bf16.gmra.mxu0 %v375
        %v1319 = vpop.f32.mrf.mxu0
        %v1320 = vadd.f32 0.0, %v1319
        %v1321 = vpop.f32.mrf.mxu0
        %v1322 = vadd.f32 0.0, %v1321
        %1323 = vmatmul.bf16.gmra.mxu0 %v376
        %v1324 = vpop.f32.mrf.mxu0
        %v1325 = vadd.f32 0.0, %v1324
        %v1326 = vpop.f32.mrf.mxu0
        %v1327 = vadd.f32 0.0, %v1326
        %1328 = vmatmul.bf16.gmra.mxu0 %v377
        %v1329 = vpop.f32.mrf.mxu0
        %v1330 = vadd.f32 0.0, %v1329
        %v1331 = vpop.f32.mrf.mxu0
        %v1332 = vadd.f32 0.0, %v1331
        %1333 = vmatmul.bf16.gmra.mxu0 %v378
        %v1334 = vpop.f32.mrf.mxu0
        %v1335 = vadd.f32 0.0, %v1334
        %v1336 = vpop.f32.mrf.mxu0
        %v1337 = vadd.f32 0.0, %v1336
        %1338 = vmatmul.bf16.gmra.mxu0 %v379
        %v1339 = vpop.f32.mrf.mxu0
        %v1340 = vadd.f32 0.0, %v1339
        %v1341 = vpop.f32.mrf.mxu0
        %v1342 = vadd.f32 0.0, %v1341
        %1343 = vmatmul.bf16.gmra.mxu0 %v380
        %v1344 = vpop.f32.mrf.mxu0
        %v1345 = vadd.f32 0.0, %v1344
        %v1346 = vpop.f32.mrf.mxu0
        %v1347 = vadd.f32 0.0, %v1346
        %1348 = vmatmul.bf16.gmra.mxu0 %v381
        %v1349 = vpop.f32.mrf.mxu0
        %v1350 = vadd.f32 0.0, %v1349
        %v1351 = vpop.f32.mrf.mxu0
        %v1352 = vadd.f32 0.0, %v1351
        %1353 = vmatmul.bf16.gmra.mxu0 %v382
        %v1354 = vpop.f32.mrf.mxu0
        %v1355 = vadd.f32 0.0, %v1354
        %v1356 = vpop.f32.mrf.mxu0
        %v1357 = vadd.f32 0.0, %v1356
        %1358 = vmatmul.bf16.gmra.mxu0 %v383
        %v1359 = vpop.f32.mrf.mxu0
        %v1360 = vadd.f32 0.0, %v1359
        %v1361 = vpop.f32.mrf.mxu0
        %v1362 = vadd.f32 0.0, %v1361
        %1363 = vdwg.mxu0
        %v1364 = vpack.c.bf16 %v1149, %v1147
        %v1365 = vpack.c.bf16 %v1150, %v1148
        %v1366 = vpack.c.bf16 %v1153, %v1151
        %v1367 = vpack.c.bf16 %v1154, %v1152
        %v1368 = vpack.c.bf16 %v1157, %v1155
        %v1369 = vpack.c.bf16 %v1158, %v1156
        %v1370 = vpack.c.bf16 %v1161, %v1159
        %v1371 = vpack.c.bf16 %v1162, %v1160
        %v1372 = vpack.c.bf16 %v1165, %v1163
        %v1373 = vpack.c.bf16 %v1166, %v1164
        %v1374 = vpack.c.bf16 %v1169, %v1167
        %v1375 = vpack.c.bf16 %v1170, %v1168
        %v1376 = vpack.c.bf16 %v1173, %v1171
        %v1377 = vpack.c.bf16 %v1174, %v1172
        %v1378 = vpack.c.bf16 %v1177, %v1175
        %v1379 = vpack.c.bf16 %v1178, %v1176
        %v1380 = vpack.c.bf16 %v1181, %v1179
        %v1381 = vpack.c.bf16 %v1182, %v1180
        %v1382 = vpack.c.bf16 %v1185, %v1183
        %v1383 = vpack.c.bf16 %v1186, %v1184
        %v1384 = vpack.c.bf16 %v1189, %v1187
        %v1385 = vpack.c.bf16 %v1190, %v1188
        %v1386 = vpack.c.bf16 %v1193, %v1191
        %v1387 = vpack.c.bf16 %v1194, %v1192
        %v1388 = vpack.c.bf16 %v1197, %v1195
        %v1389 = vpack.c.bf16 %v1198, %v1196
        %v1390 = vpack.c.bf16 %v1201, %v1199
        %v1391 = vpack.c.bf16 %v1202, %v1200
        %v1392 = vpack.c.bf16 %v1205, %v1203
        %v1393 = vpack.c.bf16 %v1206, %v1204
        %v1394 = vpack.c.bf16 %v1209, %v1207
        %v1395 = vpack.c.bf16 %v1210, %v1208
        %v1396 = vpack.c.bf16 %v1287, %v1285
        %v1397 = vpack.c.bf16 %v1292, %v1290
        %v1398 = vpack.c.bf16 %v1297, %v1295
        %v1399 = vpack.c.bf16 %v1302, %v1300
        %v1400 = vpack.c.bf16 %v1307, %v1305
        %v1401 = vpack.c.bf16 %v1312, %v1310
        %v1402 = vpack.c.bf16 %v1317, %v1315
        %v1403 = vpack.c.bf16 %v1322, %v1320
        %v1404 = vpack.c.bf16 %v1327, %v1325
        %v1405 = vpack.c.bf16 %v1332, %v1330
        %v1406 = vpack.c.bf16 %v1337, %v1335
        %v1407 = vpack.c.bf16 %v1342, %v1340
        %v1408 = vpack.c.bf16 %v1347, %v1345
        %v1409 = vpack.c.bf16 %v1352, %v1350
        %v1410 = vpack.c.bf16 %v1357, %v1355
        %v1411 = vpack.c.bf16 %v1362, %v1360
        %1412 = vmatpush.bf16.msra.mxu0 %v1403
        %1413 = vmatpush.bf16.msra.mxu0 %v1402
        %1414 = vmatpush.bf16.msra.mxu0 %v1401
        %1415 = vmatpush.bf16.msra.mxu0 %v1400
        %1416 = vmatpush.bf16.msra.mxu0 %v1399
        %1417 = vmatpush.bf16.msra.mxu0 %v1398
        %1418 = vmatpush.bf16.msra.mxu0 %v1397
        %1419 = vmatpush.bf16.msra.mxu0 %v1396
        %1420 = vmatmul.bf16.gmra.mxu0 %v1364
        %v1421 = vpop.f32.mrf.mxu0
        %v1422 = vadd.f32 %v336, %v1421
        %v1423 = vpop.f32.mrf.mxu0
        %v1424 = vadd.f32 %v337, %v1423
        %1425 = vmatmul.bf16.gmra.mxu0 %v1366
        %v1426 = vpop.f32.mrf.mxu0
        %v1427 = vadd.f32 %v338, %v1426
        %v1428 = vpop.f32.mrf.mxu0
        %v1429 = vadd.f32 %v339, %v1428
        %1430 = vmatmul.bf16.gmra.mxu0 %v1368
        %v1431 = vpop.f32.mrf.mxu0
        %v1432 = vadd.f32 %v340, %v1431
        %v1433 = vpop.f32.mrf.mxu0
        %v1434 = vadd.f32 %v341, %v1433
        %1435 = vmatmul.bf16.gmra.mxu0 %v1370
        %v1436 = vpop.f32.mrf.mxu0
        %v1437 = vadd.f32 %v342, %v1436
        %v1438 = vpop.f32.mrf.mxu0
        %v1439 = vadd.f32 %v343, %v1438
        %1440 = vmatmul.bf16.gmra.mxu0 %v1372
        %v1441 = vpop.f32.mrf.mxu0
        %v1442 = vadd.f32 %v344, %v1441
        %v1443 = vpop.f32.mrf.mxu0
        %v1444 = vadd.f32 %v345, %v1443
        %1445 = vmatmul.bf16.gmra.mxu0 %v1374
        %v1446 = vpop.f32.mrf.mxu0
        %v1447 = vadd.f32 %v346, %v1446
        %v1448 = vpop.f32.mrf.mxu0
        %v1449 = vadd.f32 %v347, %v1448
        %1450 = vmatmul.bf16.gmra.mxu0 %v1376
        %v1451 = vpop.f32.mrf.mxu0
        %v1452 = vadd.f32 %v348, %v1451
        %v1453 = vpop.f32.mrf.mxu0
        %v1454 = vadd.f32 %v349, %v1453
        %1455 = vmatmul.bf16.gmra.mxu0 %v1378
        %v1456 = vpop.f32.mrf.mxu0
        %v1457 = vadd.f32 %v350, %v1456
        %v1458 = vpop.f32.mrf.mxu0
        %v1459 = vadd.f32 %v351, %v1458
        %1460 = vmatmul.bf16.gmra.mxu0 %v1380
        %v1461 = vpop.f32.mrf.mxu0
        %v1462 = vadd.f32 %v352, %v1461
        %v1463 = vpop.f32.mrf.mxu0
        %v1464 = vadd.f32 %v353, %v1463
        %1465 = vmatmul.bf16.gmra.mxu0 %v1382
        %v1466 = vpop.f32.mrf.mxu0
        %v1467 = vadd.f32 %v354, %v1466
        %v1468 = vpop.f32.mrf.mxu0
        %v1469 = vadd.f32 %v355, %v1468
        %1470 = vmatmul.bf16.gmra.mxu0 %v1384
        %v1471 = vpop.f32.mrf.mxu0
        %v1472 = vadd.f32 %v356, %v1471
        %v1473 = vpop.f32.mrf.mxu0
        %v1474 = vadd.f32 %v357, %v1473
        %1475 = vmatmul.bf16.gmra.mxu0 %v1386
        %v1476 = vpop.f32.mrf.mxu0
        %v1477 = vadd.f32 %v358, %v1476
        %v1478 = vpop.f32.mrf.mxu0
        %v1479 = vadd.f32 %v359, %v1478
        %1480 = vmatmul.bf16.gmra.mxu0 %v1388
        %v1481 = vpop.f32.mrf.mxu0
        %v1482 = vadd.f32 %v360, %v1481
        %v1483 = vpop.f32.mrf.mxu0
        %v1484 = vadd.f32 %v361, %v1483
        %1485 = vmatmul.bf16.gmra.mxu0 %v1390
        %v1486 = vpop.f32.mrf.mxu0
        %v1487 = vadd.f32 %v362, %v1486
        %v1488 = vpop.f32.mrf.mxu0
        %v1489 = vadd.f32 %v363, %v1488
        %1490 = vmatmul.bf16.gmra.mxu0 %v1392
        %v1491 = vpop.f32.mrf.mxu0
        %v1492 = vadd.f32 %v364, %v1491
        %v1493 = vpop.f32.mrf.mxu0
        %v1494 = vadd.f32 %v365, %v1493
        %1495 = vmatmul.bf16.gmra.mxu0 %v1394
        %v1496 = vpop.f32.mrf.mxu0
        %v1497 = vadd.f32 %v366, %v1496
        %v1498 = vpop.f32.mrf.mxu0
        %v1499 = vadd.f32 %v367, %v1498
        %1500 = vdwg.mxu0
        %1501 = vmatpush.bf16.msra.mxu0 %v1411
        %1502 = vmatpush.bf16.msra.mxu0 %v1410
        %1503 = vmatpush.bf16.msra.mxu0 %v1409
        %1504 = vmatpush.bf16.msra.mxu0 %v1408
        %1505 = vmatpush.bf16.msra.mxu0 %v1407
        %1506 = vmatpush.bf16.msra.mxu0 %v1406
        %1507 = vmatpush.bf16.msra.mxu0 %v1405
        %1508 = vmatpush.bf16.msra.mxu0 %v1404
        %1509 = vmatmul.bf16.gmra.mxu0 %v1365
        %v1510 = vpop.f32.mrf.mxu0
        %v1511 = vadd.f32 %v1422, %v1510
        %v1512 = vpop.f32.mrf.mxu0
        %v1513 = vadd.f32 %v1424, %v1512
        %1514 = vmatmul.bf16.gmra.mxu0 %v1367
        %v1515 = vpop.f32.mrf.mxu0
        %v1516 = vadd.f32 %v1427, %v1515
        %v1517 = vpop.f32.mrf.mxu0
        %v1518 = vadd.f32 %v1429, %v1517
        %1519 = vmatmul.bf16.gmra.mxu0 %v1369
        %v1520 = vpop.f32.mrf.mxu0
        %v1521 = vadd.f32 %v1432, %v1520
        %v1522 = vpop.f32.mrf.mxu0
        %v1523 = vadd.f32 %v1434, %v1522
        %1524 = vmatmul.bf16.gmra.mxu0 %v1371
        %v1525 = vpop.f32.mrf.mxu0
        %v1526 = vadd.f32 %v1437, %v1525
        %v1527 = vpop.f32.mrf.mxu0
        %v1528 = vadd.f32 %v1439, %v1527
        %1529 = vmatmul.bf16.gmra.mxu0 %v1373
        %v1530 = vpop.f32.mrf.mxu0
        %v1531 = vadd.f32 %v1442, %v1530
        %v1532 = vpop.f32.mrf.mxu0
        %v1533 = vadd.f32 %v1444, %v1532
        %1534 = vmatmul.bf16.gmra.mxu0 %v1375
        %v1535 = vpop.f32.mrf.mxu0
        %v1536 = vadd.f32 %v1447, %v1535
        %v1537 = vpop.f32.mrf.mxu0
        %v1538 = vadd.f32 %v1449, %v1537
        %1539 = vmatmul.bf16.gmra.mxu0 %v1377
        %v1540 = vpop.f32.mrf.mxu0
        %v1541 = vadd.f32 %v1452, %v1540
        %v1542 = vpop.f32.mrf.mxu0
        %v1543 = vadd.f32 %v1454, %v1542
        %1544 = vmatmul.bf16.gmra.mxu0 %v1379
        %v1545 = vpop.f32.mrf.mxu0
        %v1546 = vadd.f32 %v1457, %v1545
        %v1547 = vpop.f32.mrf.mxu0
        %v1548 = vadd.f32 %v1459, %v1547
        %1549 = vmatmul.bf16.gmra.mxu0 %v1381
        %v1550 = vpop.f32.mrf.mxu0
        %v1551 = vadd.f32 %v1462, %v1550
        %v1552 = vpop.f32.mrf.mxu0
        %v1553 = vadd.f32 %v1464, %v1552
        %1554 = vmatmul.bf16.gmra.mxu0 %v1383
        %v1555 = vpop.f32.mrf.mxu0
        %v1556 = vadd.f32 %v1467, %v1555
        %v1557 = vpop.f32.mrf.mxu0
        %v1558 = vadd.f32 %v1469, %v1557
        %1559 = vmatmul.bf16.gmra.mxu0 %v1385
        %v1560 = vpop.f32.mrf.mxu0
        %v1561 = vadd.f32 %v1472, %v1560
        %v1562 = vpop.f32.mrf.mxu0
        %v1563 = vadd.f32 %v1474, %v1562
        %1564 = vmatmul.bf16.gmra.mxu0 %v1387
        %v1565 = vpop.f32.mrf.mxu0
        %v1566 = vadd.f32 %v1477, %v1565
        %v1567 = vpop.f32.mrf.mxu0
        %v1568 = vadd.f32 %v1479, %v1567
        %1569 = vmatmul.bf16.gmra.mxu0 %v1389
        %v1570 = vpop.f32.mrf.mxu0
        %v1571 = vadd.f32 %v1482, %v1570
        %v1572 = vpop.f32.mrf.mxu0
        %v1573 = vadd.f32 %v1484, %v1572
        %1574 = vmatmul.bf16.gmra.mxu0 %v1391
        %v1575 = vpop.f32.mrf.mxu0
        %v1576 = vadd.f32 %v1487, %v1575
        %v1577 = vpop.f32.mrf.mxu0
        %v1578 = vadd.f32 %v1489, %v1577
        %1579 = vmatmul.bf16.gmra.mxu0 %v1393
        %v1580 = vpop.f32.mrf.mxu0
        %v1581 = vadd.f32 %v1492, %v1580
        %v1582 = vpop.f32.mrf.mxu0
        %v1583 = vadd.f32 %v1494, %v1582
        %1584 = vmatmul.bf16.gmra.mxu0 %v1395
        %v1585 = vpop.f32.mrf.mxu0
        %v1586 = vadd.f32 %v1497, %v1585
        %v1587 = vpop.f32.mrf.mxu0
        %v1588 = vadd.f32 %v1499, %v1587
        %1589 = vdwg.mxu0
        %v1590 = vpack.c.bf16 %v1511, %v1511
        %v1591 = vpack.c.bf16 %v1513, %v1513
        %v1592 = vpack.c.bf16 %v1516, %v1516
        %v1593 = vpack.c.bf16 %v1518, %v1518
        %v1594 = vpack.c.bf16 %v1521, %v1521
        %v1595 = vpack.c.bf16 %v1523, %v1523
        %v1596 = vpack.c.bf16 %v1526, %v1526
        %v1597 = vpack.c.bf16 %v1528, %v1528
        %v1598 = vpack.c.bf16 %v1531, %v1531
        %v1599 = vpack.c.bf16 %v1533, %v1533
        %v1600 = vpack.c.bf16 %v1536, %v1536
        %v1601 = vpack.c.bf16 %v1538, %v1538
        %v1602 = vpack.c.bf16 %v1541, %v1541
        %v1603 = vpack.c.bf16 %v1543, %v1543
        %v1604 = vpack.c.bf16 %v1546, %v1546
        %v1605 = vpack.c.bf16 %v1548, %v1548
        %v1606 = vpack.c.bf16 %v1551, %v1551
        %v1607 = vpack.c.bf16 %v1553, %v1553
        %v1608 = vpack.c.bf16 %v1556, %v1556
        %v1609 = vpack.c.bf16 %v1558, %v1558
        %v1610 = vpack.c.bf16 %v1561, %v1561
        %v1611 = vpack.c.bf16 %v1563, %v1563
        %v1612 = vpack.c.bf16 %v1566, %v1566
        %v1613 = vpack.c.bf16 %v1568, %v1568
        %v1614 = vpack.c.bf16 %v1571, %v1571
        %v1615 = vpack.c.bf16 %v1573, %v1573
        %v1616 = vpack.c.bf16 %v1576, %v1576
        %v1617 = vpack.c.bf16 %v1578, %v1578
        %v1618 = vpack.c.bf16 %v1581, %v1581
        %v1619 = vpack.c.bf16 %v1583, %v1583
        %v1620 = vpack.c.bf16 %v1586, %v1586
        %v1621 = vpack.c.bf16 %v1588, %v1588
        %1622 = vst [vmem:[%s235] sm:$0xf] %v1590
        %1623 = vst [vmem:[%s235 + $0x4] sm:$0xf] %v1591
        %1624 = vst [vmem:[%s235 + $0x8] sm:$0xf] %v1592
        %1625 = vst [vmem:[%s235 + $0xc] sm:$0xf] %v1593
        %1626 = vst [vmem:[%s235 + $0x10] sm:$0xf] %v1594
        %1627 = vst [vmem:[%s235 + $0x14] sm:$0xf] %v1595
        %1628 = vst [vmem:[%s235 + $0x18] sm:$0xf] %v1596
        %1629 = vst [vmem:[%s235 + $0x1c] sm:$0xf] %v1597
        %1630 = vst [vmem:[%s235 + $0x20] sm:$0xf] %v1598
        %1631 = vst [vmem:[%s235 + $0x24] sm:$0xf] %v1599
        %1632 = vst [vmem:[%s235 + $0x28] sm:$0xf] %v1600
        %1633 = vst [vmem:[%s235 + $0x2c] sm:$0xf] %v1601
        %1634 = vst [vmem:[%s235 + $0x30] sm:$0xf] %v1602
        %1635 = vst [vmem:[%s235 + $0x34] sm:$0xf] %v1603
        %1636 = vst [vmem:[%s235 + $0x38] sm:$0xf] %v1604
        %1637 = vst [vmem:[%s235 + $0x3c] sm:$0xf] %v1605
        %1638 = vst [vmem:[%s235 + $0x40] sm:$0xf] %v1606
        %1639 = vst [vmem:[%s235 + $0x44] sm:$0xf] %v1607
        %1640 = vst [vmem:[%s235 + $0x48] sm:$0xf] %v1608
        %1641 = vst [vmem:[%s235 + $0x4c] sm:$0xf] %v1609
        %1642 = vst [vmem:[%s235 + $0x50] sm:$0xf] %v1610
        %1643 = vst [vmem:[%s235 + $0x54] sm:$0xf] %v1611
        %1644 = vst [vmem:[%s235 + $0x58] sm:$0xf] %v1612
        %1645 = vst [vmem:[%s235 + $0x5c] sm:$0xf] %v1613
        %1646 = vst [vmem:[%s235 + $0x60] sm:$0xf] %v1614
        %1647 = vst [vmem:[%s235 + $0x64] sm:$0xf] %v1615
        %1648 = vst [vmem:[%s235 + $0x68] sm:$0xf] %v1616
        %1649 = vst [vmem:[%s235 + $0x6c] sm:$0xf] %v1617
        %1650 = vst [vmem:[%s235 + $0x70] sm:$0xf] %v1618
        %1651 = vst [vmem:[%s235 + $0x74] sm:$0xf] %v1619
        %1652 = vst [vmem:[%s235 + $0x78] sm:$0xf] %v1620
        %1653 = vst [vmem:[%s235 + $0x7c] sm:$0xf] %v1621
        %1654 = vst [vmem:[%s225] sm:$0xff] %v1147
        %1655 = vst [vmem:[%s225 + $0x8] sm:$0xff] %v1148
        %1656 = vst [vmem:[%s225 + $0x10] sm:$0xff] %v1149
        %1657 = vst [vmem:[%s225 + $0x18] sm:$0xff] %v1150
        %1658 = vst [vmem:[%s225 + $0x20] sm:$0xff] %v1151
        %1659 = vst [vmem:[%s225 + $0x28] sm:$0xff] %v1152
        %1660 = vst [vmem:[%s225 + $0x30] sm:$0xff] %v1153
        %1661 = vst [vmem:[%s225 + $0x38] sm:$0xff] %v1154
        %1662 = vst [vmem:[%s225 + $0x40] sm:$0xff] %v1155
        %1663 = vst [vmem:[%s225 + $0x48] sm:$0xff] %v1156
        %1664 = vst [vmem:[%s225 + $0x50] sm:$0xff] %v1157
        %1665 = vst [vmem:[%s225 + $0x58] sm:$0xff] %v1158
        %1666 = vst [vmem:[%s225 + $0x60] sm:$0xff] %v1159
        %1667 = vst [vmem:[%s225 + $0x68] sm:$0xff] %v1160
        %1668 = vst [vmem:[%s225 + $0x70] sm:$0xff] %v1161
        %1669 = vst [vmem:[%s225 + $0x78] sm:$0xff] %v1162
        %1670 = vst [vmem:[%s225 + $0x80] sm:$0xff] %v1163
        %1671 = vst [vmem:[%s225 + $0x88] sm:$0xff] %v1164
        %1672 = vst [vmem:[%s225 + $0x90] sm:$0xff] %v1165
        %1673 = vst [vmem:[%s225 + $0x98] sm:$0xff] %v1166
        %1674 = vst [vmem:[%s225 + $0xa0] sm:$0xff] %v1167
        %1675 = vst [vmem:[%s225 + $0xa8] sm:$0xff] %v1168
        %1676 = vst [vmem:[%s225 + $0xb0] sm:$0xff] %v1169
        %1677 = vst [vmem:[%s225 + $0xb8] sm:$0xff] %v1170
        %1678 = vst [vmem:[%s225 + $0xc0] sm:$0xff] %v1171
        %1679 = vst [vmem:[%s225 + $0xc8] sm:$0xff] %v1172
        %1680 = vst [vmem:[%s225 + $0xd0] sm:$0xff] %v1173
        %1681 = vst [vmem:[%s225 + $0xd8] sm:$0xff] %v1174
        %1682 = vst [vmem:[%s225 + $0xe0] sm:$0xff] %v1175
        %1683 = vst [vmem:[%s225 + $0xe8] sm:$0xff] %v1176
        %1684 = vst [vmem:[%s225 + $0xf0] sm:$0xff] %v1177
        %1685 = vst [vmem:[%s225 + $0xf8] sm:$0xff] %v1178
        %1686 = vst [vmem:[%s225 + $0x100] sm:$0xff] %v1179
        %1687 = vst [vmem:[%s225 + $0x108] sm:$0xff] %v1180
        %1688 = vst [vmem:[%s225 + $0x110] sm:$0xff] %v1181
        %1689 = vst [vmem:[%s225 + $0x118] sm:$0xff] %v1182
        %1690 = vst [vmem:[%s225 + $0x120] sm:$0xff] %v1183
        %1691 = vst [vmem:[%s225 + $0x128] sm:$0xff] %v1184
        %1692 = vst [vmem:[%s225 + $0x130] sm:$0xff] %v1185
        %1693 = vst [vmem:[%s225 + $0x138] sm:$0xff] %v1186
        %1694 = vst [vmem:[%s225 + $0x140] sm:$0xff] %v1187
        %1695 = vst [vmem:[%s225 + $0x148] sm:$0xff] %v1188
        %1696 = vst [vmem:[%s225 + $0x150] sm:$0xff] %v1189
        %1697 = vst [vmem:[%s225 + $0x158] sm:$0xff] %v1190
        %1698 = vst [vmem:[%s225 + $0x160] sm:$0xff] %v1191
        %1699 = vst [vmem:[%s225 + $0x168] sm:$0xff] %v1192
        %1700 = vst [vmem:[%s225 + $0x170] sm:$0xff] %v1193
        %1701 = vst [vmem:[%s225 + $0x178] sm:$0xff] %v1194
        %1702 = vst [vmem:[%s225 + $0x180] sm:$0xff] %v1195
        %1703 = vst [vmem:[%s225 + $0x188] sm:$0xff] %v1196
        %1704 = vst [vmem:[%s225 + $0x190] sm:$0xff] %v1197
        %1705 = vst [vmem:[%s225 + $0x198] sm:$0xff] %v1198
        %1706 = vst [vmem:[%s225 + $0x1a0] sm:$0xff] %v1199
        %1707 = vst [vmem:[%s225 + $0x1a8] sm:$0xff] %v1200
        %1708 = vst [vmem:[%s225 + $0x1b0] sm:$0xff] %v1201
        %1709 = vst [vmem:[%s225 + $0x1b8] sm:$0xff] %v1202
        %1710 = vst [vmem:[%s225 + $0x1c0] sm:$0xff] %v1203
        %1711 = vst [vmem:[%s225 + $0x1c8] sm:$0xff] %v1204
        %1712 = vst [vmem:[%s225 + $0x1d0] sm:$0xff] %v1205
        %1713 = vst [vmem:[%s225 + $0x1d8] sm:$0xff] %v1206
        %1714 = vst [vmem:[%s225 + $0x1e0] sm:$0xff] %v1207
        %1715 = vst [vmem:[%s225 + $0x1e8] sm:$0xff] %v1208
        %1716 = vst [vmem:[%s225 + $0x1f0] sm:$0xff] %v1209
        %1717 = vst [vmem:[%s225 + $0x1f8] sm:$0xff] %v1210
        %p1718 = scmp.lt.s32.totalorder %s20, 1
        %s1719 = scalar_select %p1718, %s20, 1
        %s1720 = smul.addr %s1719, 32
        %s1721 = smul.addr %s1720, 4
        %s1722 = scalar_lea.vmem %s4, %s1721
        %s1723 = sand.u32 %s143, 1
        %s1724 = scalar_lea.sflag [#allocation3], %s1723
        %s1725 = sand.u32 %s143, 1
        %s1726 = smul.addr %s1725, 512
        %s1727 = scalar_lea.vmem [#allocation2], %s1726
        // Predicated region
        $region37: #{da_module_forward.4} parent=35 // pred_check
          %p1728 = pneg %p127
        $region38: #{da_module_forward.4} parent=35 // pred_check_branch
          %1730 = sbr.rel (%p1728) target = $region40
        $region39: #{da_module_forward.4} parent=35 // pred_region
          _
        $region40: #{da_module_forward.4} parent=35 // pred_fallthru
          _
        // Predicated region
        $region41: #{da_module_forward.4} parent=35 // pred_check
          %p1731 = pneg %p153
        $region42: #{da_module_forward.4} parent=35 // pred_check_branch
          %1733 = sbr.rel (%p1731) target = $region44
        $region43: #{da_module_forward.4} parent=35 // pred_region
          %1735 = vsyncadd %s1724, 0
          %s1736 = smul.addr %s20, 64
          %s1737 = smul.addr %s1736, 8
          %s1738 = scalar_lea.hbm %s5, %s1737
          %s1739 = sshll.u32 %s1727, 4
          %s1740 = int_to_ptr.vmem [resolvable:$true] %s1739
          %s1741 = sshll.u32 %s1738, 4
          %s1742 = int_to_ptr.hbm [resolvable:$true] %s1741
          %1747 = dma.vmem_to_hbm [thread:$0]  %s1740, 8192, %s1742, %s1724, 256, 256, 16
        $region44: #{da_module_forward.4} parent=35 // pred_fallthru
          _
      $region36: #{da_module_forward.4} parent=5 // pred_fallthru
        _
      %p1748 = scmp.le.s32.totalorder 2, %s15
      // Predicated region
      $region45: #{da_module_forward.4} parent=5 // pred_check
        %p1749 = pneg %p1748
      $region46: #{da_module_forward.4} parent=5 // pred_check_branch
        %1751 = sbr.rel (%p1749) target = $region48
      $region47: #{da_module_forward.4} parent=5 // pred_region
        %s1752 = ssub.s32 %s15, 2
        // Predicated region
        $region49: #{da_module_forward.4} parent=47 // pred_check
          %p1753 = pneg %p133
        $region50: #{da_module_forward.4} parent=47 // pred_check_branch
          %1755 = sbr.rel (%p1753) target = $region52
        $region51: #{da_module_forward.4} parent=47 // pred_region
          %p1756 = scmp.lt.s32.totalorder %s21, 1
          %s1757 = scalar_select %p1756, %s21, 1
          %s1758 = smul.addr %s1757, 32
          %s1759 = smul.addr %s1758, 4
          %s1760 = scalar_lea.vmem %s4, %s1759
        $region52: #{da_module_forward.4} parent=47 // pred_fallthru
          _
        // Predicated region
        $region53: #{da_module_forward.4} parent=47 // pred_check
          %p1761 = pneg %p159
        $region54: #{da_module_forward.4} parent=47 // pred_check_branch
          %1763 = sbr.rel (%p1761) target = $region56
        $region55: #{da_module_forward.4} parent=47 // pred_region
          %s1764 = sand.u32 %s144, 1
          %s1765 = scalar_lea.sflag [#allocation3], %s1764
          %s1766 = sand.u32 %s144, 1
          %s1767 = smul.addr %s1766, 512
          %s1768 = scalar_lea.vmem [#allocation2], %s1767
          %1770 = dma.done %s1765, 8192
        $region56: #{da_module_forward.4} parent=47 // pred_fallthru
          _
      $region48: #{da_module_forward.4} parent=5 // pred_fallthru
        _
    $region6: #{da_module_forward.4} parent=1 // loop_footer
      %s19 = sadd.s32 1, %s15
    $region7: #{da_module_forward.4} parent=1 // loop_footer_branch
      %14 = sbr.rel target = $region3
    $region8: #{da_module_forward.4} parent=1 // loop_exit
      _
    %1771 = vsyncpa [#allocation3], 1
    %s1772 = scalar_lea.sflag [#allocation3], 1
    %1773 = vsyncpa %s1772, 1

// kernel: da_module_forward.3
$region0: #{da_module_forward.3}
  #allocation0 [shape = 'u32[]', space=smem, size = 0x4, offset = 0x4, fixed_abs, tag = 'smem constant byte address 0x4 - core index']
  #allocation1 [shape = 'u32[72,128]{1,0:T(1,128)}', space=vmem, size = 0x9000, scoped, tag = 'internal scratch']
  %s0 = inlined_call_operand.vmem [shape: bf16[2,18,18,4], index: 0, kind: input, shape index: {}]
  %s1 = inlined_call_operand.vmem [shape: bf16[36,128], index: 1, kind: input, shape index: {}]
  %s2 = inlined_call_operand.vmem [shape: bf16[2,256,128], index: 2, kind: output, shape index: {0}]
  %s3 = inlined_call_operand.vmem [shape: f32[2,2,128], index: 3, kind: output, shape index: {1}]
  %4 = xla_tuple %s2, %s3
  %s5 = sld [smem:[#allocation0]]
  $region49: #{da_module_forward.3} parent=0
    _
  %s7 = ssub.s32 1, %s5
  %s8 = scalar_select 0, %s7, %s5
  loop: start=0, step=1, limit=4
  $region2: #{da_module_forward.3} parent=0 // loop_pre_header
    _
  $region3: #{da_module_forward.3} parent=0 // loop_header
    %s10 = sphi 0, %s14
    %p11 = scmp.ge.s32.totalorder %s10, 4
    %s20 = sphi 0, %s22
    %s23 = sphi 0, %s20
    %s24 = sphi 0, %s23
    %s40 = sphi 0, %s24
    %s44 = sphi 0, %s44
    %s46 = sphi 0, %s44
    %s47 = sphi 0, %s46
    %s61 = sphi 0, %s47
    %s67 = sphi 0, %s69
    %s70 = sphi 0, %s67
    %s71 = sphi 0, %s70
    %s87 = sphi 0, %s71
    %s93 = sphi 0, %s95
    %s96 = sphi 0, %s93
    %s97 = sphi 0, %s96
    %s113 = sphi 0, %s97
  $region4: #{da_module_forward.3} parent=0 // loop_header_branch
    %13 = sbr.rel (%p11) target = $region8
  $region5: #{da_module_forward.3} parent=0 // loop_body
    %s15 = ssub.s32 %s10, 1
    %s16 = ssub.s32 %s10, 2
    %s17 = sadd.s32 %s10, 1
    %s18 = ssub.s32 %s10, %s17
    %p19 = scmp.eq.s32.totalorder %s18, 0
    %s21 = sadd.s32 %s20, 1
    %s22 = scalar_select %p19, %s20, %s21
    %p25 = pneg %p19
    %p26 = scmp.eq.s32.totalorder %s10, 1
    %p27 = por %p25, %p26
    %p28 = scmp.ne.s32.totalorder %s20, %s23
    %p29 = scmp.eq.s32.totalorder %s10, 0
    %p30 = por %p28, %p29
    %p31 = scmp.ne.s32.totalorder %s20, %s23
    %p32 = scmp.eq.s32.totalorder %s15, 1
    %p33 = por %p31, %p32
    %p34 = scmp.ne.s32.totalorder %s23, %s24
    %p35 = scmp.eq.s32.totalorder %s15, 0
    %p36 = por %p34, %p35
    %p37 = scmp.ne.s32.totalorder %s23, %s24
    %p38 = scmp.eq.s32.totalorder %s16, 1
    %p39 = por %p37, %p38
    %p41 = scmp.ne.s32.totalorder %s24, %s40
    %p42 = scmp.eq.s32.totalorder %s16, 0
    %p43 = por %p41, %p42
    %s45 = sadd.s32 %s44, 1
    %p48 = scmp.eq.s32.totalorder %s10, 1
    %p49 = scmp.ne.s32.totalorder %s44, %s46
    %p50 = scmp.eq.s32.totalorder %s10, 0
    %p51 = por %p49, %p50
    %p52 = scmp.ne.s32.totalorder %s44, %s46
    %p53 = scmp.eq.s32.totalorder %s15, 1
    %p54 = por %p52, %p53
    %p55 = scmp.ne.s32.totalorder %s46, %s47
    %p56 = scmp.eq.s32.totalorder %s15, 0
    %p57 = por %p55, %p56
    %p58 = scmp.ne.s32.totalorder %s46, %s47
    %p59 = scmp.eq.s32.totalorder %s16, 1
    %p60 = por %p58, %p59
    %p62 = scmp.ne.s32.totalorder %s47, %s61
    %p63 = scmp.eq.s32.totalorder %s16, 0
    %p64 = por %p62, %p63
    %s65 = ssub.s32 %s10, %s17
    %p66 = scmp.eq.s32.totalorder %s65, 0
    %s68 = sadd.s32 %s67, 1
    %s69 = scalar_select %p66, %s67, %s68
    %p72 = pneg %p66
    %p73 = scmp.eq.s32.totalorder %s10, 1
    %p74 = por %p72, %p73
    %p75 = scmp.ne.s32.totalorder %s67, %s70
    %p76 = scmp.eq.s32.totalorder %s10, 0
    %p77 = por %p75, %p76
    %p78 = scmp.ne.s32.totalorder %s67, %s70
    %p79 = scmp.eq.s32.totalorder %s15, 1
    %p80 = por %p78, %p79
    %p81 = scmp.ne.s32.totalorder %s70, %s71
    %p82 = scmp.eq.s32.totalorder %s15, 0
    %p83 = por %p81, %p82
    %p84 = scmp.ne.s32.totalorder %s70, %s71
    %p85 = scmp.eq.s32.totalorder %s16, 1
    %p86 = por %p84, %p85
    %p88 = scmp.ne.s32.totalorder %s71, %s87
    %p89 = scmp.eq.s32.totalorder %s16, 0
    %p90 = por %p88, %p89
    %s91 = ssub.s32 %s10, %s17
    %p92 = scmp.eq.s32.totalorder %s91, 0
    %s94 = sadd.s32 %s93, 1
    %s95 = scalar_select %p92, %s93, %s94
    %p98 = pneg %p92
    %p99 = scmp.eq.s32.totalorder %s10, 1
    %p100 = por %p98, %p99
    %p101 = scmp.ne.s32.totalorder %s93, %s96
    %p102 = scmp.eq.s32.totalorder %s10, 0
    %p103 = por %p101, %p102
    %p104 = scmp.ne.s32.totalorder %s93, %s96
    %p105 = scmp.eq.s32.totalorder %s15, 1
    %p106 = por %p104, %p105
    %p107 = scmp.ne.s32.totalorder %s96, %s97
    %p108 = scmp.eq.s32.totalorder %s15, 0
    %p109 = por %p107, %p108
    %p110 = scmp.ne.s32.totalorder %s96, %s97
    %p111 = scmp.eq.s32.totalorder %s16, 1
    %p112 = por %p110, %p111
    %p114 = scmp.ne.s32.totalorder %s97, %s113
    %p115 = scmp.eq.s32.totalorder %s16, 0
    %p116 = por %p114, %p115
    %p117 = scmp.le.s32.totalorder 1, %s10
    %p118 = scmp.lt.s32.totalorder %s10, 3
    %p119 = pnand %p117, %p118
    %p120 = pneg %p119
    // Predicated region
    $region9: #{da_module_forward.3} parent=5 // pred_check
      _
    $region10: #{da_module_forward.3} parent=5 // pred_check_branch
      %122 = sbr.rel (%p119) target = $region12
    $region11: #{da_module_forward.3} parent=5 // pred_region
      %s123 = ssub.s32 %s10, 1
      // Predicated region
      $region13: #{da_module_forward.3} parent=11 // pred_check
        %p124 = pneg %p57
      $region14: #{da_module_forward.3} parent=11 // pred_check_branch
        %126 = sbr.rel (%p124) target = $region16
      $region15: #{da_module_forward.3} parent=11 // pred_region
        _
      $region16: #{da_module_forward.3} parent=11 // pred_fallthru
        _
    $region12: #{da_module_forward.3} parent=5 // pred_fallthru
      _
    %p127 = scmp.lt.s32.totalorder %s10, 2
    // Predicated region
    $region17: #{da_module_forward.3} parent=5 // pred_check
      %p128 = pneg %p127
    $region18: #{da_module_forward.3} parent=5 // pred_check_branch
      %130 = sbr.rel (%p128) target = $region20
    $region19: #{da_module_forward.3} parent=5 // pred_region
      // Predicated region
      $region21: #{da_module_forward.3} parent=19 // pred_check
        %p131 = pneg %p30
      $region22: #{da_module_forward.3} parent=19 // pred_check_branch
        %133 = sbr.rel (%p131) target = $region24
      $region23: #{da_module_forward.3} parent=19 // pred_region
        %p134 = scmp.lt.s32.totalorder %s10, 1
        %s135 = scalar_select %p134, %s10, 1
        %s136 = smul.addr %s135, 54
        %s137 = smul.addr %s136, 4
        %s138 = scalar_lea.vmem %s0, %s137
      $region24: #{da_module_forward.3} parent=19 // pred_fallthru
        _
    $region20: #{da_module_forward.3} parent=5 // pred_fallthru
      _
    %p139 = scmp.le.s32.totalorder 1, %s10
    %p140 = scmp.lt.s32.totalorder %s10, 3
    %p141 = pnand %p139, %p140
    %p142 = pneg %p141
    // Predicated region
    $region25: #{da_module_forward.3} parent=5 // pred_check
      _
    $region26: #{da_module_forward.3} parent=5 // pred_check_branch
      %144 = sbr.rel (%p141) target = $region28
    $region27: #{da_module_forward.3} parent=5 // pred_region
      %s145 = ssub.s32 %s10, 1
      %p146 = scmp.lt.s32.totalorder %s15, 1
      %s147 = scalar_select %p146, %s15, 1
      %s148 = smul.addr %s147, 54
      %s149 = smul.addr %s148, 4
      %s150 = scalar_lea.vmem %s0, %s149
      %p151 = pneg %p36
      %p152 = pneg %p33
      %p153 = pneg %p57
      %p154 = pneg %p54
      %p155 = pneg %p83
      %p156 = pneg %p80
      %p157 = scmp.lt.s32.totalorder %s15, 1
      %s158 = scalar_select %p157, %s15, 1
      %s159 = smul.addr %s158, 32
      %s160 = smul.addr %s159, 4
      %s161 = scalar_lea.vmem %s2, %s160
      %p162 = pneg %p109
      %p163 = pneg %p106
      %p164 = scmp.lt.s32.totalorder %s15, 1
      %s165 = scalar_select %p164, %s15, 1
      %s166 = smul.addr %s165, 2
      %s167 = scalar_lea.vmem %s3, %s166
      %p168 = scmp.lt.s32.totalorder %s15, 1
      %s169 = scalar_select %p168, %s15, 1
      %s170 = smul.addr %s169, 54
      %s171 = smul.addr %s170, 4
      %s172 = scalar_lea.vmem %s0, %s171
      %p173 = scmp.lt.s32.totalorder %s15, 1
      %s174 = scalar_select %p173, %s15, 1
      %s175 = smul.addr %s174, 32
      %s176 = smul.addr %s175, 4
      %s177 = scalar_lea.vmem %s2, %s176
      %p178 = scmp.lt.s32.totalorder %s15, 1
      %s179 = scalar_select %p178, %s15, 1
      %s180 = smul.addr %s179, 2
      %s181 = scalar_lea.vmem %s3, %s180
      %v183 = vld [vmem:[%s172] sm:$0xf]
      %v184 = vld [vmem:[%s172 + $0x4] sm:$0xf]
      %v185 = vld [vmem:[%s172 + $0xc] sm:$0xf]
      %v186 = vld [vmem:[%s172 + $0x10] sm:$0xf]
      %v187 = vld [vmem:[%s172 + $0x18] sm:$0xf]
      %v188 = vld [vmem:[%s172 + $0x1c] sm:$0xf]
      %v189 = vld [vmem:[%s172 + $0x24] sm:$0xf]
      %v190 = vld [vmem:[%s172 + $0x28] sm:$0xf]
      %v191 = vld [vmem:[%s172 + $0x30] sm:$0xf]
      %v192 = vld [vmem:[%s172 + $0x34] sm:$0xf]
      %v193 = vld [vmem:[%s172 + $0x3c] sm:$0xf]
      %v194 = vld [vmem:[%s172 + $0x40] sm:$0xf]
      %v195 = vld [vmem:[%s172 + $0x48] sm:$0xf]
      %v196 = vld [vmem:[%s172 + $0x4c] sm:$0xf]
      %v197 = vld [vmem:[%s172 + $0x54] sm:$0xf]
      %v198 = vld [vmem:[%s172 + $0x58] sm:$0xf]
      %v199 = vld [vmem:[%s172 + $0x60] sm:$0xf]
      %v200 = vld [vmem:[%s172 + $0x64] sm:$0xf]
      %v201 = vld [vmem:[%s172 + $0x6c] sm:$0xf]
      %v202 = vld [vmem:[%s172 + $0x70] sm:$0xf]
      %v203 = vld [vmem:[%s172 + $0x78] sm:$0xf]
      %v204 = vld [vmem:[%s172 + $0x7c] sm:$0xf]
      %v205 = vld [vmem:[%s172 + $0x84] sm:$0xf]
      %v206 = vld [vmem:[%s172 + $0x88] sm:$0xf]
      %v207 = vld [vmem:[%s172 + $0x90] sm:$0xf]
      %v208 = vld [vmem:[%s172 + $0x94] sm:$0xf]
      %v209 = vld [vmem:[%s172 + $0x9c] sm:$0xf]
      %v210 = vld [vmem:[%s172 + $0xa0] sm:$0xf]
      %v211 = vld [vmem:[%s172 + $0xa8] sm:$0xf]
      %v212 = vld [vmem:[%s172 + $0xac] sm:$0xf]
      %v213 = vld [vmem:[%s172 + $0xb4] sm:$0xf]
      %v214 = vld [vmem:[%s172 + $0xb8] sm:$0xf]
      %v215 = vld [vmem:[%s172 + $0x8] sm:$0x1]
      %v216 = vld [vmem:[%s172 + $0x14] sm:$0x1]
      %v217 = vld [vmem:[%s172 + $0x20] sm:$0x1]
      %v218 = vld [vmem:[%s172 + $0x2c] sm:$0x1]
      %v219 = vld [vmem:[%s172 + $0x38] sm:$0x1]
      %v220 = vld [vmem:[%s172 + $0x44] sm:$0x1]
      %v221 = vld [vmem:[%s172 + $0x50] sm:$0x1]
      %v222 = vld [vmem:[%s172 + $0x5c] sm:$0x1]
      %v223 = vld [vmem:[%s172 + $0x68] sm:$0x1]
      %v224 = vld [vmem:[%s172 + $0x74] sm:$0x1]
      %v225 = vld [vmem:[%s172 + $0x80] sm:$0x1]
      %v226 = vld [vmem:[%s172 + $0x8c] sm:$0x1]
      %v227 = vld [vmem:[%s172 + $0x98] sm:$0x1]
      %v228 = vld [vmem:[%s172 + $0xa4] sm:$0x1]
      %v229 = vld [vmem:[%s172 + $0xb0] sm:$0x1]
      %v230 = vld [vmem:[%s172 + $0xbc] sm:$0x1]
      %vm231 = vsmask.f32 3328
      %vm232 = vsmask.f32 7440
      %vm233 = vmor %vm231, %vm232
      %v235 = vshrl.u32 %v183, 16
      %v237 = vrot.slane %v235, 4
      %v238 = vshll.u32 %v183, 16
      %v240 = vrot.slane %v238, 5
      %v241 = vor.u32 %v237, %v240
      %v242 = vrot.slane %v241, 4
      %v244 = vshll.u32 %v184, 16
      %v246 = vrot.slane %v244, 5
      %v247 = vsel %vm233, %v242, %v246
      %v248 = vshrl.u32 %v184, 16
      %v250 = vrot.slane %v248, 4
      %v251 = vor.u32 %v250, %v246
      %v252 = vrot.slane %v251, 4
      %v254 = vshll.u32 %v215, 16
      %v256 = vrot.slane %v254, 5
      %v257 = vsel %vm233, %v252, %v256
      %v259 = vshrl.u32 %v185, 16
      %v261 = vrot.slane %v259, 4
      %v262 = vshll.u32 %v185, 16
      %v264 = vrot.slane %v262, 5
      %v265 = vor.u32 %v261, %v264
      %v266 = vrot.slane %v265, 4
      %v268 = vshll.u32 %v186, 16
      %v270 = vrot.slane %v268, 5
      %v271 = vsel %vm233, %v266, %v270
      %v272 = vshrl.u32 %v186, 16
      %v274 = vrot.slane %v272, 4
      %v275 = vor.u32 %v274, %v270
      %v276 = vrot.slane %v275, 4
      %v278 = vshll.u32 %v216, 16
      %v280 = vrot.slane %v278, 5
      %v281 = vsel %vm233, %v276, %v280
      %v283 = vshrl.u32 %v187, 16
      %v285 = vrot.slane %v283, 4
      %v286 = vshll.u32 %v187, 16
      %v288 = vrot.slane %v286, 5
      %v289 = vor.u32 %v285, %v288
      %v290 = vrot.slane %v289, 4
      %v292 = vshll.u32 %v188, 16
      %v294 = vrot.slane %v292, 5
      %v295 = vsel %vm233, %v290, %v294
      %v296 = vshrl.u32 %v188, 16
      %v298 = vrot.slane %v296, 4
      %v299 = vor.u32 %v298, %v294
      %v300 = vrot.slane %v299, 4
      %v302 = vshll.u32 %v217, 16
      %v304 = vrot.slane %v302, 5
      %v305 = vsel %vm233, %v300, %v304
      %v307 = vshrl.u32 %v189, 16
      %v309 = vrot.slane %v307, 4
      %v310 = vshll.u32 %v189, 16
      %v312 = vrot.slane %v310, 5
      %v313 = vor.u32 %v309, %v312
      %v314 = vrot.slane %v313, 4
      %v316 = vshll.u32 %v190, 16
      %v318 = vrot.slane %v316, 5
      %v319 = vsel %vm233, %v314, %v318
      %v320 = vshrl.u32 %v190, 16
      %v322 = vrot.slane %v320, 4
      %v323 = vor.u32 %v322, %v318
      %v324 = vrot.slane %v323, 4
      %v326 = vshll.u32 %v218, 16
      %v328 = vrot.slane %v326, 5
      %v329 = vsel %vm233, %v324, %v328
      %v331 = vshrl.u32 %v191, 16
      %v333 = vrot.slane %v331, 4
      %v334 = vshll.u32 %v191, 16
      %v336 = vrot.slane %v334, 5
      %v337 = vor.u32 %v333, %v336
      %v338 = vrot.slane %v337, 4
      %v340 = vshll.u32 %v192, 16
      %v342 = vrot.slane %v340, 5
      %v343 = vsel %vm233, %v338, %v342
      %v344 = vshrl.u32 %v192, 16
      %v346 = vrot.slane %v344, 4
      %v347 = vor.u32 %v346, %v342
      %v348 = vrot.slane %v347, 4
      %v350 = vshll.u32 %v219, 16
      %v352 = vrot.slane %v350, 5
      %v353 = vsel %vm233, %v348, %v352
      %v355 = vshrl.u32 %v193, 16
      %v357 = vrot.slane %v355, 4
      %v358 = vshll.u32 %v193, 16
      %v360 = vrot.slane %v358, 5
      %v361 = vor.u32 %v357, %v360
      %v362 = vrot.slane %v361, 4
      %v364 = vshll.u32 %v194, 16
      %v366 = vrot.slane %v364, 5
      %v367 = vsel %vm233, %v362, %v366
      %v368 = vshrl.u32 %v194, 16
      %v370 = vrot.slane %v368, 4
      %v371 = vor.u32 %v370, %v366
      %v372 = vrot.slane %v371, 4
      %v374 = vshll.u32 %v220, 16
      %v376 = vrot.slane %v374, 5
      %v377 = vsel %vm233, %v372, %v376
      %v379 = vshrl.u32 %v195, 16
      %v381 = vrot.slane %v379, 4
      %v382 = vshll.u32 %v195, 16
      %v384 = vrot.slane %v382, 5
      %v385 = vor.u32 %v381, %v384
      %v386 = vrot.slane %v385, 4
      %v388 = vshll.u32 %v196, 16
      %v390 = vrot.slane %v388, 5
      %v391 = vsel %vm233, %v386, %v390
      %v392 = vshrl.u32 %v196, 16
      %v394 = vrot.slane %v392, 4
      %v395 = vor.u32 %v394, %v390
      %v396 = vrot.slane %v395, 4
      %v398 = vshll.u32 %v221, 16
      %v400 = vrot.slane %v398, 5
      %v401 = vsel %vm233, %v396, %v400
      %v403 = vshrl.u32 %v197, 16
      %v405 = vrot.slane %v403, 4
      %v406 = vshll.u32 %v197, 16
      %v408 = vrot.slane %v406, 5
      %v409 = vor.u32 %v405, %v408
      %v410 = vrot.slane %v409, 4
      %v412 = vshll.u32 %v198, 16
      %v414 = vrot.slane %v412, 5
      %v415 = vsel %vm233, %v410, %v414
      %v416 = vshrl.u32 %v198, 16
      %v418 = vrot.slane %v416, 4
      %v419 = vor.u32 %v418, %v414
      %v420 = vrot.slane %v419, 4
      %v422 = vshll.u32 %v222, 16
      %v424 = vrot.slane %v422, 5
      %v425 = vsel %vm233, %v420, %v424
      %v427 = vshrl.u32 %v199, 16
      %v429 = vrot.slane %v427, 4
      %v430 = vshll.u32 %v199, 16
      %v432 = vrot.slane %v430, 5
      %v433 = vor.u32 %v429, %v432
      %v434 = vrot.slane %v433, 4
      %v436 = vshll.u32 %v200, 16
      %v438 = vrot.slane %v436, 5
      %v439 = vsel %vm233, %v434, %v438
      %v440 = vshrl.u32 %v200, 16
      %v442 = vrot.slane %v440, 4
      %v443 = vor.u32 %v442, %v438
      %v444 = vrot.slane %v443, 4
      %v446 = vshll.u32 %v223, 16
      %v448 = vrot.slane %v446, 5
      %v449 = vsel %vm233, %v444, %v448
      %v451 = vshrl.u32 %v201, 16
      %v453 = vrot.slane %v451, 4
      %v454 = vshll.u32 %v201, 16
      %v456 = vrot.slane %v454, 5
      %v457 = vor.u32 %v453, %v456
      %v458 = vrot.slane %v457, 4
      %v460 = vshll.u32 %v202, 16
      %v462 = vrot.slane %v460, 5
      %v463 = vsel %vm233, %v458, %v462
      %v464 = vshrl.u32 %v202, 16
      %v466 = vrot.slane %v464, 4
      %v467 = vor.u32 %v466, %v462
      %v468 = vrot.slane %v467, 4
      %v470 = vshll.u32 %v224, 16
      %v472 = vrot.slane %v470, 5
      %v473 = vsel %vm233, %v468, %v472
      %v475 = vshrl.u32 %v203, 16
      %v477 = vrot.slane %v475, 4
      %v478 = vshll.u32 %v203, 16
      %v480 = vrot.slane %v478, 5
      %v481 = vor.u32 %v477, %v480
      %v482 = vrot.slane %v481, 4
      %v484 = vshll.u32 %v204, 16
      %v486 = vrot.slane %v484, 5
      %v487 = vsel %vm233, %v482, %v486
      %v488 = vshrl.u32 %v204, 16
      %v490 = vrot.slane %v488, 4
      %v491 = vor.u32 %v490, %v486
      %v492 = vrot.slane %v491, 4
      %v494 = vshll.u32 %v225, 16
      %v496 = vrot.slane %v494, 5
      %v497 = vsel %vm233, %v492, %v496
      %v499 = vshrl.u32 %v205, 16
      %v501 = vrot.slane %v499, 4
      %v502 = vshll.u32 %v205, 16
      %v504 = vrot.slane %v502, 5
      %v505 = vor.u32 %v501, %v504
      %v506 = vrot.slane %v505, 4
      %v508 = vshll.u32 %v206, 16
      %v510 = vrot.slane %v508, 5
      %v511 = vsel %vm233, %v506, %v510
      %v512 = vshrl.u32 %v206, 16
      %v514 = vrot.slane %v512, 4
      %v515 = vor.u32 %v514, %v510
      %v516 = vrot.slane %v515, 4
      %v518 = vshll.u32 %v226, 16
      %v520 = vrot.slane %v518, 5
      %v521 = vsel %vm233, %v516, %v520
      %v523 = vshrl.u32 %v207, 16
      %v525 = vrot.slane %v523, 4
      %v526 = vshll.u32 %v207, 16
      %v528 = vrot.slane %v526, 5
      %v529 = vor.u32 %v525, %v528
      %v530 = vrot.slane %v529, 4
      %v532 = vshll.u32 %v208, 16
      %v534 = vrot.slane %v532, 5
      %v535 = vsel %vm233, %v530, %v534
      %v536 = vshrl.u32 %v208, 16
      %v538 = vrot.slane %v536, 4
      %v539 = vor.u32 %v538, %v534
      %v540 = vrot.slane %v539, 4
      %v542 = vshll.u32 %v227, 16
      %v544 = vrot.slane %v542, 5
      %v545 = vsel %vm233, %v540, %v544
      %v547 = vshrl.u32 %v209, 16
      %v549 = vrot.slane %v547, 4
      %v550 = vshll.u32 %v209, 16
      %v552 = vrot.slane %v550, 5
      %v553 = vor.u32 %v549, %v552
      %v554 = vrot.slane %v553, 4
      %v556 = vshll.u32 %v210, 16
      %v558 = vrot.slane %v556, 5
      %v559 = vsel %vm233, %v554, %v558
      %v560 = vshrl.u32 %v210, 16
      %v562 = vrot.slane %v560, 4
      %v563 = vor.u32 %v562, %v558
      %v564 = vrot.slane %v563, 4
      %v566 = vshll.u32 %v228, 16
      %v568 = vrot.slane %v566, 5
      %v569 = vsel %vm233, %v564, %v568
      %v571 = vshrl.u32 %v211, 16
      %v573 = vrot.slane %v571, 4
      %v574 = vshll.u32 %v211, 16
      %v576 = vrot.slane %v574, 5
      %v577 = vor.u32 %v573, %v576
      %v578 = vrot.slane %v577, 4
      %v580 = vshll.u32 %v212, 16
      %v582 = vrot.slane %v580, 5
      %v583 = vsel %vm233, %v578, %v582
      %v584 = vshrl.u32 %v212, 16
      %v586 = vrot.slane %v584, 4
      %v587 = vor.u32 %v586, %v582
      %v588 = vrot.slane %v587, 4
      %v590 = vshll.u32 %v229, 16
      %v592 = vrot.slane %v590, 5
      %v593 = vsel %vm233, %v588, %v592
      %v595 = vshrl.u32 %v213, 16
      %v597 = vrot.slane %v595, 4
      %v598 = vshll.u32 %v213, 16
      %v600 = vrot.slane %v598, 5
      %v601 = vor.u32 %v597, %v600
      %v602 = vrot.slane %v601, 4
      %v604 = vshll.u32 %v214, 16
      %v606 = vrot.slane %v604, 5
      %v607 = vsel %vm233, %v602, %v606
      %v608 = vshrl.u32 %v214, 16
      %v610 = vrot.slane %v608, 4
      %v611 = vor.u32 %v610, %v606
      %v612 = vrot.slane %v611, 4
      %v614 = vshll.u32 %v230, 16
      %v616 = vrot.slane %v614, 5
      %v617 = vsel %vm233, %v612, %v616
      %v618 = vld [vmem:[%s172] sm:$0xe]
      %v619 = vld [vmem:[%s172 + $0xc] sm:$0xe]
      %v620 = vld [vmem:[%s172 + $0x18] sm:$0xe]
      %v621 = vld [vmem:[%s172 + $0x24] sm:$0xe]
      %v622 = vld [vmem:[%s172 + $0x30] sm:$0xe]
      %v623 = vld [vmem:[%s172 + $0x3c] sm:$0xe]
      %v624 = vld [vmem:[%s172 + $0x48] sm:$0xe]
      %v625 = vld [vmem:[%s172 + $0x54] sm:$0xe]
      %v626 = vld [vmem:[%s172 + $0x60] sm:$0xe]
      %v627 = vld [vmem:[%s172 + $0x6c] sm:$0xe]
      %v628 = vld [vmem:[%s172 + $0x78] sm:$0xe]
      %v629 = vld [vmem:[%s172 + $0x84] sm:$0xe]
      %v630 = vld [vmem:[%s172 + $0x90] sm:$0xe]
      %v631 = vld [vmem:[%s172 + $0x9c] sm:$0xe]
      %v632 = vld [vmem:[%s172 + $0xa8] sm:$0xe]
      %v633 = vld [vmem:[%s172 + $0xb4] sm:$0xe]
      %vm682 = vcmask 1042432
      %vm683 = vcmask 1046532
      %vm684 = vmor %vm682, %vm683
      %v685 = vrot.slane %v618, 5
      %v686 = vrot.slane %v685, 4
      %v687 = vrot.slane %v184, 5
      %v688 = vsel %vm684, %v686, %v687
      %v689 = vrot.slane %v687, 4
      %v690 = vrot.slane %v215, 5
      %v691 = vsel %vm684, %v689, %v690
      %v692 = vrot.slane %v619, 5
      %v693 = vrot.slane %v692, 4
      %v694 = vrot.slane %v186, 5
      %v695 = vsel %vm684, %v693, %v694
      %v696 = vrot.slane %v694, 4
      %v697 = vrot.slane %v216, 5
      %v698 = vsel %vm684, %v696, %v697
      %v699 = vrot.slane %v620, 5
      %v700 = vrot.slane %v699, 4
      %v701 = vrot.slane %v188, 5
      %v702 = vsel %vm684, %v700, %v701
      %v703 = vrot.slane %v701, 4
      %v704 = vrot.slane %v217, 5
      %v705 = vsel %vm684, %v703, %v704
      %v706 = vrot.slane %v621, 5
      %v707 = vrot.slane %v706, 4
      %v708 = vrot.slane %v190, 5
      %v709 = vsel %vm684, %v707, %v708
      %v710 = vrot.slane %v708, 4
      %v711 = vrot.slane %v218, 5
      %v712 = vsel %vm684, %v710, %v711
      %v713 = vrot.slane %v622, 5
      %v714 = vrot.slane %v713, 4
      %v715 = vrot.slane %v192, 5
      %v716 = vsel %vm684, %v714, %v715
      %v717 = vrot.slane %v715, 4
      %v718 = vrot.slane %v219, 5
      %v719 = vsel %vm684, %v717, %v718
      %v720 = vrot.slane %v623, 5
      %v721 = vrot.slane %v720, 4
      %v722 = vrot.slane %v194, 5
      %v723 = vsel %vm684, %v721, %v722
      %v724 = vrot.slane %v722, 4
      %v725 = vrot.slane %v220, 5
      %v726 = vsel %vm684, %v724, %v725
      %v727 = vrot.slane %v624, 5
      %v728 = vrot.slane %v727, 4
      %v729 = vrot.slane %v196, 5
      %v730 = vsel %vm684, %v728, %v729
      %v731 = vrot.slane %v729, 4
      %v732 = vrot.slane %v221, 5
      %v733 = vsel %vm684, %v731, %v732
      %v734 = vrot.slane %v625, 5
      %v735 = vrot.slane %v734, 4
      %v736 = vrot.slane %v198, 5
      %v737 = vsel %vm684, %v735, %v736
      %v738 = vrot.slane %v736, 4
      %v739 = vrot.slane %v222, 5
      %v740 = vsel %vm684, %v738, %v739
      %v741 = vrot.slane %v626, 5
      %v742 = vrot.slane %v741, 4
      %v743 = vrot.slane %v200, 5
      %v744 = vsel %vm684, %v742, %v743
      %v745 = vrot.slane %v743, 4
      %v746 = vrot.slane %v223, 5
      %v747 = vsel %vm684, %v745, %v746
      %v748 = vrot.slane %v627, 5
      %v749 = vrot.slane %v748, 4
      %v750 = vrot.slane %v202, 5
      %v751 = vsel %vm684, %v749, %v750
      %v752 = vrot.slane %v750, 4
      %v753 = vrot.slane %v224, 5
      %v754 = vsel %vm684, %v752, %v753
      %v755 = vrot.slane %v628, 5
      %v756 = vrot.slane %v755, 4
      %v757 = vrot.slane %v204, 5
      %v758 = vsel %vm684, %v756, %v757
      %v759 = vrot.slane %v757, 4
      %v760 = vrot.slane %v225, 5
      %v761 = vsel %vm684, %v759, %v760
      %v762 = vrot.slane %v629, 5
      %v763 = vrot.slane %v762, 4
      %v764 = vrot.slane %v206, 5
      %v765 = vsel %vm684, %v763, %v764
      %v766 = vrot.slane %v764, 4
      %v767 = vrot.slane %v226, 5
      %v768 = vsel %vm684, %v766, %v767
      %v769 = vrot.slane %v630, 5
      %v770 = vrot.slane %v769, 4
      %v771 = vrot.slane %v208, 5
      %v772 = vsel %vm684, %v770, %v771
      %v773 = vrot.slane %v771, 4
      %v774 = vrot.slane %v227, 5
      %v775 = vsel %vm684, %v773, %v774
      %v776 = vrot.slane %v631, 5
      %v777 = vrot.slane %v776, 4
      %v778 = vrot.slane %v210, 5
      %v779 = vsel %vm684, %v777, %v778
      %v780 = vrot.slane %v778, 4
      %v781 = vrot.slane %v228, 5
      %v782 = vsel %vm684, %v780, %v781
      %v783 = vrot.slane %v632, 5
      %v784 = vrot.slane %v783, 4
      %v785 = vrot.slane %v212, 5
      %v786 = vsel %vm684, %v784, %v785
      %v787 = vrot.slane %v785, 4
      %v788 = vrot.slane %v229, 5
      %v789 = vsel %vm684, %v787, %v788
      %v790 = vrot.slane %v633, 5
      %v791 = vrot.slane %v790, 4
      %v792 = vrot.slane %v214, 5
      %v793 = vsel %vm684, %v791, %v792
      %v794 = vrot.slane %v792, 4
      %v795 = vrot.slane %v230, 5
      %v796 = vsel %vm684, %v794, %v795
      %s797 = scalar_lea.vmem %s172, 12
      %v798 = vld [vmem:[%s797] sm:$0xf]
      %v799 = vld [vmem:[%s797 + $0x4] sm:$0xf]
      %v800 = vld [vmem:[%s797 + $0xc] sm:$0xf]
      %v801 = vld [vmem:[%s797 + $0x10] sm:$0xf]
      %v802 = vld [vmem:[%s797 + $0x18] sm:$0xf]
      %v803 = vld [vmem:[%s797 + $0x1c] sm:$0xf]
      %v804 = vld [vmem:[%s797 + $0x24] sm:$0xf]
      %v805 = vld [vmem:[%s797 + $0x28] sm:$0xf]
      %v806 = vld [vmem:[%s797 + $0x30] sm:$0xf]
      %v807 = vld [vmem:[%s797 + $0x34] sm:$0xf]
      %v808 = vld [vmem:[%s797 + $0x3c] sm:$0xf]
      %v809 = vld [vmem:[%s797 + $0x40] sm:$0xf]
      %v810 = vld [vmem:[%s797 + $0x48] sm:$0xf]
      %v811 = vld [vmem:[%s797 + $0x4c] sm:$0xf]
      %v812 = vld [vmem:[%s797 + $0x54] sm:$0xf]
      %v813 = vld [vmem:[%s797 + $0x58] sm:$0xf]
      %v814 = vld [vmem:[%s797 + $0x60] sm:$0xf]
      %v815 = vld [vmem:[%s797 + $0x64] sm:$0xf]
      %v816 = vld [vmem:[%s797 + $0x6c] sm:$0xf]
      %v817 = vld [vmem:[%s797 + $0x70] sm:$0xf]
      %v818 = vld [vmem:[%s797 + $0x78] sm:$0xf]
      %v819 = vld [vmem:[%s797 + $0x7c] sm:$0xf]
      %v820 = vld [vmem:[%s797 + $0x84] sm:$0xf]
      %v821 = vld [vmem:[%s797 + $0x88] sm:$0xf]
      %v822 = vld [vmem:[%s797 + $0x90] sm:$0xf]
      %v823 = vld [vmem:[%s797 + $0x94] sm:$0xf]
      %v824 = vld [vmem:[%s797 + $0x9c] sm:$0xf]
      %v825 = vld [vmem:[%s797 + $0xa0] sm:$0xf]
      %v826 = vld [vmem:[%s797 + $0xa8] sm:$0xf]
      %v827 = vld [vmem:[%s797 + $0xac] sm:$0xf]
      %v828 = vld [vmem:[%s797 + $0xb4] sm:$0xf]
      %v829 = vld [vmem:[%s797 + $0xb8] sm:$0xf]
      %v830 = vld [vmem:[%s797 + $0x8] sm:$0x1]
      %v831 = vld [vmem:[%s797 + $0x14] sm:$0x1]
      %v832 = vld [vmem:[%s797 + $0x20] sm:$0x1]
      %v833 = vld [vmem:[%s797 + $0x2c] sm:$0x1]
      %v834 = vld [vmem:[%s797 + $0x38] sm:$0x1]
      %v835 = vld [vmem:[%s797 + $0x44] sm:$0x1]
      %v836 = vld [vmem:[%s797 + $0x50] sm:$0x1]
      %v837 = vld [vmem:[%s797 + $0x5c] sm:$0x1]
      %v838 = vld [vmem:[%s797 + $0x68] sm:$0x1]
      %v839 = vld [vmem:[%s797 + $0x74] sm:$0x1]
      %v840 = vld [vmem:[%s797 + $0x80] sm:$0x1]
      %v841 = vld [vmem:[%s797 + $0x8c] sm:$0x1]
      %v842 = vld [vmem:[%s797 + $0x98] sm:$0x1]
      %v843 = vld [vmem:[%s797 + $0xa4] sm:$0x1]
      %v844 = vld [vmem:[%s797 + $0xb0] sm:$0x1]
      %v845 = vld [vmem:[%s797 + $0xbc] sm:$0x1]
      %v847 = vshrl.u32 %v798, 16
      %v849 = vrot.slane %v847, 4
      %v850 = vshll.u32 %v798, 16
      %v852 = vrot.slane %v850, 5
      %v853 = vor.u32 %v849, %v852
      %v854 = vrot.slane %v853, 4
      %v856 = vshll.u32 %v799, 16
      %v858 = vrot.slane %v856, 5
      %v859 = vsel %vm233, %v854, %v858
      %v860 = vshrl.u32 %v799, 16
      %v862 = vrot.slane %v860, 4
      %v863 = vor.u32 %v862, %v858
      %v864 = vrot.slane %v863, 4
      %v866 = vshll.u32 %v830, 16
      %v868 = vrot.slane %v866, 5
      %v869 = vsel %vm233, %v864, %v868
      %v871 = vshrl.u32 %v800, 16
      %v873 = vrot.slane %v871, 4
      %v874 = vshll.u32 %v800, 16
      %v876 = vrot.slane %v874, 5
      %v877 = vor.u32 %v873, %v876
      %v878 = vrot.slane %v877, 4
      %v880 = vshll.u32 %v801, 16
      %v882 = vrot.slane %v880, 5
      %v883 = vsel %vm233, %v878, %v882
      %v884 = vshrl.u32 %v801, 16
      %v886 = vrot.slane %v884, 4
      %v887 = vor.u32 %v886, %v882
      %v888 = vrot.slane %v887, 4
      %v890 = vshll.u32 %v831, 16
      %v892 = vrot.slane %v890, 5
      %v893 = vsel %vm233, %v888, %v892
      %v895 = vshrl.u32 %v802, 16
      %v897 = vrot.slane %v895, 4
      %v898 = vshll.u32 %v802, 16
      %v900 = vrot.slane %v898, 5
      %v901 = vor.u32 %v897, %v900
      %v902 = vrot.slane %v901, 4
      %v904 = vshll.u32 %v803, 16
      %v906 = vrot.slane %v904, 5
      %v907 = vsel %vm233, %v902, %v906
      %v908 = vshrl.u32 %v803, 16
      %v910 = vrot.slane %v908, 4
      %v911 = vor.u32 %v910, %v906
      %v912 = vrot.slane %v911, 4
      %v914 = vshll.u32 %v832, 16
      %v916 = vrot.slane %v914, 5
      %v917 = vsel %vm233, %v912, %v916
      %v919 = vshrl.u32 %v804, 16
      %v921 = vrot.slane %v919, 4
      %v922 = vshll.u32 %v804, 16
      %v924 = vrot.slane %v922, 5
      %v925 = vor.u32 %v921, %v924
      %v926 = vrot.slane %v925, 4
      %v928 = vshll.u32 %v805, 16
      %v930 = vrot.slane %v928, 5
      %v931 = vsel %vm233, %v926, %v930
      %v932 = vshrl.u32 %v805, 16
      %v934 = vrot.slane %v932, 4
      %v935 = vor.u32 %v934, %v930
      %v936 = vrot.slane %v935, 4
      %v938 = vshll.u32 %v833, 16
      %v940 = vrot.slane %v938, 5
      %v941 = vsel %vm233, %v936, %v940
      %v943 = vshrl.u32 %v806, 16
      %v945 = vrot.slane %v943, 4
      %v946 = vshll.u32 %v806, 16
      %v948 = vrot.slane %v946, 5
      %v949 = vor.u32 %v945, %v948
      %v950 = vrot.slane %v949, 4
      %v952 = vshll.u32 %v807, 16
      %v954 = vrot.slane %v952, 5
      %v955 = vsel %vm233, %v950, %v954
      %v956 = vshrl.u32 %v807, 16
      %v958 = vrot.slane %v956, 4
      %v959 = vor.u32 %v958, %v954
      %v960 = vrot.slane %v959, 4
      %v962 = vshll.u32 %v834, 16
      %v964 = vrot.slane %v962, 5
      %v965 = vsel %vm233, %v960, %v964
      %v967 = vshrl.u32 %v808, 16
      %v969 = vrot.slane %v967, 4
      %v970 = vshll.u32 %v808, 16
      %v972 = vrot.slane %v970, 5
      %v973 = vor.u32 %v969, %v972
      %v974 = vrot.slane %v973, 4
      %v976 = vshll.u32 %v809, 16
      %v978 = vrot.slane %v976, 5
      %v979 = vsel %vm233, %v974, %v978
      %v980 = vshrl.u32 %v809, 16
      %v982 = vrot.slane %v980, 4
      %v983 = vor.u32 %v982, %v978
      %v984 = vrot.slane %v983, 4
      %v986 = vshll.u32 %v835, 16
      %v988 = vrot.slane %v986, 5
      %v989 = vsel %vm233, %v984, %v988
      %v991 = vshrl.u32 %v810, 16
      %v993 = vrot.slane %v991, 4
      %v994 = vshll.u32 %v810, 16
      %v996 = vrot.slane %v994, 5
      %v997 = vor.u32 %v993, %v996
      %v998 = vrot.slane %v997, 4
      %v1000 = vshll.u32 %v811, 16
      %v1002 = vrot.slane %v1000, 5
      %v1003 = vsel %vm233, %v998, %v1002
      %v1004 = vshrl.u32 %v811, 16
      %v1006 = vrot.slane %v1004, 4
      %v1007 = vor.u32 %v1006, %v1002
      %v1008 = vrot.slane %v1007, 4
      %v1010 = vshll.u32 %v836, 16
      %v1012 = vrot.slane %v1010, 5
      %v1013 = vsel %vm233, %v1008, %v1012
      %v1015 = vshrl.u32 %v812, 16
      %v1017 = vrot.slane %v1015, 4
      %v1018 = vshll.u32 %v812, 16
      %v1020 = vrot.slane %v1018, 5
      %v1021 = vor.u32 %v1017, %v1020
      %v1022 = vrot.slane %v1021, 4
      %v1024 = vshll.u32 %v813, 16
      %v1026 = vrot.slane %v1024, 5
      %v1027 = vsel %vm233, %v1022, %v1026
      %v1028 = vshrl.u32 %v813, 16
      %v1030 = vrot.slane %v1028, 4
      %v1031 = vor.u32 %v1030, %v1026
      %v1032 = vrot.slane %v1031, 4
      %v1034 = vshll.u32 %v837, 16
      %v1036 = vrot.slane %v1034, 5
      %v1037 = vsel %vm233, %v1032, %v1036
      %v1039 = vshrl.u32 %v814, 16
      %v1041 = vrot.slane %v1039, 4
      %v1042 = vshll.u32 %v814, 16
      %v1044 = vrot.slane %v1042, 5
      %v1045 = vor.u32 %v1041, %v1044
      %v1046 = vrot.slane %v1045, 4
      %v1048 = vshll.u32 %v815, 16
      %v1050 = vrot.slane %v1048, 5
      %v1051 = vsel %vm233, %v1046, %v1050
      %v1052 = vshrl.u32 %v815, 16
      %v1054 = vrot.slane %v1052, 4
      %v1055 = vor.u32 %v1054, %v1050
      %v1056 = vrot.slane %v1055, 4
      %v1058 = vshll.u32 %v838, 16
      %v1060 = vrot.slane %v1058, 5
      %v1061 = vsel %vm233, %v1056, %v1060
      %v1063 = vshrl.u32 %v816, 16
      %v1065 = vrot.slane %v1063, 4
      %v1066 = vshll.u32 %v816, 16
      %v1068 = vrot.slane %v1066, 5
      %v1069 = vor.u32 %v1065, %v1068
      %v1070 = vrot.slane %v1069, 4
      %v1072 = vshll.u32 %v817, 16
      %v1074 = vrot.slane %v1072, 5
      %v1075 = vsel %vm233, %v1070, %v1074
      %v1076 = vshrl.u32 %v817, 16
      %v1078 = vrot.slane %v1076, 4
      %v1079 = vor.u32 %v1078, %v1074
      %v1080 = vrot.slane %v1079, 4
      %v1082 = vshll.u32 %v839, 16
      %v1084 = vrot.slane %v1082, 5
      %v1085 = vsel %vm233, %v1080, %v1084
      %v1087 = vshrl.u32 %v818, 16
      %v1089 = vrot.slane %v1087, 4
      %v1090 = vshll.u32 %v818, 16
      %v1092 = vrot.slane %v1090, 5
      %v1093 = vor.u32 %v1089, %v1092
      %v1094 = vrot.slane %v1093, 4
      %v1096 = vshll.u32 %v819, 16
      %v1098 = vrot.slane %v1096, 5
      %v1099 = vsel %vm233, %v1094, %v1098
      %v1100 = vshrl.u32 %v819, 16
      %v1102 = vrot.slane %v1100, 4
      %v1103 = vor.u32 %v1102, %v1098
      %v1104 = vrot.slane %v1103, 4
      %v1106 = vshll.u32 %v840, 16
      %v1108 = vrot.slane %v1106, 5
      %v1109 = vsel %vm233, %v1104, %v1108
      %v1111 = vshrl.u32 %v820, 16
      %v1113 = vrot.slane %v1111, 4
      %v1114 = vshll.u32 %v820, 16
      %v1116 = vrot.slane %v1114, 5
      %v1117 = vor.u32 %v1113, %v1116
      %v1118 = vrot.slane %v1117, 4
      %v1120 = vshll.u32 %v821, 16
      %v1122 = vrot.slane %v1120, 5
      %v1123 = vsel %vm233, %v1118, %v1122
      %v1124 = vshrl.u32 %v821, 16
      %v1126 = vrot.slane %v1124, 4
      %v1127 = vor.u32 %v1126, %v1122
      %v1128 = vrot.slane %v1127, 4
      %v1130 = vshll.u32 %v841, 16
      %v1132 = vrot.slane %v1130, 5
      %v1133 = vsel %vm233, %v1128, %v1132
      %v1135 = vshrl.u32 %v822, 16
      %v1137 = vrot.slane %v1135, 4
      %v1138 = vshll.u32 %v822, 16
      %v1140 = vrot.slane %v1138, 5
      %v1141 = vor.u32 %v1137, %v1140
      %v1142 = vrot.slane %v1141, 4
      %v1144 = vshll.u32 %v823, 16
      %v1146 = vrot.slane %v1144, 5
      %v1147 = vsel %vm233, %v1142, %v1146
      %v1148 = vshrl.u32 %v823, 16
      %v1150 = vrot.slane %v1148, 4
      %v1151 = vor.u32 %v1150, %v1146
      %v1152 = vrot.slane %v1151, 4
      %v1154 = vshll.u32 %v842, 16
      %v1156 = vrot.slane %v1154, 5
      %v1157 = vsel %vm233, %v1152, %v1156
      %v1159 = vshrl.u32 %v824, 16
      %v1161 = vrot.slane %v1159, 4
      %v1162 = vshll.u32 %v824, 16
      %v1164 = vrot.slane %v1162, 5
      %v1165 = vor.u32 %v1161, %v1164
      %v1166 = vrot.slane %v1165, 4
      %v1168 = vshll.u32 %v825, 16
      %v1170 = vrot.slane %v1168, 5
      %v1171 = vsel %vm233, %v1166, %v1170
      %v1172 = vshrl.u32 %v825, 16
      %v1174 = vrot.slane %v1172, 4
      %v1175 = vor.u32 %v1174, %v1170
      %v1176 = vrot.slane %v1175, 4
      %v1178 = vshll.u32 %v843, 16
      %v1180 = vrot.slane %v1178, 5
      %v1181 = vsel %vm233, %v1176, %v1180
      %v1183 = vshrl.u32 %v826, 16
      %v1185 = vrot.slane %v1183, 4
      %v1186 = vshll.u32 %v826, 16
      %v1188 = vrot.slane %v1186, 5
      %v1189 = vor.u32 %v1185, %v1188
      %v1190 = vrot.slane %v1189, 4
      %v1192 = vshll.u32 %v827, 16
      %v1194 = vrot.slane %v1192, 5
      %v1195 = vsel %vm233, %v1190, %v1194
      %v1196 = vshrl.u32 %v827, 16
      %v1198 = vrot.slane %v1196, 4
      %v1199 = vor.u32 %v1198, %v1194
      %v1200 = vrot.slane %v1199, 4
      %v1202 = vshll.u32 %v844, 16
      %v1204 = vrot.slane %v1202, 5
      %v1205 = vsel %vm233, %v1200, %v1204
      %v1207 = vshrl.u32 %v828, 16
      %v1209 = vrot.slane %v1207, 4
      %v1210 = vshll.u32 %v828, 16
      %v1212 = vrot.slane %v1210, 5
      %v1213 = vor.u32 %v1209, %v1212
      %v1214 = vrot.slane %v1213, 4
      %v1216 = vshll.u32 %v829, 16
      %v1218 = vrot.slane %v1216, 5
      %v1219 = vsel %vm233, %v1214, %v1218
      %v1220 = vshrl.u32 %v829, 16
      %v1222 = vrot.slane %v1220, 4
      %v1223 = vor.u32 %v1222, %v1218
      %v1224 = vrot.slane %v1223, 4
      %v1226 = vshll.u32 %v845, 16
      %v1228 = vrot.slane %v1226, 5
      %v1229 = vsel %vm233, %v1224, %v1228
      %v1230 = vld [vmem:[%s797] sm:$0xe]
      %v1231 = vld [vmem:[%s797 + $0xc] sm:$0xe]
      %v1232 = vld [vmem:[%s797 + $0x18] sm:$0xe]
      %v1233 = vld [vmem:[%s797 + $0x24] sm:$0xe]
      %v1234 = vld [vmem:[%s797 + $0x30] sm:$0xe]
      %v1235 = vld [vmem:[%s797 + $0x3c] sm:$0xe]
      %v1236 = vld [vmem:[%s797 + $0x48] sm:$0xe]
      %v1237 = vld [vmem:[%s797 + $0x54] sm:$0xe]
      %v1238 = vld [vmem:[%s797 + $0x60] sm:$0xe]
      %v1239 = vld [vmem:[%s797 + $0x6c] sm:$0xe]
      %v1240 = vld [vmem:[%s797 + $0x78] sm:$0xe]
      %v1241 = vld [vmem:[%s797 + $0x84] sm:$0xe]
      %v1242 = vld [vmem:[%s797 + $0x90] sm:$0xe]
      %v1243 = vld [vmem:[%s797 + $0x9c] sm:$0xe]
      %v1244 = vld [vmem:[%s797 + $0xa8] sm:$0xe]
      %v1245 = vld [vmem:[%s797 + $0xb4] sm:$0xe]
      %v1294 = vrot.slane %v1230, 5
      %v1295 = vrot.slane %v1294, 4
      %v1296 = vrot.slane %v799, 5
      %v1297 = vsel %vm684, %v1295, %v1296
      %v1298 = vrot.slane %v1296, 4
      %v1299 = vrot.slane %v830, 5
      %v1300 = vsel %vm684, %v1298, %v1299
      %v1301 = vrot.slane %v1231, 5
      %v1302 = vrot.slane %v1301, 4
      %v1303 = vrot.slane %v801, 5
      %v1304 = vsel %vm684, %v1302, %v1303
      %v1305 = vrot.slane %v1303, 4
      %v1306 = vrot.slane %v831, 5
      %v1307 = vsel %vm684, %v1305, %v1306
      %v1308 = vrot.slane %v1232, 5
      %v1309 = vrot.slane %v1308, 4
      %v1310 = vrot.slane %v803, 5
      %v1311 = vsel %vm684, %v1309, %v1310
      %v1312 = vrot.slane %v1310, 4
      %v1313 = vrot.slane %v832, 5
      %v1314 = vsel %vm684, %v1312, %v1313
      %v1315 = vrot.slane %v1233, 5
      %v1316 = vrot.slane %v1315, 4
      %v1317 = vrot.slane %v805, 5
      %v1318 = vsel %vm684, %v1316, %v1317
      %v1319 = vrot.slane %v1317, 4
      %v1320 = vrot.slane %v833, 5
      %v1321 = vsel %vm684, %v1319, %v1320
      %v1322 = vrot.slane %v1234, 5
      %v1323 = vrot.slane %v1322, 4
      %v1324 = vrot.slane %v807, 5
      %v1325 = vsel %vm684, %v1323, %v1324
      %v1326 = vrot.slane %v1324, 4
      %v1327 = vrot.slane %v834, 5
      %v1328 = vsel %vm684, %v1326, %v1327
      %v1329 = vrot.slane %v1235, 5
      %v1330 = vrot.slane %v1329, 4
      %v1331 = vrot.slane %v809, 5
      %v1332 = vsel %vm684, %v1330, %v1331
      %v1333 = vrot.slane %v1331, 4
      %v1334 = vrot.slane %v835, 5
      %v1335 = vsel %vm684, %v1333, %v1334
      %v1336 = vrot.slane %v1236, 5
      %v1337 = vrot.slane %v1336, 4
      %v1338 = vrot.slane %v811, 5
      %v1339 = vsel %vm684, %v1337, %v1338
      %v1340 = vrot.slane %v1338, 4
      %v1341 = vrot.slane %v836, 5
      %v1342 = vsel %vm684, %v1340, %v1341
      %v1343 = vrot.slane %v1237, 5
      %v1344 = vrot.slane %v1343, 4
      %v1345 = vrot.slane %v813, 5
      %v1346 = vsel %vm684, %v1344, %v1345
      %v1347 = vrot.slane %v1345, 4
      %v1348 = vrot.slane %v837, 5
      %v1349 = vsel %vm684, %v1347, %v1348
      %v1350 = vrot.slane %v1238, 5
      %v1351 = vrot.slane %v1350, 4
      %v1352 = vrot.slane %v815, 5
      %v1353 = vsel %vm684, %v1351, %v1352
      %v1354 = vrot.slane %v1352, 4
      %v1355 = vrot.slane %v838, 5
      %v1356 = vsel %vm684, %v1354, %v1355
      %v1357 = vrot.slane %v1239, 5
      %v1358 = vrot.slane %v1357, 4
      %v1359 = vrot.slane %v817, 5
      %v1360 = vsel %vm684, %v1358, %v1359
      %v1361 = vrot.slane %v1359, 4
      %v1362 = vrot.slane %v839, 5
      %v1363 = vsel %vm684, %v1361, %v1362
      %v1364 = vrot.slane %v1240, 5
      %v1365 = vrot.slane %v1364, 4
      %v1366 = vrot.slane %v819, 5
      %v1367 = vsel %vm684, %v1365, %v1366
      %v1368 = vrot.slane %v1366, 4
      %v1369 = vrot.slane %v840, 5
      %v1370 = vsel %vm684, %v1368, %v1369
      %v1371 = vrot.slane %v1241, 5
      %v1372 = vrot.slane %v1371, 4
      %v1373 = vrot.slane %v821, 5
      %v1374 = vsel %vm684, %v1372, %v1373
      %v1375 = vrot.slane %v1373, 4
      %v1376 = vrot.slane %v841, 5
      %v1377 = vsel %vm684, %v1375, %v1376
      %v1378 = vrot.slane %v1242, 5
      %v1379 = vrot.slane %v1378, 4
      %v1380 = vrot.slane %v823, 5
      %v1381 = vsel %vm684, %v1379, %v1380
      %v1382 = vrot.slane %v1380, 4
      %v1383 = vrot.slane %v842, 5
      %v1384 = vsel %vm684, %v1382, %v1383
      %v1385 = vrot.slane %v1243, 5
      %v1386 = vrot.slane %v1385, 4
      %v1387 = vrot.slane %v825, 5
      %v1388 = vsel %vm684, %v1386, %v1387
      %v1389 = vrot.slane %v1387, 4
      %v1390 = vrot.slane %v843, 5
      %v1391 = vsel %vm684, %v1389, %v1390
      %v1392 = vrot.slane %v1244, 5
      %v1393 = vrot.slane %v1392, 4
      %v1394 = vrot.slane %v827, 5
      %v1395 = vsel %vm684, %v1393, %v1394
      %v1396 = vrot.slane %v1394, 4
      %v1397 = vrot.slane %v844, 5
      %v1398 = vsel %vm684, %v1396, %v1397
      %v1399 = vrot.slane %v1245, 5
      %v1400 = vrot.slane %v1399, 4
      %v1401 = vrot.slane %v829, 5
      %v1402 = vsel %vm684, %v1400, %v1401
      %v1403 = vrot.slane %v1401, 4
      %v1404 = vrot.slane %v845, 5
      %v1405 = vsel %vm684, %v1403, %v1404
      %s1406 = scalar_lea.vmem %s172, 24
      %v1407 = vld [vmem:[%s1406] sm:$0xf]
      %v1408 = vld [vmem:[%s1406 + $0x4] sm:$0xf]
      %v1409 = vld [vmem:[%s1406 + $0xc] sm:$0xf]
      %v1410 = vld [vmem:[%s1406 + $0x10] sm:$0xf]
      %v1411 = vld [vmem:[%s1406 + $0x18] sm:$0xf]
      %v1412 = vld [vmem:[%s1406 + $0x1c] sm:$0xf]
      %v1413 = vld [vmem:[%s1406 + $0x24] sm:$0xf]
      %v1414 = vld [vmem:[%s1406 + $0x28] sm:$0xf]
      %v1415 = vld [vmem:[%s1406 + $0x30] sm:$0xf]
      %v1416 = vld [vmem:[%s1406 + $0x34] sm:$0xf]
      %v1417 = vld [vmem:[%s1406 + $0x3c] sm:$0xf]
      %v1418 = vld [vmem:[%s1406 + $0x40] sm:$0xf]
      %v1419 = vld [vmem:[%s1406 + $0x48] sm:$0xf]
      %v1420 = vld [vmem:[%s1406 + $0x4c] sm:$0xf]
      %v1421 = vld [vmem:[%s1406 + $0x54] sm:$0xf]
      %v1422 = vld [vmem:[%s1406 + $0x58] sm:$0xf]
      %v1423 = vld [vmem:[%s1406 + $0x60] sm:$0xf]
      %v1424 = vld [vmem:[%s1406 + $0x64] sm:$0xf]
      %v1425 = vld [vmem:[%s1406 + $0x6c] sm:$0xf]
      %v1426 = vld [vmem:[%s1406 + $0x70] sm:$0xf]
      %v1427 = vld [vmem:[%s1406 + $0x78] sm:$0xf]
      %v1428 = vld [vmem:[%s1406 + $0x7c] sm:$0xf]
      %v1429 = vld [vmem:[%s1406 + $0x84] sm:$0xf]
      %v1430 = vld [vmem:[%s1406 + $0x88] sm:$0xf]
      %v1431 = vld [vmem:[%s1406 + $0x90] sm:$0xf]
      %v1432 = vld [vmem:[%s1406 + $0x94] sm:$0xf]
      %v1433 = vld [vmem:[%s1406 + $0x9c] sm:$0xf]
      %v1434 = vld [vmem:[%s1406 + $0xa0] sm:$0xf]
      %v1435 = vld [vmem:[%s1406 + $0xa8] sm:$0xf]
      %v1436 = vld [vmem:[%s1406 + $0xac] sm:$0xf]
      %v1437 = vld [vmem:[%s1406 + $0xb4] sm:$0xf]
      %v1438 = vld [vmem:[%s1406 + $0xb8] sm:$0xf]
      %v1439 = vld [vmem:[%s1406 + $0x8] sm:$0x1]
      %v1440 = vld [vmem:[%s1406 + $0x14] sm:$0x1]
      %v1441 = vld [vmem:[%s1406 + $0x20] sm:$0x1]
      %v1442 = vld [vmem:[%s1406 + $0x2c] sm:$0x1]
      %v1443 = vld [vmem:[%s1406 + $0x38] sm:$0x1]
      %v1444 = vld [vmem:[%s1406 + $0x44] sm:$0x1]
      %v1445 = vld [vmem:[%s1406 + $0x50] sm:$0x1]
      %v1446 = vld [vmem:[%s1406 + $0x5c] sm:$0x1]
      %v1447 = vld [vmem:[%s1406 + $0x68] sm:$0x1]
      %v1448 = vld [vmem:[%s1406 + $0x74] sm:$0x1]
      %v1449 = vld [vmem:[%s1406 + $0x80] sm:$0x1]
      %v1450 = vld [vmem:[%s1406 + $0x8c] sm:$0x1]
      %v1451 = vld [vmem:[%s1406 + $0x98] sm:$0x1]
      %v1452 = vld [vmem:[%s1406 + $0xa4] sm:$0x1]
      %v1453 = vld [vmem:[%s1406 + $0xb0] sm:$0x1]
      %v1454 = vld [vmem:[%s1406 + $0xbc] sm:$0x1]
      %v1456 = vshrl.u32 %v1407, 16
      %v1458 = vrot.slane %v1456, 4
      %v1459 = vshll.u32 %v1407, 16
      %v1461 = vrot.slane %v1459, 5
      %v1462 = vor.u32 %v1458, %v1461
      %v1463 = vrot.slane %v1462, 4
      %v1465 = vshll.u32 %v1408, 16
      %v1467 = vrot.slane %v1465, 5
      %v1468 = vsel %vm233, %v1463, %v1467
      %v1469 = vshrl.u32 %v1408, 16
      %v1471 = vrot.slane %v1469, 4
      %v1472 = vor.u32 %v1471, %v1467
      %v1473 = vrot.slane %v1472, 4
      %v1475 = vshll.u32 %v1439, 16
      %v1477 = vrot.slane %v1475, 5
      %v1478 = vsel %vm233, %v1473, %v1477
      %v1480 = vshrl.u32 %v1409, 16
      %v1482 = vrot.slane %v1480, 4
      %v1483 = vshll.u32 %v1409, 16
      %v1485 = vrot.slane %v1483, 5
      %v1486 = vor.u32 %v1482, %v1485
      %v1487 = vrot.slane %v1486, 4
      %v1489 = vshll.u32 %v1410, 16
      %v1491 = vrot.slane %v1489, 5
      %v1492 = vsel %vm233, %v1487, %v1491
      %v1493 = vshrl.u32 %v1410, 16
      %v1495 = vrot.slane %v1493, 4
      %v1496 = vor.u32 %v1495, %v1491
      %v1497 = vrot.slane %v1496, 4
      %v1499 = vshll.u32 %v1440, 16
      %v1501 = vrot.slane %v1499, 5
      %v1502 = vsel %vm233, %v1497, %v1501
      %v1504 = vshrl.u32 %v1411, 16
      %v1506 = vrot.slane %v1504, 4
      %v1507 = vshll.u32 %v1411, 16
      %v1509 = vrot.slane %v1507, 5
      %v1510 = vor.u32 %v1506, %v1509
      %v1511 = vrot.slane %v1510, 4
      %v1513 = vshll.u32 %v1412, 16
      %v1515 = vrot.slane %v1513, 5
      %v1516 = vsel %vm233, %v1511, %v1515
      %v1517 = vshrl.u32 %v1412, 16
      %v1519 = vrot.slane %v1517, 4
      %v1520 = vor.u32 %v1519, %v1515
      %v1521 = vrot.slane %v1520, 4
      %v1523 = vshll.u32 %v1441, 16
      %v1525 = vrot.slane %v1523, 5
      %v1526 = vsel %vm233, %v1521, %v1525
      %v1528 = vshrl.u32 %v1413, 16
      %v1530 = vrot.slane %v1528, 4
      %v1531 = vshll.u32 %v1413, 16
      %v1533 = vrot.slane %v1531, 5
      %v1534 = vor.u32 %v1530, %v1533
      %v1535 = vrot.slane %v1534, 4
      %v1537 = vshll.u32 %v1414, 16
      %v1539 = vrot.slane %v1537, 5
      %v1540 = vsel %vm233, %v1535, %v1539
      %v1541 = vshrl.u32 %v1414, 16
      %v1543 = vrot.slane %v1541, 4
      %v1544 = vor.u32 %v1543, %v1539
      %v1545 = vrot.slane %v1544, 4
      %v1547 = vshll.u32 %v1442, 16
      %v1549 = vrot.slane %v1547, 5
      %v1550 = vsel %vm233, %v1545, %v1549
      %v1552 = vshrl.u32 %v1415, 16
      %v1554 = vrot.slane %v1552, 4
      %v1555 = vshll.u32 %v1415, 16
      %v1557 = vrot.slane %v1555, 5
      %v1558 = vor.u32 %v1554, %v1557
      %v1559 = vrot.slane %v1558, 4
      %v1561 = vshll.u32 %v1416, 16
      %v1563 = vrot.slane %v1561, 5
      %v1564 = vsel %vm233, %v1559, %v1563
      %v1565 = vshrl.u32 %v1416, 16
      %v1567 = vrot.slane %v1565, 4
      %v1568 = vor.u32 %v1567, %v1563
      %v1569 = vrot.slane %v1568, 4
      %v1571 = vshll.u32 %v1443, 16
      %v1573 = vrot.slane %v1571, 5
      %v1574 = vsel %vm233, %v1569, %v1573
      %v1576 = vshrl.u32 %v1417, 16
      %v1578 = vrot.slane %v1576, 4
      %v1579 = vshll.u32 %v1417, 16
      %v1581 = vrot.slane %v1579, 5
      %v1582 = vor.u32 %v1578, %v1581
      %v1583 = vrot.slane %v1582, 4
      %v1585 = vshll.u32 %v1418, 16
      %v1587 = vrot.slane %v1585, 5
      %v1588 = vsel %vm233, %v1583, %v1587
      %v1589 = vshrl.u32 %v1418, 16
      %v1591 = vrot.slane %v1589, 4
      %v1592 = vor.u32 %v1591, %v1587
      %v1593 = vrot.slane %v1592, 4
      %v1595 = vshll.u32 %v1444, 16
      %v1597 = vrot.slane %v1595, 5
      %v1598 = vsel %vm233, %v1593, %v1597
      %v1600 = vshrl.u32 %v1419, 16
      %v1602 = vrot.slane %v1600, 4
      %v1603 = vshll.u32 %v1419, 16
      %v1605 = vrot.slane %v1603, 5
      %v1606 = vor.u32 %v1602, %v1605
      %v1607 = vrot.slane %v1606, 4
      %v1609 = vshll.u32 %v1420, 16
      %v1611 = vrot.slane %v1609, 5
      %v1612 = vsel %vm233, %v1607, %v1611
      %v1613 = vshrl.u32 %v1420, 16
      %v1615 = vrot.slane %v1613, 4
      %v1616 = vor.u32 %v1615, %v1611
      %v1617 = vrot.slane %v1616, 4
      %v1619 = vshll.u32 %v1445, 16
      %v1621 = vrot.slane %v1619, 5
      %v1622 = vsel %vm233, %v1617, %v1621
      %v1624 = vshrl.u32 %v1421, 16
      %v1626 = vrot.slane %v1624, 4
      %v1627 = vshll.u32 %v1421, 16
      %v1629 = vrot.slane %v1627, 5
      %v1630 = vor.u32 %v1626, %v1629
      %v1631 = vrot.slane %v1630, 4
      %v1633 = vshll.u32 %v1422, 16
      %v1635 = vrot.slane %v1633, 5
      %v1636 = vsel %vm233, %v1631, %v1635
      %v1637 = vshrl.u32 %v1422, 16
      %v1639 = vrot.slane %v1637, 4
      %v1640 = vor.u32 %v1639, %v1635
      %v1641 = vrot.slane %v1640, 4
      %v1643 = vshll.u32 %v1446, 16
      %v1645 = vrot.slane %v1643, 5
      %v1646 = vsel %vm233, %v1641, %v1645
      %v1648 = vshrl.u32 %v1423, 16
      %v1650 = vrot.slane %v1648, 4
      %v1651 = vshll.u32 %v1423, 16
      %v1653 = vrot.slane %v1651, 5
      %v1654 = vor.u32 %v1650, %v1653
      %v1655 = vrot.slane %v1654, 4
      %v1657 = vshll.u32 %v1424, 16
      %v1659 = vrot.slane %v1657, 5
      %v1660 = vsel %vm233, %v1655, %v1659
      %v1661 = vshrl.u32 %v1424, 16
      %v1663 = vrot.slane %v1661, 4
      %v1664 = vor.u32 %v1663, %v1659
      %v1665 = vrot.slane %v1664, 4
      %v1667 = vshll.u32 %v1447, 16
      %v1669 = vrot.slane %v1667, 5
      %v1670 = vsel %vm233, %v1665, %v1669
      %v1672 = vshrl.u32 %v1425, 16
      %v1674 = vrot.slane %v1672, 4
      %v1675 = vshll.u32 %v1425, 16
      %v1677 = vrot.slane %v1675, 5
      %v1678 = vor.u32 %v1674, %v1677
      %v1679 = vrot.slane %v1678, 4
      %v1681 = vshll.u32 %v1426, 16
      %v1683 = vrot.slane %v1681, 5
      %v1684 = vsel %vm233, %v1679, %v1683
      %v1685 = vshrl.u32 %v1426, 16
      %v1687 = vrot.slane %v1685, 4
      %v1688 = vor.u32 %v1687, %v1683
      %v1689 = vrot.slane %v1688, 4
      %v1691 = vshll.u32 %v1448, 16
      %v1693 = vrot.slane %v1691, 5
      %v1694 = vsel %vm233, %v1689, %v1693
      %v1696 = vshrl.u32 %v1427, 16
      %v1698 = vrot.slane %v1696, 4
      %v1699 = vshll.u32 %v1427, 16
      %v1701 = vrot.slane %v1699, 5
      %v1702 = vor.u32 %v1698, %v1701
      %v1703 = vrot.slane %v1702, 4
      %v1705 = vshll.u32 %v1428, 16
      %v1707 = vrot.slane %v1705, 5
      %v1708 = vsel %vm233, %v1703, %v1707
      %v1709 = vshrl.u32 %v1428, 16
      %v1711 = vrot.slane %v1709, 4
      %v1712 = vor.u32 %v1711, %v1707
      %v1713 = vrot.slane %v1712, 4
      %v1715 = vshll.u32 %v1449, 16
      %v1717 = vrot.slane %v1715, 5
      %v1718 = vsel %vm233, %v1713, %v1717
      %v1720 = vshrl.u32 %v1429, 16
      %v1722 = vrot.slane %v1720, 4
      %v1723 = vshll.u32 %v1429, 16
      %v1725 = vrot.slane %v1723, 5
      %v1726 = vor.u32 %v1722, %v1725
      %v1727 = vrot.slane %v1726, 4
      %v1729 = vshll.u32 %v1430, 16
      %v1731 = vrot.slane %v1729, 5
      %v1732 = vsel %vm233, %v1727, %v1731
      %v1733 = vshrl.u32 %v1430, 16
      %v1735 = vrot.slane %v1733, 4
      %v1736 = vor.u32 %v1735, %v1731
      %v1737 = vrot.slane %v1736, 4
      %v1739 = vshll.u32 %v1450, 16
      %v1741 = vrot.slane %v1739, 5
      %v1742 = vsel %vm233, %v1737, %v1741
      %v1744 = vshrl.u32 %v1431, 16
      %v1746 = vrot.slane %v1744, 4
      %v1747 = vshll.u32 %v1431, 16
      %v1749 = vrot.slane %v1747, 5
      %v1750 = vor.u32 %v1746, %v1749
      %v1751 = vrot.slane %v1750, 4
      %v1753 = vshll.u32 %v1432, 16
      %v1755 = vrot.slane %v1753, 5
      %v1756 = vsel %vm233, %v1751, %v1755
      %v1757 = vshrl.u32 %v1432, 16
      %v1759 = vrot.slane %v1757, 4
      %v1760 = vor.u32 %v1759, %v1755
      %v1761 = vrot.slane %v1760, 4
      %v1763 = vshll.u32 %v1451, 16
      %v1765 = vrot.slane %v1763, 5
      %v1766 = vsel %vm233, %v1761, %v1765
      %v1768 = vshrl.u32 %v1433, 16
      %v1770 = vrot.slane %v1768, 4
      %v1771 = vshll.u32 %v1433, 16
      %v1773 = vrot.slane %v1771, 5
      %v1774 = vor.u32 %v1770, %v1773
      %v1775 = vrot.slane %v1774, 4
      %v1777 = vshll.u32 %v1434, 16
      %v1779 = vrot.slane %v1777, 5
      %v1780 = vsel %vm233, %v1775, %v1779
      %v1781 = vshrl.u32 %v1434, 16
      %v1783 = vrot.slane %v1781, 4
      %v1784 = vor.u32 %v1783, %v1779
      %v1785 = vrot.slane %v1784, 4
      %v1787 = vshll.u32 %v1452, 16
      %v1789 = vrot.slane %v1787, 5
      %v1790 = vsel %vm233, %v1785, %v1789
      %v1792 = vshrl.u32 %v1435, 16
      %v1794 = vrot.slane %v1792, 4
      %v1795 = vshll.u32 %v1435, 16
      %v1797 = vrot.slane %v1795, 5
      %v1798 = vor.u32 %v1794, %v1797
      %v1799 = vrot.slane %v1798, 4
      %v1801 = vshll.u32 %v1436, 16
      %v1803 = vrot.slane %v1801, 5
      %v1804 = vsel %vm233, %v1799, %v1803
      %v1805 = vshrl.u32 %v1436, 16
      %v1807 = vrot.slane %v1805, 4
      %v1808 = vor.u32 %v1807, %v1803
      %v1809 = vrot.slane %v1808, 4
      %v1811 = vshll.u32 %v1453, 16
      %v1813 = vrot.slane %v1811, 5
      %v1814 = vsel %vm233, %v1809, %v1813
      %v1816 = vshrl.u32 %v1437, 16
      %v1818 = vrot.slane %v1816, 4
      %v1819 = vshll.u32 %v1437, 16
      %v1821 = vrot.slane %v1819, 5
      %v1822 = vor.u32 %v1818, %v1821
      %v1823 = vrot.slane %v1822, 4
      %v1825 = vshll.u32 %v1438, 16
      %v1827 = vrot.slane %v1825, 5
      %v1828 = vsel %vm233, %v1823, %v1827
      %v1829 = vshrl.u32 %v1438, 16
      %v1831 = vrot.slane %v1829, 4
      %v1832 = vor.u32 %v1831, %v1827
      %v1833 = vrot.slane %v1832, 4
      %v1835 = vshll.u32 %v1454, 16
      %v1837 = vrot.slane %v1835, 5
      %v1838 = vsel %vm233, %v1833, %v1837
      %v1839 = vld [vmem:[%s1406] sm:$0xe]
      %v1840 = vld [vmem:[%s1406 + $0xc] sm:$0xe]
      %v1841 = vld [vmem:[%s1406 + $0x18] sm:$0xe]
      %v1842 = vld [vmem:[%s1406 + $0x24] sm:$0xe]
      %v1843 = vld [vmem:[%s1406 + $0x30] sm:$0xe]
      %v1844 = vld [vmem:[%s1406 + $0x3c] sm:$0xe]
      %v1845 = vld [vmem:[%s1406 + $0x48] sm:$0xe]
      %v1846 = vld [vmem:[%s1406 + $0x54] sm:$0xe]
      %v1847 = vld [vmem:[%s1406 + $0x60] sm:$0xe]
      %v1848 = vld [vmem:[%s1406 + $0x6c] sm:$0xe]
      %v1849 = vld [vmem:[%s1406 + $0x78] sm:$0xe]
      %v1850 = vld [vmem:[%s1406 + $0x84] sm:$0xe]
      %v1851 = vld [vmem:[%s1406 + $0x90] sm:$0xe]
      %v1852 = vld [vmem:[%s1406 + $0x9c] sm:$0xe]
      %v1853 = vld [vmem:[%s1406 + $0xa8] sm:$0xe]
      %v1854 = vld [vmem:[%s1406 + $0xb4] sm:$0xe]
      %v1903 = vrot.slane %v1839, 5
      %v1904 = vrot.slane %v1903, 4
      %v1905 = vrot.slane %v1408, 5
      %v1906 = vsel %vm684, %v1904, %v1905
      %v1907 = vrot.slane %v1905, 4
      %v1908 = vrot.slane %v1439, 5
      %v1909 = vsel %vm684, %v1907, %v1908
      %v1910 = vrot.slane %v1840, 5
      %v1911 = vrot.slane %v1910, 4
      %v1912 = vrot.slane %v1410, 5
      %v1913 = vsel %vm684, %v1911, %v1912
      %v1914 = vrot.slane %v1912, 4
      %v1915 = vrot.slane %v1440, 5
      %v1916 = vsel %vm684, %v1914, %v1915
      %v1917 = vrot.slane %v1841, 5
      %v1918 = vrot.slane %v1917, 4
      %v1919 = vrot.slane %v1412, 5
      %v1920 = vsel %vm684, %v1918, %v1919
      %v1921 = vrot.slane %v1919, 4
      %v1922 = vrot.slane %v1441, 5
      %v1923 = vsel %vm684, %v1921, %v1922
      %v1924 = vrot.slane %v1842, 5
      %v1925 = vrot.slane %v1924, 4
      %v1926 = vrot.slane %v1414, 5
      %v1927 = vsel %vm684, %v1925, %v1926
      %v1928 = vrot.slane %v1926, 4
      %v1929 = vrot.slane %v1442, 5
      %v1930 = vsel %vm684, %v1928, %v1929
      %v1931 = vrot.slane %v1843, 5
      %v1932 = vrot.slane %v1931, 4
      %v1933 = vrot.slane %v1416, 5
      %v1934 = vsel %vm684, %v1932, %v1933
      %v1935 = vrot.slane %v1933, 4
      %v1936 = vrot.slane %v1443, 5
      %v1937 = vsel %vm684, %v1935, %v1936
      %v1938 = vrot.slane %v1844, 5
      %v1939 = vrot.slane %v1938, 4
      %v1940 = vrot.slane %v1418, 5
      %v1941 = vsel %vm684, %v1939, %v1940
      %v1942 = vrot.slane %v1940, 4
      %v1943 = vrot.slane %v1444, 5
      %v1944 = vsel %vm684, %v1942, %v1943
      %v1945 = vrot.slane %v1845, 5
      %v1946 = vrot.slane %v1945, 4
      %v1947 = vrot.slane %v1420, 5
      %v1948 = vsel %vm684, %v1946, %v1947
      %v1949 = vrot.slane %v1947, 4
      %v1950 = vrot.slane %v1445, 5
      %v1951 = vsel %vm684, %v1949, %v1950
      %v1952 = vrot.slane %v1846, 5
      %v1953 = vrot.slane %v1952, 4
      %v1954 = vrot.slane %v1422, 5
      %v1955 = vsel %vm684, %v1953, %v1954
      %v1956 = vrot.slane %v1954, 4
      %v1957 = vrot.slane %v1446, 5
      %v1958 = vsel %vm684, %v1956, %v1957
      %v1959 = vrot.slane %v1847, 5
      %v1960 = vrot.slane %v1959, 4
      %v1961 = vrot.slane %v1424, 5
      %v1962 = vsel %vm684, %v1960, %v1961
      %v1963 = vrot.slane %v1961, 4
      %v1964 = vrot.slane %v1447, 5
      %v1965 = vsel %vm684, %v1963, %v1964
      %v1966 = vrot.slane %v1848, 5
      %v1967 = vrot.slane %v1966, 4
      %v1968 = vrot.slane %v1426, 5
      %v1969 = vsel %vm684, %v1967, %v1968
      %v1970 = vrot.slane %v1968, 4
      %v1971 = vrot.slane %v1448, 5
      %v1972 = vsel %vm684, %v1970, %v1971
      %v1973 = vrot.slane %v1849, 5
      %v1974 = vrot.slane %v1973, 4
      %v1975 = vrot.slane %v1428, 5
      %v1976 = vsel %vm684, %v1974, %v1975
      %v1977 = vrot.slane %v1975, 4
      %v1978 = vrot.slane %v1449, 5
      %v1979 = vsel %vm684, %v1977, %v1978
      %v1980 = vrot.slane %v1850, 5
      %v1981 = vrot.slane %v1980, 4
      %v1982 = vrot.slane %v1430, 5
      %v1983 = vsel %vm684, %v1981, %v1982
      %v1984 = vrot.slane %v1982, 4
      %v1985 = vrot.slane %v1450, 5
      %v1986 = vsel %vm684, %v1984, %v1985
      %v1987 = vrot.slane %v1851, 5
      %v1988 = vrot.slane %v1987, 4
      %v1989 = vrot.slane %v1432, 5
      %v1990 = vsel %vm684, %v1988, %v1989
      %v1991 = vrot.slane %v1989, 4
      %v1992 = vrot.slane %v1451, 5
      %v1993 = vsel %vm684, %v1991, %v1992
      %v1994 = vrot.slane %v1852, 5
      %v1995 = vrot.slane %v1994, 4
      %v1996 = vrot.slane %v1434, 5
      %v1997 = vsel %vm684, %v1995, %v1996
      %v1998 = vrot.slane %v1996, 4
      %v1999 = vrot.slane %v1452, 5
      %v2000 = vsel %vm684, %v1998, %v1999
      %v2001 = vrot.slane %v1853, 5
      %v2002 = vrot.slane %v2001, 4
      %v2003 = vrot.slane %v1436, 5
      %v2004 = vsel %vm684, %v2002, %v2003
      %v2005 = vrot.slane %v2003, 4
      %v2006 = vrot.slane %v1453, 5
      %v2007 = vsel %vm684, %v2005, %v2006
      %v2008 = vrot.slane %v1854, 5
      %v2009 = vrot.slane %v2008, 4
      %v2010 = vrot.slane %v1438, 5
      %v2011 = vsel %vm684, %v2009, %v2010
      %v2012 = vrot.slane %v2010, 4
      %v2013 = vrot.slane %v1454, 5
      %v2014 = vsel %vm684, %v2012, %v2013
      %v2031 = vunpack.c.l.b16 %v183
      %v2032 = vunpack.c.l.b16 %v184
      %v2033 = vunpack.c.l.b16 %v185
      %v2034 = vunpack.c.l.b16 %v186
      %v2035 = vunpack.c.l.b16 %v187
      %v2036 = vunpack.c.l.b16 %v188
      %v2037 = vunpack.c.l.b16 %v189
      %v2038 = vunpack.c.l.b16 %v190
      %v2039 = vunpack.c.l.b16 %v191
      %v2040 = vunpack.c.l.b16 %v192
      %v2041 = vunpack.c.l.b16 %v193
      %v2042 = vunpack.c.l.b16 %v194
      %v2043 = vunpack.c.l.b16 %v195
      %v2044 = vunpack.c.l.b16 %v196
      %v2045 = vunpack.c.l.b16 %v197
      %v2046 = vunpack.c.l.b16 %v198
      %v2047 = vunpack.c.l.b16 %v199
      %v2048 = vunpack.c.l.b16 %v200
      %v2049 = vunpack.c.l.b16 %v201
      %v2050 = vunpack.c.l.b16 %v202
      %v2051 = vunpack.c.l.b16 %v203
      %v2052 = vunpack.c.l.b16 %v204
      %v2053 = vunpack.c.l.b16 %v205
      %v2054 = vunpack.c.l.b16 %v206
      %v2055 = vunpack.c.l.b16 %v207
      %v2056 = vunpack.c.l.b16 %v208
      %v2057 = vunpack.c.l.b16 %v209
      %v2058 = vunpack.c.l.b16 %v210
      %v2059 = vunpack.c.l.b16 %v211
      %v2060 = vunpack.c.l.b16 %v212
      %v2061 = vunpack.c.l.b16 %v213
      %v2062 = vunpack.c.l.b16 %v214
      %v2063 = vpack.c.b16 %v2032, %v2031
      %v2064 = vpack.c.b16 %v2034, %v2033
      %v2065 = vpack.c.b16 %v2036, %v2035
      %v2066 = vpack.c.b16 %v2038, %v2037
      %v2067 = vpack.c.b16 %v2040, %v2039
      %v2068 = vpack.c.b16 %v2042, %v2041
      %v2069 = vpack.c.b16 %v2044, %v2043
      %v2070 = vpack.c.b16 %v2046, %v2045
      %v2071 = vpack.c.b16 %v2048, %v2047
      %v2072 = vpack.c.b16 %v2050, %v2049
      %v2073 = vpack.c.b16 %v2052, %v2051
      %v2074 = vpack.c.b16 %v2054, %v2053
      %v2075 = vpack.c.b16 %v2056, %v2055
      %v2076 = vpack.c.b16 %v2058, %v2057
      %v2077 = vpack.c.b16 %v2060, %v2059
      %v2078 = vpack.c.b16 %v2062, %v2061
      %v2079 = vunpack.c.l.b16 %v247
      %v2080 = vunpack.c.l.b16 %v257
      %v2081 = vunpack.c.l.b16 %v271
      %v2082 = vunpack.c.l.b16 %v281
      %v2083 = vunpack.c.l.b16 %v295
      %v2084 = vunpack.c.l.b16 %v305
      %v2085 = vunpack.c.l.b16 %v319
      %v2086 = vunpack.c.l.b16 %v329
      %v2087 = vunpack.c.l.b16 %v343
      %v2088 = vunpack.c.l.b16 %v353
      %v2089 = vunpack.c.l.b16 %v367
      %v2090 = vunpack.c.l.b16 %v377
      %v2091 = vunpack.c.l.b16 %v391
      %v2092 = vunpack.c.l.b16 %v401
      %v2093 = vunpack.c.l.b16 %v415
      %v2094 = vunpack.c.l.b16 %v425
      %v2095 = vunpack.c.l.b16 %v439
      %v2096 = vunpack.c.l.b16 %v449
      %v2097 = vunpack.c.l.b16 %v463
      %v2098 = vunpack.c.l.b16 %v473
      %v2099 = vunpack.c.l.b16 %v487
      %v2100 = vunpack.c.l.b16 %v497
      %v2101 = vunpack.c.l.b16 %v511
      %v2102 = vunpack.c.l.b16 %v521
      %v2103 = vunpack.c.l.b16 %v535
      %v2104 = vunpack.c.l.b16 %v545
      %v2105 = vunpack.c.l.b16 %v559
      %v2106 = vunpack.c.l.b16 %v569
      %v2107 = vunpack.c.l.b16 %v583
      %v2108 = vunpack.c.l.b16 %v593
      %v2109 = vunpack.c.l.b16 %v607
      %v2110 = vunpack.c.l.b16 %v617
      %v2111 = vpack.c.b16 %v2080, %v2079
      %v2112 = vpack.c.b16 %v2082, %v2081
      %v2113 = vpack.c.b16 %v2084, %v2083
      %v2114 = vpack.c.b16 %v2086, %v2085
      %v2115 = vpack.c.b16 %v2088, %v2087
      %v2116 = vpack.c.b16 %v2090, %v2089
      %v2117 = vpack.c.b16 %v2092, %v2091
      %v2118 = vpack.c.b16 %v2094, %v2093
      %v2119 = vpack.c.b16 %v2096, %v2095
      %v2120 = vpack.c.b16 %v2098, %v2097
      %v2121 = vpack.c.b16 %v2100, %v2099
      %v2122 = vpack.c.b16 %v2102, %v2101
      %v2123 = vpack.c.b16 %v2104, %v2103
      %v2124 = vpack.c.b16 %v2106, %v2105
      %v2125 = vpack.c.b16 %v2108, %v2107
      %v2126 = vpack.c.b16 %v2110, %v2109
      %2127 = vrot.lane.b32.xlu0 %v2111, 4
      %v2128 = vpop.permute.xlu0 %2127
      %2129 = vrot.lane.b32.xlu0 %v2112, 4
      %v2130 = vpop.permute.xlu0 %2129
      %2131 = vrot.lane.b32.xlu0 %v2113, 4
      %v2132 = vpop.permute.xlu0 %2131
      %2133 = vrot.lane.b32.xlu0 %v2114, 4
      %v2134 = vpop.permute.xlu0 %2133
      %2135 = vrot.lane.b32.xlu0 %v2115, 4
      %v2136 = vpop.permute.xlu0 %2135
      %2137 = vrot.lane.b32.xlu0 %v2116, 4
      %v2138 = vpop.permute.xlu0 %2137
      %2139 = vrot.lane.b32.xlu0 %v2117, 4
      %v2140 = vpop.permute.xlu0 %2139
      %2141 = vrot.lane.b32.xlu0 %v2118, 4
      %v2142 = vpop.permute.xlu0 %2141
      %2143 = vrot.lane.b32.xlu0 %v2119, 4
      %v2144 = vpop.permute.xlu0 %2143
      %2145 = vrot.lane.b32.xlu0 %v2120, 4
      %v2146 = vpop.permute.xlu0 %2145
      %2147 = vrot.lane.b32.xlu0 %v2121, 4
      %v2148 = vpop.permute.xlu0 %2147
      %2149 = vrot.lane.b32.xlu0 %v2122, 4
      %v2150 = vpop.permute.xlu0 %2149
      %2151 = vrot.lane.b32.xlu0 %v2123, 4
      %v2152 = vpop.permute.xlu0 %2151
      %2153 = vrot.lane.b32.xlu0 %v2124, 4
      %v2154 = vpop.permute.xlu0 %2153
      %2155 = vrot.lane.b32.xlu0 %v2125, 4
      %v2156 = vpop.permute.xlu0 %2155
      %2157 = vrot.lane.b32.xlu0 %v2126, 4
      %v2158 = vpop.permute.xlu0 %2157
      %v2159 = vunpack.c.l.b16 %v688
      %v2160 = vunpack.c.l.b16 %v691
      %v2161 = vunpack.c.l.b16 %v695
      %v2162 = vunpack.c.l.b16 %v698
      %v2163 = vunpack.c.l.b16 %v702
      %v2164 = vunpack.c.l.b16 %v705
      %v2165 = vunpack.c.l.b16 %v709
      %v2166 = vunpack.c.l.b16 %v712
      %v2167 = vunpack.c.l.b16 %v716
      %v2168 = vunpack.c.l.b16 %v719
      %v2169 = vunpack.c.l.b16 %v723
      %v2170 = vunpack.c.l.b16 %v726
      %v2171 = vunpack.c.l.b16 %v730
      %v2172 = vunpack.c.l.b16 %v733
      %v2173 = vunpack.c.l.b16 %v737
      %v2174 = vunpack.c.l.b16 %v740
      %v2175 = vunpack.c.l.b16 %v744
      %v2176 = vunpack.c.l.b16 %v747
      %v2177 = vunpack.c.l.b16 %v751
      %v2178 = vunpack.c.l.b16 %v754
      %v2179 = vunpack.c.l.b16 %v758
      %v2180 = vunpack.c.l.b16 %v761
      %v2181 = vunpack.c.l.b16 %v765
      %v2182 = vunpack.c.l.b16 %v768
      %v2183 = vunpack.c.l.b16 %v772
      %v2184 = vunpack.c.l.b16 %v775
      %v2185 = vunpack.c.l.b16 %v779
      %v2186 = vunpack.c.l.b16 %v782
      %v2187 = vunpack.c.l.b16 %v786
      %v2188 = vunpack.c.l.b16 %v789
      %v2189 = vunpack.c.l.b16 %v793
      %v2190 = vunpack.c.l.b16 %v796
      %v2191 = vpack.c.b16 %v2160, %v2159
      %v2192 = vpack.c.b16 %v2162, %v2161
      %v2193 = vpack.c.b16 %v2164, %v2163
      %v2194 = vpack.c.b16 %v2166, %v2165
      %v2195 = vpack.c.b16 %v2168, %v2167
      %v2196 = vpack.c.b16 %v2170, %v2169
      %v2197 = vpack.c.b16 %v2172, %v2171
      %v2198 = vpack.c.b16 %v2174, %v2173
      %v2199 = vpack.c.b16 %v2176, %v2175
      %v2200 = vpack.c.b16 %v2178, %v2177
      %v2201 = vpack.c.b16 %v2180, %v2179
      %v2202 = vpack.c.b16 %v2182, %v2181
      %v2203 = vpack.c.b16 %v2184, %v2183
      %v2204 = vpack.c.b16 %v2186, %v2185
      %v2205 = vpack.c.b16 %v2188, %v2187
      %v2206 = vpack.c.b16 %v2190, %v2189
      %2207 = vrot.lane.b32.xlu0 %v2191, 8
      %v2208 = vpop.permute.xlu0 %2207
      %2209 = vrot.lane.b32.xlu0 %v2192, 8
      %v2210 = vpop.permute.xlu0 %2209
      %2211 = vrot.lane.b32.xlu0 %v2193, 8
      %v2212 = vpop.permute.xlu0 %2211
      %2213 = vrot.lane.b32.xlu0 %v2194, 8
      %v2214 = vpop.permute.xlu0 %2213
      %2215 = vrot.lane.b32.xlu0 %v2195, 8
      %v2216 = vpop.permute.xlu0 %2215
      %2217 = vrot.lane.b32.xlu0 %v2196, 8
      %v2218 = vpop.permute.xlu0 %2217
      %2219 = vrot.lane.b32.xlu0 %v2197, 8
      %v2220 = vpop.permute.xlu0 %2219
      %2221 = vrot.lane.b32.xlu0 %v2198, 8
      %v2222 = vpop.permute.xlu0 %2221
      %2223 = vrot.lane.b32.xlu0 %v2199, 8
      %v2224 = vpop.permute.xlu0 %2223
      %2225 = vrot.lane.b32.xlu0 %v2200, 8
      %v2226 = vpop.permute.xlu0 %2225
      %2227 = vrot.lane.b32.xlu0 %v2201, 8
      %v2228 = vpop.permute.xlu0 %2227
      %2229 = vrot.lane.b32.xlu0 %v2202, 8
      %v2230 = vpop.permute.xlu0 %2229
      %2231 = vrot.lane.b32.xlu0 %v2203, 8
      %v2232 = vpop.permute.xlu0 %2231
      %2233 = vrot.lane.b32.xlu0 %v2204, 8
      %v2234 = vpop.permute.xlu0 %2233
      %2235 = vrot.lane.b32.xlu0 %v2205, 8
      %v2236 = vpop.permute.xlu0 %2235
      %2237 = vrot.lane.b32.xlu0 %v2206, 8
      %v2238 = vpop.permute.xlu0 %2237
      %v2255 = vunpack.c.l.b16 %v798
      %v2256 = vunpack.c.l.b16 %v799
      %v2257 = vunpack.c.l.b16 %v800
      %v2258 = vunpack.c.l.b16 %v801
      %v2259 = vunpack.c.l.b16 %v802
      %v2260 = vunpack.c.l.b16 %v803
      %v2261 = vunpack.c.l.b16 %v804
      %v2262 = vunpack.c.l.b16 %v805
      %v2263 = vunpack.c.l.b16 %v806
      %v2264 = vunpack.c.l.b16 %v807
      %v2265 = vunpack.c.l.b16 %v808
      %v2266 = vunpack.c.l.b16 %v809
      %v2267 = vunpack.c.l.b16 %v810
      %v2268 = vunpack.c.l.b16 %v811
      %v2269 = vunpack.c.l.b16 %v812
      %v2270 = vunpack.c.l.b16 %v813
      %v2271 = vunpack.c.l.b16 %v814
      %v2272 = vunpack.c.l.b16 %v815
      %v2273 = vunpack.c.l.b16 %v816
      %v2274 = vunpack.c.l.b16 %v817
      %v2275 = vunpack.c.l.b16 %v818
      %v2276 = vunpack.c.l.b16 %v819
      %v2277 = vunpack.c.l.b16 %v820
      %v2278 = vunpack.c.l.b16 %v821
      %v2279 = vunpack.c.l.b16 %v822
      %v2280 = vunpack.c.l.b16 %v823
      %v2281 = vunpack.c.l.b16 %v824
      %v2282 = vunpack.c.l.b16 %v825
      %v2283 = vunpack.c.l.b16 %v826
      %v2284 = vunpack.c.l.b16 %v827
      %v2285 = vunpack.c.l.b16 %v828
      %v2286 = vunpack.c.l.b16 %v829
      %v2287 = vpack.c.b16 %v2256, %v2255
      %v2288 = vpack.c.b16 %v2258, %v2257
      %v2289 = vpack.c.b16 %v2260, %v2259
      %v2290 = vpack.c.b16 %v2262, %v2261
      %v2291 = vpack.c.b16 %v2264, %v2263
      %v2292 = vpack.c.b16 %v2266, %v2265
      %v2293 = vpack.c.b16 %v2268, %v2267
      %v2294 = vpack.c.b16 %v2270, %v2269
      %v2295 = vpack.c.b16 %v2272, %v2271
      %v2296 = vpack.c.b16 %v2274, %v2273
      %v2297 = vpack.c.b16 %v2276, %v2275
      %v2298 = vpack.c.b16 %v2278, %v2277
      %v2299 = vpack.c.b16 %v2280, %v2279
      %v2300 = vpack.c.b16 %v2282, %v2281
      %v2301 = vpack.c.b16 %v2284, %v2283
      %v2302 = vpack.c.b16 %v2286, %v2285
      %2303 = vrot.lane.b32.xlu0 %v2287, 12
      %v2304 = vpop.permute.xlu0 %2303
      %2305 = vrot.lane.b32.xlu0 %v2288, 12
      %v2306 = vpop.permute.xlu0 %2305
      %2307 = vrot.lane.b32.xlu0 %v2289, 12
      %v2308 = vpop.permute.xlu0 %2307
      %2309 = vrot.lane.b32.xlu0 %v2290, 12
      %v2310 = vpop.permute.xlu0 %2309
      %2311 = vrot.lane.b32.xlu0 %v2291, 12
      %v2312 = vpop.permute.xlu0 %2311
      %2313 = vrot.lane.b32.xlu0 %v2292, 12
      %v2314 = vpop.permute.xlu0 %2313
      %2315 = vrot.lane.b32.xlu0 %v2293, 12
      %v2316 = vpop.permute.xlu0 %2315
      %2317 = vrot.lane.b32.xlu0 %v2294, 12
      %v2318 = vpop.permute.xlu0 %2317
      %2319 = vrot.lane.b32.xlu0 %v2295, 12
      %v2320 = vpop.permute.xlu0 %2319
      %2321 = vrot.lane.b32.xlu0 %v2296, 12
      %v2322 = vpop.permute.xlu0 %2321
      %2323 = vrot.lane.b32.xlu0 %v2297, 12
      %v2324 = vpop.permute.xlu0 %2323
      %2325 = vrot.lane.b32.xlu0 %v2298, 12
      %v2326 = vpop.permute.xlu0 %2325
      %2327 = vrot.lane.b32.xlu0 %v2299, 12
      %v2328 = vpop.permute.xlu0 %2327
      %2329 = vrot.lane.b32.xlu0 %v2300, 12
      %v2330 = vpop.permute.xlu0 %2329
      %2331 = vrot.lane.b32.xlu0 %v2301, 12
      %v2332 = vpop.permute.xlu0 %2331
      %2333 = vrot.lane.b32.xlu0 %v2302, 12
      %v2334 = vpop.permute.xlu0 %2333
      %v2335 = vunpack.c.l.b16 %v859
      %v2336 = vunpack.c.l.b16 %v869
      %v2337 = vunpack.c.l.b16 %v883
      %v2338 = vunpack.c.l.b16 %v893
      %v2339 = vunpack.c.l.b16 %v907
      %v2340 = vunpack.c.l.b16 %v917
      %v2341 = vunpack.c.l.b16 %v931
      %v2342 = vunpack.c.l.b16 %v941
      %v2343 = vunpack.c.l.b16 %v955
      %v2344 = vunpack.c.l.b16 %v965
      %v2345 = vunpack.c.l.b16 %v979
      %v2346 = vunpack.c.l.b16 %v989
      %v2347 = vunpack.c.l.b16 %v1003
      %v2348 = vunpack.c.l.b16 %v1013
      %v2349 = vunpack.c.l.b16 %v1027
      %v2350 = vunpack.c.l.b16 %v1037
      %v2351 = vunpack.c.l.b16 %v1051
      %v2352 = vunpack.c.l.b16 %v1061
      %v2353 = vunpack.c.l.b16 %v1075
      %v2354 = vunpack.c.l.b16 %v1085
      %v2355 = vunpack.c.l.b16 %v1099
      %v2356 = vunpack.c.l.b16 %v1109
      %v2357 = vunpack.c.l.b16 %v1123
      %v2358 = vunpack.c.l.b16 %v1133
      %v2359 = vunpack.c.l.b16 %v1147
      %v2360 = vunpack.c.l.b16 %v1157
      %v2361 = vunpack.c.l.b16 %v1171
      %v2362 = vunpack.c.l.b16 %v1181
      %v2363 = vunpack.c.l.b16 %v1195
      %v2364 = vunpack.c.l.b16 %v1205
      %v2365 = vunpack.c.l.b16 %v1219
      %v2366 = vunpack.c.l.b16 %v1229
      %v2367 = vpack.c.b16 %v2336, %v2335
      %v2368 = vpack.c.b16 %v2338, %v2337
      %v2369 = vpack.c.b16 %v2340, %v2339
      %v2370 = vpack.c.b16 %v2342, %v2341
      %v2371 = vpack.c.b16 %v2344, %v2343
      %v2372 = vpack.c.b16 %v2346, %v2345
      %v2373 = vpack.c.b16 %v2348, %v2347
      %v2374 = vpack.c.b16 %v2350, %v2349
      %v2375 = vpack.c.b16 %v2352, %v2351
      %v2376 = vpack.c.b16 %v2354, %v2353
      %v2377 = vpack.c.b16 %v2356, %v2355
      %v2378 = vpack.c.b16 %v2358, %v2357
      %v2379 = vpack.c.b16 %v2360, %v2359
      %v2380 = vpack.c.b16 %v2362, %v2361
      %v2381 = vpack.c.b16 %v2364, %v2363
      %v2382 = vpack.c.b16 %v2366, %v2365
      %2383 = vrot.lane.b32.xlu0 %v2367, 16
      %v2384 = vpop.permute.xlu0 %2383
      %2385 = vrot.lane.b32.xlu0 %v2368, 16
      %v2386 = vpop.permute.xlu0 %2385
      %2387 = vrot.lane.b32.xlu0 %v2369, 16
      %v2388 = vpop.permute.xlu0 %2387
      %2389 = vrot.lane.b32.xlu0 %v2370, 16
      %v2390 = vpop.permute.xlu0 %2389
      %2391 = vrot.lane.b32.xlu0 %v2371, 16
      %v2392 = vpop.permute.xlu0 %2391
      %2393 = vrot.lane.b32.xlu0 %v2372, 16
      %v2394 = vpop.permute.xlu0 %2393
      %2395 = vrot.lane.b32.xlu0 %v2373, 16
      %v2396 = vpop.permute.xlu0 %2395
      %2397 = vrot.lane.b32.xlu0 %v2374, 16
      %v2398 = vpop.permute.xlu0 %2397
      %2399 = vrot.lane.b32.xlu0 %v2375, 16
      %v2400 = vpop.permute.xlu0 %2399
      %2401 = vrot.lane.b32.xlu0 %v2376, 16
      %v2402 = vpop.permute.xlu0 %2401
      %2403 = vrot.lane.b32.xlu0 %v2377, 16
      %v2404 = vpop.permute.xlu0 %2403
      %2405 = vrot.lane.b32.xlu0 %v2378, 16
      %v2406 = vpop.permute.xlu0 %2405
      %2407 = vrot.lane.b32.xlu0 %v2379, 16
      %v2408 = vpop.permute.xlu0 %2407
      %2409 = vrot.lane.b32.xlu0 %v2380, 16
      %v2410 = vpop.permute.xlu0 %2409
      %2411 = vrot.lane.b32.xlu0 %v2381, 16
      %v2412 = vpop.permute.xlu0 %2411
      %2413 = vrot.lane.b32.xlu0 %v2382, 16
      %v2414 = vpop.permute.xlu0 %2413
      %v2415 = vunpack.c.l.b16 %v1297
      %v2416 = vunpack.c.l.b16 %v1300
      %v2417 = vunpack.c.l.b16 %v1304
      %v2418 = vunpack.c.l.b16 %v1307
      %v2419 = vunpack.c.l.b16 %v1311
      %v2420 = vunpack.c.l.b16 %v1314
      %v2421 = vunpack.c.l.b16 %v1318
      %v2422 = vunpack.c.l.b16 %v1321
      %v2423 = vunpack.c.l.b16 %v1325
      %v2424 = vunpack.c.l.b16 %v1328
      %v2425 = vunpack.c.l.b16 %v1332
      %v2426 = vunpack.c.l.b16 %v1335
      %v2427 = vunpack.c.l.b16 %v1339
      %v2428 = vunpack.c.l.b16 %v1342
      %v2429 = vunpack.c.l.b16 %v1346
      %v2430 = vunpack.c.l.b16 %v1349
      %v2431 = vunpack.c.l.b16 %v1353
      %v2432 = vunpack.c.l.b16 %v1356
      %v2433 = vunpack.c.l.b16 %v1360
      %v2434 = vunpack.c.l.b16 %v1363
      %v2435 = vunpack.c.l.b16 %v1367
      %v2436 = vunpack.c.l.b16 %v1370
      %v2437 = vunpack.c.l.b16 %v1374
      %v2438 = vunpack.c.l.b16 %v1377
      %v2439 = vunpack.c.l.b16 %v1381
      %v2440 = vunpack.c.l.b16 %v1384
      %v2441 = vunpack.c.l.b16 %v1388
      %v2442 = vunpack.c.l.b16 %v1391
      %v2443 = vunpack.c.l.b16 %v1395
      %v2444 = vunpack.c.l.b16 %v1398
      %v2445 = vunpack.c.l.b16 %v1402
      %v2446 = vunpack.c.l.b16 %v1405
      %v2447 = vpack.c.b16 %v2416, %v2415
      %v2448 = vpack.c.b16 %v2418, %v2417
      %v2449 = vpack.c.b16 %v2420, %v2419
      %v2450 = vpack.c.b16 %v2422, %v2421
      %v2451 = vpack.c.b16 %v2424, %v2423
      %v2452 = vpack.c.b16 %v2426, %v2425
      %v2453 = vpack.c.b16 %v2428, %v2427
      %v2454 = vpack.c.b16 %v2430, %v2429
      %v2455 = vpack.c.b16 %v2432, %v2431
      %v2456 = vpack.c.b16 %v2434, %v2433
      %v2457 = vpack.c.b16 %v2436, %v2435
      %v2458 = vpack.c.b16 %v2438, %v2437
      %v2459 = vpack.c.b16 %v2440, %v2439
      %v2460 = vpack.c.b16 %v2442, %v2441
      %v2461 = vpack.c.b16 %v2444, %v2443
      %v2462 = vpack.c.b16 %v2446, %v2445
      %2463 = vrot.lane.b32.xlu0 %v2447, 20
      %v2464 = vpop.permute.xlu0 %2463
      %2465 = vrot.lane.b32.xlu0 %v2448, 20
      %v2466 = vpop.permute.xlu0 %2465
      %2467 = vrot.lane.b32.xlu0 %v2449, 20
      %v2468 = vpop.permute.xlu0 %2467
      %2469 = vrot.lane.b32.xlu0 %v2450, 20
      %v2470 = vpop.permute.xlu0 %2469
      %2471 = vrot.lane.b32.xlu0 %v2451, 20
      %v2472 = vpop.permute.xlu0 %2471
      %2473 = vrot.lane.b32.xlu0 %v2452, 20
      %v2474 = vpop.permute.xlu0 %2473
      %2475 = vrot.lane.b32.xlu0 %v2453, 20
      %v2476 = vpop.permute.xlu0 %2475
      %2477 = vrot.lane.b32.xlu0 %v2454, 20
      %v2478 = vpop.permute.xlu0 %2477
      %2479 = vrot.lane.b32.xlu0 %v2455, 20
      %v2480 = vpop.permute.xlu0 %2479
      %2481 = vrot.lane.b32.xlu0 %v2456, 20
      %v2482 = vpop.permute.xlu0 %2481
      %2483 = vrot.lane.b32.xlu0 %v2457, 20
      %v2484 = vpop.permute.xlu0 %2483
      %2485 = vrot.lane.b32.xlu0 %v2458, 20
      %v2486 = vpop.permute.xlu0 %2485
      %2487 = vrot.lane.b32.xlu0 %v2459, 20
      %v2488 = vpop.permute.xlu0 %2487
      %2489 = vrot.lane.b32.xlu0 %v2460, 20
      %v2490 = vpop.permute.xlu0 %2489
      %2491 = vrot.lane.b32.xlu0 %v2461, 20
      %v2492 = vpop.permute.xlu0 %2491
      %2493 = vrot.lane.b32.xlu0 %v2462, 20
      %v2494 = vpop.permute.xlu0 %2493
      %v2511 = vunpack.c.l.b16 %v1407
      %v2512 = vunpack.c.l.b16 %v1408
      %v2513 = vunpack.c.l.b16 %v1409
      %v2514 = vunpack.c.l.b16 %v1410
      %v2515 = vunpack.c.l.b16 %v1411
      %v2516 = vunpack.c.l.b16 %v1412
      %v2517 = vunpack.c.l.b16 %v1413
      %v2518 = vunpack.c.l.b16 %v1414
      %v2519 = vunpack.c.l.b16 %v1415
      %v2520 = vunpack.c.l.b16 %v1416
      %v2521 = vunpack.c.l.b16 %v1417
      %v2522 = vunpack.c.l.b16 %v1418
      %v2523 = vunpack.c.l.b16 %v1419
      %v2524 = vunpack.c.l.b16 %v1420
      %v2525 = vunpack.c.l.b16 %v1421
      %v2526 = vunpack.c.l.b16 %v1422
      %v2527 = vunpack.c.l.b16 %v1423
      %v2528 = vunpack.c.l.b16 %v1424
      %v2529 = vunpack.c.l.b16 %v1425
      %v2530 = vunpack.c.l.b16 %v1426
      %v2531 = vunpack.c.l.b16 %v1427
      %v2532 = vunpack.c.l.b16 %v1428
      %v2533 = vunpack.c.l.b16 %v1429
      %v2534 = vunpack.c.l.b16 %v1430
      %v2535 = vunpack.c.l.b16 %v1431
      %v2536 = vunpack.c.l.b16 %v1432
      %v2537 = vunpack.c.l.b16 %v1433
      %v2538 = vunpack.c.l.b16 %v1434
      %v2539 = vunpack.c.l.b16 %v1435
      %v2540 = vunpack.c.l.b16 %v1436
      %v2541 = vunpack.c.l.b16 %v1437
      %v2542 = vunpack.c.l.b16 %v1438
      %v2543 = vpack.c.b16 %v2512, %v2511
      %v2544 = vpack.c.b16 %v2514, %v2513
      %v2545 = vpack.c.b16 %v2516, %v2515
      %v2546 = vpack.c.b16 %v2518, %v2517
      %v2547 = vpack.c.b16 %v2520, %v2519
      %v2548 = vpack.c.b16 %v2522, %v2521
      %v2549 = vpack.c.b16 %v2524, %v2523
      %v2550 = vpack.c.b16 %v2526, %v2525
      %v2551 = vpack.c.b16 %v2528, %v2527
      %v2552 = vpack.c.b16 %v2530, %v2529
      %v2553 = vpack.c.b16 %v2532, %v2531
      %v2554 = vpack.c.b16 %v2534, %v2533
      %v2555 = vpack.c.b16 %v2536, %v2535
      %v2556 = vpack.c.b16 %v2538, %v2537
      %v2557 = vpack.c.b16 %v2540, %v2539
      %v2558 = vpack.c.b16 %v2542, %v2541
      %2559 = vrot.lane.b32.xlu0 %v2543, 24
      %v2560 = vpop.permute.xlu0 %2559
      %2561 = vrot.lane.b32.xlu0 %v2544, 24
      %v2562 = vpop.permute.xlu0 %2561
      %2563 = vrot.lane.b32.xlu0 %v2545, 24
      %v2564 = vpop.permute.xlu0 %2563
      %2565 = vrot.lane.b32.xlu0 %v2546, 24
      %v2566 = vpop.permute.xlu0 %2565
      %2567 = vrot.lane.b32.xlu0 %v2547, 24
      %v2568 = vpop.permute.xlu0 %2567
      %2569 = vrot.lane.b32.xlu0 %v2548, 24
      %v2570 = vpop.permute.xlu0 %2569
      %2571 = vrot.lane.b32.xlu0 %v2549, 24
      %v2572 = vpop.permute.xlu0 %2571
      %2573 = vrot.lane.b32.xlu0 %v2550, 24
      %v2574 = vpop.permute.xlu0 %2573
      %2575 = vrot.lane.b32.xlu0 %v2551, 24
      %v2576 = vpop.permute.xlu0 %2575
      %2577 = vrot.lane.b32.xlu0 %v2552, 24
      %v2578 = vpop.permute.xlu0 %2577
      %2579 = vrot.lane.b32.xlu0 %v2553, 24
      %v2580 = vpop.permute.xlu0 %2579
      %2581 = vrot.lane.b32.xlu0 %v2554, 24
      %v2582 = vpop.permute.xlu0 %2581
      %2583 = vrot.lane.b32.xlu0 %v2555, 24
      %v2584 = vpop.permute.xlu0 %2583
      %2585 = vrot.lane.b32.xlu0 %v2556, 24
      %v2586 = vpop.permute.xlu0 %2585
      %2587 = vrot.lane.b32.xlu0 %v2557, 24
      %v2588 = vpop.permute.xlu0 %2587
      %2589 = vrot.lane.b32.xlu0 %v2558, 24
      %v2590 = vpop.permute.xlu0 %2589
      %v2591 = vunpack.c.l.b16 %v1468
      %v2592 = vunpack.c.l.b16 %v1478
      %v2593 = vunpack.c.l.b16 %v1492
      %v2594 = vunpack.c.l.b16 %v1502
      %v2595 = vunpack.c.l.b16 %v1516
      %v2596 = vunpack.c.l.b16 %v1526
      %v2597 = vunpack.c.l.b16 %v1540
      %v2598 = vunpack.c.l.b16 %v1550
      %v2599 = vunpack.c.l.b16 %v1564
      %v2600 = vunpack.c.l.b16 %v1574
      %v2601 = vunpack.c.l.b16 %v1588
      %v2602 = vunpack.c.l.b16 %v1598
      %v2603 = vunpack.c.l.b16 %v1612
      %v2604 = vunpack.c.l.b16 %v1622
      %v2605 = vunpack.c.l.b16 %v1636
      %v2606 = vunpack.c.l.b16 %v1646
      %v2607 = vunpack.c.l.b16 %v1660
      %v2608 = vunpack.c.l.b16 %v1670
      %v2609 = vunpack.c.l.b16 %v1684
      %v2610 = vunpack.c.l.b16 %v1694
      %v2611 = vunpack.c.l.b16 %v1708
      %v2612 = vunpack.c.l.b16 %v1718
      %v2613 = vunpack.c.l.b16 %v1732
      %v2614 = vunpack.c.l.b16 %v1742
      %v2615 = vunpack.c.l.b16 %v1756
      %v2616 = vunpack.c.l.b16 %v1766
      %v2617 = vunpack.c.l.b16 %v1780
      %v2618 = vunpack.c.l.b16 %v1790
      %v2619 = vunpack.c.l.b16 %v1804
      %v2620 = vunpack.c.l.b16 %v1814
      %v2621 = vunpack.c.l.b16 %v1828
      %v2622 = vunpack.c.l.b16 %v1838
      %v2623 = vpack.c.b16 %v2592, %v2591
      %v2624 = vpack.c.b16 %v2594, %v2593
      %v2625 = vpack.c.b16 %v2596, %v2595
      %v2626 = vpack.c.b16 %v2598, %v2597
      %v2627 = vpack.c.b16 %v2600, %v2599
      %v2628 = vpack.c.b16 %v2602, %v2601
      %v2629 = vpack.c.b16 %v2604, %v2603
      %v2630 = vpack.c.b16 %v2606, %v2605
      %v2631 = vpack.c.b16 %v2608, %v2607
      %v2632 = vpack.c.b16 %v2610, %v2609
      %v2633 = vpack.c.b16 %v2612, %v2611
      %v2634 = vpack.c.b16 %v2614, %v2613
      %v2635 = vpack.c.b16 %v2616, %v2615
      %v2636 = vpack.c.b16 %v2618, %v2617
      %v2637 = vpack.c.b16 %v2620, %v2619
      %v2638 = vpack.c.b16 %v2622, %v2621
      %2639 = vrot.lane.b32.xlu0 %v2623, 28
      %v2640 = vpop.permute.xlu0 %2639
      %2641 = vrot.lane.b32.xlu0 %v2624, 28
      %v2642 = vpop.permute.xlu0 %2641
      %2643 = vrot.lane.b32.xlu0 %v2625, 28
      %v2644 = vpop.permute.xlu0 %2643
      %2645 = vrot.lane.b32.xlu0 %v2626, 28
      %v2646 = vpop.permute.xlu0 %2645
      %2647 = vrot.lane.b32.xlu0 %v2627, 28
      %v2648 = vpop.permute.xlu0 %2647
      %2649 = vrot.lane.b32.xlu0 %v2628, 28
      %v2650 = vpop.permute.xlu0 %2649
      %2651 = vrot.lane.b32.xlu0 %v2629, 28
      %v2652 = vpop.permute.xlu0 %2651
      %2653 = vrot.lane.b32.xlu0 %v2630, 28
      %v2654 = vpop.permute.xlu0 %2653
      %2655 = vrot.lane.b32.xlu0 %v2631, 28
      %v2656 = vpop.permute.xlu0 %2655
      %2657 = vrot.lane.b32.xlu0 %v2632, 28
      %v2658 = vpop.permute.xlu0 %2657
      %2659 = vrot.lane.b32.xlu0 %v2633, 28
      %v2660 = vpop.permute.xlu0 %2659
      %2661 = vrot.lane.b32.xlu0 %v2634, 28
      %v2662 = vpop.permute.xlu0 %2661
      %2663 = vrot.lane.b32.xlu0 %v2635, 28
      %v2664 = vpop.permute.xlu0 %2663
      %2665 = vrot.lane.b32.xlu0 %v2636, 28
      %v2666 = vpop.permute.xlu0 %2665
      %2667 = vrot.lane.b32.xlu0 %v2637, 28
      %v2668 = vpop.permute.xlu0 %2667
      %2669 = vrot.lane.b32.xlu0 %v2638, 28
      %v2670 = vpop.permute.xlu0 %2669
      %v2671 = vunpack.c.l.b16 %v1906
      %v2672 = vunpack.c.l.b16 %v1909
      %v2673 = vunpack.c.l.b16 %v1913
      %v2674 = vunpack.c.l.b16 %v1916
      %v2675 = vunpack.c.l.b16 %v1920
      %v2676 = vunpack.c.l.b16 %v1923
      %v2677 = vunpack.c.l.b16 %v1927
      %v2678 = vunpack.c.l.b16 %v1930
      %v2679 = vunpack.c.l.b16 %v1934
      %v2680 = vunpack.c.l.b16 %v1937
      %v2681 = vunpack.c.l.b16 %v1941
      %v2682 = vunpack.c.l.b16 %v1944
      %v2683 = vunpack.c.l.b16 %v1948
      %v2684 = vunpack.c.l.b16 %v1951
      %v2685 = vunpack.c.l.b16 %v1955
      %v2686 = vunpack.c.l.b16 %v1958
      %v2687 = vunpack.c.l.b16 %v1962
      %v2688 = vunpack.c.l.b16 %v1965
      %v2689 = vunpack.c.l.b16 %v1969
      %v2690 = vunpack.c.l.b16 %v1972
      %v2691 = vunpack.c.l.b16 %v1976
      %v2692 = vunpack.c.l.b16 %v1979
      %v2693 = vunpack.c.l.b16 %v1983
      %v2694 = vunpack.c.l.b16 %v1986
      %v2695 = vunpack.c.l.b16 %v1990
      %v2696 = vunpack.c.l.b16 %v1993
      %v2697 = vunpack.c.l.b16 %v1997
      %v2698 = vunpack.c.l.b16 %v2000
      %v2699 = vunpack.c.l.b16 %v2004
      %v2700 = vunpack.c.l.b16 %v2007
      %v2701 = vunpack.c.l.b16 %v2011
      %v2702 = vunpack.c.l.b16 %v2014
      %v2703 = vpack.c.b16 %v2672, %v2671
      %v2704 = vpack.c.b16 %v2674, %v2673
      %v2705 = vpack.c.b16 %v2676, %v2675
      %v2706 = vpack.c.b16 %v2678, %v2677
      %v2707 = vpack.c.b16 %v2680, %v2679
      %v2708 = vpack.c.b16 %v2682, %v2681
      %v2709 = vpack.c.b16 %v2684, %v2683
      %v2710 = vpack.c.b16 %v2686, %v2685
      %v2711 = vpack.c.b16 %v2688, %v2687
      %v2712 = vpack.c.b16 %v2690, %v2689
      %v2713 = vpack.c.b16 %v2692, %v2691
      %v2714 = vpack.c.b16 %v2694, %v2693
      %v2715 = vpack.c.b16 %v2696, %v2695
      %v2716 = vpack.c.b16 %v2698, %v2697
      %v2717 = vpack.c.b16 %v2700, %v2699
      %v2718 = vpack.c.b16 %v2702, %v2701
      %2719 = vrot.lane.b32.xlu0 %v2703, 32
      %v2720 = vpop.permute.xlu0 %2719
      %2721 = vrot.lane.b32.xlu0 %v2704, 32
      %v2722 = vpop.permute.xlu0 %2721
      %2723 = vrot.lane.b32.xlu0 %v2705, 32
      %v2724 = vpop.permute.xlu0 %2723
      %2725 = vrot.lane.b32.xlu0 %v2706, 32
      %v2726 = vpop.permute.xlu0 %2725
      %2727 = vrot.lane.b32.xlu0 %v2707, 32
      %v2728 = vpop.permute.xlu0 %2727
      %2729 = vrot.lane.b32.xlu0 %v2708, 32
      %v2730 = vpop.permute.xlu0 %2729
      %2731 = vrot.lane.b32.xlu0 %v2709, 32
      %v2732 = vpop.permute.xlu0 %2731
      %2733 = vrot.lane.b32.xlu0 %v2710, 32
      %v2734 = vpop.permute.xlu0 %2733
      %2735 = vrot.lane.b32.xlu0 %v2711, 32
      %v2736 = vpop.permute.xlu0 %2735
      %2737 = vrot.lane.b32.xlu0 %v2712, 32
      %v2738 = vpop.permute.xlu0 %2737
      %2739 = vrot.lane.b32.xlu0 %v2713, 32
      %v2740 = vpop.permute.xlu0 %2739
      %2741 = vrot.lane.b32.xlu0 %v2714, 32
      %v2742 = vpop.permute.xlu0 %2741
      %2743 = vrot.lane.b32.xlu0 %v2715, 32
      %v2744 = vpop.permute.xlu0 %2743
      %2745 = vrot.lane.b32.xlu0 %v2716, 32
      %v2746 = vpop.permute.xlu0 %2745
      %2747 = vrot.lane.b32.xlu0 %v2717, 32
      %v2748 = vpop.permute.xlu0 %2747
      %2749 = vrot.lane.b32.xlu0 %v2718, 32
      %v2750 = vpop.permute.xlu0 %2749
      %vm2751 = vcmask 31744
      %v2754 = vsel %vm2751, %v2063, %v2128
      %v2757 = vsel %vm2751, %v2064, %v2130
      %v2760 = vsel %vm2751, %v2065, %v2132
      %v2763 = vsel %vm2751, %v2066, %v2134
      %v2766 = vsel %vm2751, %v2067, %v2136
      %v2769 = vsel %vm2751, %v2068, %v2138
      %v2772 = vsel %vm2751, %v2069, %v2140
      %v2775 = vsel %vm2751, %v2070, %v2142
      %v2778 = vsel %vm2751, %v2071, %v2144
      %v2781 = vsel %vm2751, %v2072, %v2146
      %v2784 = vsel %vm2751, %v2073, %v2148
      %v2787 = vsel %vm2751, %v2074, %v2150
      %v2790 = vsel %vm2751, %v2075, %v2152
      %v2793 = vsel %vm2751, %v2076, %v2154
      %v2796 = vsel %vm2751, %v2077, %v2156
      %v2799 = vsel %vm2751, %v2078, %v2158
      %vm2800 = vcmask 64512
      %v2802 = vsel %vm2800, %v2754, %v2208
      %v2804 = vsel %vm2800, %v2757, %v2210
      %v2806 = vsel %vm2800, %v2760, %v2212
      %v2808 = vsel %vm2800, %v2763, %v2214
      %v2810 = vsel %vm2800, %v2766, %v2216
      %v2812 = vsel %vm2800, %v2769, %v2218
      %v2814 = vsel %vm2800, %v2772, %v2220
      %v2816 = vsel %vm2800, %v2775, %v2222
      %v2818 = vsel %vm2800, %v2778, %v2224
      %v2820 = vsel %vm2800, %v2781, %v2226
      %v2822 = vsel %vm2800, %v2784, %v2228
      %v2824 = vsel %vm2800, %v2787, %v2230
      %v2826 = vsel %vm2800, %v2790, %v2232
      %v2828 = vsel %vm2800, %v2793, %v2234
      %v2830 = vsel %vm2800, %v2796, %v2236
      %v2832 = vsel %vm2800, %v2799, %v2238
      %vm2833 = vcmask 97280
      %v2835 = vsel %vm2833, %v2802, %v2304
      %v2837 = vsel %vm2833, %v2804, %v2306
      %v2839 = vsel %vm2833, %v2806, %v2308
      %v2841 = vsel %vm2833, %v2808, %v2310
      %v2843 = vsel %vm2833, %v2810, %v2312
      %v2845 = vsel %vm2833, %v2812, %v2314
      %v2847 = vsel %vm2833, %v2814, %v2316
      %v2849 = vsel %vm2833, %v2816, %v2318
      %v2851 = vsel %vm2833, %v2818, %v2320
      %v2853 = vsel %vm2833, %v2820, %v2322
      %v2855 = vsel %vm2833, %v2822, %v2324
      %v2857 = vsel %vm2833, %v2824, %v2326
      %v2859 = vsel %vm2833, %v2826, %v2328
      %v2861 = vsel %vm2833, %v2828, %v2330
      %v2863 = vsel %vm2833, %v2830, %v2332
      %v2865 = vsel %vm2833, %v2832, %v2334
      %vm2866 = vcmask 130048
      %v2868 = vsel %vm2866, %v2835, %v2384
      %v2870 = vsel %vm2866, %v2837, %v2386
      %v2872 = vsel %vm2866, %v2839, %v2388
      %v2874 = vsel %vm2866, %v2841, %v2390
      %v2876 = vsel %vm2866, %v2843, %v2392
      %v2878 = vsel %vm2866, %v2845, %v2394
      %v2880 = vsel %vm2866, %v2847, %v2396
      %v2882 = vsel %vm2866, %v2849, %v2398
      %v2884 = vsel %vm2866, %v2851, %v2400
      %v2886 = vsel %vm2866, %v2853, %v2402
      %v2888 = vsel %vm2866, %v2855, %v2404
      %v2890 = vsel %vm2866, %v2857, %v2406
      %v2892 = vsel %vm2866, %v2859, %v2408
      %v2894 = vsel %vm2866, %v2861, %v2410
      %v2896 = vsel %vm2866, %v2863, %v2412
      %v2898 = vsel %vm2866, %v2865, %v2414
      %vm2899 = vcmask 162816
      %v2901 = vsel %vm2899, %v2868, %v2464
      %v2903 = vsel %vm2899, %v2870, %v2466
      %v2905 = vsel %vm2899, %v2872, %v2468
      %v2907 = vsel %vm2899, %v2874, %v2470
      %v2909 = vsel %vm2899, %v2876, %v2472
      %v2911 = vsel %vm2899, %v2878, %v2474
      %v2913 = vsel %vm2899, %v2880, %v2476
      %v2915 = vsel %vm2899, %v2882, %v2478
      %v2917 = vsel %vm2899, %v2884, %v2480
      %v2919 = vsel %vm2899, %v2886, %v2482
      %v2921 = vsel %vm2899, %v2888, %v2484
      %v2923 = vsel %vm2899, %v2890, %v2486
      %v2925 = vsel %vm2899, %v2892, %v2488
      %v2927 = vsel %vm2899, %v2894, %v2490
      %v2929 = vsel %vm2899, %v2896, %v2492
      %v2931 = vsel %vm2899, %v2898, %v2494
      %vm2932 = vcmask 195584
      %v2934 = vsel %vm2932, %v2901, %v2560
      %v2936 = vsel %vm2932, %v2903, %v2562
      %v2938 = vsel %vm2932, %v2905, %v2564
      %v2940 = vsel %vm2932, %v2907, %v2566
      %v2942 = vsel %vm2932, %v2909, %v2568
      %v2944 = vsel %vm2932, %v2911, %v2570
      %v2946 = vsel %vm2932, %v2913, %v2572
      %v2948 = vsel %vm2932, %v2915, %v2574
      %v2950 = vsel %vm2932, %v2917, %v2576
      %v2952 = vsel %vm2932, %v2919, %v2578
      %v2954 = vsel %vm2932, %v2921, %v2580
      %v2956 = vsel %vm2932, %v2923, %v2582
      %v2958 = vsel %vm2932, %v2925, %v2584
      %v2960 = vsel %vm2932, %v2927, %v2586
      %v2962 = vsel %vm2932, %v2929, %v2588
      %v2964 = vsel %vm2932, %v2931, %v2590
      %vm2965 = vcmask 228352
      %v2967 = vsel %vm2965, %v2934, %v2640
      %v2969 = vsel %vm2965, %v2936, %v2642
      %v2971 = vsel %vm2965, %v2938, %v2644
      %v2973 = vsel %vm2965, %v2940, %v2646
      %v2975 = vsel %vm2965, %v2942, %v2648
      %v2977 = vsel %vm2965, %v2944, %v2650
      %v2979 = vsel %vm2965, %v2946, %v2652
      %v2981 = vsel %vm2965, %v2948, %v2654
      %v2983 = vsel %vm2965, %v2950, %v2656
      %v2985 = vsel %vm2965, %v2952, %v2658
      %v2987 = vsel %vm2965, %v2954, %v2660
      %v2989 = vsel %vm2965, %v2956, %v2662
      %v2991 = vsel %vm2965, %v2958, %v2664
      %v2993 = vsel %vm2965, %v2960, %v2666
      %v2995 = vsel %vm2965, %v2962, %v2668
      %v2997 = vsel %vm2965, %v2964, %v2670
      %vm2998 = vcmask 261120
      %v3000 = vsel %vm2998, %v2967, %v2720
      %v3002 = vsel %vm2998, %v2969, %v2722
      %v3004 = vsel %vm2998, %v2971, %v2724
      %v3006 = vsel %vm2998, %v2973, %v2726
      %v3008 = vsel %vm2998, %v2975, %v2728
      %v3010 = vsel %vm2998, %v2977, %v2730
      %v3012 = vsel %vm2998, %v2979, %v2732
      %v3014 = vsel %vm2998, %v2981, %v2734
      %v3016 = vsel %vm2998, %v2983, %v2736
      %v3018 = vsel %vm2998, %v2985, %v2738
      %v3020 = vsel %vm2998, %v2987, %v2740
      %v3022 = vsel %vm2998, %v2989, %v2742
      %v3024 = vsel %vm2998, %v2991, %v2744
      %v3026 = vsel %vm2998, %v2993, %v2746
      %v3028 = vsel %vm2998, %v2995, %v2748
      %v3030 = vsel %vm2998, %v2997, %v2750
      %v3031 = vld [vmem:[%s1] sm:$0xf]
      %v3032 = vld [vmem:[%s1 + $0x4] sm:$0xf]
      %v3033 = vld [vmem:[%s1 + $0x8] sm:$0xf]
      %v3034 = vld [vmem:[%s1 + $0xc] sm:$0xf]
      %v3035 = vld [vmem:[%s1 + $0x10] sm:$0x3]
      %v3041 = vunpack.c.l.b16 %v3031
      %v3042 = vunpack.c.l.b16 %v3032
      %v3043 = vunpack.c.l.b16 %v3033
      %v3044 = vunpack.c.l.b16 %v3034
      %v3045 = vunpack.c.l.b16 %v3035
      %v3046 = vpack.c.b16 %v3042, %v3041
      %v3047 = vpack.c.b16 %v3044, %v3043
      %v3048 = vpack.c.b16 %v3045, %v3045
      %vm3051 = vcmask 293888
      %v3052 = vsel %vm3051, %v3000, 0
      %v3054 = vsel %vm3051, %v3002, 0
      %v3056 = vsel %vm3051, %v3004, 0
      %v3058 = vsel %vm3051, %v3006, 0
      %v3060 = vsel %vm3051, %v3008, 0
      %v3062 = vsel %vm3051, %v3010, 0
      %v3064 = vsel %vm3051, %v3012, 0
      %v3066 = vsel %vm3051, %v3014, 0
      %v3068 = vsel %vm3051, %v3016, 0
      %v3070 = vsel %vm3051, %v3018, 0
      %v3072 = vsel %vm3051, %v3020, 0
      %v3074 = vsel %vm3051, %v3022, 0
      %v3076 = vsel %vm3051, %v3024, 0
      %v3078 = vsel %vm3051, %v3026, 0
      %v3080 = vsel %vm3051, %v3028, 0
      %v3082 = vsel %vm3051, %v3030, 0
      %vm3084 = vcmask 1041408
      %v3086 = vsel %vm3084, %v3048, 0
      %3088 = vmatpush.bf16.msra.mxu0 0
      %3089 = vmatpush.bf16.msra.mxu0 0
      %3090 = vmatpush.bf16.msra.mxu0 0
      %3091 = vmatpush.bf16.msra.mxu0 0
      %3092 = vmatpush.bf16.msra.mxu0 0
      %3093 = vmatpush.bf16.msra.mxu0 %v3086
      %3094 = vmatpush.bf16.msra.mxu0 %v3047
      %3095 = vmatpush.bf16.msra.mxu0 %v3046
      %3096 = vmatmul.bf16.gmra.mxu0 %v3052
      %v3097 = vpop.f32.mrf.mxu0
      %v3098 = vadd.f32 0.0, %v3097
      %v3099 = vpop.f32.mrf.mxu0
      %v3100 = vadd.f32 0.0, %v3099
      %3101 = vmatmul.bf16.gmra.mxu0 %v3054
      %v3102 = vpop.f32.mrf.mxu0
      %v3103 = vadd.f32 0.0, %v3102
      %v3104 = vpop.f32.mrf.mxu0
      %v3105 = vadd.f32 0.0, %v3104
      %3106 = vmatmul.bf16.gmra.mxu0 %v3056
      %v3107 = vpop.f32.mrf.mxu0
      %v3108 = vadd.f32 0.0, %v3107
      %v3109 = vpop.f32.mrf.mxu0
      %v3110 = vadd.f32 0.0, %v3109
      %3111 = vmatmul.bf16.gmra.mxu0 %v3058
      %v3112 = vpop.f32.mrf.mxu0
      %v3113 = vadd.f32 0.0, %v3112
      %v3114 = vpop.f32.mrf.mxu0
      %v3115 = vadd.f32 0.0, %v3114
      %3116 = vmatmul.bf16.gmra.mxu0 %v3060
      %v3117 = vpop.f32.mrf.mxu0
      %v3118 = vadd.f32 0.0, %v3117
      %v3119 = vpop.f32.mrf.mxu0
      %v3120 = vadd.f32 0.0, %v3119
      %3121 = vmatmul.bf16.gmra.mxu0 %v3062
      %v3122 = vpop.f32.mrf.mxu0
      %v3123 = vadd.f32 0.0, %v3122
      %v3124 = vpop.f32.mrf.mxu0
      %v3125 = vadd.f32 0.0, %v3124
      %3126 = vmatmul.bf16.gmra.mxu0 %v3064
      %v3127 = vpop.f32.mrf.mxu0
      %v3128 = vadd.f32 0.0, %v3127
      %v3129 = vpop.f32.mrf.mxu0
      %v3130 = vadd.f32 0.0, %v3129
      %3131 = vmatmul.bf16.gmra.mxu0 %v3066
      %v3132 = vpop.f32.mrf.mxu0
      %v3133 = vadd.f32 0.0, %v3132
      %v3134 = vpop.f32.mrf.mxu0
      %v3135 = vadd.f32 0.0, %v3134
      %3136 = vmatmul.bf16.gmra.mxu0 %v3068
      %v3137 = vpop.f32.mrf.mxu0
      %v3138 = vadd.f32 0.0, %v3137
      %v3139 = vpop.f32.mrf.mxu0
      %v3140 = vadd.f32 0.0, %v3139
      %3141 = vmatmul.bf16.gmra.mxu0 %v3070
      %v3142 = vpop.f32.mrf.mxu0
      %v3143 = vadd.f32 0.0, %v3142
      %v3144 = vpop.f32.mrf.mxu0
      %v3145 = vadd.f32 0.0, %v3144
      %3146 = vmatmul.bf16.gmra.mxu0 %v3072
      %v3147 = vpop.f32.mrf.mxu0
      %v3148 = vadd.f32 0.0, %v3147
      %v3149 = vpop.f32.mrf.mxu0
      %v3150 = vadd.f32 0.0, %v3149
      %3151 = vmatmul.bf16.gmra.mxu0 %v3074
      %v3152 = vpop.f32.mrf.mxu0
      %v3153 = vadd.f32 0.0, %v3152
      %v3154 = vpop.f32.mrf.mxu0
      %v3155 = vadd.f32 0.0, %v3154
      %3156 = vmatmul.bf16.gmra.mxu0 %v3076
      %v3157 = vpop.f32.mrf.mxu0
      %v3158 = vadd.f32 0.0, %v3157
      %v3159 = vpop.f32.mrf.mxu0
      %v3160 = vadd.f32 0.0, %v3159
      %3161 = vmatmul.bf16.gmra.mxu0 %v3078
      %v3162 = vpop.f32.mrf.mxu0
      %v3163 = vadd.f32 0.0, %v3162
      %v3164 = vpop.f32.mrf.mxu0
      %v3165 = vadd.f32 0.0, %v3164
      %3166 = vmatmul.bf16.gmra.mxu0 %v3080
      %v3167 = vpop.f32.mrf.mxu0
      %v3168 = vadd.f32 0.0, %v3167
      %v3169 = vpop.f32.mrf.mxu0
      %v3170 = vadd.f32 0.0, %v3169
      %3171 = vmatmul.bf16.gmra.mxu0 %v3082
      %v3172 = vpop.f32.mrf.mxu0
      %v3173 = vadd.f32 0.0, %v3172
      %v3174 = vpop.f32.mrf.mxu0
      %v3175 = vadd.f32 0.0, %v3174
      %3176 = vdwg.mxu0
      %v3177 = vpack.c.bf16 %v3098, %v3098
      %v3178 = vpack.c.bf16 %v3100, %v3100
      %v3179 = vpack.c.bf16 %v3103, %v3103
      %v3180 = vpack.c.bf16 %v3105, %v3105
      %v3181 = vpack.c.bf16 %v3108, %v3108
      %v3182 = vpack.c.bf16 %v3110, %v3110
      %v3183 = vpack.c.bf16 %v3113, %v3113
      %v3184 = vpack.c.bf16 %v3115, %v3115
      %v3185 = vpack.c.bf16 %v3118, %v3118
      %v3186 = vpack.c.bf16 %v3120, %v3120
      %v3187 = vpack.c.bf16 %v3123, %v3123
      %v3188 = vpack.c.bf16 %v3125, %v3125
      %v3189 = vpack.c.bf16 %v3128, %v3128
      %v3190 = vpack.c.bf16 %v3130, %v3130
      %v3191 = vpack.c.bf16 %v3133, %v3133
      %v3192 = vpack.c.bf16 %v3135, %v3135
      %v3193 = vpack.c.bf16 %v3138, %v3138
      %v3194 = vpack.c.bf16 %v3140, %v3140
      %v3195 = vpack.c.bf16 %v3143, %v3143
      %v3196 = vpack.c.bf16 %v3145, %v3145
      %v3197 = vpack.c.bf16 %v3148, %v3148
      %v3198 = vpack.c.bf16 %v3150, %v3150
      %v3199 = vpack.c.bf16 %v3153, %v3153
      %v3200 = vpack.c.bf16 %v3155, %v3155
      %v3201 = vpack.c.bf16 %v3158, %v3158
      %v3202 = vpack.c.bf16 %v3160, %v3160
      %v3203 = vpack.c.bf16 %v3163, %v3163
      %v3204 = vpack.c.bf16 %v3165, %v3165
      %v3205 = vpack.c.bf16 %v3168, %v3168
      %v3206 = vpack.c.bf16 %v3170, %v3170
      %v3207 = vpack.c.bf16 %v3173, %v3173
      %v3208 = vpack.c.bf16 %v3175, %v3175
      %3209 = vst [vmem:[%s177] sm:$0xf] %v3177
      %3210 = vst [vmem:[%s177 + $0x4] sm:$0xf] %v3178
      %3211 = vst [vmem:[%s177 + $0x8] sm:$0xf] %v3179
      %3212 = vst [vmem:[%s177 + $0xc] sm:$0xf] %v3180
      %3213 = vst [vmem:[%s177 + $0x10] sm:$0xf] %v3181
      %3214 = vst [vmem:[%s177 + $0x14] sm:$0xf] %v3182
      %3215 = vst [vmem:[%s177 + $0x18] sm:$0xf] %v3183
      %3216 = vst [vmem:[%s177 + $0x1c] sm:$0xf] %v3184
      %3217 = vst [vmem:[%s177 + $0x20] sm:$0xf] %v3185
      %3218 = vst [vmem:[%s177 + $0x24] sm:$0xf] %v3186
      %3219 = vst [vmem:[%s177 + $0x28] sm:$0xf] %v3187
      %3220 = vst [vmem:[%s177 + $0x2c] sm:$0xf] %v3188
      %3221 = vst [vmem:[%s177 + $0x30] sm:$0xf] %v3189
      %3222 = vst [vmem:[%s177 + $0x34] sm:$0xf] %v3190
      %3223 = vst [vmem:[%s177 + $0x38] sm:$0xf] %v3191
      %3224 = vst [vmem:[%s177 + $0x3c] sm:$0xf] %v3192
      %3225 = vst [vmem:[%s177 + $0x40] sm:$0xf] %v3193
      %3226 = vst [vmem:[%s177 + $0x44] sm:$0xf] %v3194
      %3227 = vst [vmem:[%s177 + $0x48] sm:$0xf] %v3195
      %3228 = vst [vmem:[%s177 + $0x4c] sm:$0xf] %v3196
      %3229 = vst [vmem:[%s177 + $0x50] sm:$0xf] %v3197
      %3230 = vst [vmem:[%s177 + $0x54] sm:$0xf] %v3198
      %3231 = vst [vmem:[%s177 + $0x58] sm:$0xf] %v3199
      %3232 = vst [vmem:[%s177 + $0x5c] sm:$0xf] %v3200
      %3233 = vst [vmem:[%s177 + $0x60] sm:$0xf] %v3201
      %3234 = vst [vmem:[%s177 + $0x64] sm:$0xf] %v3202
      %3235 = vst [vmem:[%s177 + $0x68] sm:$0xf] %v3203
      %3236 = vst [vmem:[%s177 + $0x6c] sm:$0xf] %v3204
      %3237 = vst [vmem:[%s177 + $0x70] sm:$0xf] %v3205
      %3238 = vst [vmem:[%s177 + $0x74] sm:$0xf] %v3206
      %3239 = vst [vmem:[%s177 + $0x78] sm:$0xf] %v3207
      %3240 = vst [vmem:[%s177 + $0x7c] sm:$0xf] %v3208
      %v3241 = vadd.f32 %v3098, %v3100
      %v3242 = vadd.f32 %v3241, %v3103
      %v3243 = vadd.f32 %v3242, %v3105
      %v3244 = vadd.f32 %v3243, %v3108
      %v3245 = vadd.f32 %v3244, %v3110
      %v3246 = vadd.f32 %v3245, %v3113
      %v3247 = vadd.f32 %v3246, %v3115
      %v3248 = vadd.f32 %v3247, %v3118
      %v3249 = vadd.f32 %v3248, %v3120
      %v3250 = vadd.f32 %v3249, %v3123
      %v3251 = vadd.f32 %v3250, %v3125
      %v3252 = vadd.f32 %v3251, %v3128
      %v3253 = vadd.f32 %v3252, %v3130
      %v3254 = vadd.f32 %v3253, %v3133
      %v3255 = vadd.f32 %v3254, %v3135
      %v3256 = vadd.f32 %v3255, %v3138
      %v3257 = vadd.f32 %v3256, %v3140
      %v3258 = vadd.f32 %v3257, %v3143
      %v3259 = vadd.f32 %v3258, %v3145
      %v3260 = vadd.f32 %v3259, %v3148
      %v3261 = vadd.f32 %v3260, %v3150
      %v3262 = vadd.f32 %v3261, %v3153
      %v3263 = vadd.f32 %v3262, %v3155
      %v3264 = vadd.f32 %v3263, %v3158
      %v3265 = vadd.f32 %v3264, %v3160
      %v3266 = vadd.f32 %v3265, %v3163
      %v3267 = vadd.f32 %v3266, %v3165
      %v3268 = vadd.f32 %v3267, %v3168
      %v3269 = vadd.f32 %v3268, %v3170
      %v3270 = vadd.f32 %v3269, %v3173
      %v3271 = vadd.f32 %v3270, %v3175
      %v3272 = vrot.slane %v3271, 4
      %v3273 = vadd.f32 %v3271, %v3272
      %v3274 = vrot.slane %v3273, 2
      %v3275 = vadd.f32 %v3273, %v3274
      %v3276 = vrot.slane %v3275, 1
      %v3277 = vadd.f32 %v3275, %v3276
      %v3278 = vmul.f32 %v3098, %v3098
      %v3279 = vmul.f32 %v3100, %v3100
      %v3280 = vmul.f32 %v3103, %v3103
      %v3281 = vmul.f32 %v3105, %v3105
      %v3282 = vmul.f32 %v3108, %v3108
      %v3283 = vmul.f32 %v3110, %v3110
      %v3284 = vmul.f32 %v3113, %v3113
      %v3285 = vmul.f32 %v3115, %v3115
      %v3286 = vmul.f32 %v3118, %v3118
      %v3287 = vmul.f32 %v3120, %v3120
      %v3288 = vmul.f32 %v3123, %v3123
      %v3289 = vmul.f32 %v3125, %v3125
      %v3290 = vmul.f32 %v3128, %v3128
      %v3291 = vmul.f32 %v3130, %v3130
      %v3292 = vmul.f32 %v3133, %v3133
      %v3293 = vmul.f32 %v3135, %v3135
      %v3294 = vmul.f32 %v3138, %v3138
      %v3295 = vmul.f32 %v3140, %v3140
      %v3296 = vmul.f32 %v3143, %v3143
      %v3297 = vmul.f32 %v3145, %v3145
      %v3298 = vmul.f32 %v3148, %v3148
      %v3299 = vmul.f32 %v3150, %v3150
      %v3300 = vmul.f32 %v3153, %v3153
      %v3301 = vmul.f32 %v3155, %v3155
      %v3302 = vmul.f32 %v3158, %v3158
      %v3303 = vmul.f32 %v3160, %v3160
      %v3304 = vmul.f32 %v3163, %v3163
      %v3305 = vmul.f32 %v3165, %v3165
      %v3306 = vmul.f32 %v3168, %v3168
      %v3307 = vmul.f32 %v3170, %v3170
      %v3308 = vmul.f32 %v3173, %v3173
      %v3309 = vmul.f32 %v3175, %v3175
      %v3310 = vadd.f32 %v3278, %v3279
      %v3311 = vadd.f32 %v3310, %v3280
      %v3312 = vadd.f32 %v3311, %v3281
      %v3313 = vadd.f32 %v3312, %v3282
      %v3314 = vadd.f32 %v3313, %v3283
      %v3315 = vadd.f32 %v3314, %v3284
      %v3316 = vadd.f32 %v3315, %v3285
      %v3317 = vadd.f32 %v3316, %v3286
      %v3318 = vadd.f32 %v3317, %v3287
      %v3319 = vadd.f32 %v3318, %v3288
      %v3320 = vadd.f32 %v3319, %v3289
      %v3321 = vadd.f32 %v3320, %v3290
      %v3322 = vadd.f32 %v3321, %v3291
      %v3323 = vadd.f32 %v3322, %v3292
      %v3324 = vadd.f32 %v3323, %v3293
      %v3325 = vadd.f32 %v3324, %v3294
      %v3326 = vadd.f32 %v3325, %v3295
      %v3327 = vadd.f32 %v3326, %v3296
      %v3328 = vadd.f32 %v3327, %v3297
      %v3329 = vadd.f32 %v3328, %v3298
      %v3330 = vadd.f32 %v3329, %v3299
      %v3331 = vadd.f32 %v3330, %v3300
      %v3332 = vadd.f32 %v3331, %v3301
      %v3333 = vadd.f32 %v3332, %v3302
      %v3334 = vadd.f32 %v3333, %v3303
      %v3335 = vadd.f32 %v3334, %v3304
      %v3336 = vadd.f32 %v3335, %v3305
      %v3337 = vadd.f32 %v3336, %v3306
      %v3338 = vadd.f32 %v3337, %v3307
      %v3339 = vadd.f32 %v3338, %v3308
      %v3340 = vadd.f32 %v3339, %v3309
      %v3341 = vrot.slane %v3340, 4
      %v3342 = vadd.f32 %v3340, %v3341
      %v3343 = vrot.slane %v3342, 2
      %v3344 = vadd.f32 %v3342, %v3343
      %v3345 = vrot.slane %v3344, 1
      %v3346 = vadd.f32 %v3344, %v3345
      %vm3347 = vcmask 1040384
      %v3348 = vsel %vm3347, %v3277, %v3346
      %3349 = vst [vmem:[%s181] sm:$0x3] %v3348
      %p3350 = scmp.lt.s32.totalorder %s15, 1
      %s3351 = scalar_select %p3350, %s15, 1
      %s3352 = smul.addr %s3351, 32
      %s3353 = smul.addr %s3352, 4
      %s3354 = scalar_lea.vmem %s2, %s3353
      %p3355 = scmp.lt.s32.totalorder %s15, 1
      %s3356 = scalar_select %p3355, %s15, 1
      %s3357 = smul.addr %s3356, 2
      %s3358 = scalar_lea.vmem %s3, %s3357
      // Predicated region
      $region29: #{da_module_forward.3} parent=27 // pred_check
        %p3359 = pneg %p80
      $region30: #{da_module_forward.3} parent=27 // pred_check_branch
        %3361 = sbr.rel (%p3359) target = $region32
      $region31: #{da_module_forward.3} parent=27 // pred_region
        _
      $region32: #{da_module_forward.3} parent=27 // pred_fallthru
        _
      // Predicated region
      $region33: #{da_module_forward.3} parent=27 // pred_check
        %p3362 = pneg %p106
      $region34: #{da_module_forward.3} parent=27 // pred_check_branch
        %3364 = sbr.rel (%p3362) target = $region36
      $region35: #{da_module_forward.3} parent=27 // pred_region
        _
      $region36: #{da_module_forward.3} parent=27 // pred_fallthru
        _
    $region28: #{da_module_forward.3} parent=5 // pred_fallthru
      _
    %p3365 = scmp.le.s32.totalorder 2, %s10
    // Predicated region
    $region37: #{da_module_forward.3} parent=5 // pred_check
      %p3366 = pneg %p3365
    $region38: #{da_module_forward.3} parent=5 // pred_check_branch
      %3368 = sbr.rel (%p3366) target = $region40
    $region39: #{da_module_forward.3} parent=5 // pred_region
      %s3369 = ssub.s32 %s10, 2
      // Predicated region
      $region41: #{da_module_forward.3} parent=39 // pred_check
        %p3370 = pneg %p86
      $region42: #{da_module_forward.3} parent=39 // pred_check_branch
        %3372 = sbr.rel (%p3370) target = $region44
      $region43: #{da_module_forward.3} parent=39 // pred_region
        %p3373 = scmp.lt.s32.totalorder %s16, 1
        %s3374 = scalar_select %p3373, %s16, 1
        %s3375 = smul.addr %s3374, 32
        %s3376 = smul.addr %s3375, 4
        %s3377 = scalar_lea.vmem %s2, %s3376
      $region44: #{da_module_forward.3} parent=39 // pred_fallthru
        _
      // Predicated region
      $region45: #{da_module_forward.3} parent=39 // pred_check
        %p3378 = pneg %p112
      $region46: #{da_module_forward.3} parent=39 // pred_check_branch
        %3380 = sbr.rel (%p3378) target = $region48
      $region47: #{da_module_forward.3} parent=39 // pred_region
        %p3381 = scmp.lt.s32.totalorder %s16, 1
        %s3382 = scalar_select %p3381, %s16, 1
        %s3383 = smul.addr %s3382, 2
        %s3384 = scalar_lea.vmem %s3, %s3383
      $region48: #{da_module_forward.3} parent=39 // pred_fallthru
        _
    $region40: #{da_module_forward.3} parent=5 // pred_fallthru
      _
  $region6: #{da_module_forward.3} parent=0 // loop_footer
    %s14 = sadd.s32 1, %s10
  $region7: #{da_module_forward.3} parent=0 // loop_footer_branch
    %9 = sbr.rel target = $region3
  $region8: #{da_module_forward.3} parent=0 // loop_exit
    _

// kernel: da_module_forward.5
$region0: #{da_module_forward.5}
  #allocation0 [shape = 'u32[]', space=smem, size = 0x4, offset = 0x4, fixed_abs, tag = 'smem constant byte address 0x4 - core index']
  #allocation1 [shape = 'u32[72,128]{1,0:T(1,128)}', space=vmem, size = 0x9000, scoped, tag = 'internal scratch']
  %s0 = inlined_call_operand.vmem [shape: bf16[2,18,18,128], index: 0, kind: input, shape index: {}]
  %s1 = inlined_call_operand.vmem [shape: bf16[1152,128], index: 1, kind: input, shape index: {}]
  %s2 = inlined_call_operand.vmem [shape: bf16[2,256,128], index: 2, kind: output, shape index: {0}]
  %s3 = inlined_call_operand.vmem [shape: f32[2,2,128], index: 3, kind: output, shape index: {1}]
  %4 = xla_tuple %s2, %s3
  %s5 = sld [smem:[#allocation0]]
  $region49: #{da_module_forward.5} parent=0
    _
  %s7 = ssub.s32 1, %s5
  %s8 = scalar_select 0, %s7, %s5
  loop: start=0, step=1, limit=4
  $region2: #{da_module_forward.5} parent=0 // loop_pre_header
    _
  $region3: #{da_module_forward.5} parent=0 // loop_header
    %s10 = sphi 0, %s14
    %p11 = scmp.ge.s32.totalorder %s10, 4
    %s20 = sphi 0, %s22
    %s23 = sphi 0, %s20
    %s24 = sphi 0, %s23
    %s40 = sphi 0, %s24
    %s44 = sphi 0, %s44
    %s46 = sphi 0, %s44
    %s47 = sphi 0, %s46
    %s61 = sphi 0, %s47
    %s67 = sphi 0, %s69
    %s70 = sphi 0, %s67
    %s71 = sphi 0, %s70
    %s87 = sphi 0, %s71
    %s93 = sphi 0, %s95
    %s96 = sphi 0, %s93
    %s97 = sphi 0, %s96
    %s113 = sphi 0, %s97
  $region4: #{da_module_forward.5} parent=0 // loop_header_branch
    %13 = sbr.rel (%p11) target = $region8
  $region5: #{da_module_forward.5} parent=0 // loop_body
    %s15 = ssub.s32 %s10, 1
    %s16 = ssub.s32 %s10, 2
    %s17 = sadd.s32 %s10, 1
    %s18 = ssub.s32 %s10, %s17
    %p19 = scmp.eq.s32.totalorder %s18, 0
    %s21 = sadd.s32 %s20, 1
    %s22 = scalar_select %p19, %s20, %s21
    %p25 = pneg %p19
    %p26 = scmp.eq.s32.totalorder %s10, 1
    %p27 = por %p25, %p26
    %p28 = scmp.ne.s32.totalorder %s20, %s23
    %p29 = scmp.eq.s32.totalorder %s10, 0
    %p30 = por %p28, %p29
    %p31 = scmp.ne.s32.totalorder %s20, %s23
    %p32 = scmp.eq.s32.totalorder %s15, 1
    %p33 = por %p31, %p32
    %p34 = scmp.ne.s32.totalorder %s23, %s24
    %p35 = scmp.eq.s32.totalorder %s15, 0
    %p36 = por %p34, %p35
    %p37 = scmp.ne.s32.totalorder %s23, %s24
    %p38 = scmp.eq.s32.totalorder %s16, 1
    %p39 = por %p37, %p38
    %p41 = scmp.ne.s32.totalorder %s24, %s40
    %p42 = scmp.eq.s32.totalorder %s16, 0
    %p43 = por %p41, %p42
    %s45 = sadd.s32 %s44, 1
    %p48 = scmp.eq.s32.totalorder %s10, 1
    %p49 = scmp.ne.s32.totalorder %s44, %s46
    %p50 = scmp.eq.s32.totalorder %s10, 0
    %p51 = por %p49, %p50
    %p52 = scmp.ne.s32.totalorder %s44, %s46
    %p53 = scmp.eq.s32.totalorder %s15, 1
    %p54 = por %p52, %p53
    %p55 = scmp.ne.s32.totalorder %s46, %s47
    %p56 = scmp.eq.s32.totalorder %s15, 0
    %p57 = por %p55, %p56
    %p58 = scmp.ne.s32.totalorder %s46, %s47
    %p59 = scmp.eq.s32.totalorder %s16, 1
    %p60 = por %p58, %p59
    %p62 = scmp.ne.s32.totalorder %s47, %s61
    %p63 = scmp.eq.s32.totalorder %s16, 0
    %p64 = por %p62, %p63
    %s65 = ssub.s32 %s10, %s17
    %p66 = scmp.eq.s32.totalorder %s65, 0
    %s68 = sadd.s32 %s67, 1
    %s69 = scalar_select %p66, %s67, %s68
    %p72 = pneg %p66
    %p73 = scmp.eq.s32.totalorder %s10, 1
    %p74 = por %p72, %p73
    %p75 = scmp.ne.s32.totalorder %s67, %s70
    %p76 = scmp.eq.s32.totalorder %s10, 0
    %p77 = por %p75, %p76
    %p78 = scmp.ne.s32.totalorder %s67, %s70
    %p79 = scmp.eq.s32.totalorder %s15, 1
    %p80 = por %p78, %p79
    %p81 = scmp.ne.s32.totalorder %s70, %s71
    %p82 = scmp.eq.s32.totalorder %s15, 0
    %p83 = por %p81, %p82
    %p84 = scmp.ne.s32.totalorder %s70, %s71
    %p85 = scmp.eq.s32.totalorder %s16, 1
    %p86 = por %p84, %p85
    %p88 = scmp.ne.s32.totalorder %s71, %s87
    %p89 = scmp.eq.s32.totalorder %s16, 0
    %p90 = por %p88, %p89
    %s91 = ssub.s32 %s10, %s17
    %p92 = scmp.eq.s32.totalorder %s91, 0
    %s94 = sadd.s32 %s93, 1
    %s95 = scalar_select %p92, %s93, %s94
    %p98 = pneg %p92
    %p99 = scmp.eq.s32.totalorder %s10, 1
    %p100 = por %p98, %p99
    %p101 = scmp.ne.s32.totalorder %s93, %s96
    %p102 = scmp.eq.s32.totalorder %s10, 0
    %p103 = por %p101, %p102
    %p104 = scmp.ne.s32.totalorder %s93, %s96
    %p105 = scmp.eq.s32.totalorder %s15, 1
    %p106 = por %p104, %p105
    %p107 = scmp.ne.s32.totalorder %s96, %s97
    %p108 = scmp.eq.s32.totalorder %s15, 0
    %p109 = por %p107, %p108
    %p110 = scmp.ne.s32.totalorder %s96, %s97
    %p111 = scmp.eq.s32.totalorder %s16, 1
    %p112 = por %p110, %p111
    %p114 = scmp.ne.s32.totalorder %s97, %s113
    %p115 = scmp.eq.s32.totalorder %s16, 0
    %p116 = por %p114, %p115
    %p117 = scmp.le.s32.totalorder 1, %s10
    %p118 = scmp.lt.s32.totalorder %s10, 3
    %p119 = pnand %p117, %p118
    %p120 = pneg %p119
    // Predicated region
    $region9: #{da_module_forward.5} parent=5 // pred_check
      _
    $region10: #{da_module_forward.5} parent=5 // pred_check_branch
      %122 = sbr.rel (%p119) target = $region12
    $region11: #{da_module_forward.5} parent=5 // pred_region
      %s123 = ssub.s32 %s10, 1
      // Predicated region
      $region13: #{da_module_forward.5} parent=11 // pred_check
        %p124 = pneg %p57
      $region14: #{da_module_forward.5} parent=11 // pred_check_branch
        %126 = sbr.rel (%p124) target = $region16
      $region15: #{da_module_forward.5} parent=11 // pred_region
        _
      $region16: #{da_module_forward.5} parent=11 // pred_fallthru
        _
    $region12: #{da_module_forward.5} parent=5 // pred_fallthru
      _
    %p127 = scmp.lt.s32.totalorder %s10, 2
    // Predicated region
    $region17: #{da_module_forward.5} parent=5 // pred_check
      %p128 = pneg %p127
    $region18: #{da_module_forward.5} parent=5 // pred_check_branch
      %130 = sbr.rel (%p128) target = $region20
    $region19: #{da_module_forward.5} parent=5 // pred_region
      // Predicated region
      $region21: #{da_module_forward.5} parent=19 // pred_check
        %p131 = pneg %p30
      $region22: #{da_module_forward.5} parent=19 // pred_check_branch
        %133 = sbr.rel (%p131) target = $region24
      $region23: #{da_module_forward.5} parent=19 // pred_region
        %p134 = scmp.lt.s32.totalorder %s10, 1
        %s135 = scalar_select %p134, %s10, 1
        %s136 = smul.addr %s135, 54
        %s137 = smul.addr %s136, 4
        %s138 = scalar_lea.vmem %s0, %s137
      $region24: #{da_module_forward.5} parent=19 // pred_fallthru
        _
    $region20: #{da_module_forward.5} parent=5 // pred_fallthru
      _
    %p139 = scmp.le.s32.totalorder 1, %s10
    %p140 = scmp.lt.s32.totalorder %s10, 3
    %p141 = pnand %p139, %p140
    %p142 = pneg %p141
    // Predicated region
    $region25: #{da_module_forward.5} parent=5 // pred_check
      _
    $region26: #{da_module_forward.5} parent=5 // pred_check_branch
      %144 = sbr.rel (%p141) target = $region28
    $region27: #{da_module_forward.5} parent=5 // pred_region
      %s145 = ssub.s32 %s10, 1
      %p146 = scmp.lt.s32.totalorder %s15, 1
      %s147 = scalar_select %p146, %s15, 1
      %s148 = smul.addr %s147, 54
      %s149 = smul.addr %s148, 4
      %s150 = scalar_lea.vmem %s0, %s149
      %p151 = pneg %p36
      %p152 = pneg %p33
      %p153 = pneg %p57
      %p154 = pneg %p54
      %p155 = pneg %p83
      %p156 = pneg %p80
      %p157 = scmp.lt.s32.totalorder %s15, 1
      %s158 = scalar_select %p157, %s15, 1
      %s159 = smul.addr %s158, 32
      %s160 = smul.addr %s159, 4
      %s161 = scalar_lea.vmem %s2, %s160
      %p162 = pneg %p109
      %p163 = pneg %p106
      %p164 = scmp.lt.s32.totalorder %s15, 1
      %s165 = scalar_select %p164, %s15, 1
      %s166 = smul.addr %s165, 2
      %s167 = scalar_lea.vmem %s3, %s166
      %p168 = scmp.lt.s32.totalorder %s15, 1
      %s169 = scalar_select %p168, %s15, 1
      %s170 = smul.addr %s169, 54
      %s171 = smul.addr %s170, 4
      %s172 = scalar_lea.vmem %s0, %s171
      %p173 = scmp.lt.s32.totalorder %s15, 1
      %s174 = scalar_select %p173, %s15, 1
      %s175 = smul.addr %s174, 32
      %s176 = smul.addr %s175, 4
      %s177 = scalar_lea.vmem %s2, %s176
      %p178 = scmp.lt.s32.totalorder %s15, 1
      %s179 = scalar_select %p178, %s15, 1
      %s180 = smul.addr %s179, 2
      %s181 = scalar_lea.vmem %s3, %s180
      %v182 = vld [vmem:[%s172] sm:$0xf]
      %v183 = vld [vmem:[%s172 + $0x4] sm:$0xf]
      %v184 = vld [vmem:[%s172 + $0xc] sm:$0xf]
      %v185 = vld [vmem:[%s172 + $0x10] sm:$0xf]
      %v186 = vld [vmem:[%s172 + $0x18] sm:$0xf]
      %v187 = vld [vmem:[%s172 + $0x1c] sm:$0xf]
      %v188 = vld [vmem:[%s172 + $0x24] sm:$0xf]
      %v189 = vld [vmem:[%s172 + $0x28] sm:$0xf]
      %v190 = vld [vmem:[%s172 + $0x30] sm:$0xf]
      %v191 = vld [vmem:[%s172 + $0x34] sm:$0xf]
      %v192 = vld [vmem:[%s172 + $0x3c] sm:$0xf]
      %v193 = vld [vmem:[%s172 + $0x40] sm:$0xf]
      %v194 = vld [vmem:[%s172 + $0x48] sm:$0xf]
      %v195 = vld [vmem:[%s172 + $0x4c] sm:$0xf]
      %v196 = vld [vmem:[%s172 + $0x54] sm:$0xf]
      %v197 = vld [vmem:[%s172 + $0x58] sm:$0xf]
      %v198 = vld [vmem:[%s172 + $0x60] sm:$0xf]
      %v199 = vld [vmem:[%s172 + $0x64] sm:$0xf]
      %v200 = vld [vmem:[%s172 + $0x6c] sm:$0xf]
      %v201 = vld [vmem:[%s172 + $0x70] sm:$0xf]
      %v202 = vld [vmem:[%s172 + $0x78] sm:$0xf]
      %v203 = vld [vmem:[%s172 + $0x7c] sm:$0xf]
      %v204 = vld [vmem:[%s172 + $0x84] sm:$0xf]
      %v205 = vld [vmem:[%s172 + $0x88] sm:$0xf]
      %v206 = vld [vmem:[%s172 + $0x90] sm:$0xf]
      %v207 = vld [vmem:[%s172 + $0x94] sm:$0xf]
      %v208 = vld [vmem:[%s172 + $0x9c] sm:$0xf]
      %v209 = vld [vmem:[%s172 + $0xa0] sm:$0xf]
      %v210 = vld [vmem:[%s172 + $0xa8] sm:$0xf]
      %v211 = vld [vmem:[%s172 + $0xac] sm:$0xf]
      %v212 = vld [vmem:[%s172 + $0xb4] sm:$0xf]
      %v213 = vld [vmem:[%s172 + $0xb8] sm:$0xf]
      %v214 = vld [vmem:[%s172 + $0x8] sm:$0x1]
      %v215 = vld [vmem:[%s172 + $0x14] sm:$0x1]
      %v216 = vld [vmem:[%s172 + $0x20] sm:$0x1]
      %v217 = vld [vmem:[%s172 + $0x2c] sm:$0x1]
      %v218 = vld [vmem:[%s172 + $0x38] sm:$0x1]
      %v219 = vld [vmem:[%s172 + $0x44] sm:$0x1]
      %v220 = vld [vmem:[%s172 + $0x50] sm:$0x1]
      %v221 = vld [vmem:[%s172 + $0x5c] sm:$0x1]
      %v222 = vld [vmem:[%s172 + $0x68] sm:$0x1]
      %v223 = vld [vmem:[%s172 + $0x74] sm:$0x1]
      %v224 = vld [vmem:[%s172 + $0x80] sm:$0x1]
      %v225 = vld [vmem:[%s172 + $0x8c] sm:$0x1]
      %v226 = vld [vmem:[%s172 + $0x98] sm:$0x1]
      %v227 = vld [vmem:[%s172 + $0xa4] sm:$0x1]
      %v228 = vld [vmem:[%s172 + $0xb0] sm:$0x1]
      %v229 = vld [vmem:[%s172 + $0xbc] sm:$0x1]
      %vm230 = vsmask.f32 3328
      %vm231 = vsmask.f32 7440
      %vm232 = vmor %vm230, %vm231
      %v234 = vshrl.u32 %v182, 16
      %v236 = vrot.slane %v234, 4
      %v237 = vshll.u32 %v182, 16
      %v239 = vrot.slane %v237, 5
      %v240 = vor.u32 %v236, %v239
      %v241 = vrot.slane %v240, 4
      %v243 = vshll.u32 %v183, 16
      %v245 = vrot.slane %v243, 5
      %v246 = vsel %vm232, %v241, %v245
      %v247 = vshrl.u32 %v183, 16
      %v249 = vrot.slane %v247, 4
      %v250 = vor.u32 %v249, %v245
      %v251 = vrot.slane %v250, 4
      %v253 = vshll.u32 %v214, 16
      %v255 = vrot.slane %v253, 5
      %v256 = vsel %vm232, %v251, %v255
      %v258 = vshrl.u32 %v184, 16
      %v260 = vrot.slane %v258, 4
      %v261 = vshll.u32 %v184, 16
      %v263 = vrot.slane %v261, 5
      %v264 = vor.u32 %v260, %v263
      %v265 = vrot.slane %v264, 4
      %v267 = vshll.u32 %v185, 16
      %v269 = vrot.slane %v267, 5
      %v270 = vsel %vm232, %v265, %v269
      %v271 = vshrl.u32 %v185, 16
      %v273 = vrot.slane %v271, 4
      %v274 = vor.u32 %v273, %v269
      %v275 = vrot.slane %v274, 4
      %v277 = vshll.u32 %v215, 16
      %v279 = vrot.slane %v277, 5
      %v280 = vsel %vm232, %v275, %v279
      %v282 = vshrl.u32 %v186, 16
      %v284 = vrot.slane %v282, 4
      %v285 = vshll.u32 %v186, 16
      %v287 = vrot.slane %v285, 5
      %v288 = vor.u32 %v284, %v287
      %v289 = vrot.slane %v288, 4
      %v291 = vshll.u32 %v187, 16
      %v293 = vrot.slane %v291, 5
      %v294 = vsel %vm232, %v289, %v293
      %v295 = vshrl.u32 %v187, 16
      %v297 = vrot.slane %v295, 4
      %v298 = vor.u32 %v297, %v293
      %v299 = vrot.slane %v298, 4
      %v301 = vshll.u32 %v216, 16
      %v303 = vrot.slane %v301, 5
      %v304 = vsel %vm232, %v299, %v303
      %v306 = vshrl.u32 %v188, 16
      %v308 = vrot.slane %v306, 4
      %v309 = vshll.u32 %v188, 16
      %v311 = vrot.slane %v309, 5
      %v312 = vor.u32 %v308, %v311
      %v313 = vrot.slane %v312, 4
      %v315 = vshll.u32 %v189, 16
      %v317 = vrot.slane %v315, 5
      %v318 = vsel %vm232, %v313, %v317
      %v319 = vshrl.u32 %v189, 16
      %v321 = vrot.slane %v319, 4
      %v322 = vor.u32 %v321, %v317
      %v323 = vrot.slane %v322, 4
      %v325 = vshll.u32 %v217, 16
      %v327 = vrot.slane %v325, 5
      %v328 = vsel %vm232, %v323, %v327
      %v330 = vshrl.u32 %v190, 16
      %v332 = vrot.slane %v330, 4
      %v333 = vshll.u32 %v190, 16
      %v335 = vrot.slane %v333, 5
      %v336 = vor.u32 %v332, %v335
      %v337 = vrot.slane %v336, 4
      %v339 = vshll.u32 %v191, 16
      %v341 = vrot.slane %v339, 5
      %v342 = vsel %vm232, %v337, %v341
      %v343 = vshrl.u32 %v191, 16
      %v345 = vrot.slane %v343, 4
      %v346 = vor.u32 %v345, %v341
      %v347 = vrot.slane %v346, 4
      %v349 = vshll.u32 %v218, 16
      %v351 = vrot.slane %v349, 5
      %v352 = vsel %vm232, %v347, %v351
      %v354 = vshrl.u32 %v192, 16
      %v356 = vrot.slane %v354, 4
      %v357 = vshll.u32 %v192, 16
      %v359 = vrot.slane %v357, 5
      %v360 = vor.u32 %v356, %v359
      %v361 = vrot.slane %v360, 4
      %v363 = vshll.u32 %v193, 16
      %v365 = vrot.slane %v363, 5
      %v366 = vsel %vm232, %v361, %v365
      %v367 = vshrl.u32 %v193, 16
      %v369 = vrot.slane %v367, 4
      %v370 = vor.u32 %v369, %v365
      %v371 = vrot.slane %v370, 4
      %v373 = vshll.u32 %v219, 16
      %v375 = vrot.slane %v373, 5
      %v376 = vsel %vm232, %v371, %v375
      %v378 = vshrl.u32 %v194, 16
      %v380 = vrot.slane %v378, 4
      %v381 = vshll.u32 %v194, 16
      %v383 = vrot.slane %v381, 5
      %v384 = vor.u32 %v380, %v383
      %v385 = vrot.slane %v384, 4
      %v387 = vshll.u32 %v195, 16
      %v389 = vrot.slane %v387, 5
      %v390 = vsel %vm232, %v385, %v389
      %v391 = vshrl.u32 %v195, 16
      %v393 = vrot.slane %v391, 4
      %v394 = vor.u32 %v393, %v389
      %v395 = vrot.slane %v394, 4
      %v397 = vshll.u32 %v220, 16
      %v399 = vrot.slane %v397, 5
      %v400 = vsel %vm232, %v395, %v399
      %v402 = vshrl.u32 %v196, 16
      %v404 = vrot.slane %v402, 4
      %v405 = vshll.u32 %v196, 16
      %v407 = vrot.slane %v405, 5
      %v408 = vor.u32 %v404, %v407
      %v409 = vrot.slane %v408, 4
      %v411 = vshll.u32 %v197, 16
      %v413 = vrot.slane %v411, 5
      %v414 = vsel %vm232, %v409, %v413
      %v415 = vshrl.u32 %v197, 16
      %v417 = vrot.slane %v415, 4
      %v418 = vor.u32 %v417, %v413
      %v419 = vrot.slane %v418, 4
      %v421 = vshll.u32 %v221, 16
      %v423 = vrot.slane %v421, 5
      %v424 = vsel %vm232, %v419, %v423
      %v426 = vshrl.u32 %v198, 16
      %v428 = vrot.slane %v426, 4
      %v429 = vshll.u32 %v198, 16
      %v431 = vrot.slane %v429, 5
      %v432 = vor.u32 %v428, %v431
      %v433 = vrot.slane %v432, 4
      %v435 = vshll.u32 %v199, 16
      %v437 = vrot.slane %v435, 5
      %v438 = vsel %vm232, %v433, %v437
      %v439 = vshrl.u32 %v199, 16
      %v441 = vrot.slane %v439, 4
      %v442 = vor.u32 %v441, %v437
      %v443 = vrot.slane %v442, 4
      %v445 = vshll.u32 %v222, 16
      %v447 = vrot.slane %v445, 5
      %v448 = vsel %vm232, %v443, %v447
      %v450 = vshrl.u32 %v200, 16
      %v452 = vrot.slane %v450, 4
      %v453 = vshll.u32 %v200, 16
      %v455 = vrot.slane %v453, 5
      %v456 = vor.u32 %v452, %v455
      %v457 = vrot.slane %v456, 4
      %v459 = vshll.u32 %v201, 16
      %v461 = vrot.slane %v459, 5
      %v462 = vsel %vm232, %v457, %v461
      %v463 = vshrl.u32 %v201, 16
      %v465 = vrot.slane %v463, 4
      %v466 = vor.u32 %v465, %v461
      %v467 = vrot.slane %v466, 4
      %v469 = vshll.u32 %v223, 16
      %v471 = vrot.slane %v469, 5
      %v472 = vsel %vm232, %v467, %v471
      %v474 = vshrl.u32 %v202, 16
      %v476 = vrot.slane %v474, 4
      %v477 = vshll.u32 %v202, 16
      %v479 = vrot.slane %v477, 5
      %v480 = vor.u32 %v476, %v479
      %v481 = vrot.slane %v480, 4
      %v483 = vshll.u32 %v203, 16
      %v485 = vrot.slane %v483, 5
      %v486 = vsel %vm232, %v481, %v485
      %v487 = vshrl.u32 %v203, 16
      %v489 = vrot.slane %v487, 4
      %v490 = vor.u32 %v489, %v485
      %v491 = vrot.slane %v490, 4
      %v493 = vshll.u32 %v224, 16
      %v495 = vrot.slane %v493, 5
      %v496 = vsel %vm232, %v491, %v495
      %v498 = vshrl.u32 %v204, 16
      %v500 = vrot.slane %v498, 4
      %v501 = vshll.u32 %v204, 16
      %v503 = vrot.slane %v501, 5
      %v504 = vor.u32 %v500, %v503
      %v505 = vrot.slane %v504, 4
      %v507 = vshll.u32 %v205, 16
      %v509 = vrot.slane %v507, 5
      %v510 = vsel %vm232, %v505, %v509
      %v511 = vshrl.u32 %v205, 16
      %v513 = vrot.slane %v511, 4
      %v514 = vor.u32 %v513, %v509
      %v515 = vrot.slane %v514, 4
      %v517 = vshll.u32 %v225, 16
      %v519 = vrot.slane %v517, 5
      %v520 = vsel %vm232, %v515, %v519
      %v522 = vshrl.u32 %v206, 16
      %v524 = vrot.slane %v522, 4
      %v525 = vshll.u32 %v206, 16
      %v527 = vrot.slane %v525, 5
      %v528 = vor.u32 %v524, %v527
      %v529 = vrot.slane %v528, 4
      %v531 = vshll.u32 %v207, 16
      %v533 = vrot.slane %v531, 5
      %v534 = vsel %vm232, %v529, %v533
      %v535 = vshrl.u32 %v207, 16
      %v537 = vrot.slane %v535, 4
      %v538 = vor.u32 %v537, %v533
      %v539 = vrot.slane %v538, 4
      %v541 = vshll.u32 %v226, 16
      %v543 = vrot.slane %v541, 5
      %v544 = vsel %vm232, %v539, %v543
      %v546 = vshrl.u32 %v208, 16
      %v548 = vrot.slane %v546, 4
      %v549 = vshll.u32 %v208, 16
      %v551 = vrot.slane %v549, 5
      %v552 = vor.u32 %v548, %v551
      %v553 = vrot.slane %v552, 4
      %v555 = vshll.u32 %v209, 16
      %v557 = vrot.slane %v555, 5
      %v558 = vsel %vm232, %v553, %v557
      %v559 = vshrl.u32 %v209, 16
      %v561 = vrot.slane %v559, 4
      %v562 = vor.u32 %v561, %v557
      %v563 = vrot.slane %v562, 4
      %v565 = vshll.u32 %v227, 16
      %v567 = vrot.slane %v565, 5
      %v568 = vsel %vm232, %v563, %v567
      %v570 = vshrl.u32 %v210, 16
      %v572 = vrot.slane %v570, 4
      %v573 = vshll.u32 %v210, 16
      %v575 = vrot.slane %v573, 5
      %v576 = vor.u32 %v572, %v575
      %v577 = vrot.slane %v576, 4
      %v579 = vshll.u32 %v211, 16
      %v581 = vrot.slane %v579, 5
      %v582 = vsel %vm232, %v577, %v581
      %v583 = vshrl.u32 %v211, 16
      %v585 = vrot.slane %v583, 4
      %v586 = vor.u32 %v585, %v581
      %v587 = vrot.slane %v586, 4
      %v589 = vshll.u32 %v228, 16
      %v591 = vrot.slane %v589, 5
      %v592 = vsel %vm232, %v587, %v591
      %v594 = vshrl.u32 %v212, 16
      %v596 = vrot.slane %v594, 4
      %v597 = vshll.u32 %v212, 16
      %v599 = vrot.slane %v597, 5
      %v600 = vor.u32 %v596, %v599
      %v601 = vrot.slane %v600, 4
      %v603 = vshll.u32 %v213, 16
      %v605 = vrot.slane %v603, 5
      %v606 = vsel %vm232, %v601, %v605
      %v607 = vshrl.u32 %v213, 16
      %v609 = vrot.slane %v607, 4
      %v610 = vor.u32 %v609, %v605
      %v611 = vrot.slane %v610, 4
      %v613 = vshll.u32 %v229, 16
      %v615 = vrot.slane %v613, 5
      %v616 = vsel %vm232, %v611, %v615
      %v617 = vld [vmem:[%s172] sm:$0xe]
      %v618 = vld [vmem:[%s172 + $0xc] sm:$0xe]
      %v619 = vld [vmem:[%s172 + $0x18] sm:$0xe]
      %v620 = vld [vmem:[%s172 + $0x24] sm:$0xe]
      %v621 = vld [vmem:[%s172 + $0x30] sm:$0xe]
      %v622 = vld [vmem:[%s172 + $0x3c] sm:$0xe]
      %v623 = vld [vmem:[%s172 + $0x48] sm:$0xe]
      %v624 = vld [vmem:[%s172 + $0x54] sm:$0xe]
      %v625 = vld [vmem:[%s172 + $0x60] sm:$0xe]
      %v626 = vld [vmem:[%s172 + $0x6c] sm:$0xe]
      %v627 = vld [vmem:[%s172 + $0x78] sm:$0xe]
      %v628 = vld [vmem:[%s172 + $0x84] sm:$0xe]
      %v629 = vld [vmem:[%s172 + $0x90] sm:$0xe]
      %v630 = vld [vmem:[%s172 + $0x9c] sm:$0xe]
      %v631 = vld [vmem:[%s172 + $0xa8] sm:$0xe]
      %v632 = vld [vmem:[%s172 + $0xb4] sm:$0xe]
      %vm681 = vcmask 1042432
      %vm682 = vcmask 1046532
      %vm683 = vmor %vm681, %vm682
      %v684 = vrot.slane %v617, 5
      %v685 = vrot.slane %v684, 4
      %v686 = vrot.slane %v183, 5
      %v687 = vsel %vm683, %v685, %v686
      %v688 = vrot.slane %v686, 4
      %v689 = vrot.slane %v214, 5
      %v690 = vsel %vm683, %v688, %v689
      %v691 = vrot.slane %v618, 5
      %v692 = vrot.slane %v691, 4
      %v693 = vrot.slane %v185, 5
      %v694 = vsel %vm683, %v692, %v693
      %v695 = vrot.slane %v693, 4
      %v696 = vrot.slane %v215, 5
      %v697 = vsel %vm683, %v695, %v696
      %v698 = vrot.slane %v619, 5
      %v699 = vrot.slane %v698, 4
      %v700 = vrot.slane %v187, 5
      %v701 = vsel %vm683, %v699, %v700
      %v702 = vrot.slane %v700, 4
      %v703 = vrot.slane %v216, 5
      %v704 = vsel %vm683, %v702, %v703
      %v705 = vrot.slane %v620, 5
      %v706 = vrot.slane %v705, 4
      %v707 = vrot.slane %v189, 5
      %v708 = vsel %vm683, %v706, %v707
      %v709 = vrot.slane %v707, 4
      %v710 = vrot.slane %v217, 5
      %v711 = vsel %vm683, %v709, %v710
      %v712 = vrot.slane %v621, 5
      %v713 = vrot.slane %v712, 4
      %v714 = vrot.slane %v191, 5
      %v715 = vsel %vm683, %v713, %v714
      %v716 = vrot.slane %v714, 4
      %v717 = vrot.slane %v218, 5
      %v718 = vsel %vm683, %v716, %v717
      %v719 = vrot.slane %v622, 5
      %v720 = vrot.slane %v719, 4
      %v721 = vrot.slane %v193, 5
      %v722 = vsel %vm683, %v720, %v721
      %v723 = vrot.slane %v721, 4
      %v724 = vrot.slane %v219, 5
      %v725 = vsel %vm683, %v723, %v724
      %v726 = vrot.slane %v623, 5
      %v727 = vrot.slane %v726, 4
      %v728 = vrot.slane %v195, 5
      %v729 = vsel %vm683, %v727, %v728
      %v730 = vrot.slane %v728, 4
      %v731 = vrot.slane %v220, 5
      %v732 = vsel %vm683, %v730, %v731
      %v733 = vrot.slane %v624, 5
      %v734 = vrot.slane %v733, 4
      %v735 = vrot.slane %v197, 5
      %v736 = vsel %vm683, %v734, %v735
      %v737 = vrot.slane %v735, 4
      %v738 = vrot.slane %v221, 5
      %v739 = vsel %vm683, %v737, %v738
      %v740 = vrot.slane %v625, 5
      %v741 = vrot.slane %v740, 4
      %v742 = vrot.slane %v199, 5
      %v743 = vsel %vm683, %v741, %v742
      %v744 = vrot.slane %v742, 4
      %v745 = vrot.slane %v222, 5
      %v746 = vsel %vm683, %v744, %v745
      %v747 = vrot.slane %v626, 5
      %v748 = vrot.slane %v747, 4
      %v749 = vrot.slane %v201, 5
      %v750 = vsel %vm683, %v748, %v749
      %v751 = vrot.slane %v749, 4
      %v752 = vrot.slane %v223, 5
      %v753 = vsel %vm683, %v751, %v752
      %v754 = vrot.slane %v627, 5
      %v755 = vrot.slane %v754, 4
      %v756 = vrot.slane %v203, 5
      %v757 = vsel %vm683, %v755, %v756
      %v758 = vrot.slane %v756, 4
      %v759 = vrot.slane %v224, 5
      %v760 = vsel %vm683, %v758, %v759
      %v761 = vrot.slane %v628, 5
      %v762 = vrot.slane %v761, 4
      %v763 = vrot.slane %v205, 5
      %v764 = vsel %vm683, %v762, %v763
      %v765 = vrot.slane %v763, 4
      %v766 = vrot.slane %v225, 5
      %v767 = vsel %vm683, %v765, %v766
      %v768 = vrot.slane %v629, 5
      %v769 = vrot.slane %v768, 4
      %v770 = vrot.slane %v207, 5
      %v771 = vsel %vm683, %v769, %v770
      %v772 = vrot.slane %v770, 4
      %v773 = vrot.slane %v226, 5
      %v774 = vsel %vm683, %v772, %v773
      %v775 = vrot.slane %v630, 5
      %v776 = vrot.slane %v775, 4
      %v777 = vrot.slane %v209, 5
      %v778 = vsel %vm683, %v776, %v777
      %v779 = vrot.slane %v777, 4
      %v780 = vrot.slane %v227, 5
      %v781 = vsel %vm683, %v779, %v780
      %v782 = vrot.slane %v631, 5
      %v783 = vrot.slane %v782, 4
      %v784 = vrot.slane %v211, 5
      %v785 = vsel %vm683, %v783, %v784
      %v786 = vrot.slane %v784, 4
      %v787 = vrot.slane %v228, 5
      %v788 = vsel %vm683, %v786, %v787
      %v789 = vrot.slane %v632, 5
      %v790 = vrot.slane %v789, 4
      %v791 = vrot.slane %v213, 5
      %v792 = vsel %vm683, %v790, %v791
      %v793 = vrot.slane %v791, 4
      %v794 = vrot.slane %v229, 5
      %v795 = vsel %vm683, %v793, %v794
      %s796 = scalar_lea.vmem %s172, 12
      %v797 = vld [vmem:[%s796] sm:$0xf]
      %v798 = vld [vmem:[%s796 + $0x4] sm:$0xf]
      %v799 = vld [vmem:[%s796 + $0xc] sm:$0xf]
      %v800 = vld [vmem:[%s796 + $0x10] sm:$0xf]
      %v801 = vld [vmem:[%s796 + $0x18] sm:$0xf]
      %v802 = vld [vmem:[%s796 + $0x1c] sm:$0xf]
      %v803 = vld [vmem:[%s796 + $0x24] sm:$0xf]
      %v804 = vld [vmem:[%s796 + $0x28] sm:$0xf]
      %v805 = vld [vmem:[%s796 + $0x30] sm:$0xf]
      %v806 = vld [vmem:[%s796 + $0x34] sm:$0xf]
      %v807 = vld [vmem:[%s796 + $0x3c] sm:$0xf]
      %v808 = vld [vmem:[%s796 + $0x40] sm:$0xf]
      %v809 = vld [vmem:[%s796 + $0x48] sm:$0xf]
      %v810 = vld [vmem:[%s796 + $0x4c] sm:$0xf]
      %v811 = vld [vmem:[%s796 + $0x54] sm:$0xf]
      %v812 = vld [vmem:[%s796 + $0x58] sm:$0xf]
      %v813 = vld [vmem:[%s796 + $0x60] sm:$0xf]
      %v814 = vld [vmem:[%s796 + $0x64] sm:$0xf]
      %v815 = vld [vmem:[%s796 + $0x6c] sm:$0xf]
      %v816 = vld [vmem:[%s796 + $0x70] sm:$0xf]
      %v817 = vld [vmem:[%s796 + $0x78] sm:$0xf]
      %v818 = vld [vmem:[%s796 + $0x7c] sm:$0xf]
      %v819 = vld [vmem:[%s796 + $0x84] sm:$0xf]
      %v820 = vld [vmem:[%s796 + $0x88] sm:$0xf]
      %v821 = vld [vmem:[%s796 + $0x90] sm:$0xf]
      %v822 = vld [vmem:[%s796 + $0x94] sm:$0xf]
      %v823 = vld [vmem:[%s796 + $0x9c] sm:$0xf]
      %v824 = vld [vmem:[%s796 + $0xa0] sm:$0xf]
      %v825 = vld [vmem:[%s796 + $0xa8] sm:$0xf]
      %v826 = vld [vmem:[%s796 + $0xac] sm:$0xf]
      %v827 = vld [vmem:[%s796 + $0xb4] sm:$0xf]
      %v828 = vld [vmem:[%s796 + $0xb8] sm:$0xf]
      %v829 = vld [vmem:[%s796 + $0x8] sm:$0x1]
      %v830 = vld [vmem:[%s796 + $0x14] sm:$0x1]
      %v831 = vld [vmem:[%s796 + $0x20] sm:$0x1]
      %v832 = vld [vmem:[%s796 + $0x2c] sm:$0x1]
      %v833 = vld [vmem:[%s796 + $0x38] sm:$0x1]
      %v834 = vld [vmem:[%s796 + $0x44] sm:$0x1]
      %v835 = vld [vmem:[%s796 + $0x50] sm:$0x1]
      %v836 = vld [vmem:[%s796 + $0x5c] sm:$0x1]
      %v837 = vld [vmem:[%s796 + $0x68] sm:$0x1]
      %v838 = vld [vmem:[%s796 + $0x74] sm:$0x1]
      %v839 = vld [vmem:[%s796 + $0x80] sm:$0x1]
      %v840 = vld [vmem:[%s796 + $0x8c] sm:$0x1]
      %v841 = vld [vmem:[%s796 + $0x98] sm:$0x1]
      %v842 = vld [vmem:[%s796 + $0xa4] sm:$0x1]
      %v843 = vld [vmem:[%s796 + $0xb0] sm:$0x1]
      %v844 = vld [vmem:[%s796 + $0xbc] sm:$0x1]
      %v846 = vshrl.u32 %v797, 16
      %v848 = vrot.slane %v846, 4
      %v849 = vshll.u32 %v797, 16
      %v851 = vrot.slane %v849, 5
      %v852 = vor.u32 %v848, %v851
      %v853 = vrot.slane %v852, 4
      %v855 = vshll.u32 %v798, 16
      %v857 = vrot.slane %v855, 5
      %v858 = vsel %vm232, %v853, %v857
      %v859 = vshrl.u32 %v798, 16
      %v861 = vrot.slane %v859, 4
      %v862 = vor.u32 %v861, %v857
      %v863 = vrot.slane %v862, 4
      %v865 = vshll.u32 %v829, 16
      %v867 = vrot.slane %v865, 5
      %v868 = vsel %vm232, %v863, %v867
      %v870 = vshrl.u32 %v799, 16
      %v872 = vrot.slane %v870, 4
      %v873 = vshll.u32 %v799, 16
      %v875 = vrot.slane %v873, 5
      %v876 = vor.u32 %v872, %v875
      %v877 = vrot.slane %v876, 4
      %v879 = vshll.u32 %v800, 16
      %v881 = vrot.slane %v879, 5
      %v882 = vsel %vm232, %v877, %v881
      %v883 = vshrl.u32 %v800, 16
      %v885 = vrot.slane %v883, 4
      %v886 = vor.u32 %v885, %v881
      %v887 = vrot.slane %v886, 4
      %v889 = vshll.u32 %v830, 16
      %v891 = vrot.slane %v889, 5
      %v892 = vsel %vm232, %v887, %v891
      %v894 = vshrl.u32 %v801, 16
      %v896 = vrot.slane %v894, 4
      %v897 = vshll.u32 %v801, 16
      %v899 = vrot.slane %v897, 5
      %v900 = vor.u32 %v896, %v899
      %v901 = vrot.slane %v900, 4
      %v903 = vshll.u32 %v802, 16
      %v905 = vrot.slane %v903, 5
      %v906 = vsel %vm232, %v901, %v905
      %v907 = vshrl.u32 %v802, 16
      %v909 = vrot.slane %v907, 4
      %v910 = vor.u32 %v909, %v905
      %v911 = vrot.slane %v910, 4
      %v913 = vshll.u32 %v831, 16
      %v915 = vrot.slane %v913, 5
      %v916 = vsel %vm232, %v911, %v915
      %v918 = vshrl.u32 %v803, 16
      %v920 = vrot.slane %v918, 4
      %v921 = vshll.u32 %v803, 16
      %v923 = vrot.slane %v921, 5
      %v924 = vor.u32 %v920, %v923
      %v925 = vrot.slane %v924, 4
      %v927 = vshll.u32 %v804, 16
      %v929 = vrot.slane %v927, 5
      %v930 = vsel %vm232, %v925, %v929
      %v931 = vshrl.u32 %v804, 16
      %v933 = vrot.slane %v931, 4
      %v934 = vor.u32 %v933, %v929
      %v935 = vrot.slane %v934, 4
      %v937 = vshll.u32 %v832, 16
      %v939 = vrot.slane %v937, 5
      %v940 = vsel %vm232, %v935, %v939
      %v942 = vshrl.u32 %v805, 16
      %v944 = vrot.slane %v942, 4
      %v945 = vshll.u32 %v805, 16
      %v947 = vrot.slane %v945, 5
      %v948 = vor.u32 %v944, %v947
      %v949 = vrot.slane %v948, 4
      %v951 = vshll.u32 %v806, 16
      %v953 = vrot.slane %v951, 5
      %v954 = vsel %vm232, %v949, %v953
      %v955 = vshrl.u32 %v806, 16
      %v957 = vrot.slane %v955, 4
      %v958 = vor.u32 %v957, %v953
      %v959 = vrot.slane %v958, 4
      %v961 = vshll.u32 %v833, 16
      %v963 = vrot.slane %v961, 5
      %v964 = vsel %vm232, %v959, %v963
      %v966 = vshrl.u32 %v807, 16
      %v968 = vrot.slane %v966, 4
      %v969 = vshll.u32 %v807, 16
      %v971 = vrot.slane %v969, 5
      %v972 = vor.u32 %v968, %v971
      %v973 = vrot.slane %v972, 4
      %v975 = vshll.u32 %v808, 16
      %v977 = vrot.slane %v975, 5
      %v978 = vsel %vm232, %v973, %v977
      %v979 = vshrl.u32 %v808, 16
      %v981 = vrot.slane %v979, 4
      %v982 = vor.u32 %v981, %v977
      %v983 = vrot.slane %v982, 4
      %v985 = vshll.u32 %v834, 16
      %v987 = vrot.slane %v985, 5
      %v988 = vsel %vm232, %v983, %v987
      %v990 = vshrl.u32 %v809, 16
      %v992 = vrot.slane %v990, 4
      %v993 = vshll.u32 %v809, 16
      %v995 = vrot.slane %v993, 5
      %v996 = vor.u32 %v992, %v995
      %v997 = vrot.slane %v996, 4
      %v999 = vshll.u32 %v810, 16
      %v1001 = vrot.slane %v999, 5
      %v1002 = vsel %vm232, %v997, %v1001
      %v1003 = vshrl.u32 %v810, 16
      %v1005 = vrot.slane %v1003, 4
      %v1006 = vor.u32 %v1005, %v1001
      %v1007 = vrot.slane %v1006, 4
      %v1009 = vshll.u32 %v835, 16
      %v1011 = vrot.slane %v1009, 5
      %v1012 = vsel %vm232, %v1007, %v1011
      %v1014 = vshrl.u32 %v811, 16
      %v1016 = vrot.slane %v1014, 4
      %v1017 = vshll.u32 %v811, 16
      %v1019 = vrot.slane %v1017, 5
      %v1020 = vor.u32 %v1016, %v1019
      %v1021 = vrot.slane %v1020, 4
      %v1023 = vshll.u32 %v812, 16
      %v1025 = vrot.slane %v1023, 5
      %v1026 = vsel %vm232, %v1021, %v1025
      %v1027 = vshrl.u32 %v812, 16
      %v1029 = vrot.slane %v1027, 4
      %v1030 = vor.u32 %v1029, %v1025
      %v1031 = vrot.slane %v1030, 4
      %v1033 = vshll.u32 %v836, 16
      %v1035 = vrot.slane %v1033, 5
      %v1036 = vsel %vm232, %v1031, %v1035
      %v1038 = vshrl.u32 %v813, 16
      %v1040 = vrot.slane %v1038, 4
      %v1041 = vshll.u32 %v813, 16
      %v1043 = vrot.slane %v1041, 5
      %v1044 = vor.u32 %v1040, %v1043
      %v1045 = vrot.slane %v1044, 4
      %v1047 = vshll.u32 %v814, 16
      %v1049 = vrot.slane %v1047, 5
      %v1050 = vsel %vm232, %v1045, %v1049
      %v1051 = vshrl.u32 %v814, 16
      %v1053 = vrot.slane %v1051, 4
      %v1054 = vor.u32 %v1053, %v1049
      %v1055 = vrot.slane %v1054, 4
      %v1057 = vshll.u32 %v837, 16
      %v1059 = vrot.slane %v1057, 5
      %v1060 = vsel %vm232, %v1055, %v1059
      %v1062 = vshrl.u32 %v815, 16
      %v1064 = vrot.slane %v1062, 4
      %v1065 = vshll.u32 %v815, 16
      %v1067 = vrot.slane %v1065, 5
      %v1068 = vor.u32 %v1064, %v1067
      %v1069 = vrot.slane %v1068, 4
      %v1071 = vshll.u32 %v816, 16
      %v1073 = vrot.slane %v1071, 5
      %v1074 = vsel %vm232, %v1069, %v1073
      %v1075 = vshrl.u32 %v816, 16
      %v1077 = vrot.slane %v1075, 4
      %v1078 = vor.u32 %v1077, %v1073
      %v1079 = vrot.slane %v1078, 4
      %v1081 = vshll.u32 %v838, 16
      %v1083 = vrot.slane %v1081, 5
      %v1084 = vsel %vm232, %v1079, %v1083
      %v1086 = vshrl.u32 %v817, 16
      %v1088 = vrot.slane %v1086, 4
      %v1089 = vshll.u32 %v817, 16
      %v1091 = vrot.slane %v1089, 5
      %v1092 = vor.u32 %v1088, %v1091
      %v1093 = vrot.slane %v1092, 4
      %v1095 = vshll.u32 %v818, 16
      %v1097 = vrot.slane %v1095, 5
      %v1098 = vsel %vm232, %v1093, %v1097
      %v1099 = vshrl.u32 %v818, 16
      %v1101 = vrot.slane %v1099, 4
      %v1102 = vor.u32 %v1101, %v1097
      %v1103 = vrot.slane %v1102, 4
      %v1105 = vshll.u32 %v839, 16
      %v1107 = vrot.slane %v1105, 5
      %v1108 = vsel %vm232, %v1103, %v1107
      %v1110 = vshrl.u32 %v819, 16
      %v1112 = vrot.slane %v1110, 4
      %v1113 = vshll.u32 %v819, 16
      %v1115 = vrot.slane %v1113, 5
      %v1116 = vor.u32 %v1112, %v1115
      %v1117 = vrot.slane %v1116, 4
      %v1119 = vshll.u32 %v820, 16
      %v1121 = vrot.slane %v1119, 5
      %v1122 = vsel %vm232, %v1117, %v1121
      %v1123 = vshrl.u32 %v820, 16
      %v1125 = vrot.slane %v1123, 4
      %v1126 = vor.u32 %v1125, %v1121
      %v1127 = vrot.slane %v1126, 4
      %v1129 = vshll.u32 %v840, 16
      %v1131 = vrot.slane %v1129, 5
      %v1132 = vsel %vm232, %v1127, %v1131
      %v1134 = vshrl.u32 %v821, 16
      %v1136 = vrot.slane %v1134, 4
      %v1137 = vshll.u32 %v821, 16
      %v1139 = vrot.slane %v1137, 5
      %v1140 = vor.u32 %v1136, %v1139
      %v1141 = vrot.slane %v1140, 4
      %v1143 = vshll.u32 %v822, 16
      %v1145 = vrot.slane %v1143, 5
      %v1146 = vsel %vm232, %v1141, %v1145
      %v1147 = vshrl.u32 %v822, 16
      %v1149 = vrot.slane %v1147, 4
      %v1150 = vor.u32 %v1149, %v1145
      %v1151 = vrot.slane %v1150, 4
      %v1153 = vshll.u32 %v841, 16
      %v1155 = vrot.slane %v1153, 5
      %v1156 = vsel %vm232, %v1151, %v1155
      %v1158 = vshrl.u32 %v823, 16
      %v1160 = vrot.slane %v1158, 4
      %v1161 = vshll.u32 %v823, 16
      %v1163 = vrot.slane %v1161, 5
      %v1164 = vor.u32 %v1160, %v1163
      %v1165 = vrot.slane %v1164, 4
      %v1167 = vshll.u32 %v824, 16
      %v1169 = vrot.slane %v1167, 5
      %v1170 = vsel %vm232, %v1165, %v1169
      %v1171 = vshrl.u32 %v824, 16
      %v1173 = vrot.slane %v1171, 4
      %v1174 = vor.u32 %v1173, %v1169
      %v1175 = vrot.slane %v1174, 4
      %v1177 = vshll.u32 %v842, 16
      %v1179 = vrot.slane %v1177, 5
      %v1180 = vsel %vm232, %v1175, %v1179
      %v1182 = vshrl.u32 %v825, 16
      %v1184 = vrot.slane %v1182, 4
      %v1185 = vshll.u32 %v825, 16
      %v1187 = vrot.slane %v1185, 5
      %v1188 = vor.u32 %v1184, %v1187
      %v1189 = vrot.slane %v1188, 4
      %v1191 = vshll.u32 %v826, 16
      %v1193 = vrot.slane %v1191, 5
      %v1194 = vsel %vm232, %v1189, %v1193
      %v1195 = vshrl.u32 %v826, 16
      %v1197 = vrot.slane %v1195, 4
      %v1198 = vor.u32 %v1197, %v1193
      %v1199 = vrot.slane %v1198, 4
      %v1201 = vshll.u32 %v843, 16
      %v1203 = vrot.slane %v1201, 5
      %v1204 = vsel %vm232, %v1199, %v1203
      %v1206 = vshrl.u32 %v827, 16
      %v1208 = vrot.slane %v1206, 4
      %v1209 = vshll.u32 %v827, 16
      %v1211 = vrot.slane %v1209, 5
      %v1212 = vor.u32 %v1208, %v1211
      %v1213 = vrot.slane %v1212, 4
      %v1215 = vshll.u32 %v828, 16
      %v1217 = vrot.slane %v1215, 5
      %v1218 = vsel %vm232, %v1213, %v1217
      %v1219 = vshrl.u32 %v828, 16
      %v1221 = vrot.slane %v1219, 4
      %v1222 = vor.u32 %v1221, %v1217
      %v1223 = vrot.slane %v1222, 4
      %v1225 = vshll.u32 %v844, 16
      %v1227 = vrot.slane %v1225, 5
      %v1228 = vsel %vm232, %v1223, %v1227
      %v1229 = vld [vmem:[%s796] sm:$0xe]
      %v1230 = vld [vmem:[%s796 + $0xc] sm:$0xe]
      %v1231 = vld [vmem:[%s796 + $0x18] sm:$0xe]
      %v1232 = vld [vmem:[%s796 + $0x24] sm:$0xe]
      %v1233 = vld [vmem:[%s796 + $0x30] sm:$0xe]
      %v1234 = vld [vmem:[%s796 + $0x3c] sm:$0xe]
      %v1235 = vld [vmem:[%s796 + $0x48] sm:$0xe]
      %v1236 = vld [vmem:[%s796 + $0x54] sm:$0xe]
      %v1237 = vld [vmem:[%s796 + $0x60] sm:$0xe]
      %v1238 = vld [vmem:[%s796 + $0x6c] sm:$0xe]
      %v1239 = vld [vmem:[%s796 + $0x78] sm:$0xe]
      %v1240 = vld [vmem:[%s796 + $0x84] sm:$0xe]
      %v1241 = vld [vmem:[%s796 + $0x90] sm:$0xe]
      %v1242 = vld [vmem:[%s796 + $0x9c] sm:$0xe]
      %v1243 = vld [vmem:[%s796 + $0xa8] sm:$0xe]
      %v1244 = vld [vmem:[%s796 + $0xb4] sm:$0xe]
      %v1293 = vrot.slane %v1229, 5
      %v1294 = vrot.slane %v1293, 4
      %v1295 = vrot.slane %v798, 5
      %v1296 = vsel %vm683, %v1294, %v1295
      %v1297 = vrot.slane %v1295, 4
      %v1298 = vrot.slane %v829, 5
      %v1299 = vsel %vm683, %v1297, %v1298
      %v1300 = vrot.slane %v1230, 5
      %v1301 = vrot.slane %v1300, 4
      %v1302 = vrot.slane %v800, 5
      %v1303 = vsel %vm683, %v1301, %v1302
      %v1304 = vrot.slane %v1302, 4
      %v1305 = vrot.slane %v830, 5
      %v1306 = vsel %vm683, %v1304, %v1305
      %v1307 = vrot.slane %v1231, 5
      %v1308 = vrot.slane %v1307, 4
      %v1309 = vrot.slane %v802, 5
      %v1310 = vsel %vm683, %v1308, %v1309
      %v1311 = vrot.slane %v1309, 4
      %v1312 = vrot.slane %v831, 5
      %v1313 = vsel %vm683, %v1311, %v1312
      %v1314 = vrot.slane %v1232, 5
      %v1315 = vrot.slane %v1314, 4
      %v1316 = vrot.slane %v804, 5
      %v1317 = vsel %vm683, %v1315, %v1316
      %v1318 = vrot.slane %v1316, 4
      %v1319 = vrot.slane %v832, 5
      %v1320 = vsel %vm683, %v1318, %v1319
      %v1321 = vrot.slane %v1233, 5
      %v1322 = vrot.slane %v1321, 4
      %v1323 = vrot.slane %v806, 5
      %v1324 = vsel %vm683, %v1322, %v1323
      %v1325 = vrot.slane %v1323, 4
      %v1326 = vrot.slane %v833, 5
      %v1327 = vsel %vm683, %v1325, %v1326
      %v1328 = vrot.slane %v1234, 5
      %v1329 = vrot.slane %v1328, 4
      %v1330 = vrot.slane %v808, 5
      %v1331 = vsel %vm683, %v1329, %v1330
      %v1332 = vrot.slane %v1330, 4
      %v1333 = vrot.slane %v834, 5
      %v1334 = vsel %vm683, %v1332, %v1333
      %v1335 = vrot.slane %v1235, 5
      %v1336 = vrot.slane %v1335, 4
      %v1337 = vrot.slane %v810, 5
      %v1338 = vsel %vm683, %v1336, %v1337
      %v1339 = vrot.slane %v1337, 4
      %v1340 = vrot.slane %v835, 5
      %v1341 = vsel %vm683, %v1339, %v1340
      %v1342 = vrot.slane %v1236, 5
      %v1343 = vrot.slane %v1342, 4
      %v1344 = vrot.slane %v812, 5
      %v1345 = vsel %vm683, %v1343, %v1344
      %v1346 = vrot.slane %v1344, 4
      %v1347 = vrot.slane %v836, 5
      %v1348 = vsel %vm683, %v1346, %v1347
      %v1349 = vrot.slane %v1237, 5
      %v1350 = vrot.slane %v1349, 4
      %v1351 = vrot.slane %v814, 5
      %v1352 = vsel %vm683, %v1350, %v1351
      %v1353 = vrot.slane %v1351, 4
      %v1354 = vrot.slane %v837, 5
      %v1355 = vsel %vm683, %v1353, %v1354
      %v1356 = vrot.slane %v1238, 5
      %v1357 = vrot.slane %v1356, 4
      %v1358 = vrot.slane %v816, 5
      %v1359 = vsel %vm683, %v1357, %v1358
      %v1360 = vrot.slane %v1358, 4
      %v1361 = vrot.slane %v838, 5
      %v1362 = vsel %vm683, %v1360, %v1361
      %v1363 = vrot.slane %v1239, 5
      %v1364 = vrot.slane %v1363, 4
      %v1365 = vrot.slane %v818, 5
      %v1366 = vsel %vm683, %v1364, %v1365
      %v1367 = vrot.slane %v1365, 4
      %v1368 = vrot.slane %v839, 5
      %v1369 = vsel %vm683, %v1367, %v1368
      %v1370 = vrot.slane %v1240, 5
      %v1371 = vrot.slane %v1370, 4
      %v1372 = vrot.slane %v820, 5
      %v1373 = vsel %vm683, %v1371, %v1372
      %v1374 = vrot.slane %v1372, 4
      %v1375 = vrot.slane %v840, 5
      %v1376 = vsel %vm683, %v1374, %v1375
      %v1377 = vrot.slane %v1241, 5
      %v1378 = vrot.slane %v1377, 4
      %v1379 = vrot.slane %v822, 5
      %v1380 = vsel %vm683, %v1378, %v1379
      %v1381 = vrot.slane %v1379, 4
      %v1382 = vrot.slane %v841, 5
      %v1383 = vsel %vm683, %v1381, %v1382
      %v1384 = vrot.slane %v1242, 5
      %v1385 = vrot.slane %v1384, 4
      %v1386 = vrot.slane %v824, 5
      %v1387 = vsel %vm683, %v1385, %v1386
      %v1388 = vrot.slane %v1386, 4
      %v1389 = vrot.slane %v842, 5
      %v1390 = vsel %vm683, %v1388, %v1389
      %v1391 = vrot.slane %v1243, 5
      %v1392 = vrot.slane %v1391, 4
      %v1393 = vrot.slane %v826, 5
      %v1394 = vsel %vm683, %v1392, %v1393
      %v1395 = vrot.slane %v1393, 4
      %v1396 = vrot.slane %v843, 5
      %v1397 = vsel %vm683, %v1395, %v1396
      %v1398 = vrot.slane %v1244, 5
      %v1399 = vrot.slane %v1398, 4
      %v1400 = vrot.slane %v828, 5
      %v1401 = vsel %vm683, %v1399, %v1400
      %v1402 = vrot.slane %v1400, 4
      %v1403 = vrot.slane %v844, 5
      %v1404 = vsel %vm683, %v1402, %v1403
      %s1405 = scalar_lea.vmem %s172, 24
      %v1406 = vld [vmem:[%s1405] sm:$0xf]
      %v1407 = vld [vmem:[%s1405 + $0x4] sm:$0xf]
      %v1408 = vld [vmem:[%s1405 + $0xc] sm:$0xf]
      %v1409 = vld [vmem:[%s1405 + $0x10] sm:$0xf]
      %v1410 = vld [vmem:[%s1405 + $0x18] sm:$0xf]
      %v1411 = vld [vmem:[%s1405 + $0x1c] sm:$0xf]
      %v1412 = vld [vmem:[%s1405 + $0x24] sm:$0xf]
      %v1413 = vld [vmem:[%s1405 + $0x28] sm:$0xf]
      %v1414 = vld [vmem:[%s1405 + $0x30] sm:$0xf]
      %v1415 = vld [vmem:[%s1405 + $0x34] sm:$0xf]
      %v1416 = vld [vmem:[%s1405 + $0x3c] sm:$0xf]
      %v1417 = vld [vmem:[%s1405 + $0x40] sm:$0xf]
      %v1418 = vld [vmem:[%s1405 + $0x48] sm:$0xf]
      %v1419 = vld [vmem:[%s1405 + $0x4c] sm:$0xf]
      %v1420 = vld [vmem:[%s1405 + $0x54] sm:$0xf]
      %v1421 = vld [vmem:[%s1405 + $0x58] sm:$0xf]
      %v1422 = vld [vmem:[%s1405 + $0x60] sm:$0xf]
      %v1423 = vld [vmem:[%s1405 + $0x64] sm:$0xf]
      %v1424 = vld [vmem:[%s1405 + $0x6c] sm:$0xf]
      %v1425 = vld [vmem:[%s1405 + $0x70] sm:$0xf]
      %v1426 = vld [vmem:[%s1405 + $0x78] sm:$0xf]
      %v1427 = vld [vmem:[%s1405 + $0x7c] sm:$0xf]
      %v1428 = vld [vmem:[%s1405 + $0x84] sm:$0xf]
      %v1429 = vld [vmem:[%s1405 + $0x88] sm:$0xf]
      %v1430 = vld [vmem:[%s1405 + $0x90] sm:$0xf]
      %v1431 = vld [vmem:[%s1405 + $0x94] sm:$0xf]
      %v1432 = vld [vmem:[%s1405 + $0x9c] sm:$0xf]
      %v1433 = vld [vmem:[%s1405 + $0xa0] sm:$0xf]
      %v1434 = vld [vmem:[%s1405 + $0xa8] sm:$0xf]
      %v1435 = vld [vmem:[%s1405 + $0xac] sm:$0xf]
      %v1436 = vld [vmem:[%s1405 + $0xb4] sm:$0xf]
      %v1437 = vld [vmem:[%s1405 + $0xb8] sm:$0xf]
      %v1438 = vld [vmem:[%s1405 + $0x8] sm:$0x1]
      %v1439 = vld [vmem:[%s1405 + $0x14] sm:$0x1]
      %v1440 = vld [vmem:[%s1405 + $0x20] sm:$0x1]
      %v1441 = vld [vmem:[%s1405 + $0x2c] sm:$0x1]
      %v1442 = vld [vmem:[%s1405 + $0x38] sm:$0x1]
      %v1443 = vld [vmem:[%s1405 + $0x44] sm:$0x1]
      %v1444 = vld [vmem:[%s1405 + $0x50] sm:$0x1]
      %v1445 = vld [vmem:[%s1405 + $0x5c] sm:$0x1]
      %v1446 = vld [vmem:[%s1405 + $0x68] sm:$0x1]
      %v1447 = vld [vmem:[%s1405 + $0x74] sm:$0x1]
      %v1448 = vld [vmem:[%s1405 + $0x80] sm:$0x1]
      %v1449 = vld [vmem:[%s1405 + $0x8c] sm:$0x1]
      %v1450 = vld [vmem:[%s1405 + $0x98] sm:$0x1]
      %v1451 = vld [vmem:[%s1405 + $0xa4] sm:$0x1]
      %v1452 = vld [vmem:[%s1405 + $0xb0] sm:$0x1]
      %v1453 = vld [vmem:[%s1405 + $0xbc] sm:$0x1]
      %v1455 = vshrl.u32 %v1406, 16
      %v1457 = vrot.slane %v1455, 4
      %v1458 = vshll.u32 %v1406, 16
      %v1460 = vrot.slane %v1458, 5
      %v1461 = vor.u32 %v1457, %v1460
      %v1462 = vrot.slane %v1461, 4
      %v1464 = vshll.u32 %v1407, 16
      %v1466 = vrot.slane %v1464, 5
      %v1467 = vsel %vm232, %v1462, %v1466
      %v1468 = vshrl.u32 %v1407, 16
      %v1470 = vrot.slane %v1468, 4
      %v1471 = vor.u32 %v1470, %v1466
      %v1472 = vrot.slane %v1471, 4
      %v1474 = vshll.u32 %v1438, 16
      %v1476 = vrot.slane %v1474, 5
      %v1477 = vsel %vm232, %v1472, %v1476
      %v1479 = vshrl.u32 %v1408, 16
      %v1481 = vrot.slane %v1479, 4
      %v1482 = vshll.u32 %v1408, 16
      %v1484 = vrot.slane %v1482, 5
      %v1485 = vor.u32 %v1481, %v1484
      %v1486 = vrot.slane %v1485, 4
      %v1488 = vshll.u32 %v1409, 16
      %v1490 = vrot.slane %v1488, 5
      %v1491 = vsel %vm232, %v1486, %v1490
      %v1492 = vshrl.u32 %v1409, 16
      %v1494 = vrot.slane %v1492, 4
      %v1495 = vor.u32 %v1494, %v1490
      %v1496 = vrot.slane %v1495, 4
      %v1498 = vshll.u32 %v1439, 16
      %v1500 = vrot.slane %v1498, 5
      %v1501 = vsel %vm232, %v1496, %v1500
      %v1503 = vshrl.u32 %v1410, 16
      %v1505 = vrot.slane %v1503, 4
      %v1506 = vshll.u32 %v1410, 16
      %v1508 = vrot.slane %v1506, 5
      %v1509 = vor.u32 %v1505, %v1508
      %v1510 = vrot.slane %v1509, 4
      %v1512 = vshll.u32 %v1411, 16
      %v1514 = vrot.slane %v1512, 5
      %v1515 = vsel %vm232, %v1510, %v1514
      %v1516 = vshrl.u32 %v1411, 16
      %v1518 = vrot.slane %v1516, 4
      %v1519 = vor.u32 %v1518, %v1514
      %v1520 = vrot.slane %v1519, 4
      %v1522 = vshll.u32 %v1440, 16
      %v1524 = vrot.slane %v1522, 5
      %v1525 = vsel %vm232, %v1520, %v1524
      %v1527 = vshrl.u32 %v1412, 16
      %v1529 = vrot.slane %v1527, 4
      %v1530 = vshll.u32 %v1412, 16
      %v1532 = vrot.slane %v1530, 5
      %v1533 = vor.u32 %v1529, %v1532
      %v1534 = vrot.slane %v1533, 4
      %v1536 = vshll.u32 %v1413, 16
      %v1538 = vrot.slane %v1536, 5
      %v1539 = vsel %vm232, %v1534, %v1538
      %v1540 = vshrl.u32 %v1413, 16
      %v1542 = vrot.slane %v1540, 4
      %v1543 = vor.u32 %v1542, %v1538
      %v1544 = vrot.slane %v1543, 4
      %v1546 = vshll.u32 %v1441, 16
      %v1548 = vrot.slane %v1546, 5
      %v1549 = vsel %vm232, %v1544, %v1548
      %v1551 = vshrl.u32 %v1414, 16
      %v1553 = vrot.slane %v1551, 4
      %v1554 = vshll.u32 %v1414, 16
      %v1556 = vrot.slane %v1554, 5
      %v1557 = vor.u32 %v1553, %v1556
      %v1558 = vrot.slane %v1557, 4
      %v1560 = vshll.u32 %v1415, 16
      %v1562 = vrot.slane %v1560, 5
      %v1563 = vsel %vm232, %v1558, %v1562
      %v1564 = vshrl.u32 %v1415, 16
      %v1566 = vrot.slane %v1564, 4
      %v1567 = vor.u32 %v1566, %v1562
      %v1568 = vrot.slane %v1567, 4
      %v1570 = vshll.u32 %v1442, 16
      %v1572 = vrot.slane %v1570, 5
      %v1573 = vsel %vm232, %v1568, %v1572
      %v1575 = vshrl.u32 %v1416, 16
      %v1577 = vrot.slane %v1575, 4
      %v1578 = vshll.u32 %v1416, 16
      %v1580 = vrot.slane %v1578, 5
      %v1581 = vor.u32 %v1577, %v1580
      %v1582 = vrot.slane %v1581, 4
      %v1584 = vshll.u32 %v1417, 16
      %v1586 = vrot.slane %v1584, 5
      %v1587 = vsel %vm232, %v1582, %v1586
      %v1588 = vshrl.u32 %v1417, 16
      %v1590 = vrot.slane %v1588, 4
      %v1591 = vor.u32 %v1590, %v1586
      %v1592 = vrot.slane %v1591, 4
      %v1594 = vshll.u32 %v1443, 16
      %v1596 = vrot.slane %v1594, 5
      %v1597 = vsel %vm232, %v1592, %v1596
      %v1599 = vshrl.u32 %v1418, 16
      %v1601 = vrot.slane %v1599, 4
      %v1602 = vshll.u32 %v1418, 16
      %v1604 = vrot.slane %v1602, 5
      %v1605 = vor.u32 %v1601, %v1604
      %v1606 = vrot.slane %v1605, 4
      %v1608 = vshll.u32 %v1419, 16
      %v1610 = vrot.slane %v1608, 5
      %v1611 = vsel %vm232, %v1606, %v1610
      %v1612 = vshrl.u32 %v1419, 16
      %v1614 = vrot.slane %v1612, 4
      %v1615 = vor.u32 %v1614, %v1610
      %v1616 = vrot.slane %v1615, 4
      %v1618 = vshll.u32 %v1444, 16
      %v1620 = vrot.slane %v1618, 5
      %v1621 = vsel %vm232, %v1616, %v1620
      %v1623 = vshrl.u32 %v1420, 16
      %v1625 = vrot.slane %v1623, 4
      %v1626 = vshll.u32 %v1420, 16
      %v1628 = vrot.slane %v1626, 5
      %v1629 = vor.u32 %v1625, %v1628
      %v1630 = vrot.slane %v1629, 4
      %v1632 = vshll.u32 %v1421, 16
      %v1634 = vrot.slane %v1632, 5
      %v1635 = vsel %vm232, %v1630, %v1634
      %v1636 = vshrl.u32 %v1421, 16
      %v1638 = vrot.slane %v1636, 4
      %v1639 = vor.u32 %v1638, %v1634
      %v1640 = vrot.slane %v1639, 4
      %v1642 = vshll.u32 %v1445, 16
      %v1644 = vrot.slane %v1642, 5
      %v1645 = vsel %vm232, %v1640, %v1644
      %v1647 = vshrl.u32 %v1422, 16
      %v1649 = vrot.slane %v1647, 4
      %v1650 = vshll.u32 %v1422, 16
      %v1652 = vrot.slane %v1650, 5
      %v1653 = vor.u32 %v1649, %v1652
      %v1654 = vrot.slane %v1653, 4
      %v1656 = vshll.u32 %v1423, 16
      %v1658 = vrot.slane %v1656, 5
      %v1659 = vsel %vm232, %v1654, %v1658
      %v1660 = vshrl.u32 %v1423, 16
      %v1662 = vrot.slane %v1660, 4
      %v1663 = vor.u32 %v1662, %v1658
      %v1664 = vrot.slane %v1663, 4
      %v1666 = vshll.u32 %v1446, 16
      %v1668 = vrot.slane %v1666, 5
      %v1669 = vsel %vm232, %v1664, %v1668
      %v1671 = vshrl.u32 %v1424, 16
      %v1673 = vrot.slane %v1671, 4
      %v1674 = vshll.u32 %v1424, 16
      %v1676 = vrot.slane %v1674, 5
      %v1677 = vor.u32 %v1673, %v1676
      %v1678 = vrot.slane %v1677, 4
      %v1680 = vshll.u32 %v1425, 16
      %v1682 = vrot.slane %v1680, 5
      %v1683 = vsel %vm232, %v1678, %v1682
      %v1684 = vshrl.u32 %v1425, 16
      %v1686 = vrot.slane %v1684, 4
      %v1687 = vor.u32 %v1686, %v1682
      %v1688 = vrot.slane %v1687, 4
      %v1690 = vshll.u32 %v1447, 16
      %v1692 = vrot.slane %v1690, 5
      %v1693 = vsel %vm232, %v1688, %v1692
      %v1695 = vshrl.u32 %v1426, 16
      %v1697 = vrot.slane %v1695, 4
      %v1698 = vshll.u32 %v1426, 16
      %v1700 = vrot.slane %v1698, 5
      %v1701 = vor.u32 %v1697, %v1700
      %v1702 = vrot.slane %v1701, 4
      %v1704 = vshll.u32 %v1427, 16
      %v1706 = vrot.slane %v1704, 5
      %v1707 = vsel %vm232, %v1702, %v1706
      %v1708 = vshrl.u32 %v1427, 16
      %v1710 = vrot.slane %v1708, 4
      %v1711 = vor.u32 %v1710, %v1706
      %v1712 = vrot.slane %v1711, 4
      %v1714 = vshll.u32 %v1448, 16
      %v1716 = vrot.slane %v1714, 5
      %v1717 = vsel %vm232, %v1712, %v1716
      %v1719 = vshrl.u32 %v1428, 16
      %v1721 = vrot.slane %v1719, 4
      %v1722 = vshll.u32 %v1428, 16
      %v1724 = vrot.slane %v1722, 5
      %v1725 = vor.u32 %v1721, %v1724
      %v1726 = vrot.slane %v1725, 4
      %v1728 = vshll.u32 %v1429, 16
      %v1730 = vrot.slane %v1728, 5
      %v1731 = vsel %vm232, %v1726, %v1730
      %v1732 = vshrl.u32 %v1429, 16
      %v1734 = vrot.slane %v1732, 4
      %v1735 = vor.u32 %v1734, %v1730
      %v1736 = vrot.slane %v1735, 4
      %v1738 = vshll.u32 %v1449, 16
      %v1740 = vrot.slane %v1738, 5
      %v1741 = vsel %vm232, %v1736, %v1740
      %v1743 = vshrl.u32 %v1430, 16
      %v1745 = vrot.slane %v1743, 4
      %v1746 = vshll.u32 %v1430, 16
      %v1748 = vrot.slane %v1746, 5
      %v1749 = vor.u32 %v1745, %v1748
      %v1750 = vrot.slane %v1749, 4
      %v1752 = vshll.u32 %v1431, 16
      %v1754 = vrot.slane %v1752, 5
      %v1755 = vsel %vm232, %v1750, %v1754
      %v1756 = vshrl.u32 %v1431, 16
      %v1758 = vrot.slane %v1756, 4
      %v1759 = vor.u32 %v1758, %v1754
      %v1760 = vrot.slane %v1759, 4
      %v1762 = vshll.u32 %v1450, 16
      %v1764 = vrot.slane %v1762, 5
      %v1765 = vsel %vm232, %v1760, %v1764
      %v1767 = vshrl.u32 %v1432, 16
      %v1769 = vrot.slane %v1767, 4
      %v1770 = vshll.u32 %v1432, 16
      %v1772 = vrot.slane %v1770, 5
      %v1773 = vor.u32 %v1769, %v1772
      %v1774 = vrot.slane %v1773, 4
      %v1776 = vshll.u32 %v1433, 16
      %v1778 = vrot.slane %v1776, 5
      %v1779 = vsel %vm232, %v1774, %v1778
      %v1780 = vshrl.u32 %v1433, 16
      %v1782 = vrot.slane %v1780, 4
      %v1783 = vor.u32 %v1782, %v1778
      %v1784 = vrot.slane %v1783, 4
      %v1786 = vshll.u32 %v1451, 16
      %v1788 = vrot.slane %v1786, 5
      %v1789 = vsel %vm232, %v1784, %v1788
      %v1791 = vshrl.u32 %v1434, 16
      %v1793 = vrot.slane %v1791, 4
      %v1794 = vshll.u32 %v1434, 16
      %v1796 = vrot.slane %v1794, 5
      %v1797 = vor.u32 %v1793, %v1796
      %v1798 = vrot.slane %v1797, 4
      %v1800 = vshll.u32 %v1435, 16
      %v1802 = vrot.slane %v1800, 5
      %v1803 = vsel %vm232, %v1798, %v1802
      %v1804 = vshrl.u32 %v1435, 16
      %v1806 = vrot.slane %v1804, 4
      %v1807 = vor.u32 %v1806, %v1802
      %v1808 = vrot.slane %v1807, 4
      %v1810 = vshll.u32 %v1452, 16
      %v1812 = vrot.slane %v1810, 5
      %v1813 = vsel %vm232, %v1808, %v1812
      %v1815 = vshrl.u32 %v1436, 16
      %v1817 = vrot.slane %v1815, 4
      %v1818 = vshll.u32 %v1436, 16
      %v1820 = vrot.slane %v1818, 5
      %v1821 = vor.u32 %v1817, %v1820
      %v1822 = vrot.slane %v1821, 4
      %v1824 = vshll.u32 %v1437, 16
      %v1826 = vrot.slane %v1824, 5
      %v1827 = vsel %vm232, %v1822, %v1826
      %v1828 = vshrl.u32 %v1437, 16
      %v1830 = vrot.slane %v1828, 4
      %v1831 = vor.u32 %v1830, %v1826
      %v1832 = vrot.slane %v1831, 4
      %v1834 = vshll.u32 %v1453, 16
      %v1836 = vrot.slane %v1834, 5
      %v1837 = vsel %vm232, %v1832, %v1836
      %v1838 = vld [vmem:[%s1405] sm:$0xe]
      %v1839 = vld [vmem:[%s1405 + $0xc] sm:$0xe]
      %v1840 = vld [vmem:[%s1405 + $0x18] sm:$0xe]
      %v1841 = vld [vmem:[%s1405 + $0x24] sm:$0xe]
      %v1842 = vld [vmem:[%s1405 + $0x30] sm:$0xe]
      %v1843 = vld [vmem:[%s1405 + $0x3c] sm:$0xe]
      %v1844 = vld [vmem:[%s1405 + $0x48] sm:$0xe]
      %v1845 = vld [vmem:[%s1405 + $0x54] sm:$0xe]
      %v1846 = vld [vmem:[%s1405 + $0x60] sm:$0xe]
      %v1847 = vld [vmem:[%s1405 + $0x6c] sm:$0xe]
      %v1848 = vld [vmem:[%s1405 + $0x78] sm:$0xe]
      %v1849 = vld [vmem:[%s1405 + $0x84] sm:$0xe]
      %v1850 = vld [vmem:[%s1405 + $0x90] sm:$0xe]
      %v1851 = vld [vmem:[%s1405 + $0x9c] sm:$0xe]
      %v1852 = vld [vmem:[%s1405 + $0xa8] sm:$0xe]
      %v1853 = vld [vmem:[%s1405 + $0xb4] sm:$0xe]
      %v1902 = vrot.slane %v1838, 5
      %v1903 = vrot.slane %v1902, 4
      %v1904 = vrot.slane %v1407, 5
      %v1905 = vsel %vm683, %v1903, %v1904
      %v1906 = vrot.slane %v1904, 4
      %v1907 = vrot.slane %v1438, 5
      %v1908 = vsel %vm683, %v1906, %v1907
      %v1909 = vrot.slane %v1839, 5
      %v1910 = vrot.slane %v1909, 4
      %v1911 = vrot.slane %v1409, 5
      %v1912 = vsel %vm683, %v1910, %v1911
      %v1913 = vrot.slane %v1911, 4
      %v1914 = vrot.slane %v1439, 5
      %v1915 = vsel %vm683, %v1913, %v1914
      %v1916 = vrot.slane %v1840, 5
      %v1917 = vrot.slane %v1916, 4
      %v1918 = vrot.slane %v1411, 5
      %v1919 = vsel %vm683, %v1917, %v1918
      %v1920 = vrot.slane %v1918, 4
      %v1921 = vrot.slane %v1440, 5
      %v1922 = vsel %vm683, %v1920, %v1921
      %v1923 = vrot.slane %v1841, 5
      %v1924 = vrot.slane %v1923, 4
      %v1925 = vrot.slane %v1413, 5
      %v1926 = vsel %vm683, %v1924, %v1925
      %v1927 = vrot.slane %v1925, 4
      %v1928 = vrot.slane %v1441, 5
      %v1929 = vsel %vm683, %v1927, %v1928
      %v1930 = vrot.slane %v1842, 5
      %v1931 = vrot.slane %v1930, 4
      %v1932 = vrot.slane %v1415, 5
      %v1933 = vsel %vm683, %v1931, %v1932
      %v1934 = vrot.slane %v1932, 4
      %v1935 = vrot.slane %v1442, 5
      %v1936 = vsel %vm683, %v1934, %v1935
      %v1937 = vrot.slane %v1843, 5
      %v1938 = vrot.slane %v1937, 4
      %v1939 = vrot.slane %v1417, 5
      %v1940 = vsel %vm683, %v1938, %v1939
      %v1941 = vrot.slane %v1939, 4
      %v1942 = vrot.slane %v1443, 5
      %v1943 = vsel %vm683, %v1941, %v1942
      %v1944 = vrot.slane %v1844, 5
      %v1945 = vrot.slane %v1944, 4
      %v1946 = vrot.slane %v1419, 5
      %v1947 = vsel %vm683, %v1945, %v1946
      %v1948 = vrot.slane %v1946, 4
      %v1949 = vrot.slane %v1444, 5
      %v1950 = vsel %vm683, %v1948, %v1949
      %v1951 = vrot.slane %v1845, 5
      %v1952 = vrot.slane %v1951, 4
      %v1953 = vrot.slane %v1421, 5
      %v1954 = vsel %vm683, %v1952, %v1953
      %v1955 = vrot.slane %v1953, 4
      %v1956 = vrot.slane %v1445, 5
      %v1957 = vsel %vm683, %v1955, %v1956
      %v1958 = vrot.slane %v1846, 5
      %v1959 = vrot.slane %v1958, 4
      %v1960 = vrot.slane %v1423, 5
      %v1961 = vsel %vm683, %v1959, %v1960
      %v1962 = vrot.slane %v1960, 4
      %v1963 = vrot.slane %v1446, 5
      %v1964 = vsel %vm683, %v1962, %v1963
      %v1965 = vrot.slane %v1847, 5
      %v1966 = vrot.slane %v1965, 4
      %v1967 = vrot.slane %v1425, 5
      %v1968 = vsel %vm683, %v1966, %v1967
      %v1969 = vrot.slane %v1967, 4
      %v1970 = vrot.slane %v1447, 5
      %v1971 = vsel %vm683, %v1969, %v1970
      %v1972 = vrot.slane %v1848, 5
      %v1973 = vrot.slane %v1972, 4
      %v1974 = vrot.slane %v1427, 5
      %v1975 = vsel %vm683, %v1973, %v1974
      %v1976 = vrot.slane %v1974, 4
      %v1977 = vrot.slane %v1448, 5
      %v1978 = vsel %vm683, %v1976, %v1977
      %v1979 = vrot.slane %v1849, 5
      %v1980 = vrot.slane %v1979, 4
      %v1981 = vrot.slane %v1429, 5
      %v1982 = vsel %vm683, %v1980, %v1981
      %v1983 = vrot.slane %v1981, 4
      %v1984 = vrot.slane %v1449, 5
      %v1985 = vsel %vm683, %v1983, %v1984
      %v1986 = vrot.slane %v1850, 5
      %v1987 = vrot.slane %v1986, 4
      %v1988 = vrot.slane %v1431, 5
      %v1989 = vsel %vm683, %v1987, %v1988
      %v1990 = vrot.slane %v1988, 4
      %v1991 = vrot.slane %v1450, 5
      %v1992 = vsel %vm683, %v1990, %v1991
      %v1993 = vrot.slane %v1851, 5
      %v1994 = vrot.slane %v1993, 4
      %v1995 = vrot.slane %v1433, 5
      %v1996 = vsel %vm683, %v1994, %v1995
      %v1997 = vrot.slane %v1995, 4
      %v1998 = vrot.slane %v1451, 5
      %v1999 = vsel %vm683, %v1997, %v1998
      %v2000 = vrot.slane %v1852, 5
      %v2001 = vrot.slane %v2000, 4
      %v2002 = vrot.slane %v1435, 5
      %v2003 = vsel %vm683, %v2001, %v2002
      %v2004 = vrot.slane %v2002, 4
      %v2005 = vrot.slane %v1452, 5
      %v2006 = vsel %vm683, %v2004, %v2005
      %v2007 = vrot.slane %v1853, 5
      %v2008 = vrot.slane %v2007, 4
      %v2009 = vrot.slane %v1437, 5
      %v2010 = vsel %vm683, %v2008, %v2009
      %v2011 = vrot.slane %v2009, 4
      %v2012 = vrot.slane %v1453, 5
      %v2013 = vsel %vm683, %v2011, %v2012
      %v2030 = vunpack.c.l.b16 %v182
      %v2031 = vunpack.c.l.b16 %v183
      %v2032 = vunpack.c.l.b16 %v184
      %v2033 = vunpack.c.l.b16 %v185
      %v2034 = vunpack.c.l.b16 %v186
      %v2035 = vunpack.c.l.b16 %v187
      %v2036 = vunpack.c.l.b16 %v188
      %v2037 = vunpack.c.l.b16 %v189
      %v2038 = vunpack.c.l.b16 %v190
      %v2039 = vunpack.c.l.b16 %v191
      %v2040 = vunpack.c.l.b16 %v192
      %v2041 = vunpack.c.l.b16 %v193
      %v2042 = vunpack.c.l.b16 %v194
      %v2043 = vunpack.c.l.b16 %v195
      %v2044 = vunpack.c.l.b16 %v196
      %v2045 = vunpack.c.l.b16 %v197
      %v2046 = vunpack.c.l.b16 %v198
      %v2047 = vunpack.c.l.b16 %v199
      %v2048 = vunpack.c.l.b16 %v200
      %v2049 = vunpack.c.l.b16 %v201
      %v2050 = vunpack.c.l.b16 %v202
      %v2051 = vunpack.c.l.b16 %v203
      %v2052 = vunpack.c.l.b16 %v204
      %v2053 = vunpack.c.l.b16 %v205
      %v2054 = vunpack.c.l.b16 %v206
      %v2055 = vunpack.c.l.b16 %v207
      %v2056 = vunpack.c.l.b16 %v208
      %v2057 = vunpack.c.l.b16 %v209
      %v2058 = vunpack.c.l.b16 %v210
      %v2059 = vunpack.c.l.b16 %v211
      %v2060 = vunpack.c.l.b16 %v212
      %v2061 = vunpack.c.l.b16 %v213
      %v2062 = vpack.c.b16 %v2031, %v2030
      %v2063 = vpack.c.b16 %v2033, %v2032
      %v2064 = vpack.c.b16 %v2035, %v2034
      %v2065 = vpack.c.b16 %v2037, %v2036
      %v2066 = vpack.c.b16 %v2039, %v2038
      %v2067 = vpack.c.b16 %v2041, %v2040
      %v2068 = vpack.c.b16 %v2043, %v2042
      %v2069 = vpack.c.b16 %v2045, %v2044
      %v2070 = vpack.c.b16 %v2047, %v2046
      %v2071 = vpack.c.b16 %v2049, %v2048
      %v2072 = vpack.c.b16 %v2051, %v2050
      %v2073 = vpack.c.b16 %v2053, %v2052
      %v2074 = vpack.c.b16 %v2055, %v2054
      %v2075 = vpack.c.b16 %v2057, %v2056
      %v2076 = vpack.c.b16 %v2059, %v2058
      %v2077 = vpack.c.b16 %v2061, %v2060
      %v2094 = vunpack.c.l.b16 %v246
      %v2095 = vunpack.c.l.b16 %v256
      %v2096 = vunpack.c.l.b16 %v270
      %v2097 = vunpack.c.l.b16 %v280
      %v2098 = vunpack.c.l.b16 %v294
      %v2099 = vunpack.c.l.b16 %v304
      %v2100 = vunpack.c.l.b16 %v318
      %v2101 = vunpack.c.l.b16 %v328
      %v2102 = vunpack.c.l.b16 %v342
      %v2103 = vunpack.c.l.b16 %v352
      %v2104 = vunpack.c.l.b16 %v366
      %v2105 = vunpack.c.l.b16 %v376
      %v2106 = vunpack.c.l.b16 %v390
      %v2107 = vunpack.c.l.b16 %v400
      %v2108 = vunpack.c.l.b16 %v414
      %v2109 = vunpack.c.l.b16 %v424
      %v2110 = vunpack.c.l.b16 %v438
      %v2111 = vunpack.c.l.b16 %v448
      %v2112 = vunpack.c.l.b16 %v462
      %v2113 = vunpack.c.l.b16 %v472
      %v2114 = vunpack.c.l.b16 %v486
      %v2115 = vunpack.c.l.b16 %v496
      %v2116 = vunpack.c.l.b16 %v510
      %v2117 = vunpack.c.l.b16 %v520
      %v2118 = vunpack.c.l.b16 %v534
      %v2119 = vunpack.c.l.b16 %v544
      %v2120 = vunpack.c.l.b16 %v558
      %v2121 = vunpack.c.l.b16 %v568
      %v2122 = vunpack.c.l.b16 %v582
      %v2123 = vunpack.c.l.b16 %v592
      %v2124 = vunpack.c.l.b16 %v606
      %v2125 = vunpack.c.l.b16 %v616
      %v2126 = vpack.c.b16 %v2095, %v2094
      %v2127 = vpack.c.b16 %v2097, %v2096
      %v2128 = vpack.c.b16 %v2099, %v2098
      %v2129 = vpack.c.b16 %v2101, %v2100
      %v2130 = vpack.c.b16 %v2103, %v2102
      %v2131 = vpack.c.b16 %v2105, %v2104
      %v2132 = vpack.c.b16 %v2107, %v2106
      %v2133 = vpack.c.b16 %v2109, %v2108
      %v2134 = vpack.c.b16 %v2111, %v2110
      %v2135 = vpack.c.b16 %v2113, %v2112
      %v2136 = vpack.c.b16 %v2115, %v2114
      %v2137 = vpack.c.b16 %v2117, %v2116
      %v2138 = vpack.c.b16 %v2119, %v2118
      %v2139 = vpack.c.b16 %v2121, %v2120
      %v2140 = vpack.c.b16 %v2123, %v2122
      %v2141 = vpack.c.b16 %v2125, %v2124
      %v2158 = vunpack.c.l.b16 %v687
      %v2159 = vunpack.c.l.b16 %v690
      %v2160 = vunpack.c.l.b16 %v694
      %v2161 = vunpack.c.l.b16 %v697
      %v2162 = vunpack.c.l.b16 %v701
      %v2163 = vunpack.c.l.b16 %v704
      %v2164 = vunpack.c.l.b16 %v708
      %v2165 = vunpack.c.l.b16 %v711
      %v2166 = vunpack.c.l.b16 %v715
      %v2167 = vunpack.c.l.b16 %v718
      %v2168 = vunpack.c.l.b16 %v722
      %v2169 = vunpack.c.l.b16 %v725
      %v2170 = vunpack.c.l.b16 %v729
      %v2171 = vunpack.c.l.b16 %v732
      %v2172 = vunpack.c.l.b16 %v736
      %v2173 = vunpack.c.l.b16 %v739
      %v2174 = vunpack.c.l.b16 %v743
      %v2175 = vunpack.c.l.b16 %v746
      %v2176 = vunpack.c.l.b16 %v750
      %v2177 = vunpack.c.l.b16 %v753
      %v2178 = vunpack.c.l.b16 %v757
      %v2179 = vunpack.c.l.b16 %v760
      %v2180 = vunpack.c.l.b16 %v764
      %v2181 = vunpack.c.l.b16 %v767
      %v2182 = vunpack.c.l.b16 %v771
      %v2183 = vunpack.c.l.b16 %v774
      %v2184 = vunpack.c.l.b16 %v778
      %v2185 = vunpack.c.l.b16 %v781
      %v2186 = vunpack.c.l.b16 %v785
      %v2187 = vunpack.c.l.b16 %v788
      %v2188 = vunpack.c.l.b16 %v792
      %v2189 = vunpack.c.l.b16 %v795
      %v2190 = vpack.c.b16 %v2159, %v2158
      %v2191 = vpack.c.b16 %v2161, %v2160
      %v2192 = vpack.c.b16 %v2163, %v2162
      %v2193 = vpack.c.b16 %v2165, %v2164
      %v2194 = vpack.c.b16 %v2167, %v2166
      %v2195 = vpack.c.b16 %v2169, %v2168
      %v2196 = vpack.c.b16 %v2171, %v2170
      %v2197 = vpack.c.b16 %v2173, %v2172
      %v2198 = vpack.c.b16 %v2175, %v2174
      %v2199 = vpack.c.b16 %v2177, %v2176
      %v2200 = vpack.c.b16 %v2179, %v2178
      %v2201 = vpack.c.b16 %v2181, %v2180
      %v2202 = vpack.c.b16 %v2183, %v2182
      %v2203 = vpack.c.b16 %v2185, %v2184
      %v2204 = vpack.c.b16 %v2187, %v2186
      %v2205 = vpack.c.b16 %v2189, %v2188
      %v2238 = vunpack.c.l.b16 %v797
      %v2239 = vunpack.c.l.b16 %v798
      %v2240 = vunpack.c.l.b16 %v799
      %v2241 = vunpack.c.l.b16 %v800
      %v2242 = vunpack.c.l.b16 %v801
      %v2243 = vunpack.c.l.b16 %v802
      %v2244 = vunpack.c.l.b16 %v803
      %v2245 = vunpack.c.l.b16 %v804
      %v2246 = vunpack.c.l.b16 %v805
      %v2247 = vunpack.c.l.b16 %v806
      %v2248 = vunpack.c.l.b16 %v807
      %v2249 = vunpack.c.l.b16 %v808
      %v2250 = vunpack.c.l.b16 %v809
      %v2251 = vunpack.c.l.b16 %v810
      %v2252 = vunpack.c.l.b16 %v811
      %v2253 = vunpack.c.l.b16 %v812
      %v2254 = vunpack.c.l.b16 %v813
      %v2255 = vunpack.c.l.b16 %v814
      %v2256 = vunpack.c.l.b16 %v815
      %v2257 = vunpack.c.l.b16 %v816
      %v2258 = vunpack.c.l.b16 %v817
      %v2259 = vunpack.c.l.b16 %v818
      %v2260 = vunpack.c.l.b16 %v819
      %v2261 = vunpack.c.l.b16 %v820
      %v2262 = vunpack.c.l.b16 %v821
      %v2263 = vunpack.c.l.b16 %v822
      %v2264 = vunpack.c.l.b16 %v823
      %v2265 = vunpack.c.l.b16 %v824
      %v2266 = vunpack.c.l.b16 %v825
      %v2267 = vunpack.c.l.b16 %v826
      %v2268 = vunpack.c.l.b16 %v827
      %v2269 = vunpack.c.l.b16 %v828
      %v2270 = vpack.c.b16 %v2239, %v2238
      %v2271 = vpack.c.b16 %v2241, %v2240
      %v2272 = vpack.c.b16 %v2243, %v2242
      %v2273 = vpack.c.b16 %v2245, %v2244
      %v2274 = vpack.c.b16 %v2247, %v2246
      %v2275 = vpack.c.b16 %v2249, %v2248
      %v2276 = vpack.c.b16 %v2251, %v2250
      %v2277 = vpack.c.b16 %v2253, %v2252
      %v2278 = vpack.c.b16 %v2255, %v2254
      %v2279 = vpack.c.b16 %v2257, %v2256
      %v2280 = vpack.c.b16 %v2259, %v2258
      %v2281 = vpack.c.b16 %v2261, %v2260
      %v2282 = vpack.c.b16 %v2263, %v2262
      %v2283 = vpack.c.b16 %v2265, %v2264
      %v2284 = vpack.c.b16 %v2267, %v2266
      %v2285 = vpack.c.b16 %v2269, %v2268
      %v2302 = vunpack.c.l.b16 %v858
      %v2303 = vunpack.c.l.b16 %v868
      %v2304 = vunpack.c.l.b16 %v882
      %v2305 = vunpack.c.l.b16 %v892
      %v2306 = vunpack.c.l.b16 %v906
      %v2307 = vunpack.c.l.b16 %v916
      %v2308 = vunpack.c.l.b16 %v930
      %v2309 = vunpack.c.l.b16 %v940
      %v2310 = vunpack.c.l.b16 %v954
      %v2311 = vunpack.c.l.b16 %v964
      %v2312 = vunpack.c.l.b16 %v978
      %v2313 = vunpack.c.l.b16 %v988
      %v2314 = vunpack.c.l.b16 %v1002
      %v2315 = vunpack.c.l.b16 %v1012
      %v2316 = vunpack.c.l.b16 %v1026
      %v2317 = vunpack.c.l.b16 %v1036
      %v2318 = vunpack.c.l.b16 %v1050
      %v2319 = vunpack.c.l.b16 %v1060
      %v2320 = vunpack.c.l.b16 %v1074
      %v2321 = vunpack.c.l.b16 %v1084
      %v2322 = vunpack.c.l.b16 %v1098
      %v2323 = vunpack.c.l.b16 %v1108
      %v2324 = vunpack.c.l.b16 %v1122
      %v2325 = vunpack.c.l.b16 %v1132
      %v2326 = vunpack.c.l.b16 %v1146
      %v2327 = vunpack.c.l.b16 %v1156
      %v2328 = vunpack.c.l.b16 %v1170
      %v2329 = vunpack.c.l.b16 %v1180
      %v2330 = vunpack.c.l.b16 %v1194
      %v2331 = vunpack.c.l.b16 %v1204
      %v2332 = vunpack.c.l.b16 %v1218
      %v2333 = vunpack.c.l.b16 %v1228
      %v2334 = vpack.c.b16 %v2303, %v2302
      %v2335 = vpack.c.b16 %v2305, %v2304
      %v2336 = vpack.c.b16 %v2307, %v2306
      %v2337 = vpack.c.b16 %v2309, %v2308
      %v2338 = vpack.c.b16 %v2311, %v2310
      %v2339 = vpack.c.b16 %v2313, %v2312
      %v2340 = vpack.c.b16 %v2315, %v2314
      %v2341 = vpack.c.b16 %v2317, %v2316
      %v2342 = vpack.c.b16 %v2319, %v2318
      %v2343 = vpack.c.b16 %v2321, %v2320
      %v2344 = vpack.c.b16 %v2323, %v2322
      %v2345 = vpack.c.b16 %v2325, %v2324
      %v2346 = vpack.c.b16 %v2327, %v2326
      %v2347 = vpack.c.b16 %v2329, %v2328
      %v2348 = vpack.c.b16 %v2331, %v2330
      %v2349 = vpack.c.b16 %v2333, %v2332
      %v2366 = vunpack.c.l.b16 %v1296
      %v2367 = vunpack.c.l.b16 %v1299
      %v2368 = vunpack.c.l.b16 %v1303
      %v2369 = vunpack.c.l.b16 %v1306
      %v2370 = vunpack.c.l.b16 %v1310
      %v2371 = vunpack.c.l.b16 %v1313
      %v2372 = vunpack.c.l.b16 %v1317
      %v2373 = vunpack.c.l.b16 %v1320
      %v2374 = vunpack.c.l.b16 %v1324
      %v2375 = vunpack.c.l.b16 %v1327
      %v2376 = vunpack.c.l.b16 %v1331
      %v2377 = vunpack.c.l.b16 %v1334
      %v2378 = vunpack.c.l.b16 %v1338
      %v2379 = vunpack.c.l.b16 %v1341
      %v2380 = vunpack.c.l.b16 %v1345
      %v2381 = vunpack.c.l.b16 %v1348
      %v2382 = vunpack.c.l.b16 %v1352
      %v2383 = vunpack.c.l.b16 %v1355
      %v2384 = vunpack.c.l.b16 %v1359
      %v2385 = vunpack.c.l.b16 %v1362
      %v2386 = vunpack.c.l.b16 %v1366
      %v2387 = vunpack.c.l.b16 %v1369
      %v2388 = vunpack.c.l.b16 %v1373
      %v2389 = vunpack.c.l.b16 %v1376
      %v2390 = vunpack.c.l.b16 %v1380
      %v2391 = vunpack.c.l.b16 %v1383
      %v2392 = vunpack.c.l.b16 %v1387
      %v2393 = vunpack.c.l.b16 %v1390
      %v2394 = vunpack.c.l.b16 %v1394
      %v2395 = vunpack.c.l.b16 %v1397
      %v2396 = vunpack.c.l.b16 %v1401
      %v2397 = vunpack.c.l.b16 %v1404
      %v2398 = vpack.c.b16 %v2367, %v2366
      %v2399 = vpack.c.b16 %v2369, %v2368
      %v2400 = vpack.c.b16 %v2371, %v2370
      %v2401 = vpack.c.b16 %v2373, %v2372
      %v2402 = vpack.c.b16 %v2375, %v2374
      %v2403 = vpack.c.b16 %v2377, %v2376
      %v2404 = vpack.c.b16 %v2379, %v2378
      %v2405 = vpack.c.b16 %v2381, %v2380
      %v2406 = vpack.c.b16 %v2383, %v2382
      %v2407 = vpack.c.b16 %v2385, %v2384
      %v2408 = vpack.c.b16 %v2387, %v2386
      %v2409 = vpack.c.b16 %v2389, %v2388
      %v2410 = vpack.c.b16 %v2391, %v2390
      %v2411 = vpack.c.b16 %v2393, %v2392
      %v2412 = vpack.c.b16 %v2395, %v2394
      %v2413 = vpack.c.b16 %v2397, %v2396
      %v2446 = vunpack.c.l.b16 %v1406
      %v2447 = vunpack.c.l.b16 %v1407
      %v2448 = vunpack.c.l.b16 %v1408
      %v2449 = vunpack.c.l.b16 %v1409
      %v2450 = vunpack.c.l.b16 %v1410
      %v2451 = vunpack.c.l.b16 %v1411
      %v2452 = vunpack.c.l.b16 %v1412
      %v2453 = vunpack.c.l.b16 %v1413
      %v2454 = vunpack.c.l.b16 %v1414
      %v2455 = vunpack.c.l.b16 %v1415
      %v2456 = vunpack.c.l.b16 %v1416
      %v2457 = vunpack.c.l.b16 %v1417
      %v2458 = vunpack.c.l.b16 %v1418
      %v2459 = vunpack.c.l.b16 %v1419
      %v2460 = vunpack.c.l.b16 %v1420
      %v2461 = vunpack.c.l.b16 %v1421
      %v2462 = vunpack.c.l.b16 %v1422
      %v2463 = vunpack.c.l.b16 %v1423
      %v2464 = vunpack.c.l.b16 %v1424
      %v2465 = vunpack.c.l.b16 %v1425
      %v2466 = vunpack.c.l.b16 %v1426
      %v2467 = vunpack.c.l.b16 %v1427
      %v2468 = vunpack.c.l.b16 %v1428
      %v2469 = vunpack.c.l.b16 %v1429
      %v2470 = vunpack.c.l.b16 %v1430
      %v2471 = vunpack.c.l.b16 %v1431
      %v2472 = vunpack.c.l.b16 %v1432
      %v2473 = vunpack.c.l.b16 %v1433
      %v2474 = vunpack.c.l.b16 %v1434
      %v2475 = vunpack.c.l.b16 %v1435
      %v2476 = vunpack.c.l.b16 %v1436
      %v2477 = vunpack.c.l.b16 %v1437
      %v2478 = vpack.c.b16 %v2447, %v2446
      %v2479 = vpack.c.b16 %v2449, %v2448
      %v2480 = vpack.c.b16 %v2451, %v2450
      %v2481 = vpack.c.b16 %v2453, %v2452
      %v2482 = vpack.c.b16 %v2455, %v2454
      %v2483 = vpack.c.b16 %v2457, %v2456
      %v2484 = vpack.c.b16 %v2459, %v2458
      %v2485 = vpack.c.b16 %v2461, %v2460
      %v2486 = vpack.c.b16 %v2463, %v2462
      %v2487 = vpack.c.b16 %v2465, %v2464
      %v2488 = vpack.c.b16 %v2467, %v2466
      %v2489 = vpack.c.b16 %v2469, %v2468
      %v2490 = vpack.c.b16 %v2471, %v2470
      %v2491 = vpack.c.b16 %v2473, %v2472
      %v2492 = vpack.c.b16 %v2475, %v2474
      %v2493 = vpack.c.b16 %v2477, %v2476
      %v2510 = vunpack.c.l.b16 %v1467
      %v2511 = vunpack.c.l.b16 %v1477
      %v2512 = vunpack.c.l.b16 %v1491
      %v2513 = vunpack.c.l.b16 %v1501
      %v2514 = vunpack.c.l.b16 %v1515
      %v2515 = vunpack.c.l.b16 %v1525
      %v2516 = vunpack.c.l.b16 %v1539
      %v2517 = vunpack.c.l.b16 %v1549
      %v2518 = vunpack.c.l.b16 %v1563
      %v2519 = vunpack.c.l.b16 %v1573
      %v2520 = vunpack.c.l.b16 %v1587
      %v2521 = vunpack.c.l.b16 %v1597
      %v2522 = vunpack.c.l.b16 %v1611
      %v2523 = vunpack.c.l.b16 %v1621
      %v2524 = vunpack.c.l.b16 %v1635
      %v2525 = vunpack.c.l.b16 %v1645
      %v2526 = vunpack.c.l.b16 %v1659
      %v2527 = vunpack.c.l.b16 %v1669
      %v2528 = vunpack.c.l.b16 %v1683
      %v2529 = vunpack.c.l.b16 %v1693
      %v2530 = vunpack.c.l.b16 %v1707
      %v2531 = vunpack.c.l.b16 %v1717
      %v2532 = vunpack.c.l.b16 %v1731
      %v2533 = vunpack.c.l.b16 %v1741
      %v2534 = vunpack.c.l.b16 %v1755
      %v2535 = vunpack.c.l.b16 %v1765
      %v2536 = vunpack.c.l.b16 %v1779
      %v2537 = vunpack.c.l.b16 %v1789
      %v2538 = vunpack.c.l.b16 %v1803
      %v2539 = vunpack.c.l.b16 %v1813
      %v2540 = vunpack.c.l.b16 %v1827
      %v2541 = vunpack.c.l.b16 %v1837
      %v2542 = vpack.c.b16 %v2511, %v2510
      %v2543 = vpack.c.b16 %v2513, %v2512
      %v2544 = vpack.c.b16 %v2515, %v2514
      %v2545 = vpack.c.b16 %v2517, %v2516
      %v2546 = vpack.c.b16 %v2519, %v2518
      %v2547 = vpack.c.b16 %v2521, %v2520
      %v2548 = vpack.c.b16 %v2523, %v2522
      %v2549 = vpack.c.b16 %v2525, %v2524
      %v2550 = vpack.c.b16 %v2527, %v2526
      %v2551 = vpack.c.b16 %v2529, %v2528
      %v2552 = vpack.c.b16 %v2531, %v2530
      %v2553 = vpack.c.b16 %v2533, %v2532
      %v2554 = vpack.c.b16 %v2535, %v2534
      %v2555 = vpack.c.b16 %v2537, %v2536
      %v2556 = vpack.c.b16 %v2539, %v2538
      %v2557 = vpack.c.b16 %v2541, %v2540
      %v2574 = vunpack.c.l.b16 %v1905
      %v2575 = vunpack.c.l.b16 %v1908
      %v2576 = vunpack.c.l.b16 %v1912
      %v2577 = vunpack.c.l.b16 %v1915
      %v2578 = vunpack.c.l.b16 %v1919
      %v2579 = vunpack.c.l.b16 %v1922
      %v2580 = vunpack.c.l.b16 %v1926
      %v2581 = vunpack.c.l.b16 %v1929
      %v2582 = vunpack.c.l.b16 %v1933
      %v2583 = vunpack.c.l.b16 %v1936
      %v2584 = vunpack.c.l.b16 %v1940
      %v2585 = vunpack.c.l.b16 %v1943
      %v2586 = vunpack.c.l.b16 %v1947
      %v2587 = vunpack.c.l.b16 %v1950
      %v2588 = vunpack.c.l.b16 %v1954
      %v2589 = vunpack.c.l.b16 %v1957
      %v2590 = vunpack.c.l.b16 %v1961
      %v2591 = vunpack.c.l.b16 %v1964
      %v2592 = vunpack.c.l.b16 %v1968
      %v2593 = vunpack.c.l.b16 %v1971
      %v2594 = vunpack.c.l.b16 %v1975
      %v2595 = vunpack.c.l.b16 %v1978
      %v2596 = vunpack.c.l.b16 %v1982
      %v2597 = vunpack.c.l.b16 %v1985
      %v2598 = vunpack.c.l.b16 %v1989
      %v2599 = vunpack.c.l.b16 %v1992
      %v2600 = vunpack.c.l.b16 %v1996
      %v2601 = vunpack.c.l.b16 %v1999
      %v2602 = vunpack.c.l.b16 %v2003
      %v2603 = vunpack.c.l.b16 %v2006
      %v2604 = vunpack.c.l.b16 %v2010
      %v2605 = vunpack.c.l.b16 %v2013
      %v2606 = vpack.c.b16 %v2575, %v2574
      %v2607 = vpack.c.b16 %v2577, %v2576
      %v2608 = vpack.c.b16 %v2579, %v2578
      %v2609 = vpack.c.b16 %v2581, %v2580
      %v2610 = vpack.c.b16 %v2583, %v2582
      %v2611 = vpack.c.b16 %v2585, %v2584
      %v2612 = vpack.c.b16 %v2587, %v2586
      %v2613 = vpack.c.b16 %v2589, %v2588
      %v2614 = vpack.c.b16 %v2591, %v2590
      %v2615 = vpack.c.b16 %v2593, %v2592
      %v2616 = vpack.c.b16 %v2595, %v2594
      %v2617 = vpack.c.b16 %v2597, %v2596
      %v2618 = vpack.c.b16 %v2599, %v2598
      %v2619 = vpack.c.b16 %v2601, %v2600
      %v2620 = vpack.c.b16 %v2603, %v2602
      %v2621 = vpack.c.b16 %v2605, %v2604
      %v2638 = vld [vmem:[%s1] sm:$0xf]
      %v2639 = vld [vmem:[%s1 + $0x4] sm:$0xf]
      %v2640 = vld [vmem:[%s1 + $0x8] sm:$0xf]
      %v2641 = vld [vmem:[%s1 + $0xc] sm:$0xf]
      %v2642 = vld [vmem:[%s1 + $0x10] sm:$0xf]
      %v2643 = vld [vmem:[%s1 + $0x14] sm:$0xf]
      %v2644 = vld [vmem:[%s1 + $0x18] sm:$0xf]
      %v2645 = vld [vmem:[%s1 + $0x1c] sm:$0xf]
      %v2646 = vld [vmem:[%s1 + $0x20] sm:$0xf]
      %v2647 = vld [vmem:[%s1 + $0x24] sm:$0xf]
      %v2648 = vld [vmem:[%s1 + $0x28] sm:$0xf]
      %v2649 = vld [vmem:[%s1 + $0x2c] sm:$0xf]
      %v2650 = vld [vmem:[%s1 + $0x30] sm:$0xf]
      %v2651 = vld [vmem:[%s1 + $0x34] sm:$0xf]
      %v2652 = vld [vmem:[%s1 + $0x38] sm:$0xf]
      %v2653 = vld [vmem:[%s1 + $0x3c] sm:$0xf]
      %v2654 = vld [vmem:[%s1 + $0x40] sm:$0xf]
      %v2655 = vld [vmem:[%s1 + $0x44] sm:$0xf]
      %v2656 = vld [vmem:[%s1 + $0x48] sm:$0xf]
      %v2657 = vld [vmem:[%s1 + $0x4c] sm:$0xf]
      %v2658 = vld [vmem:[%s1 + $0x50] sm:$0xf]
      %v2659 = vld [vmem:[%s1 + $0x54] sm:$0xf]
      %v2660 = vld [vmem:[%s1 + $0x58] sm:$0xf]
      %v2661 = vld [vmem:[%s1 + $0x5c] sm:$0xf]
      %v2662 = vld [vmem:[%s1 + $0x60] sm:$0xf]
      %v2663 = vld [vmem:[%s1 + $0x64] sm:$0xf]
      %v2664 = vld [vmem:[%s1 + $0x68] sm:$0xf]
      %v2665 = vld [vmem:[%s1 + $0x6c] sm:$0xf]
      %v2666 = vld [vmem:[%s1 + $0x70] sm:$0xf]
      %v2667 = vld [vmem:[%s1 + $0x74] sm:$0xf]
      %v2668 = vld [vmem:[%s1 + $0x78] sm:$0xf]
      %v2669 = vld [vmem:[%s1 + $0x7c] sm:$0xf]
      %v2670 = vld [vmem:[%s1 + $0x80] sm:$0xf]
      %v2671 = vld [vmem:[%s1 + $0x84] sm:$0xf]
      %v2672 = vld [vmem:[%s1 + $0x88] sm:$0xf]
      %v2673 = vld [vmem:[%s1 + $0x8c] sm:$0xf]
      %v2674 = vld [vmem:[%s1 + $0x90] sm:$0xf]
      %v2675 = vld [vmem:[%s1 + $0x94] sm:$0xf]
      %v2676 = vld [vmem:[%s1 + $0x98] sm:$0xf]
      %v2677 = vld [vmem:[%s1 + $0x9c] sm:$0xf]
      %v2678 = vld [vmem:[%s1 + $0xa0] sm:$0xf]
      %v2679 = vld [vmem:[%s1 + $0xa4] sm:$0xf]
      %v2680 = vld [vmem:[%s1 + $0xa8] sm:$0xf]
      %v2681 = vld [vmem:[%s1 + $0xac] sm:$0xf]
      %v2682 = vld [vmem:[%s1 + $0xb0] sm:$0xf]
      %v2683 = vld [vmem:[%s1 + $0xb4] sm:$0xf]
      %v2684 = vld [vmem:[%s1 + $0xb8] sm:$0xf]
      %v2685 = vld [vmem:[%s1 + $0xbc] sm:$0xf]
      %v2686 = vld [vmem:[%s1 + $0xc0] sm:$0xf]
      %v2687 = vld [vmem:[%s1 + $0xc4] sm:$0xf]
      %v2688 = vld [vmem:[%s1 + $0xc8] sm:$0xf]
      %v2689 = vld [vmem:[%s1 + $0xcc] sm:$0xf]
      %v2690 = vld [vmem:[%s1 + $0xd0] sm:$0xf]
      %v2691 = vld [vmem:[%s1 + $0xd4] sm:$0xf]
      %v2692 = vld [vmem:[%s1 + $0xd8] sm:$0xf]
      %v2693 = vld [vmem:[%s1 + $0xdc] sm:$0xf]
      %v2694 = vld [vmem:[%s1 + $0xe0] sm:$0xf]
      %v2695 = vld [vmem:[%s1 + $0xe4] sm:$0xf]
      %v2696 = vld [vmem:[%s1 + $0xe8] sm:$0xf]
      %v2697 = vld [vmem:[%s1 + $0xec] sm:$0xf]
      %v2698 = vld [vmem:[%s1 + $0xf0] sm:$0xf]
      %v2699 = vld [vmem:[%s1 + $0xf4] sm:$0xf]
      %v2700 = vld [vmem:[%s1 + $0xf8] sm:$0xf]
      %v2701 = vld [vmem:[%s1 + $0xfc] sm:$0xf]
      %v2702 = vld [vmem:[%s1 + $0x100] sm:$0xf]
      %v2703 = vld [vmem:[%s1 + $0x104] sm:$0xf]
      %v2704 = vld [vmem:[%s1 + $0x108] sm:$0xf]
      %v2705 = vld [vmem:[%s1 + $0x10c] sm:$0xf]
      %v2706 = vld [vmem:[%s1 + $0x110] sm:$0xf]
      %v2707 = vld [vmem:[%s1 + $0x114] sm:$0xf]
      %v2708 = vld [vmem:[%s1 + $0x118] sm:$0xf]
      %v2709 = vld [vmem:[%s1 + $0x11c] sm:$0xf]
      %v2710 = vld [vmem:[%s1 + $0x120] sm:$0xf]
      %v2711 = vld [vmem:[%s1 + $0x124] sm:$0xf]
      %v2712 = vld [vmem:[%s1 + $0x128] sm:$0xf]
      %v2713 = vld [vmem:[%s1 + $0x12c] sm:$0xf]
      %v2714 = vld [vmem:[%s1 + $0x130] sm:$0xf]
      %v2715 = vld [vmem:[%s1 + $0x134] sm:$0xf]
      %v2716 = vld [vmem:[%s1 + $0x138] sm:$0xf]
      %v2717 = vld [vmem:[%s1 + $0x13c] sm:$0xf]
      %v2718 = vld [vmem:[%s1 + $0x140] sm:$0xf]
      %v2719 = vld [vmem:[%s1 + $0x144] sm:$0xf]
      %v2720 = vld [vmem:[%s1 + $0x148] sm:$0xf]
      %v2721 = vld [vmem:[%s1 + $0x14c] sm:$0xf]
      %v2722 = vld [vmem:[%s1 + $0x150] sm:$0xf]
      %v2723 = vld [vmem:[%s1 + $0x154] sm:$0xf]
      %v2724 = vld [vmem:[%s1 + $0x158] sm:$0xf]
      %v2725 = vld [vmem:[%s1 + $0x15c] sm:$0xf]
      %v2726 = vld [vmem:[%s1 + $0x160] sm:$0xf]
      %v2727 = vld [vmem:[%s1 + $0x164] sm:$0xf]
      %v2728 = vld [vmem:[%s1 + $0x168] sm:$0xf]
      %v2729 = vld [vmem:[%s1 + $0x16c] sm:$0xf]
      %v2730 = vld [vmem:[%s1 + $0x170] sm:$0xf]
      %v2731 = vld [vmem:[%s1 + $0x174] sm:$0xf]
      %v2732 = vld [vmem:[%s1 + $0x178] sm:$0xf]
      %v2733 = vld [vmem:[%s1 + $0x17c] sm:$0xf]
      %v2734 = vld [vmem:[%s1 + $0x180] sm:$0xf]
      %v2735 = vld [vmem:[%s1 + $0x184] sm:$0xf]
      %v2736 = vld [vmem:[%s1 + $0x188] sm:$0xf]
      %v2737 = vld [vmem:[%s1 + $0x18c] sm:$0xf]
      %v2738 = vld [vmem:[%s1 + $0x190] sm:$0xf]
      %v2739 = vld [vmem:[%s1 + $0x194] sm:$0xf]
      %v2740 = vld [vmem:[%s1 + $0x198] sm:$0xf]
      %v2741 = vld [vmem:[%s1 + $0x19c] sm:$0xf]
      %v2742 = vld [vmem:[%s1 + $0x1a0] sm:$0xf]
      %v2743 = vld [vmem:[%s1 + $0x1a4] sm:$0xf]
      %v2744 = vld [vmem:[%s1 + $0x1a8] sm:$0xf]
      %v2745 = vld [vmem:[%s1 + $0x1ac] sm:$0xf]
      %v2746 = vld [vmem:[%s1 + $0x1b0] sm:$0xf]
      %v2747 = vld [vmem:[%s1 + $0x1b4] sm:$0xf]
      %v2748 = vld [vmem:[%s1 + $0x1b8] sm:$0xf]
      %v2749 = vld [vmem:[%s1 + $0x1bc] sm:$0xf]
      %v2750 = vld [vmem:[%s1 + $0x1c0] sm:$0xf]
      %v2751 = vld [vmem:[%s1 + $0x1c4] sm:$0xf]
      %v2752 = vld [vmem:[%s1 + $0x1c8] sm:$0xf]
      %v2753 = vld [vmem:[%s1 + $0x1cc] sm:$0xf]
      %v2754 = vld [vmem:[%s1 + $0x1d0] sm:$0xf]
      %v2755 = vld [vmem:[%s1 + $0x1d4] sm:$0xf]
      %v2756 = vld [vmem:[%s1 + $0x1d8] sm:$0xf]
      %v2757 = vld [vmem:[%s1 + $0x1dc] sm:$0xf]
      %v2758 = vld [vmem:[%s1 + $0x1e0] sm:$0xf]
      %v2759 = vld [vmem:[%s1 + $0x1e4] sm:$0xf]
      %v2760 = vld [vmem:[%s1 + $0x1e8] sm:$0xf]
      %v2761 = vld [vmem:[%s1 + $0x1ec] sm:$0xf]
      %v2762 = vld [vmem:[%s1 + $0x1f0] sm:$0xf]
      %v2763 = vld [vmem:[%s1 + $0x1f4] sm:$0xf]
      %v2764 = vld [vmem:[%s1 + $0x1f8] sm:$0xf]
      %v2765 = vld [vmem:[%s1 + $0x1fc] sm:$0xf]
      %v2766 = vld [vmem:[%s1 + $0x200] sm:$0xf]
      %v2767 = vld [vmem:[%s1 + $0x204] sm:$0xf]
      %v2768 = vld [vmem:[%s1 + $0x208] sm:$0xf]
      %v2769 = vld [vmem:[%s1 + $0x20c] sm:$0xf]
      %v2770 = vld [vmem:[%s1 + $0x210] sm:$0xf]
      %v2771 = vld [vmem:[%s1 + $0x214] sm:$0xf]
      %v2772 = vld [vmem:[%s1 + $0x218] sm:$0xf]
      %v2773 = vld [vmem:[%s1 + $0x21c] sm:$0xf]
      %v2774 = vld [vmem:[%s1 + $0x220] sm:$0xf]
      %v2775 = vld [vmem:[%s1 + $0x224] sm:$0xf]
      %v2776 = vld [vmem:[%s1 + $0x228] sm:$0xf]
      %v2777 = vld [vmem:[%s1 + $0x22c] sm:$0xf]
      %v2778 = vld [vmem:[%s1 + $0x230] sm:$0xf]
      %v2779 = vld [vmem:[%s1 + $0x234] sm:$0xf]
      %v2780 = vld [vmem:[%s1 + $0x238] sm:$0xf]
      %v2781 = vld [vmem:[%s1 + $0x23c] sm:$0xf]
      %v2926 = vunpack.c.l.b16 %v2638
      %v2927 = vunpack.c.l.b16 %v2639
      %v2928 = vunpack.c.l.b16 %v2640
      %v2929 = vunpack.c.l.b16 %v2641
      %v2930 = vunpack.c.l.b16 %v2642
      %v2931 = vunpack.c.l.b16 %v2643
      %v2932 = vunpack.c.l.b16 %v2644
      %v2933 = vunpack.c.l.b16 %v2645
      %v2934 = vunpack.c.l.b16 %v2646
      %v2935 = vunpack.c.l.b16 %v2647
      %v2936 = vunpack.c.l.b16 %v2648
      %v2937 = vunpack.c.l.b16 %v2649
      %v2938 = vunpack.c.l.b16 %v2650
      %v2939 = vunpack.c.l.b16 %v2651
      %v2940 = vunpack.c.l.b16 %v2652
      %v2941 = vunpack.c.l.b16 %v2653
      %v2942 = vunpack.c.l.b16 %v2654
      %v2943 = vunpack.c.l.b16 %v2655
      %v2944 = vunpack.c.l.b16 %v2656
      %v2945 = vunpack.c.l.b16 %v2657
      %v2946 = vunpack.c.l.b16 %v2658
      %v2947 = vunpack.c.l.b16 %v2659
      %v2948 = vunpack.c.l.b16 %v2660
      %v2949 = vunpack.c.l.b16 %v2661
      %v2950 = vunpack.c.l.b16 %v2662
      %v2951 = vunpack.c.l.b16 %v2663
      %v2952 = vunpack.c.l.b16 %v2664
      %v2953 = vunpack.c.l.b16 %v2665
      %v2954 = vunpack.c.l.b16 %v2666
      %v2955 = vunpack.c.l.b16 %v2667
      %v2956 = vunpack.c.l.b16 %v2668
      %v2957 = vunpack.c.l.b16 %v2669
      %v2958 = vunpack.c.l.b16 %v2670
      %v2959 = vunpack.c.l.b16 %v2671
      %v2960 = vunpack.c.l.b16 %v2672
      %v2961 = vunpack.c.l.b16 %v2673
      %v2962 = vunpack.c.l.b16 %v2674
      %v2963 = vunpack.c.l.b16 %v2675
      %v2964 = vunpack.c.l.b16 %v2676
      %v2965 = vunpack.c.l.b16 %v2677
      %v2966 = vunpack.c.l.b16 %v2678
      %v2967 = vunpack.c.l.b16 %v2679
      %v2968 = vunpack.c.l.b16 %v2680
      %v2969 = vunpack.c.l.b16 %v2681
      %v2970 = vunpack.c.l.b16 %v2682
      %v2971 = vunpack.c.l.b16 %v2683
      %v2972 = vunpack.c.l.b16 %v2684
      %v2973 = vunpack.c.l.b16 %v2685
      %v2974 = vunpack.c.l.b16 %v2686
      %v2975 = vunpack.c.l.b16 %v2687
      %v2976 = vunpack.c.l.b16 %v2688
      %v2977 = vunpack.c.l.b16 %v2689
      %v2978 = vunpack.c.l.b16 %v2690
      %v2979 = vunpack.c.l.b16 %v2691
      %v2980 = vunpack.c.l.b16 %v2692
      %v2981 = vunpack.c.l.b16 %v2693
      %v2982 = vunpack.c.l.b16 %v2694
      %v2983 = vunpack.c.l.b16 %v2695
      %v2984 = vunpack.c.l.b16 %v2696
      %v2985 = vunpack.c.l.b16 %v2697
      %v2986 = vunpack.c.l.b16 %v2698
      %v2987 = vunpack.c.l.b16 %v2699
      %v2988 = vunpack.c.l.b16 %v2700
      %v2989 = vunpack.c.l.b16 %v2701
      %v2990 = vunpack.c.l.b16 %v2702
      %v2991 = vunpack.c.l.b16 %v2703
      %v2992 = vunpack.c.l.b16 %v2704
      %v2993 = vunpack.c.l.b16 %v2705
      %v2994 = vunpack.c.l.b16 %v2706
      %v2995 = vunpack.c.l.b16 %v2707
      %v2996 = vunpack.c.l.b16 %v2708
      %v2997 = vunpack.c.l.b16 %v2709
      %v2998 = vunpack.c.l.b16 %v2710
      %v2999 = vunpack.c.l.b16 %v2711
      %v3000 = vunpack.c.l.b16 %v2712
      %v3001 = vunpack.c.l.b16 %v2713
      %v3002 = vunpack.c.l.b16 %v2714
      %v3003 = vunpack.c.l.b16 %v2715
      %v3004 = vunpack.c.l.b16 %v2716
      %v3005 = vunpack.c.l.b16 %v2717
      %v3006 = vunpack.c.l.b16 %v2718
      %v3007 = vunpack.c.l.b16 %v2719
      %v3008 = vunpack.c.l.b16 %v2720
      %v3009 = vunpack.c.l.b16 %v2721
      %v3010 = vunpack.c.l.b16 %v2722
      %v3011 = vunpack.c.l.b16 %v2723
      %v3012 = vunpack.c.l.b16 %v2724
      %v3013 = vunpack.c.l.b16 %v2725
      %v3014 = vunpack.c.l.b16 %v2726
      %v3015 = vunpack.c.l.b16 %v2727
      %v3016 = vunpack.c.l.b16 %v2728
      %v3017 = vunpack.c.l.b16 %v2729
      %v3018 = vunpack.c.l.b16 %v2730
      %v3019 = vunpack.c.l.b16 %v2731
      %v3020 = vunpack.c.l.b16 %v2732
      %v3021 = vunpack.c.l.b16 %v2733
      %v3022 = vunpack.c.l.b16 %v2734
      %v3023 = vunpack.c.l.b16 %v2735
      %v3024 = vunpack.c.l.b16 %v2736
      %v3025 = vunpack.c.l.b16 %v2737
      %v3026 = vunpack.c.l.b16 %v2738
      %v3027 = vunpack.c.l.b16 %v2739
      %v3028 = vunpack.c.l.b16 %v2740
      %v3029 = vunpack.c.l.b16 %v2741
      %v3030 = vunpack.c.l.b16 %v2742
      %v3031 = vunpack.c.l.b16 %v2743
      %v3032 = vunpack.c.l.b16 %v2744
      %v3033 = vunpack.c.l.b16 %v2745
      %v3034 = vunpack.c.l.b16 %v2746
      %v3035 = vunpack.c.l.b16 %v2747
      %v3036 = vunpack.c.l.b16 %v2748
      %v3037 = vunpack.c.l.b16 %v2749
      %v3038 = vunpack.c.l.b16 %v2750
      %v3039 = vunpack.c.l.b16 %v2751
      %v3040 = vunpack.c.l.b16 %v2752
      %v3041 = vunpack.c.l.b16 %v2753
      %v3042 = vunpack.c.l.b16 %v2754
      %v3043 = vunpack.c.l.b16 %v2755
      %v3044 = vunpack.c.l.b16 %v2756
      %v3045 = vunpack.c.l.b16 %v2757
      %v3046 = vunpack.c.l.b16 %v2758
      %v3047 = vunpack.c.l.b16 %v2759
      %v3048 = vunpack.c.l.b16 %v2760
      %v3049 = vunpack.c.l.b16 %v2761
      %v3050 = vunpack.c.l.b16 %v2762
      %v3051 = vunpack.c.l.b16 %v2763
      %v3052 = vunpack.c.l.b16 %v2764
      %v3053 = vunpack.c.l.b16 %v2765
      %v3054 = vunpack.c.l.b16 %v2766
      %v3055 = vunpack.c.l.b16 %v2767
      %v3056 = vunpack.c.l.b16 %v2768
      %v3057 = vunpack.c.l.b16 %v2769
      %v3058 = vunpack.c.l.b16 %v2770
      %v3059 = vunpack.c.l.b16 %v2771
      %v3060 = vunpack.c.l.b16 %v2772
      %v3061 = vunpack.c.l.b16 %v2773
      %v3062 = vunpack.c.l.b16 %v2774
      %v3063 = vunpack.c.l.b16 %v2775
      %v3064 = vunpack.c.l.b16 %v2776
      %v3065 = vunpack.c.l.b16 %v2777
      %v3066 = vunpack.c.l.b16 %v2778
      %v3067 = vunpack.c.l.b16 %v2779
      %v3068 = vunpack.c.l.b16 %v2780
      %v3069 = vunpack.c.l.b16 %v2781
      %v3070 = vpack.c.b16 %v2927, %v2926
      %v3071 = vpack.c.b16 %v2929, %v2928
      %v3072 = vpack.c.b16 %v2931, %v2930
      %v3073 = vpack.c.b16 %v2933, %v2932
      %v3074 = vpack.c.b16 %v2935, %v2934
      %v3075 = vpack.c.b16 %v2937, %v2936
      %v3076 = vpack.c.b16 %v2939, %v2938
      %v3077 = vpack.c.b16 %v2941, %v2940
      %v3078 = vpack.c.b16 %v2943, %v2942
      %v3079 = vpack.c.b16 %v2945, %v2944
      %v3080 = vpack.c.b16 %v2947, %v2946
      %v3081 = vpack.c.b16 %v2949, %v2948
      %v3082 = vpack.c.b16 %v2951, %v2950
      %v3083 = vpack.c.b16 %v2953, %v2952
      %v3084 = vpack.c.b16 %v2955, %v2954
      %v3085 = vpack.c.b16 %v2957, %v2956
      %v3086 = vpack.c.b16 %v2959, %v2958
      %v3087 = vpack.c.b16 %v2961, %v2960
      %v3088 = vpack.c.b16 %v2963, %v2962
      %v3089 = vpack.c.b16 %v2965, %v2964
      %v3090 = vpack.c.b16 %v2967, %v2966
      %v3091 = vpack.c.b16 %v2969, %v2968
      %v3092 = vpack.c.b16 %v2971, %v2970
      %v3093 = vpack.c.b16 %v2973, %v2972
      %v3094 = vpack.c.b16 %v2975, %v2974
      %v3095 = vpack.c.b16 %v2977, %v2976
      %v3096 = vpack.c.b16 %v2979, %v2978
      %v3097 = vpack.c.b16 %v2981, %v2980
      %v3098 = vpack.c.b16 %v2983, %v2982
      %v3099 = vpack.c.b16 %v2985, %v2984
      %v3100 = vpack.c.b16 %v2987, %v2986
      %v3101 = vpack.c.b16 %v2989, %v2988
      %v3102 = vpack.c.b16 %v2991, %v2990
      %v3103 = vpack.c.b16 %v2993, %v2992
      %v3104 = vpack.c.b16 %v2995, %v2994
      %v3105 = vpack.c.b16 %v2997, %v2996
      %v3106 = vpack.c.b16 %v2999, %v2998
      %v3107 = vpack.c.b16 %v3001, %v3000
      %v3108 = vpack.c.b16 %v3003, %v3002
      %v3109 = vpack.c.b16 %v3005, %v3004
      %v3110 = vpack.c.b16 %v3007, %v3006
      %v3111 = vpack.c.b16 %v3009, %v3008
      %v3112 = vpack.c.b16 %v3011, %v3010
      %v3113 = vpack.c.b16 %v3013, %v3012
      %v3114 = vpack.c.b16 %v3015, %v3014
      %v3115 = vpack.c.b16 %v3017, %v3016
      %v3116 = vpack.c.b16 %v3019, %v3018
      %v3117 = vpack.c.b16 %v3021, %v3020
      %v3118 = vpack.c.b16 %v3023, %v3022
      %v3119 = vpack.c.b16 %v3025, %v3024
      %v3120 = vpack.c.b16 %v3027, %v3026
      %v3121 = vpack.c.b16 %v3029, %v3028
      %v3122 = vpack.c.b16 %v3031, %v3030
      %v3123 = vpack.c.b16 %v3033, %v3032
      %v3124 = vpack.c.b16 %v3035, %v3034
      %v3125 = vpack.c.b16 %v3037, %v3036
      %v3126 = vpack.c.b16 %v3039, %v3038
      %v3127 = vpack.c.b16 %v3041, %v3040
      %v3128 = vpack.c.b16 %v3043, %v3042
      %v3129 = vpack.c.b16 %v3045, %v3044
      %v3130 = vpack.c.b16 %v3047, %v3046
      %v3131 = vpack.c.b16 %v3049, %v3048
      %v3132 = vpack.c.b16 %v3051, %v3050
      %v3133 = vpack.c.b16 %v3053, %v3052
      %v3134 = vpack.c.b16 %v3055, %v3054
      %v3135 = vpack.c.b16 %v3057, %v3056
      %v3136 = vpack.c.b16 %v3059, %v3058
      %v3137 = vpack.c.b16 %v3061, %v3060
      %v3138 = vpack.c.b16 %v3063, %v3062
      %v3139 = vpack.c.b16 %v3065, %v3064
      %v3140 = vpack.c.b16 %v3067, %v3066
      %v3141 = vpack.c.b16 %v3069, %v3068
      %3214 = vmatpush.bf16.msra.mxu0 %v3077
      %3215 = vmatpush.bf16.msra.mxu0 %v3076
      %3216 = vmatpush.bf16.msra.mxu0 %v3075
      %3217 = vmatpush.bf16.msra.mxu0 %v3074
      %3218 = vmatpush.bf16.msra.mxu0 %v3073
      %3219 = vmatpush.bf16.msra.mxu0 %v3072
      %3220 = vmatpush.bf16.msra.mxu0 %v3071
      %3221 = vmatpush.bf16.msra.mxu0 %v3070
      %3222 = vmatmul.bf16.gmra.mxu0 %v2062
      %v3223 = vpop.f32.mrf.mxu0
      %v3224 = vadd.f32 0.0, %v3223
      %v3225 = vpop.f32.mrf.mxu0
      %v3226 = vadd.f32 0.0, %v3225
      %3227 = vmatmul.bf16.gmra.mxu0 %v2063
      %v3228 = vpop.f32.mrf.mxu0
      %v3229 = vadd.f32 0.0, %v3228
      %v3230 = vpop.f32.mrf.mxu0
      %v3231 = vadd.f32 0.0, %v3230
      %3232 = vmatmul.bf16.gmra.mxu0 %v2064
      %v3233 = vpop.f32.mrf.mxu0
      %v3234 = vadd.f32 0.0, %v3233
      %v3235 = vpop.f32.mrf.mxu0
      %v3236 = vadd.f32 0.0, %v3235
      %3237 = vmatmul.bf16.gmra.mxu0 %v2065
      %v3238 = vpop.f32.mrf.mxu0
      %v3239 = vadd.f32 0.0, %v3238
      %v3240 = vpop.f32.mrf.mxu0
      %v3241 = vadd.f32 0.0, %v3240
      %3242 = vmatmul.bf16.gmra.mxu0 %v2066
      %v3243 = vpop.f32.mrf.mxu0
      %v3244 = vadd.f32 0.0, %v3243
      %v3245 = vpop.f32.mrf.mxu0
      %v3246 = vadd.f32 0.0, %v3245
      %3247 = vmatmul.bf16.gmra.mxu0 %v2067
      %v3248 = vpop.f32.mrf.mxu0
      %v3249 = vadd.f32 0.0, %v3248
      %v3250 = vpop.f32.mrf.mxu0
      %v3251 = vadd.f32 0.0, %v3250
      %3252 = vmatmul.bf16.gmra.mxu0 %v2068
      %v3253 = vpop.f32.mrf.mxu0
      %v3254 = vadd.f32 0.0, %v3253
      %v3255 = vpop.f32.mrf.mxu0
      %v3256 = vadd.f32 0.0, %v3255
      %3257 = vmatmul.bf16.gmra.mxu0 %v2069
      %v3258 = vpop.f32.mrf.mxu0
      %v3259 = vadd.f32 0.0, %v3258
      %v3260 = vpop.f32.mrf.mxu0
      %v3261 = vadd.f32 0.0, %v3260
      %3262 = vmatmul.bf16.gmra.mxu0 %v2070
      %v3263 = vpop.f32.mrf.mxu0
      %v3264 = vadd.f32 0.0, %v3263
      %v3265 = vpop.f32.mrf.mxu0
      %v3266 = vadd.f32 0.0, %v3265
      %3267 = vmatmul.bf16.gmra.mxu0 %v2071
      %v3268 = vpop.f32.mrf.mxu0
      %v3269 = vadd.f32 0.0, %v3268
      %v3270 = vpop.f32.mrf.mxu0
      %v3271 = vadd.f32 0.0, %v3270
      %3272 = vmatmul.bf16.gmra.mxu0 %v2072
      %v3273 = vpop.f32.mrf.mxu0
      %v3274 = vadd.f32 0.0, %v3273
      %v3275 = vpop.f32.mrf.mxu0
      %v3276 = vadd.f32 0.0, %v3275
      %3277 = vmatmul.bf16.gmra.mxu0 %v2073
      %v3278 = vpop.f32.mrf.mxu0
      %v3279 = vadd.f32 0.0, %v3278
      %v3280 = vpop.f32.mrf.mxu0
      %v3281 = vadd.f32 0.0, %v3280
      %3282 = vmatmul.bf16.gmra.mxu0 %v2074
      %v3283 = vpop.f32.mrf.mxu0
      %v3284 = vadd.f32 0.0, %v3283
      %v3285 = vpop.f32.mrf.mxu0
      %v3286 = vadd.f32 0.0, %v3285
      %3287 = vmatmul.bf16.gmra.mxu0 %v2075
      %v3288 = vpop.f32.mrf.mxu0
      %v3289 = vadd.f32 0.0, %v3288
      %v3290 = vpop.f32.mrf.mxu0
      %v3291 = vadd.f32 0.0, %v3290
      %3292 = vmatmul.bf16.gmra.mxu0 %v2076
      %v3293 = vpop.f32.mrf.mxu0
      %v3294 = vadd.f32 0.0, %v3293
      %v3295 = vpop.f32.mrf.mxu0
      %v3296 = vadd.f32 0.0, %v3295
      %3297 = vmatmul.bf16.gmra.mxu0 %v2077
      %v3298 = vpop.f32.mrf.mxu0
      %v3299 = vadd.f32 0.0, %v3298
      %v3300 = vpop.f32.mrf.mxu0
      %v3301 = vadd.f32 0.0, %v3300
      %3302 = vdwg.mxu0
      %3303 = vmatpush.bf16.msra.mxu0 %v3085
      %3304 = vmatpush.bf16.msra.mxu0 %v3084
      %3305 = vmatpush.bf16.msra.mxu0 %v3083
      %3306 = vmatpush.bf16.msra.mxu0 %v3082
      %3307 = vmatpush.bf16.msra.mxu0 %v3081
      %3308 = vmatpush.bf16.msra.mxu0 %v3080
      %3309 = vmatpush.bf16.msra.mxu0 %v3079
      %3310 = vmatpush.bf16.msra.mxu0 %v3078
      %3311 = vmatmul.bf16.gmra.mxu0 %v2126
      %v3312 = vpop.f32.mrf.mxu0
      %v3313 = vadd.f32 %v3224, %v3312
      %v3314 = vpop.f32.mrf.mxu0
      %v3315 = vadd.f32 %v3226, %v3314
      %3316 = vmatmul.bf16.gmra.mxu0 %v2127
      %v3317 = vpop.f32.mrf.mxu0
      %v3318 = vadd.f32 %v3229, %v3317
      %v3319 = vpop.f32.mrf.mxu0
      %v3320 = vadd.f32 %v3231, %v3319
      %3321 = vmatmul.bf16.gmra.mxu0 %v2128
      %v3322 = vpop.f32.mrf.mxu0
      %v3323 = vadd.f32 %v3234, %v3322
      %v3324 = vpop.f32.mrf.mxu0
      %v3325 = vadd.f32 %v3236, %v3324
      %3326 = vmatmul.bf16.gmra.mxu0 %v2129
      %v3327 = vpop.f32.mrf.mxu0
      %v3328 = vadd.f32 %v3239, %v3327
      %v3329 = vpop.f32.mrf.mxu0
      %v3330 = vadd.f32 %v3241, %v3329
      %3331 = vmatmul.bf16.gmra.mxu0 %v2130
      %v3332 = vpop.f32.mrf.mxu0
      %v3333 = vadd.f32 %v3244, %v3332
      %v3334 = vpop.f32.mrf.mxu0
      %v3335 = vadd.f32 %v3246, %v3334
      %3336 = vmatmul.bf16.gmra.mxu0 %v2131
      %v3337 = vpop.f32.mrf.mxu0
      %v3338 = vadd.f32 %v3249, %v3337
      %v3339 = vpop.f32.mrf.mxu0
      %v3340 = vadd.f32 %v3251, %v3339
      %3341 = vmatmul.bf16.gmra.mxu0 %v2132
      %v3342 = vpop.f32.mrf.mxu0
      %v3343 = vadd.f32 %v3254, %v3342
      %v3344 = vpop.f32.mrf.mxu0
      %v3345 = vadd.f32 %v3256, %v3344
      %3346 = vmatmul.bf16.gmra.mxu0 %v2133
      %v3347 = vpop.f32.mrf.mxu0
      %v3348 = vadd.f32 %v3259, %v3347
      %v3349 = vpop.f32.mrf.mxu0
      %v3350 = vadd.f32 %v3261, %v3349
      %3351 = vmatmul.bf16.gmra.mxu0 %v2134
      %v3352 = vpop.f32.mrf.mxu0
      %v3353 = vadd.f32 %v3264, %v3352
      %v3354 = vpop.f32.mrf.mxu0
      %v3355 = vadd.f32 %v3266, %v3354
      %3356 = vmatmul.bf16.gmra.mxu0 %v2135
      %v3357 = vpop.f32.mrf.mxu0
      %v3358 = vadd.f32 %v3269, %v3357
      %v3359 = vpop.f32.mrf.mxu0
      %v3360 = vadd.f32 %v3271, %v3359
      %3361 = vmatmul.bf16.gmra.mxu0 %v2136
      %v3362 = vpop.f32.mrf.mxu0
      %v3363 = vadd.f32 %v3274, %v3362
      %v3364 = vpop.f32.mrf.mxu0
      %v3365 = vadd.f32 %v3276, %v3364
      %3366 = vmatmul.bf16.gmra.mxu0 %v2137
      %v3367 = vpop.f32.mrf.mxu0
      %v3368 = vadd.f32 %v3279, %v3367
      %v3369 = vpop.f32.mrf.mxu0
      %v3370 = vadd.f32 %v3281, %v3369
      %3371 = vmatmul.bf16.gmra.mxu0 %v2138
      %v3372 = vpop.f32.mrf.mxu0
      %v3373 = vadd.f32 %v3284, %v3372
      %v3374 = vpop.f32.mrf.mxu0
      %v3375 = vadd.f32 %v3286, %v3374
      %3376 = vmatmul.bf16.gmra.mxu0 %v2139
      %v3377 = vpop.f32.mrf.mxu0
      %v3378 = vadd.f32 %v3289, %v3377
      %v3379 = vpop.f32.mrf.mxu0
      %v3380 = vadd.f32 %v3291, %v3379
      %3381 = vmatmul.bf16.gmra.mxu0 %v2140
      %v3382 = vpop.f32.mrf.mxu0
      %v3383 = vadd.f32 %v3294, %v3382
      %v3384 = vpop.f32.mrf.mxu0
      %v3385 = vadd.f32 %v3296, %v3384
      %3386 = vmatmul.bf16.gmra.mxu0 %v2141
      %v3387 = vpop.f32.mrf.mxu0
      %v3388 = vadd.f32 %v3299, %v3387
      %v3389 = vpop.f32.mrf.mxu0
      %v3390 = vadd.f32 %v3301, %v3389
      %3391 = vdwg.mxu0
      %3392 = vmatpush.bf16.msra.mxu0 %v3093
      %3393 = vmatpush.bf16.msra.mxu0 %v3092
      %3394 = vmatpush.bf16.msra.mxu0 %v3091
      %3395 = vmatpush.bf16.msra.mxu0 %v3090
      %3396 = vmatpush.bf16.msra.mxu0 %v3089
      %3397 = vmatpush.bf16.msra.mxu0 %v3088
      %3398 = vmatpush.bf16.msra.mxu0 %v3087
      %3399 = vmatpush.bf16.msra.mxu0 %v3086
      %3400 = vmatmul.bf16.gmra.mxu0 %v2190
      %v3401 = vpop.f32.mrf.mxu0
      %v3402 = vadd.f32 %v3313, %v3401
      %v3403 = vpop.f32.mrf.mxu0
      %v3404 = vadd.f32 %v3315, %v3403
      %3405 = vmatmul.bf16.gmra.mxu0 %v2191
      %v3406 = vpop.f32.mrf.mxu0
      %v3407 = vadd.f32 %v3318, %v3406
      %v3408 = vpop.f32.mrf.mxu0
      %v3409 = vadd.f32 %v3320, %v3408
      %3410 = vmatmul.bf16.gmra.mxu0 %v2192
      %v3411 = vpop.f32.mrf.mxu0
      %v3412 = vadd.f32 %v3323, %v3411
      %v3413 = vpop.f32.mrf.mxu0
      %v3414 = vadd.f32 %v3325, %v3413
      %3415 = vmatmul.bf16.gmra.mxu0 %v2193
      %v3416 = vpop.f32.mrf.mxu0
      %v3417 = vadd.f32 %v3328, %v3416
      %v3418 = vpop.f32.mrf.mxu0
      %v3419 = vadd.f32 %v3330, %v3418
      %3420 = vmatmul.bf16.gmra.mxu0 %v2194
      %v3421 = vpop.f32.mrf.mxu0
      %v3422 = vadd.f32 %v3333, %v3421
      %v3423 = vpop.f32.mrf.mxu0
      %v3424 = vadd.f32 %v3335, %v3423
      %3425 = vmatmul.bf16.gmra.mxu0 %v2195
      %v3426 = vpop.f32.mrf.mxu0
      %v3427 = vadd.f32 %v3338, %v3426
      %v3428 = vpop.f32.mrf.mxu0
      %v3429 = vadd.f32 %v3340, %v3428
      %3430 = vmatmul.bf16.gmra.mxu0 %v2196
      %v3431 = vpop.f32.mrf.mxu0
      %v3432 = vadd.f32 %v3343, %v3431
      %v3433 = vpop.f32.mrf.mxu0
      %v3434 = vadd.f32 %v3345, %v3433
      %3435 = vmatmul.bf16.gmra.mxu0 %v2197
      %v3436 = vpop.f32.mrf.mxu0
      %v3437 = vadd.f32 %v3348, %v3436
      %v3438 = vpop.f32.mrf.mxu0
      %v3439 = vadd.f32 %v3350, %v3438
      %3440 = vmatmul.bf16.gmra.mxu0 %v2198
      %v3441 = vpop.f32.mrf.mxu0
      %v3442 = vadd.f32 %v3353, %v3441
      %v3443 = vpop.f32.mrf.mxu0
      %v3444 = vadd.f32 %v3355, %v3443
      %3445 = vmatmul.bf16.gmra.mxu0 %v2199
      %v3446 = vpop.f32.mrf.mxu0
      %v3447 = vadd.f32 %v3358, %v3446
      %v3448 = vpop.f32.mrf.mxu0
      %v3449 = vadd.f32 %v3360, %v3448
      %3450 = vmatmul.bf16.gmra.mxu0 %v2200
      %v3451 = vpop.f32.mrf.mxu0
      %v3452 = vadd.f32 %v3363, %v3451
      %v3453 = vpop.f32.mrf.mxu0
      %v3454 = vadd.f32 %v3365, %v3453
      %3455 = vmatmul.bf16.gmra.mxu0 %v2201
      %v3456 = vpop.f32.mrf.mxu0
      %v3457 = vadd.f32 %v3368, %v3456
      %v3458 = vpop.f32.mrf.mxu0
      %v3459 = vadd.f32 %v3370, %v3458
      %3460 = vmatmul.bf16.gmra.mxu0 %v2202
      %v3461 = vpop.f32.mrf.mxu0
      %v3462 = vadd.f32 %v3373, %v3461
      %v3463 = vpop.f32.mrf.mxu0
      %v3464 = vadd.f32 %v3375, %v3463
      %3465 = vmatmul.bf16.gmra.mxu0 %v2203
      %v3466 = vpop.f32.mrf.mxu0
      %v3467 = vadd.f32 %v3378, %v3466
      %v3468 = vpop.f32.mrf.mxu0
      %v3469 = vadd.f32 %v3380, %v3468
      %3470 = vmatmul.bf16.gmra.mxu0 %v2204
      %v3471 = vpop.f32.mrf.mxu0
      %v3472 = vadd.f32 %v3383, %v3471
      %v3473 = vpop.f32.mrf.mxu0
      %v3474 = vadd.f32 %v3385, %v3473
      %3475 = vmatmul.bf16.gmra.mxu0 %v2205
      %v3476 = vpop.f32.mrf.mxu0
      %v3477 = vadd.f32 %v3388, %v3476
      %v3478 = vpop.f32.mrf.mxu0
      %v3479 = vadd.f32 %v3390, %v3478
      %3480 = vdwg.mxu0
      %3481 = vmatpush.bf16.msra.mxu0 %v3101
      %3482 = vmatpush.bf16.msra.mxu0 %v3100
      %3483 = vmatpush.bf16.msra.mxu0 %v3099
      %3484 = vmatpush.bf16.msra.mxu0 %v3098
      %3485 = vmatpush.bf16.msra.mxu0 %v3097
      %3486 = vmatpush.bf16.msra.mxu0 %v3096
      %3487 = vmatpush.bf16.msra.mxu0 %v3095
      %3488 = vmatpush.bf16.msra.mxu0 %v3094
      %3489 = vmatmul.bf16.gmra.mxu0 %v2270
      %v3490 = vpop.f32.mrf.mxu0
      %v3491 = vadd.f32 %v3402, %v3490
      %v3492 = vpop.f32.mrf.mxu0
      %v3493 = vadd.f32 %v3404, %v3492
      %3494 = vmatmul.bf16.gmra.mxu0 %v2271
      %v3495 = vpop.f32.mrf.mxu0
      %v3496 = vadd.f32 %v3407, %v3495
      %v3497 = vpop.f32.mrf.mxu0
      %v3498 = vadd.f32 %v3409, %v3497
      %3499 = vmatmul.bf16.gmra.mxu0 %v2272
      %v3500 = vpop.f32.mrf.mxu0
      %v3501 = vadd.f32 %v3412, %v3500
      %v3502 = vpop.f32.mrf.mxu0
      %v3503 = vadd.f32 %v3414, %v3502
      %3504 = vmatmul.bf16.gmra.mxu0 %v2273
      %v3505 = vpop.f32.mrf.mxu0
      %v3506 = vadd.f32 %v3417, %v3505
      %v3507 = vpop.f32.mrf.mxu0
      %v3508 = vadd.f32 %v3419, %v3507
      %3509 = vmatmul.bf16.gmra.mxu0 %v2274
      %v3510 = vpop.f32.mrf.mxu0
      %v3511 = vadd.f32 %v3422, %v3510
      %v3512 = vpop.f32.mrf.mxu0
      %v3513 = vadd.f32 %v3424, %v3512
      %3514 = vmatmul.bf16.gmra.mxu0 %v2275
      %v3515 = vpop.f32.mrf.mxu0
      %v3516 = vadd.f32 %v3427, %v3515
      %v3517 = vpop.f32.mrf.mxu0
      %v3518 = vadd.f32 %v3429, %v3517
      %3519 = vmatmul.bf16.gmra.mxu0 %v2276
      %v3520 = vpop.f32.mrf.mxu0
      %v3521 = vadd.f32 %v3432, %v3520
      %v3522 = vpop.f32.mrf.mxu0
      %v3523 = vadd.f32 %v3434, %v3522
      %3524 = vmatmul.bf16.gmra.mxu0 %v2277
      %v3525 = vpop.f32.mrf.mxu0
      %v3526 = vadd.f32 %v3437, %v3525
      %v3527 = vpop.f32.mrf.mxu0
      %v3528 = vadd.f32 %v3439, %v3527
      %3529 = vmatmul.bf16.gmra.mxu0 %v2278
      %v3530 = vpop.f32.mrf.mxu0
      %v3531 = vadd.f32 %v3442, %v3530
      %v3532 = vpop.f32.mrf.mxu0
      %v3533 = vadd.f32 %v3444, %v3532
      %3534 = vmatmul.bf16.gmra.mxu0 %v2279
      %v3535 = vpop.f32.mrf.mxu0
      %v3536 = vadd.f32 %v3447, %v3535
      %v3537 = vpop.f32.mrf.mxu0
      %v3538 = vadd.f32 %v3449, %v3537
      %3539 = vmatmul.bf16.gmra.mxu0 %v2280
      %v3540 = vpop.f32.mrf.mxu0
      %v3541 = vadd.f32 %v3452, %v3540
      %v3542 = vpop.f32.mrf.mxu0
      %v3543 = vadd.f32 %v3454, %v3542
      %3544 = vmatmul.bf16.gmra.mxu0 %v2281
      %v3545 = vpop.f32.mrf.mxu0
      %v3546 = vadd.f32 %v3457, %v3545
      %v3547 = vpop.f32.mrf.mxu0
      %v3548 = vadd.f32 %v3459, %v3547
      %3549 = vmatmul.bf16.gmra.mxu0 %v2282
      %v3550 = vpop.f32.mrf.mxu0
      %v3551 = vadd.f32 %v3462, %v3550
      %v3552 = vpop.f32.mrf.mxu0
      %v3553 = vadd.f32 %v3464, %v3552
      %3554 = vmatmul.bf16.gmra.mxu0 %v2283
      %v3555 = vpop.f32.mrf.mxu0
      %v3556 = vadd.f32 %v3467, %v3555
      %v3557 = vpop.f32.mrf.mxu0
      %v3558 = vadd.f32 %v3469, %v3557
      %3559 = vmatmul.bf16.gmra.mxu0 %v2284
      %v3560 = vpop.f32.mrf.mxu0
      %v3561 = vadd.f32 %v3472, %v3560
      %v3562 = vpop.f32.mrf.mxu0
      %v3563 = vadd.f32 %v3474, %v3562
      %3564 = vmatmul.bf16.gmra.mxu0 %v2285
      %v3565 = vpop.f32.mrf.mxu0
      %v3566 = vadd.f32 %v3477, %v3565
      %v3567 = vpop.f32.mrf.mxu0
      %v3568 = vadd.f32 %v3479, %v3567
      %3569 = vdwg.mxu0
      %3570 = vmatpush.bf16.msra.mxu0 %v3109
      %3571 = vmatpush.bf16.msra.mxu0 %v3108
      %3572 = vmatpush.bf16.msra.mxu0 %v3107
      %3573 = vmatpush.bf16.msra.mxu0 %v3106
      %3574 = vmatpush.bf16.msra.mxu0 %v3105
      %3575 = vmatpush.bf16.msra.mxu0 %v3104
      %3576 = vmatpush.bf16.msra.mxu0 %v3103
      %3577 = vmatpush.bf16.msra.mxu0 %v3102
      %3578 = vmatmul.bf16.gmra.mxu0 %v2334
      %v3579 = vpop.f32.mrf.mxu0
      %v3580 = vadd.f32 %v3491, %v3579
      %v3581 = vpop.f32.mrf.mxu0
      %v3582 = vadd.f32 %v3493, %v3581
      %3583 = vmatmul.bf16.gmra.mxu0 %v2335
      %v3584 = vpop.f32.mrf.mxu0
      %v3585 = vadd.f32 %v3496, %v3584
      %v3586 = vpop.f32.mrf.mxu0
      %v3587 = vadd.f32 %v3498, %v3586
      %3588 = vmatmul.bf16.gmra.mxu0 %v2336
      %v3589 = vpop.f32.mrf.mxu0
      %v3590 = vadd.f32 %v3501, %v3589
      %v3591 = vpop.f32.mrf.mxu0
      %v3592 = vadd.f32 %v3503, %v3591
      %3593 = vmatmul.bf16.gmra.mxu0 %v2337
      %v3594 = vpop.f32.mrf.mxu0
      %v3595 = vadd.f32 %v3506, %v3594
      %v3596 = vpop.f32.mrf.mxu0
      %v3597 = vadd.f32 %v3508, %v3596
      %3598 = vmatmul.bf16.gmra.mxu0 %v2338
      %v3599 = vpop.f32.mrf.mxu0
      %v3600 = vadd.f32 %v3511, %v3599
      %v3601 = vpop.f32.mrf.mxu0
      %v3602 = vadd.f32 %v3513, %v3601
      %3603 = vmatmul.bf16.gmra.mxu0 %v2339
      %v3604 = vpop.f32.mrf.mxu0
      %v3605 = vadd.f32 %v3516, %v3604
      %v3606 = vpop.f32.mrf.mxu0
      %v3607 = vadd.f32 %v3518, %v3606
      %3608 = vmatmul.bf16.gmra.mxu0 %v2340
      %v3609 = vpop.f32.mrf.mxu0
      %v3610 = vadd.f32 %v3521, %v3609
      %v3611 = vpop.f32.mrf.mxu0
      %v3612 = vadd.f32 %v3523, %v3611
      %3613 = vmatmul.bf16.gmra.mxu0 %v2341
      %v3614 = vpop.f32.mrf.mxu0
      %v3615 = vadd.f32 %v3526, %v3614
      %v3616 = vpop.f32.mrf.mxu0
      %v3617 = vadd.f32 %v3528, %v3616
      %3618 = vmatmul.bf16.gmra.mxu0 %v2342
      %v3619 = vpop.f32.mrf.mxu0
      %v3620 = vadd.f32 %v3531, %v3619
      %v3621 = vpop.f32.mrf.mxu0
      %v3622 = vadd.f32 %v3533, %v3621
      %3623 = vmatmul.bf16.gmra.mxu0 %v2343
      %v3624 = vpop.f32.mrf.mxu0
      %v3625 = vadd.f32 %v3536, %v3624
      %v3626 = vpop.f32.mrf.mxu0
      %v3627 = vadd.f32 %v3538, %v3626
      %3628 = vmatmul.bf16.gmra.mxu0 %v2344
      %v3629 = vpop.f32.mrf.mxu0
      %v3630 = vadd.f32 %v3541, %v3629
      %v3631 = vpop.f32.mrf.mxu0
      %v3632 = vadd.f32 %v3543, %v3631
      %3633 = vmatmul.bf16.gmra.mxu0 %v2345
      %v3634 = vpop.f32.mrf.mxu0
      %v3635 = vadd.f32 %v3546, %v3634
      %v3636 = vpop.f32.mrf.mxu0
      %v3637 = vadd.f32 %v3548, %v3636
      %3638 = vmatmul.bf16.gmra.mxu0 %v2346
      %v3639 = vpop.f32.mrf.mxu0
      %v3640 = vadd.f32 %v3551, %v3639
      %v3641 = vpop.f32.mrf.mxu0
      %v3642 = vadd.f32 %v3553, %v3641
      %3643 = vmatmul.bf16.gmra.mxu0 %v2347
      %v3644 = vpop.f32.mrf.mxu0
      %v3645 = vadd.f32 %v3556, %v3644
      %v3646 = vpop.f32.mrf.mxu0
      %v3647 = vadd.f32 %v3558, %v3646
      %3648 = vmatmul.bf16.gmra.mxu0 %v2348
      %v3649 = vpop.f32.mrf.mxu0
      %v3650 = vadd.f32 %v3561, %v3649
      %v3651 = vpop.f32.mrf.mxu0
      %v3652 = vadd.f32 %v3563, %v3651
      %3653 = vmatmul.bf16.gmra.mxu0 %v2349
      %v3654 = vpop.f32.mrf.mxu0
      %v3655 = vadd.f32 %v3566, %v3654
      %v3656 = vpop.f32.mrf.mxu0
      %v3657 = vadd.f32 %v3568, %v3656
      %3658 = vdwg.mxu0
      %3659 = vmatpush.bf16.msra.mxu0 %v3117
      %3660 = vmatpush.bf16.msra.mxu0 %v3116
      %3661 = vmatpush.bf16.msra.mxu0 %v3115
      %3662 = vmatpush.bf16.msra.mxu0 %v3114
      %3663 = vmatpush.bf16.msra.mxu0 %v3113
      %3664 = vmatpush.bf16.msra.mxu0 %v3112
      %3665 = vmatpush.bf16.msra.mxu0 %v3111
      %3666 = vmatpush.bf16.msra.mxu0 %v3110
      %3667 = vmatmul.bf16.gmra.mxu0 %v2398
      %v3668 = vpop.f32.mrf.mxu0
      %v3669 = vadd.f32 %v3580, %v3668
      %v3670 = vpop.f32.mrf.mxu0
      %v3671 = vadd.f32 %v3582, %v3670
      %3672 = vmatmul.bf16.gmra.mxu0 %v2399
      %v3673 = vpop.f32.mrf.mxu0
      %v3674 = vadd.f32 %v3585, %v3673
      %v3675 = vpop.f32.mrf.mxu0
      %v3676 = vadd.f32 %v3587, %v3675
      %3677 = vmatmul.bf16.gmra.mxu0 %v2400
      %v3678 = vpop.f32.mrf.mxu0
      %v3679 = vadd.f32 %v3590, %v3678
      %v3680 = vpop.f32.mrf.mxu0
      %v3681 = vadd.f32 %v3592, %v3680
      %3682 = vmatmul.bf16.gmra.mxu0 %v2401
      %v3683 = vpop.f32.mrf.mxu0
      %v3684 = vadd.f32 %v3595, %v3683
      %v3685 = vpop.f32.mrf.mxu0
      %v3686 = vadd.f32 %v3597, %v3685
      %3687 = vmatmul.bf16.gmra.mxu0 %v2402
      %v3688 = vpop.f32.mrf.mxu0
      %v3689 = vadd.f32 %v3600, %v3688
      %v3690 = vpop.f32.mrf.mxu0
      %v3691 = vadd.f32 %v3602, %v3690
      %3692 = vmatmul.bf16.gmra.mxu0 %v2403
      %v3693 = vpop.f32.mrf.mxu0
      %v3694 = vadd.f32 %v3605, %v3693
      %v3695 = vpop.f32.mrf.mxu0
      %v3696 = vadd.f32 %v3607, %v3695
      %3697 = vmatmul.bf16.gmra.mxu0 %v2404
      %v3698 = vpop.f32.mrf.mxu0
      %v3699 = vadd.f32 %v3610, %v3698
      %v3700 = vpop.f32.mrf.mxu0
      %v3701 = vadd.f32 %v3612, %v3700
      %3702 = vmatmul.bf16.gmra.mxu0 %v2405
      %v3703 = vpop.f32.mrf.mxu0
      %v3704 = vadd.f32 %v3615, %v3703
      %v3705 = vpop.f32.mrf.mxu0
      %v3706 = vadd.f32 %v3617, %v3705
      %3707 = vmatmul.bf16.gmra.mxu0 %v2406
      %v3708 = vpop.f32.mrf.mxu0
      %v3709 = vadd.f32 %v3620, %v3708
      %v3710 = vpop.f32.mrf.mxu0
      %v3711 = vadd.f32 %v3622, %v3710
      %3712 = vmatmul.bf16.gmra.mxu0 %v2407
      %v3713 = vpop.f32.mrf.mxu0
      %v3714 = vadd.f32 %v3625, %v3713
      %v3715 = vpop.f32.mrf.mxu0
      %v3716 = vadd.f32 %v3627, %v3715
      %3717 = vmatmul.bf16.gmra.mxu0 %v2408
      %v3718 = vpop.f32.mrf.mxu0
      %v3719 = vadd.f32 %v3630, %v3718
      %v3720 = vpop.f32.mrf.mxu0
      %v3721 = vadd.f32 %v3632, %v3720
      %3722 = vmatmul.bf16.gmra.mxu0 %v2409
      %v3723 = vpop.f32.mrf.mxu0
      %v3724 = vadd.f32 %v3635, %v3723
      %v3725 = vpop.f32.mrf.mxu0
      %v3726 = vadd.f32 %v3637, %v3725
      %3727 = vmatmul.bf16.gmra.mxu0 %v2410
      %v3728 = vpop.f32.mrf.mxu0
      %v3729 = vadd.f32 %v3640, %v3728
      %v3730 = vpop.f32.mrf.mxu0
      %v3731 = vadd.f32 %v3642, %v3730
      %3732 = vmatmul.bf16.gmra.mxu0 %v2411
      %v3733 = vpop.f32.mrf.mxu0
      %v3734 = vadd.f32 %v3645, %v3733
      %v3735 = vpop.f32.mrf.mxu0
      %v3736 = vadd.f32 %v3647, %v3735
      %3737 = vmatmul.bf16.gmra.mxu0 %v2412
      %v3738 = vpop.f32.mrf.mxu0
      %v3739 = vadd.f32 %v3650, %v3738
      %v3740 = vpop.f32.mrf.mxu0
      %v3741 = vadd.f32 %v3652, %v3740
      %3742 = vmatmul.bf16.gmra.mxu0 %v2413
      %v3743 = vpop.f32.mrf.mxu0
      %v3744 = vadd.f32 %v3655, %v3743
      %v3745 = vpop.f32.mrf.mxu0
      %v3746 = vadd.f32 %v3657, %v3745
      %3747 = vdwg.mxu0
      %3748 = vmatpush.bf16.msra.mxu0 %v3125
      %3749 = vmatpush.bf16.msra.mxu0 %v3124
      %3750 = vmatpush.bf16.msra.mxu0 %v3123
      %3751 = vmatpush.bf16.msra.mxu0 %v3122
      %3752 = vmatpush.bf16.msra.mxu0 %v3121
      %3753 = vmatpush.bf16.msra.mxu0 %v3120
      %3754 = vmatpush.bf16.msra.mxu0 %v3119
      %3755 = vmatpush.bf16.msra.mxu0 %v3118
      %3756 = vmatmul.bf16.gmra.mxu0 %v2478
      %v3757 = vpop.f32.mrf.mxu0
      %v3758 = vadd.f32 %v3669, %v3757
      %v3759 = vpop.f32.mrf.mxu0
      %v3760 = vadd.f32 %v3671, %v3759
      %3761 = vmatmul.bf16.gmra.mxu0 %v2479
      %v3762 = vpop.f32.mrf.mxu0
      %v3763 = vadd.f32 %v3674, %v3762
      %v3764 = vpop.f32.mrf.mxu0
      %v3765 = vadd.f32 %v3676, %v3764
      %3766 = vmatmul.bf16.gmra.mxu0 %v2480
      %v3767 = vpop.f32.mrf.mxu0
      %v3768 = vadd.f32 %v3679, %v3767
      %v3769 = vpop.f32.mrf.mxu0
      %v3770 = vadd.f32 %v3681, %v3769
      %3771 = vmatmul.bf16.gmra.mxu0 %v2481
      %v3772 = vpop.f32.mrf.mxu0
      %v3773 = vadd.f32 %v3684, %v3772
      %v3774 = vpop.f32.mrf.mxu0
      %v3775 = vadd.f32 %v3686, %v3774
      %3776 = vmatmul.bf16.gmra.mxu0 %v2482
      %v3777 = vpop.f32.mrf.mxu0
      %v3778 = vadd.f32 %v3689, %v3777
      %v3779 = vpop.f32.mrf.mxu0
      %v3780 = vadd.f32 %v3691, %v3779
      %3781 = vmatmul.bf16.gmra.mxu0 %v2483
      %v3782 = vpop.f32.mrf.mxu0
      %v3783 = vadd.f32 %v3694, %v3782
      %v3784 = vpop.f32.mrf.mxu0
      %v3785 = vadd.f32 %v3696, %v3784
      %3786 = vmatmul.bf16.gmra.mxu0 %v2484
      %v3787 = vpop.f32.mrf.mxu0
      %v3788 = vadd.f32 %v3699, %v3787
      %v3789 = vpop.f32.mrf.mxu0
      %v3790 = vadd.f32 %v3701, %v3789
      %3791 = vmatmul.bf16.gmra.mxu0 %v2485
      %v3792 = vpop.f32.mrf.mxu0
      %v3793 = vadd.f32 %v3704, %v3792
      %v3794 = vpop.f32.mrf.mxu0
      %v3795 = vadd.f32 %v3706, %v3794
      %3796 = vmatmul.bf16.gmra.mxu0 %v2486
      %v3797 = vpop.f32.mrf.mxu0
      %v3798 = vadd.f32 %v3709, %v3797
      %v3799 = vpop.f32.mrf.mxu0
      %v3800 = vadd.f32 %v3711, %v3799
      %3801 = vmatmul.bf16.gmra.mxu0 %v2487
      %v3802 = vpop.f32.mrf.mxu0
      %v3803 = vadd.f32 %v3714, %v3802
      %v3804 = vpop.f32.mrf.mxu0
      %v3805 = vadd.f32 %v3716, %v3804
      %3806 = vmatmul.bf16.gmra.mxu0 %v2488
      %v3807 = vpop.f32.mrf.mxu0
      %v3808 = vadd.f32 %v3719, %v3807
      %v3809 = vpop.f32.mrf.mxu0
      %v3810 = vadd.f32 %v3721, %v3809
      %3811 = vmatmul.bf16.gmra.mxu0 %v2489
      %v3812 = vpop.f32.mrf.mxu0
      %v3813 = vadd.f32 %v3724, %v3812
      %v3814 = vpop.f32.mrf.mxu0
      %v3815 = vadd.f32 %v3726, %v3814
      %3816 = vmatmul.bf16.gmra.mxu0 %v2490
      %v3817 = vpop.f32.mrf.mxu0
      %v3818 = vadd.f32 %v3729, %v3817
      %v3819 = vpop.f32.mrf.mxu0
      %v3820 = vadd.f32 %v3731, %v3819
      %3821 = vmatmul.bf16.gmra.mxu0 %v2491
      %v3822 = vpop.f32.mrf.mxu0
      %v3823 = vadd.f32 %v3734, %v3822
      %v3824 = vpop.f32.mrf.mxu0
      %v3825 = vadd.f32 %v3736, %v3824
      %3826 = vmatmul.bf16.gmra.mxu0 %v2492
      %v3827 = vpop.f32.mrf.mxu0
      %v3828 = vadd.f32 %v3739, %v3827
      %v3829 = vpop.f32.mrf.mxu0
      %v3830 = vadd.f32 %v3741, %v3829
      %3831 = vmatmul.bf16.gmra.mxu0 %v2493
      %v3832 = vpop.f32.mrf.mxu0
      %v3833 = vadd.f32 %v3744, %v3832
      %v3834 = vpop.f32.mrf.mxu0
      %v3835 = vadd.f32 %v3746, %v3834
      %3836 = vdwg.mxu0
      %3837 = vmatpush.bf16.msra.mxu0 %v3133
      %3838 = vmatpush.bf16.msra.mxu0 %v3132
      %3839 = vmatpush.bf16.msra.mxu0 %v3131
      %3840 = vmatpush.bf16.msra.mxu0 %v3130
      %3841 = vmatpush.bf16.msra.mxu0 %v3129
      %3842 = vmatpush.bf16.msra.mxu0 %v3128
      %3843 = vmatpush.bf16.msra.mxu0 %v3127
      %3844 = vmatpush.bf16.msra.mxu0 %v3126
      %3845 = vmatmul.bf16.gmra.mxu0 %v2542
      %v3846 = vpop.f32.mrf.mxu0
      %v3847 = vadd.f32 %v3758, %v3846
      %v3848 = vpop.f32.mrf.mxu0
      %v3849 = vadd.f32 %v3760, %v3848
      %3850 = vmatmul.bf16.gmra.mxu0 %v2543
      %v3851 = vpop.f32.mrf.mxu0
      %v3852 = vadd.f32 %v3763, %v3851
      %v3853 = vpop.f32.mrf.mxu0
      %v3854 = vadd.f32 %v3765, %v3853
      %3855 = vmatmul.bf16.gmra.mxu0 %v2544
      %v3856 = vpop.f32.mrf.mxu0
      %v3857 = vadd.f32 %v3768, %v3856
      %v3858 = vpop.f32.mrf.mxu0
      %v3859 = vadd.f32 %v3770, %v3858
      %3860 = vmatmul.bf16.gmra.mxu0 %v2545
      %v3861 = vpop.f32.mrf.mxu0
      %v3862 = vadd.f32 %v3773, %v3861
      %v3863 = vpop.f32.mrf.mxu0
      %v3864 = vadd.f32 %v3775, %v3863
      %3865 = vmatmul.bf16.gmra.mxu0 %v2546
      %v3866 = vpop.f32.mrf.mxu0
      %v3867 = vadd.f32 %v3778, %v3866
      %v3868 = vpop.f32.mrf.mxu0
      %v3869 = vadd.f32 %v3780, %v3868
      %3870 = vmatmul.bf16.gmra.mxu0 %v2547
      %v3871 = vpop.f32.mrf.mxu0
      %v3872 = vadd.f32 %v3783, %v3871
      %v3873 = vpop.f32.mrf.mxu0
      %v3874 = vadd.f32 %v3785, %v3873
      %3875 = vmatmul.bf16.gmra.mxu0 %v2548
      %v3876 = vpop.f32.mrf.mxu0
      %v3877 = vadd.f32 %v3788, %v3876
      %v3878 = vpop.f32.mrf.mxu0
      %v3879 = vadd.f32 %v3790, %v3878
      %3880 = vmatmul.bf16.gmra.mxu0 %v2549
      %v3881 = vpop.f32.mrf.mxu0
      %v3882 = vadd.f32 %v3793, %v3881
      %v3883 = vpop.f32.mrf.mxu0
      %v3884 = vadd.f32 %v3795, %v3883
      %3885 = vmatmul.bf16.gmra.mxu0 %v2550
      %v3886 = vpop.f32.mrf.mxu0
      %v3887 = vadd.f32 %v3798, %v3886
      %v3888 = vpop.f32.mrf.mxu0
      %v3889 = vadd.f32 %v3800, %v3888
      %3890 = vmatmul.bf16.gmra.mxu0 %v2551
      %v3891 = vpop.f32.mrf.mxu0
      %v3892 = vadd.f32 %v3803, %v3891
      %v3893 = vpop.f32.mrf.mxu0
      %v3894 = vadd.f32 %v3805, %v3893
      %3895 = vmatmul.bf16.gmra.mxu0 %v2552
      %v3896 = vpop.f32.mrf.mxu0
      %v3897 = vadd.f32 %v3808, %v3896
      %v3898 = vpop.f32.mrf.mxu0
      %v3899 = vadd.f32 %v3810, %v3898
      %3900 = vmatmul.bf16.gmra.mxu0 %v2553
      %v3901 = vpop.f32.mrf.mxu0
      %v3902 = vadd.f32 %v3813, %v3901
      %v3903 = vpop.f32.mrf.mxu0
      %v3904 = vadd.f32 %v3815, %v3903
      %3905 = vmatmul.bf16.gmra.mxu0 %v2554
      %v3906 = vpop.f32.mrf.mxu0
      %v3907 = vadd.f32 %v3818, %v3906
      %v3908 = vpop.f32.mrf.mxu0
      %v3909 = vadd.f32 %v3820, %v3908
      %3910 = vmatmul.bf16.gmra.mxu0 %v2555
      %v3911 = vpop.f32.mrf.mxu0
      %v3912 = vadd.f32 %v3823, %v3911
      %v3913 = vpop.f32.mrf.mxu0
      %v3914 = vadd.f32 %v3825, %v3913
      %3915 = vmatmul.bf16.gmra.mxu0 %v2556
      %v3916 = vpop.f32.mrf.mxu0
      %v3917 = vadd.f32 %v3828, %v3916
      %v3918 = vpop.f32.mrf.mxu0
      %v3919 = vadd.f32 %v3830, %v3918
      %3920 = vmatmul.bf16.gmra.mxu0 %v2557
      %v3921 = vpop.f32.mrf.mxu0
      %v3922 = vadd.f32 %v3833, %v3921
      %v3923 = vpop.f32.mrf.mxu0
      %v3924 = vadd.f32 %v3835, %v3923
      %3925 = vdwg.mxu0
      %3926 = vmatpush.bf16.msra.mxu0 %v3141
      %3927 = vmatpush.bf16.msra.mxu0 %v3140
      %3928 = vmatpush.bf16.msra.mxu0 %v3139
      %3929 = vmatpush.bf16.msra.mxu0 %v3138
      %3930 = vmatpush.bf16.msra.mxu0 %v3137
      %3931 = vmatpush.bf16.msra.mxu0 %v3136
      %3932 = vmatpush.bf16.msra.mxu0 %v3135
      %3933 = vmatpush.bf16.msra.mxu0 %v3134
      %3934 = vmatmul.bf16.gmra.mxu0 %v2606
      %v3935 = vpop.f32.mrf.mxu0
      %v3936 = vadd.f32 %v3847, %v3935
      %v3937 = vpop.f32.mrf.mxu0
      %v3938 = vadd.f32 %v3849, %v3937
      %3939 = vmatmul.bf16.gmra.mxu0 %v2607
      %v3940 = vpop.f32.mrf.mxu0
      %v3941 = vadd.f32 %v3852, %v3940
      %v3942 = vpop.f32.mrf.mxu0
      %v3943 = vadd.f32 %v3854, %v3942
      %3944 = vmatmul.bf16.gmra.mxu0 %v2608
      %v3945 = vpop.f32.mrf.mxu0
      %v3946 = vadd.f32 %v3857, %v3945
      %v3947 = vpop.f32.mrf.mxu0
      %v3948 = vadd.f32 %v3859, %v3947
      %3949 = vmatmul.bf16.gmra.mxu0 %v2609
      %v3950 = vpop.f32.mrf.mxu0
      %v3951 = vadd.f32 %v3862, %v3950
      %v3952 = vpop.f32.mrf.mxu0
      %v3953 = vadd.f32 %v3864, %v3952
      %3954 = vmatmul.bf16.gmra.mxu0 %v2610
      %v3955 = vpop.f32.mrf.mxu0
      %v3956 = vadd.f32 %v3867, %v3955
      %v3957 = vpop.f32.mrf.mxu0
      %v3958 = vadd.f32 %v3869, %v3957
      %3959 = vmatmul.bf16.gmra.mxu0 %v2611
      %v3960 = vpop.f32.mrf.mxu0
      %v3961 = vadd.f32 %v3872, %v3960
      %v3962 = vpop.f32.mrf.mxu0
      %v3963 = vadd.f32 %v3874, %v3962
      %3964 = vmatmul.bf16.gmra.mxu0 %v2612
      %v3965 = vpop.f32.mrf.mxu0
      %v3966 = vadd.f32 %v3877, %v3965
      %v3967 = vpop.f32.mrf.mxu0
      %v3968 = vadd.f32 %v3879, %v3967
      %3969 = vmatmul.bf16.gmra.mxu0 %v2613
      %v3970 = vpop.f32.mrf.mxu0
      %v3971 = vadd.f32 %v3882, %v3970
      %v3972 = vpop.f32.mrf.mxu0
      %v3973 = vadd.f32 %v3884, %v3972
      %3974 = vmatmul.bf16.gmra.mxu0 %v2614
      %v3975 = vpop.f32.mrf.mxu0
      %v3976 = vadd.f32 %v3887, %v3975
      %v3977 = vpop.f32.mrf.mxu0
      %v3978 = vadd.f32 %v3889, %v3977
      %3979 = vmatmul.bf16.gmra.mxu0 %v2615
      %v3980 = vpop.f32.mrf.mxu0
      %v3981 = vadd.f32 %v3892, %v3980
      %v3982 = vpop.f32.mrf.mxu0
      %v3983 = vadd.f32 %v3894, %v3982
      %3984 = vmatmul.bf16.gmra.mxu0 %v2616
      %v3985 = vpop.f32.mrf.mxu0
      %v3986 = vadd.f32 %v3897, %v3985
      %v3987 = vpop.f32.mrf.mxu0
      %v3988 = vadd.f32 %v3899, %v3987
      %3989 = vmatmul.bf16.gmra.mxu0 %v2617
      %v3990 = vpop.f32.mrf.mxu0
      %v3991 = vadd.f32 %v3902, %v3990
      %v3992 = vpop.f32.mrf.mxu0
      %v3993 = vadd.f32 %v3904, %v3992
      %3994 = vmatmul.bf16.gmra.mxu0 %v2618
      %v3995 = vpop.f32.mrf.mxu0
      %v3996 = vadd.f32 %v3907, %v3995
      %v3997 = vpop.f32.mrf.mxu0
      %v3998 = vadd.f32 %v3909, %v3997
      %3999 = vmatmul.bf16.gmra.mxu0 %v2619
      %v4000 = vpop.f32.mrf.mxu0
      %v4001 = vadd.f32 %v3912, %v4000
      %v4002 = vpop.f32.mrf.mxu0
      %v4003 = vadd.f32 %v3914, %v4002
      %4004 = vmatmul.bf16.gmra.mxu0 %v2620
      %v4005 = vpop.f32.mrf.mxu0
      %v4006 = vadd.f32 %v3917, %v4005
      %v4007 = vpop.f32.mrf.mxu0
      %v4008 = vadd.f32 %v3919, %v4007
      %4009 = vmatmul.bf16.gmra.mxu0 %v2621
      %v4010 = vpop.f32.mrf.mxu0
      %v4011 = vadd.f32 %v3922, %v4010
      %v4012 = vpop.f32.mrf.mxu0
      %v4013 = vadd.f32 %v3924, %v4012
      %4014 = vdwg.mxu0
      %v4015 = vpack.c.bf16 %v3936, %v3936
      %v4016 = vpack.c.bf16 %v3938, %v3938
      %v4017 = vpack.c.bf16 %v3941, %v3941
      %v4018 = vpack.c.bf16 %v3943, %v3943
      %v4019 = vpack.c.bf16 %v3946, %v3946
      %v4020 = vpack.c.bf16 %v3948, %v3948
      %v4021 = vpack.c.bf16 %v3951, %v3951
      %v4022 = vpack.c.bf16 %v3953, %v3953
      %v4023 = vpack.c.bf16 %v3956, %v3956
      %v4024 = vpack.c.bf16 %v3958, %v3958
      %v4025 = vpack.c.bf16 %v3961, %v3961
      %v4026 = vpack.c.bf16 %v3963, %v3963
      %v4027 = vpack.c.bf16 %v3966, %v3966
      %v4028 = vpack.c.bf16 %v3968, %v3968
      %v4029 = vpack.c.bf16 %v3971, %v3971
      %v4030 = vpack.c.bf16 %v3973, %v3973
      %v4031 = vpack.c.bf16 %v3976, %v3976
      %v4032 = vpack.c.bf16 %v3978, %v3978
      %v4033 = vpack.c.bf16 %v3981, %v3981
      %v4034 = vpack.c.bf16 %v3983, %v3983
      %v4035 = vpack.c.bf16 %v3986, %v3986
      %v4036 = vpack.c.bf16 %v3988, %v3988
      %v4037 = vpack.c.bf16 %v3991, %v3991
      %v4038 = vpack.c.bf16 %v3993, %v3993
      %v4039 = vpack.c.bf16 %v3996, %v3996
      %v4040 = vpack.c.bf16 %v3998, %v3998
      %v4041 = vpack.c.bf16 %v4001, %v4001
      %v4042 = vpack.c.bf16 %v4003, %v4003
      %v4043 = vpack.c.bf16 %v4006, %v4006
      %v4044 = vpack.c.bf16 %v4008, %v4008
      %v4045 = vpack.c.bf16 %v4011, %v4011
      %v4046 = vpack.c.bf16 %v4013, %v4013
      %4047 = vst [vmem:[%s177] sm:$0xf] %v4015
      %4048 = vst [vmem:[%s177 + $0x4] sm:$0xf] %v4016
      %4049 = vst [vmem:[%s177 + $0x8] sm:$0xf] %v4017
      %4050 = vst [vmem:[%s177 + $0xc] sm:$0xf] %v4018
      %4051 = vst [vmem:[%s177 + $0x10] sm:$0xf] %v4019
      %4052 = vst [vmem:[%s177 + $0x14] sm:$0xf] %v4020
      %4053 = vst [vmem:[%s177 + $0x18] sm:$0xf] %v4021
      %4054 = vst [vmem:[%s177 + $0x1c] sm:$0xf] %v4022
      %4055 = vst [vmem:[%s177 + $0x20] sm:$0xf] %v4023
      %4056 = vst [vmem:[%s177 + $0x24] sm:$0xf] %v4024
      %4057 = vst [vmem:[%s177 + $0x28] sm:$0xf] %v4025
      %4058 = vst [vmem:[%s177 + $0x2c] sm:$0xf] %v4026
      %4059 = vst [vmem:[%s177 + $0x30] sm:$0xf] %v4027
      %4060 = vst [vmem:[%s177 + $0x34] sm:$0xf] %v4028
      %4061 = vst [vmem:[%s177 + $0x38] sm:$0xf] %v4029
      %4062 = vst [vmem:[%s177 + $0x3c] sm:$0xf] %v4030
      %4063 = vst [vmem:[%s177 + $0x40] sm:$0xf] %v4031
      %4064 = vst [vmem:[%s177 + $0x44] sm:$0xf] %v4032
      %4065 = vst [vmem:[%s177 + $0x48] sm:$0xf] %v4033
      %4066 = vst [vmem:[%s177 + $0x4c] sm:$0xf] %v4034
      %4067 = vst [vmem:[%s177 + $0x50] sm:$0xf] %v4035
      %4068 = vst [vmem:[%s177 + $0x54] sm:$0xf] %v4036
      %4069 = vst [vmem:[%s177 + $0x58] sm:$0xf] %v4037
      %4070 = vst [vmem:[%s177 + $0x5c] sm:$0xf] %v4038
      %4071 = vst [vmem:[%s177 + $0x60] sm:$0xf] %v4039
      %4072 = vst [vmem:[%s177 + $0x64] sm:$0xf] %v4040
      %4073 = vst [vmem:[%s177 + $0x68] sm:$0xf] %v4041
      %4074 = vst [vmem:[%s177 + $0x6c] sm:$0xf] %v4042
      %4075 = vst [vmem:[%s177 + $0x70] sm:$0xf] %v4043
      %4076 = vst [vmem:[%s177 + $0x74] sm:$0xf] %v4044
      %4077 = vst [vmem:[%s177 + $0x78] sm:$0xf] %v4045
      %4078 = vst [vmem:[%s177 + $0x7c] sm:$0xf] %v4046
      %v4079 = vadd.f32 %v3936, %v3938
      %v4080 = vadd.f32 %v4079, %v3941
      %v4081 = vadd.f32 %v4080, %v3943
      %v4082 = vadd.f32 %v4081, %v3946
      %v4083 = vadd.f32 %v4082, %v3948
      %v4084 = vadd.f32 %v4083, %v3951
      %v4085 = vadd.f32 %v4084, %v3953
      %v4086 = vadd.f32 %v4085, %v3956
      %v4087 = vadd.f32 %v4086, %v3958
      %v4088 = vadd.f32 %v4087, %v3961
      %v4089 = vadd.f32 %v4088, %v3963
      %v4090 = vadd.f32 %v4089, %v3966
      %v4091 = vadd.f32 %v4090, %v3968
      %v4092 = vadd.f32 %v4091, %v3971
      %v4093 = vadd.f32 %v4092, %v3973
      %v4094 = vadd.f32 %v4093, %v3976
      %v4095 = vadd.f32 %v4094, %v3978
      %v4096 = vadd.f32 %v4095, %v3981
      %v4097 = vadd.f32 %v4096, %v3983
      %v4098 = vadd.f32 %v4097, %v3986
      %v4099 = vadd.f32 %v4098, %v3988
      %v4100 = vadd.f32 %v4099, %v3991
      %v4101 = vadd.f32 %v4100, %v3993
      %v4102 = vadd.f32 %v4101, %v3996
      %v4103 = vadd.f32 %v4102, %v3998
      %v4104 = vadd.f32 %v4103, %v4001
      %v4105 = vadd.f32 %v4104, %v4003
      %v4106 = vadd.f32 %v4105, %v4006
      %v4107 = vadd.f32 %v4106, %v4008
      %v4108 = vadd.f32 %v4107, %v4011
      %v4109 = vadd.f32 %v4108, %v4013
      %v4110 = vrot.slane %v4109, 4
      %v4111 = vadd.f32 %v4109, %v4110
      %v4112 = vrot.slane %v4111, 2
      %v4113 = vadd.f32 %v4111, %v4112
      %v4114 = vrot.slane %v4113, 1
      %v4115 = vadd.f32 %v4113, %v4114
      %v4116 = vmul.f32 %v3936, %v3936
      %v4117 = vmul.f32 %v3938, %v3938
      %v4118 = vmul.f32 %v3941, %v3941
      %v4119 = vmul.f32 %v3943, %v3943
      %v4120 = vmul.f32 %v3946, %v3946
      %v4121 = vmul.f32 %v3948, %v3948
      %v4122 = vmul.f32 %v3951, %v3951
      %v4123 = vmul.f32 %v3953, %v3953
      %v4124 = vmul.f32 %v3956, %v3956
      %v4125 = vmul.f32 %v3958, %v3958
      %v4126 = vmul.f32 %v3961, %v3961
      %v4127 = vmul.f32 %v3963, %v3963
      %v4128 = vmul.f32 %v3966, %v3966
      %v4129 = vmul.f32 %v3968, %v3968
      %v4130 = vmul.f32 %v3971, %v3971
      %v4131 = vmul.f32 %v3973, %v3973
      %v4132 = vmul.f32 %v3976, %v3976
      %v4133 = vmul.f32 %v3978, %v3978
      %v4134 = vmul.f32 %v3981, %v3981
      %v4135 = vmul.f32 %v3983, %v3983
      %v4136 = vmul.f32 %v3986, %v3986
      %v4137 = vmul.f32 %v3988, %v3988
      %v4138 = vmul.f32 %v3991, %v3991
      %v4139 = vmul.f32 %v3993, %v3993
      %v4140 = vmul.f32 %v3996, %v3996
      %v4141 = vmul.f32 %v3998, %v3998
      %v4142 = vmul.f32 %v4001, %v4001
      %v4143 = vmul.f32 %v4003, %v4003
      %v4144 = vmul.f32 %v4006, %v4006
      %v4145 = vmul.f32 %v4008, %v4008
      %v4146 = vmul.f32 %v4011, %v4011
      %v4147 = vmul.f32 %v4013, %v4013
      %v4148 = vadd.f32 %v4116, %v4117
      %v4149 = vadd.f32 %v4148, %v4118
      %v4150 = vadd.f32 %v4149, %v4119
      %v4151 = vadd.f32 %v4150, %v4120
      %v4152 = vadd.f32 %v4151, %v4121
      %v4153 = vadd.f32 %v4152, %v4122
      %v4154 = vadd.f32 %v4153, %v4123
      %v4155 = vadd.f32 %v4154, %v4124
      %v4156 = vadd.f32 %v4155, %v4125
      %v4157 = vadd.f32 %v4156, %v4126
      %v4158 = vadd.f32 %v4157, %v4127
      %v4159 = vadd.f32 %v4158, %v4128
      %v4160 = vadd.f32 %v4159, %v4129
      %v4161 = vadd.f32 %v4160, %v4130
      %v4162 = vadd.f32 %v4161, %v4131
      %v4163 = vadd.f32 %v4162, %v4132
      %v4164 = vadd.f32 %v4163, %v4133
      %v4165 = vadd.f32 %v4164, %v4134
      %v4166 = vadd.f32 %v4165, %v4135
      %v4167 = vadd.f32 %v4166, %v4136
      %v4168 = vadd.f32 %v4167, %v4137
      %v4169 = vadd.f32 %v4168, %v4138
      %v4170 = vadd.f32 %v4169, %v4139
      %v4171 = vadd.f32 %v4170, %v4140
      %v4172 = vadd.f32 %v4171, %v4141
      %v4173 = vadd.f32 %v4172, %v4142
      %v4174 = vadd.f32 %v4173, %v4143
      %v4175 = vadd.f32 %v4174, %v4144
      %v4176 = vadd.f32 %v4175, %v4145
      %v4177 = vadd.f32 %v4176, %v4146
      %v4178 = vadd.f32 %v4177, %v4147
      %v4179 = vrot.slane %v4178, 4
      %v4180 = vadd.f32 %v4178, %v4179
      %v4181 = vrot.slane %v4180, 2
      %v4182 = vadd.f32 %v4180, %v4181
      %v4183 = vrot.slane %v4182, 1
      %v4184 = vadd.f32 %v4182, %v4183
      %vm4185 = vcmask 1040384
      %v4186 = vsel %vm4185, %v4115, %v4184
      %4187 = vst [vmem:[%s181] sm:$0x3] %v4186
      %p4188 = scmp.lt.s32.totalorder %s15, 1
      %s4189 = scalar_select %p4188, %s15, 1
      %s4190 = smul.addr %s4189, 32
      %s4191 = smul.addr %s4190, 4
      %s4192 = scalar_lea.vmem %s2, %s4191
      %p4193 = scmp.lt.s32.totalorder %s15, 1
      %s4194 = scalar_select %p4193, %s15, 1
      %s4195 = smul.addr %s4194, 2
      %s4196 = scalar_lea.vmem %s3, %s4195
      // Predicated region
      $region29: #{da_module_forward.5} parent=27 // pred_check
        %p4197 = pneg %p80
      $region30: #{da_module_forward.5} parent=27 // pred_check_branch
        %4199 = sbr.rel (%p4197) target = $region32
      $region31: #{da_module_forward.5} parent=27 // pred_region
        _
      $region32: #{da_module_forward.5} parent=27 // pred_fallthru
        _
      // Predicated region
      $region33: #{da_module_forward.5} parent=27 // pred_check
        %p4200 = pneg %p106
      $region34: #{da_module_forward.5} parent=27 // pred_check_branch
        %4202 = sbr.rel (%p4200) target = $region36
      $region35: #{da_module_forward.5} parent=27 // pred_region
        _
      $region36: #{da_module_forward.5} parent=27 // pred_fallthru
        _
    $region28: #{da_module_forward.5} parent=5 // pred_fallthru
      _
    %p4203 = scmp.le.s32.totalorder 2, %s10
    // Predicated region
    $region37: #{da_module_forward.5} parent=5 // pred_check
      %p4204 = pneg %p4203
    $region38: #{da_module_forward.5} parent=5 // pred_check_branch
      %4206 = sbr.rel (%p4204) target = $region40
    $region39: #{da_module_forward.5} parent=5 // pred_region
      %s4207 = ssub.s32 %s10, 2
      // Predicated region
      $region41: #{da_module_forward.5} parent=39 // pred_check
        %p4208 = pneg %p86
      $region42: #{da_module_forward.5} parent=39 // pred_check_branch
        %4210 = sbr.rel (%p4208) target = $region44
      $region43: #{da_module_forward.5} parent=39 // pred_region
        %p4211 = scmp.lt.s32.totalorder %s16, 1
        %s4212 = scalar_select %p4211, %s16, 1
        %s4213 = smul.addr %s4212, 32
        %s4214 = smul.addr %s4213, 4
        %s4215 = scalar_lea.vmem %s2, %s4214
      $region44: #{da_module_forward.5} parent=39 // pred_fallthru
        _
      // Predicated region
      $region45: #{da_module_forward.5} parent=39 // pred_check
        %p4216 = pneg %p112
      $region46: #{da_module_forward.5} parent=39 // pred_check_branch
        %4218 = sbr.rel (%p4216) target = $region48
      $region47: #{da_module_forward.5} parent=39 // pred_region
        %p4219 = scmp.lt.s32.totalorder %s16, 1
        %s4220 = scalar_select %p4219, %s16, 1
        %s4221 = smul.addr %s4220, 2
        %s4222 = scalar_lea.vmem %s3, %s4221
      $region48: #{da_module_forward.5} parent=39 // pred_fallthru
        _
    $region40: #{da_module_forward.5} parent=5 // pred_fallthru
      _
  $region6: #{da_module_forward.5} parent=0 // loop_footer
    %s14 = sadd.s32 1, %s10
  $region7: #{da_module_forward.5} parent=0 // loop_footer_branch
    %9 = sbr.rel target = $region3
  $region8: #{da_module_forward.5} parent=0 // loop_exit
    _

</llo_original>
